<compile_context>
chip_gen: v6e
topology: v6e:2x2x1
jax: 0.10.0
libtpu: 0.0.40
codegen_flags: <defaults>
</compile_context>

<pallas_src>
import functools

import jax
import jax.numpy as jnp
from jax.experimental import pallas as pl
from jax.experimental.pallas import tpu as pltpu

_LANE = 128                   # lane width; Cout is padded to a multiple of this
_TM_MAX = 512                 # max row tile for the im2col matmul path
_MIN_K_PALLAS = 16            # below this contraction size -> fused XLA
_MIN_PALLAS_WORK = 2 << 20    # M*K*Cout_pad below this -> fused XLA (overhead)
_TAP_VMEM_BUDGET = 20 << 20   # conservative budget for the tap-fused path
_VMEM_LIMIT = 32 << 20        # explicit scoped-VMEM limit (<= v7x 64 MiB phys)


def _round_up(x, m):
    return ((x + m - 1) // m) * m


@functools.lru_cache(maxsize=None)
def _num_tensorcores():
    """Best-effort TensorCore count (v7x: 2, v5e/v6e: 1). Perf-only hint."""
    try:
        info = pltpu.get_tpu_info()
    except Exception:
        return 1
    for attr in ("num_cores", "core_count", "num_tensorcores",
                 "tensorcores_per_chip"):
        v = getattr(info, attr, None)
        if isinstance(v, int) and 1 <= v <= 8:
            return v
    return 1


def _choose_tm(m, cores):
    """Row tile for the im2col path; multiple of 16 (bf16 sublane packing)."""
    m16 = _round_up(m, 16)
    if cores <= 1:
        # Single TensorCore (v5e/v6e): no forced split, biggest tile wins.
        return min(m16, _TM_MAX)
    # Two TensorCores (v7x): aim for >=4 grid steps (2 per core) when M allows.
    return min(_TM_MAX, max(128, _round_up(pl.cdiv(m16, 4), 16)))


# ----------------------------- Pallas kernels ------------------------------ #

def _matmul_bias_relu_kernel(p_ref, w_ref, b_ref, o_ref):
    """(TM,K)bf16 @ (K,Cout_pad)bf16 -> f32 accum, + folded-BN bias, ReLU."""
    acc = jnp.dot(p_ref[...], w_ref[...], preferred_element_type=jnp.float32)
    o_ref[...] = jnp.maximum(acc + b_ref[...], 0.0).astype(o_ref.dtype)


def _conv_taps_kernel(x_ref, w_ref, b_ref, o_ref, *, kh, kw, ho, wo, cin):
    """Tap-fused stride-1 conv + folded-BN bias + ReLU.

    x_ref: (G, Hp, Wp, Cin) bf16 padded activations (whole images, in VMEM)
    w_ref: (kh*kw*Cin, Cout_pad) bf16, BN scale folded
    b_ref: (1, Cout_pad) f32 folded bias
    o_ref: (G*ho*wo, Cout_pad) output rows for this grid step
    """
    xv = x_ref[...]
    g = xv.shape[0]
    f = o_ref.shape[-1]
    acc = jnp.zeros((g * ho * wo, f), jnp.float32)
    for i in range(kh):
        for j in range(kw):
            # Contiguous static slice of the in-VMEM activation; collapse
            # (G, ho, wo) -> rows (layout-preserving: wo % 8 == 0, Cin minor).
            tap = xv[:, i:i + ho, j:j + wo, :].reshape(g * ho * wo, cin)
            wt = w_ref[(i * kw + j) * cin:(i * kw + j + 1) * cin, :]
            acc = acc + jnp.dot(tap, wt, preferred_element_type=jnp.float32)
    o_ref[...] = jnp.maximum(acc + b_ref[...], 0.0).astype(o_ref.dtype)


def _maxpool_kernel(x_ref, o_ref, *, n, ho, wo):
    """3x3 / stride-2 max pool over a 2x2 phase-decomposed input.

    x_ref: (4*n, Hh, Wh, C) where row block p = 2*pi + pj holds phase (pi, pj).
    Only the strided (ho, wo) outputs are computed - no dense over-compute.
    """
    best = None
    for i in range(3):
        for j in range(3):
            p = (i % 2) * 2 + (j % 2)
            oi, oj = i // 2, j // 2
            v = x_ref[p * n:(p + 1) * n, oi:oi + ho, oj:oj + wo, :]
            best = v if best is None else jnp.maximum(best, v)
    o_ref[...] = best


# ------------------------------ JAX glue ----------------------------------- #

def _extract_patches(x, kh, kw, stride, pad):
    """x: (N,H,W,C) -> (patches (N,Ho,Wo,kh*kw*C), Ho, Wo); order (kh,kw,C)."""
    N, H, W, C = x.shape
    xp = jnp.pad(x, ((0, 0), (pad, pad), (pad, pad), (0, 0)))
    Hp, Wp = H + 2 * pad, W + 2 * pad
    Ho = (Hp - kh) // stride + 1
    Wo = (Wp - kw) // stride + 1
    cols = []
    for i in range(kh):
        for j in range(kw):
            cols.append(xp[:, i:i + (Ho - 1) * stride + 1:stride,
                           j:j + (Wo - 1) * stride + 1:stride, :])
    return jnp.concatenate(cols, axis=-1), Ho, Wo


def conv_bn_relu(x, w, scale, bias, *, stride, pad, out_dtype=None):
    """x: (N,H,W,Cin), w: (KH,KW,Cin,Cout), scale/bias: (Cout,) -> NHWC out."""
    N, H, W, Cin = x.shape
    KH, KW, _, Cout = w.shape
    out_dtype = x.dtype if out_dtype is None else out_dtype
    Ho = (H + 2 * pad - KH) // stride + 1
    Wo = (W + 2 * pad - KW) // stride + 1
    M = N * Ho * Wo
    K = KH * KW * Cin

    # Fold BN scale into the weights (f32); keep folded bias separate.
    w2 = w.reshape(K, Cout).astype(jnp.float32) * scale[None, :].astype(jnp.float32)
    b2 = bias.reshape(1, Cout).astype(jnp.float32)

    Cout_pad = _round_up(Cout, _LANE)
    work = M * K * Cout_pad

    if K < _MIN_K_PALLAS or work < _MIN_PALLAS_WORK:
        # Sub-threshold conv (1x1 with Cin=4; tiny b2 at this test size): a
        # pallas_call is pure launch/pipeline overhead -> fused XLA matmul.
        patches, _, _ = _extract_patches(x, KH, KW, stride, pad)
        y = jnp.maximum(patches.reshape(M, K).astype(jnp.float32) @ w2 + b2, 0.0)
        return y.astype(out_dtype).reshape(N, Ho, Wo, Cout)

    # Pad Cout to a lane multiple -> unmasked output stores, full MXU tiles.
    if Cout_pad != Cout:
        w2 = jnp.pad(w2, ((0, 0), (0, Cout_pad - Cout)))
        b2 = jnp.pad(b2, ((0, 0), (0, Cout_pad - Cout)))
    w_bf = w2.astype(jnp.bfloat16)

    cores = _num_tensorcores()

    # ---- Tap-fused path (stride 1): no HBM im2col materialization ----------
    Hp, Wp = H + 2 * pad, W + 2 * pad
    out_bytes = jnp.dtype(out_dtype).itemsize
    tap_vmem = (2 * N * Hp * Wp * Cin * 2          # double-buffered bf16 act
                + 2 * K * Cout_pad * 2             # weights (bf16)
                + M * Cout_pad * (4 + 2 * out_bytes))  # f32 acc + out buffers
    if stride == 1 and Wo % 8 == 0 and tap_vmem < _TAP_VMEM_BUDGET:
        steps = cores if (cores > 1 and N % cores == 0) else 1
        G = N // steps
        x_bf = jnp.pad(x, ((0, 0), (pad, pad), (pad, pad), (0, 0))
                       ).astype(jnp.bfloat16)
        kernel = functools.partial(_conv_taps_kernel, kh=KH, kw=KW,
                                   ho=Ho, wo=Wo, cin=Cin)
        out2d = pl.pallas_call(
            kernel,
            out_shape=jax.ShapeDtypeStruct((M, Cout_pad), out_dtype),
            grid=(steps,),
            in_specs=[
                pl.BlockSpec((G, Hp, Wp, Cin), lambda s: (s, 0, 0, 0)),
                pl.BlockSpec((K, Cout_pad), lambda s: (0, 0)),
                pl.BlockSpec((1, Cout_pad), lambda s: (0, 0)),
            ],
            out_specs=pl.BlockSpec((G * Ho * Wo, Cout_pad), lambda s: (s, 0)),
            compiler_params=pltpu.CompilerParams(
                dimension_semantics=("parallel",),
                vmem_limit_bytes=_VMEM_LIMIT),
        )(x_bf, w_bf, b2)
        return out2d[:, :Cout].reshape(N, Ho, Wo, Cout)

    # ---- im2col matmul path (stride > 1, or tap path doesn't fit VMEM) -----
    # TODO(synk): large stride-2 convs could also be tap-fused via a
    # space-to-depth input view instead of HBM-materialized patches.
    patches, _, _ = _extract_patches(x, KH, KW, stride, pad)
    p2 = patches.reshape(M, K).astype(jnp.bfloat16)

    TM = _choose_tm(M, cores)
    M_pad = _round_up(M, TM)
    if M_pad != M:
        p2 = jnp.pad(p2, ((0, M_pad - M), (0, 0)))

    # TODO(synk): if profiling at real sizes shows exposed patch DMA, add
    # pipeline_mode=pl.Buffered(3) on the streaming (TM, K) input spec.
    out2d = pl.pallas_call(
        _matmul_bias_relu_kernel,
        out_shape=jax.ShapeDtypeStruct((M_pad, Cout_pad), out_dtype),
        grid=(M_pad // TM,),
        in_specs=[
            pl.BlockSpec((TM, K), lambda i: (i, 0)),
            pl.BlockSpec((K, Cout_pad), lambda i: (0, 0)),
            pl.BlockSpec((1, Cout_pad), lambda i: (0, 0)),
        ],
        out_specs=pl.BlockSpec((TM, Cout_pad), lambda i: (i, 0)),
        compiler_params=pltpu.CompilerParams(
            dimension_semantics=("parallel",),
            vmem_limit_bytes=_VMEM_LIMIT),
    )(p2, w_bf, b2)
    return out2d[:M, :Cout].reshape(N, Ho, Wo, Cout)


def maxpool3x3_s2(x):
    """MaxPool2d(kernel=3, stride=2, pad=0). x: (N,H,W,C) -> (N,Ho,Wo,C)."""
    N, H, W, C = x.shape
    Ho = (H - 3) // 2 + 1
    Wo = (W - 3) // 2 + 1
    He, We = _round_up(H, 2), _round_up(W, 2)
    if (He, We) != (H, W):
        # Padded rows/cols are provably never read by any valid 3x3/s2 window.
        x = jnp.pad(x, ((0, 0), (0, He - H), (0, We - W), (0, 0)))
    Hh, Wh = He // 2, We // 2
    # (N,H,W,C) -> axes (pi, pj, n, hb, wb, c) -> (4N, Hh, Wh, C); p = 2*pi+pj.
    xs = x.reshape(N, Hh, 2, Wh, 2, C).transpose(2, 4, 0, 1, 3, 5)
    xs = xs.reshape(4 * N, Hh, Wh, C)

    kernel = functools.partial(_maxpool_kernel, n=N, ho=Ho, wo=Wo)
    return pl.pallas_call(
        kernel,
        out_shape=jax.ShapeDtypeStruct((N, Ho, Wo, C), x.dtype),
        grid=(1,),
        in_specs=[pl.BlockSpec((4 * N, Hh, Wh, C), lambda i: (0, 0, 0, 0))],
        out_specs=pl.BlockSpec((N, Ho, Wo, C), lambda i: (0, 0, 0, 0)),
        compiler_params=pltpu.CompilerParams(
            dimension_semantics=("arbitrary",)),
    )(xs)


# --------------------------- ReductionBlockA ------------------------------- #

def make_conv_params(key, kh, kw, cin, cout):
    kw_key, g_key, b_key = jax.random.split(key, 3)
    fan_in = kh * kw * cin
    w = jax.random.normal(kw_key, (kh, kw, cin, cout), jnp.float32) / jnp.sqrt(fan_in)
    gamma = 1.0 + 0.1 * jax.random.normal(g_key, (cout,), jnp.float32)
    beta = 0.1 * jax.random.normal(b_key, (cout,), jnp.float32)
    running_mean = jnp.zeros((cout,), jnp.float32)
    running_var = jnp.ones((cout,), jnp.float32)
    eps = 1e-5
    scale = gamma / jnp.sqrt(running_var + eps)
    bias = beta - running_mean * scale
    return (w, scale, bias)


def init_reduction_block_a(key, in_channels):
    k1, k2, k3, k4 = jax.random.split(key, 4)
    return {
        "b1_1": make_conv_params(k1, 1, 1, in_channels, 64),   # 1x1, s1, pad 0
        "b1_2": make_conv_params(k2, 3, 3, 64, 96),            # 3x3, s1, pad 1
        "b1_3": make_conv_params(k3, 3, 3, 96, 96),            # 3x3, s2, pad 0
        "b2":   make_conv_params(k4, 3, 3, in_channels, 384),  # 3x3, s2, pad 0
    }


def reduction_block_a(x_nchw, params):
    x = jnp.transpose(x_nchw, (0, 2, 3, 1))          # NCHW -> NHWC
    # Branch-1 intermediates in bf16: their consumers re-cast to bf16 for the
    # MXU anyway, halving HBM writeback and the next layer's read.
    b1 = conv_bn_relu(x, *params["b1_1"], stride=1, pad=0, out_dtype=jnp.bfloat16)
    b1 = conv_bn_relu(b1, *params["b1_2"], stride=1, pad=1, out_dtype=jnp.bfloat16)
    b1 = conv_bn_relu(b1, *params["b1_3"], stride=2, pad=0, out_dtype=x.dtype)
    b2 = conv_bn_relu(x, *params["b2"], stride=2, pad=0, out_dtype=x.dtype)
    b3 = maxpool3x3_s2(x)
    # TODO(synk): fuse the b1_1 -> b1_2 -> b1_3 chain into one kernel keeping
    # the 16x16x{64,96} intermediates VMEM-resident (saves 2 launches and 2
    # activation HBM round-trips; biggest win on v7x).
    out = jnp.concatenate([b1, b2, b3], axis=-1)      # channel concat
    return jnp.transpose(out, (0, 3, 1, 2))           # NHWC -> NCHW


# ------------------------- pure-JAX reference ------------------------------ #

def _reference_block(x_nchw, params):
    x = jnp.transpose(x_nchw, (0, 2, 3, 1)).astype(jnp.float32)

    def cbr(inp, w, scale, bias, stride, pad):
        y = jax.lax.conv_general_dilated(
            inp, w.astype(jnp.float32), (stride, stride),
            [(pad, pad), (pad, pad)],
            dimension_numbers=("NHWC", "HWIO", "NHWC"))
        return jnp.maximum(y * scale + bias, 0.0)

    b1 = cbr(x, *params["b1_1"], 1, 0)
    b1 = cbr(b1, *params["b1_2"], 1, 1)
    b1 = cbr(b1, *params["b1_3"], 2, 0)
    b2 = cbr(x, *params["b2"], 2, 0)
    b3 = jax.lax.reduce_window(x, -jnp.inf, jax.lax.max,
                               (1, 3, 3, 1), (1, 2, 2, 1), "VALID")
    out = jnp.concatenate([b1, b2, b3], axis=-1)
    return jnp.transpose(out, (0, 3, 1, 2))


if __name__ == "__main__":
    key = jax.random.PRNGKey(0)
    pkey, xkey = jax.random.split(key)

    N, C, H, W = 2, 4, 16, 16
    x = jax.random.normal(xkey, (N, C, H, W), jnp.float32)
    params = init_reduction_block_a(pkey, C)

    out = jax.jit(reduction_block_a)(x, params)
    out = jax.block_until_ready(out)

    # branch1: 96 ch, branch2: 384 ch, branch3 (maxpool): C ch; spatial 7x7.
    expected = (N, 96 + 384 + C, (H - 3) // 2 + 1, (W - 3) // 2 + 1)
    assert out.shape == expected, (out.shape, expected)
    assert bool(jnp.all(jnp.isfinite(out)))

    # Loose tolerance: branch-1 runs through bf16 MXU matmuls with bf16
    # intermediates; a real indexing bug would show up as O(1) errors.
    ref = _reference_block(x, params)
    rel = float(jnp.linalg.norm((out - ref).ravel()) /
                (jnp.linalg.norm(ref.ravel()) + 1e-12))
    assert rel < 5e-2, f"relative error too large: {rel}"
    print("KERNEL_OK")
</pallas_src>

<mosaic_0001>
module attributes {stable_mosaic.version = 11 : i64} {
  func.func @_maxpool_kernel(%arg0: i32, %arg1: memref<8x8x8x4xf32, #tpu.memory_space<vmem>>, %arg2: memref<2x7x7x4xf32, #tpu.memory_space<vmem>>) attributes {dimension_semantics = [#tpu.dimension_semantics<arbitrary>], iteration_bounds = array<i64: 1>, scalar_prefetch = 0 : i64, scratch_operands = 0 : i64, tpu.core_type = #tpu.core_type<tc>, window_params = [{pipeline_mode = #tpu.pipeline_mode<synchronous>, transform_indices = @transform_0, window_bounds = array<i64: 8, 8, 8, 4>}, {pipeline_mode = #tpu.pipeline_mode<synchronous>, transform_indices = @transform_1, window_bounds = array<i64: 2, 7, 7, 4>}]} {
    %c0 = arith.constant 0 : index
    %c0_0 = arith.constant 0 : index
    %c0_1 = arith.constant 0 : index
    %c0_2 = arith.constant 0 : index
    %0 = vector.load %arg1[%c0, %c0_0, %c0_1, %c0_2] : memref<8x8x8x4xf32, #tpu.memory_space<vmem>>, vector<2x7x7x4xf32>
    %c2 = arith.constant 2 : index
    %c0_3 = arith.constant 0 : index
    %c0_4 = arith.constant 0 : index
    %c0_5 = arith.constant 0 : index
    %1 = vector.load %arg1[%c2, %c0_3, %c0_4, %c0_5] : memref<8x8x8x4xf32, #tpu.memory_space<vmem>>, vector<2x7x7x4xf32>
    %2 = arith.maximumf %0, %1 : vector<2x7x7x4xf32>
    %c0_6 = arith.constant 0 : index
    %c0_7 = arith.constant 0 : index
    %c1 = arith.constant 1 : index
    %c0_8 = arith.constant 0 : index
    %3 = vector.load %arg1[%c0_6, %c0_7, %c1, %c0_8] : memref<8x8x8x4xf32, #tpu.memory_space<vmem>>, vector<2x7x7x4xf32>
    %4 = arith.maximumf %2, %3 : vector<2x7x7x4xf32>
    %c4 = arith.constant 4 : index
    %c0_9 = arith.constant 0 : index
    %c0_10 = arith.constant 0 : index
    %c0_11 = arith.constant 0 : index
    %5 = vector.load %arg1[%c4, %c0_9, %c0_10, %c0_11] : memref<8x8x8x4xf32, #tpu.memory_space<vmem>>, vector<2x7x7x4xf32>
    %6 = arith.maximumf %4, %5 : vector<2x7x7x4xf32>
    %c6 = arith.constant 6 : index
    %c0_12 = arith.constant 0 : index
    %c0_13 = arith.constant 0 : index
    %c0_14 = arith.constant 0 : index
    %7 = vector.load %arg1[%c6, %c0_12, %c0_13, %c0_14] : memref<8x8x8x4xf32, #tpu.memory_space<vmem>>, vector<2x7x7x4xf32>
    %8 = arith.maximumf %6, %7 : vector<2x7x7x4xf32>
    %c4_15 = arith.constant 4 : index
    %c0_16 = arith.constant 0 : index
    %c1_17 = arith.constant 1 : index
    %c0_18 = arith.constant 0 : index
    %9 = vector.load %arg1[%c4_15, %c0_16, %c1_17, %c0_18] : memref<8x8x8x4xf32, #tpu.memory_space<vmem>>, vector<2x7x7x4xf32>
    %10 = arith.maximumf %8, %9 : vector<2x7x7x4xf32>
    %c0_19 = arith.constant 0 : index
    %c1_20 = arith.constant 1 : index
    %c0_21 = arith.constant 0 : index
    %c0_22 = arith.constant 0 : index
    %11 = vector.load %arg1[%c0_19, %c1_20, %c0_21, %c0_22] : memref<8x8x8x4xf32, #tpu.memory_space<vmem>>, vector<2x7x7x4xf32>
    %12 = arith.maximumf %10, %11 : vector<2x7x7x4xf32>
    %c2_23 = arith.constant 2 : index
    %c1_24 = arith.constant 1 : index
    %c0_25 = arith.constant 0 : index
    %c0_26 = arith.constant 0 : index
    %13 = vector.load %arg1[%c2_23, %c1_24, %c0_25, %c0_26] : memref<8x8x8x4xf32, #tpu.memory_space<vmem>>, vector<2x7x7x4xf32>
    %14 = arith.maximumf %12, %13 : vector<2x7x7x4xf32>
    %c0_27 = arith.constant 0 : index
    %c1_28 = arith.constant 1 : index
    %c1_29 = arith.constant 1 : index
    %c0_30 = arith.constant 0 : index
    %15 = vector.load %arg1[%c0_27, %c1_28, %c1_29, %c0_30] : memref<8x8x8x4xf32, #tpu.memory_space<vmem>>, vector<2x7x7x4xf32>
    %16 = arith.maximumf %14, %15 : vector<2x7x7x4xf32>
    %c0_31 = arith.constant 0 : index
    %c0_32 = arith.constant 0 : index
    %c0_33 = arith.constant 0 : index
    %c0_34 = arith.constant 0 : index
    %17 = vector.load %arg2[%c0_31, %c0_32, %c0_33, %c0_34] : memref<2x7x7x4xf32, #tpu.memory_space<vmem>>, vector<2x7x7x4xf32>
    tpu.vector_store %arg2[%c0_31, %c0_32, %c0_33, %c0_34], %16 {strides = array<i32>} : memref<2x7x7x4xf32, #tpu.memory_space<vmem>>, vector<2x7x7x4xf32>,
    return
  }
  func.func @transform_0(%arg0: i32) -> (i32, i32, i32, i32) {
    %c0_i32 = arith.constant 0 : i32
    %c0_i32_0 = arith.constant 0 : i32
    %c0_i32_1 = arith.constant 0 : i32
    %c0_i32_2 = arith.constant 0 : i32
    %c0_i32_3 = arith.constant 0 : i32
    return %c0_i32, %c0_i32_0, %c0_i32_1, %c0_i32_2 : i32, i32, i32, i32
  }
  func.func @transform_1(%arg0: i32) -> (i32, i32, i32, i32) {
    %c0_i32 = arith.constant 0 : i32
    %c0_i32_0 = arith.constant 0 : i32
    %c0_i32_1 = arith.constant 0 : i32
    %c0_i32_2 = arith.constant 0 : i32
    %c0_i32_3 = arith.constant 0 : i32
    return %c0_i32, %c0_i32_0, %c0_i32_1, %c0_i32_2 : i32, i32, i32, i32
  }
}

module attributes {stable_mosaic.version = 11 : i64} {
  func.func @_conv_taps_kernel(%arg0: i32, %arg1: memref<2x18x18x64xbf16, #tpu.memory_space<vmem>>, %arg2: memref<576x128xbf16, #tpu.memory_space<vmem>>, %arg3: memref<1x128xf32, #tpu.memory_space<vmem>>, %arg4: memref<512x128xbf16, #tpu.memory_space<vmem>>) attributes {dimension_semantics = [#tpu.dimension_semantics<parallel>], iteration_bounds = array<i64: 1>, scalar_prefetch = 0 : i64, scratch_operands = 0 : i64, tpu.core_type = #tpu.core_type<tc>, window_params = [{transform_indices = @transform_0, window_bounds = array<i64: 2, 18, 18, 64>}, {pipeline_mode = #tpu.pipeline_mode<synchronous>, transform_indices = @transform_1, window_bounds = array<i64: 576, 128>}, {pipeline_mode = #tpu.pipeline_mode<synchronous>, transform_indices = @transform_2, window_bounds = array<i64: 1, 128>}, {transform_indices = @transform_3, window_bounds = array<i64: 512, 128>}]} {
    %c0 = arith.constant 0 : index
    %c0_0 = arith.constant 0 : index
    %c0_1 = arith.constant 0 : index
    %c0_2 = arith.constant 0 : index
    %0 = vector.load %arg1[%c0, %c0_0, %c0_1, %c0_2] : memref<2x18x18x64xbf16, #tpu.memory_space<vmem>>, vector<2x18x18x64xbf16>
    %cst = arith.constant 0.000000e+00 : f32
    %1 = vector.broadcast %cst : f32 to vector<512x128xf32>
    %2 = vector.extract_strided_slice %0 {offsets = [0, 0, 0, 0], sizes = [2, 16, 16, 64], strides = [1, 1, 1, 1]} : vector<2x18x18x64xbf16> to vector<2x16x16x64xbf16>
    %3 = vector.shape_cast %2 : vector<2x16x16x64xbf16> to vector<512x64xbf16>
    %c0_3 = arith.constant 0 : index
    %c0_4 = arith.constant 0 : index
    %4 = vector.load %arg2[%c0_3, %c0_4] : memref<576x128xbf16, #tpu.memory_space<vmem>>, vector<64x128xbf16>
    %cst_5 = arith.constant dense<0.000000e+00> : vector<512x128xf32>
    %5 = tpu.matmul %3, %4, %cst_5 {dimension_numbers = #tpu.dot_dimension_numbers<[1], [0], [0], [1], [0, 0, 1, 1], [], []>} : vector<512x64xbf16>, vector<64x128xbf16>, vector<512x128xf32> -> vector<512x128xf32>
    %6 = arith.addf %1, %5 : vector<512x128xf32>
    %7 = vector.extract_strided_slice %0 {offsets = [0, 0, 1, 0], sizes = [2, 16, 16, 64], strides = [1, 1, 1, 1]} : vector<2x18x18x64xbf16> to vector<2x16x16x64xbf16>
    %8 = vector.shape_cast %7 : vector<2x16x16x64xbf16> to vector<512x64xbf16>
    %c64 = arith.constant 64 : index
    %c0_6 = arith.constant 0 : index
    %9 = vector.load %arg2[%c64, %c0_6] : memref<576x128xbf16, #tpu.memory_space<vmem>>, vector<64x128xbf16>
    %cst_7 = arith.constant dense<0.000000e+00> : vector<512x128xf32>
    %10 = tpu.matmul %8, %9, %cst_7 {dimension_numbers = #tpu.dot_dimension_numbers<[1], [0], [0], [1], [0, 0, 1, 1], [], []>} : vector<512x64xbf16>, vector<64x128xbf16>, vector<512x128xf32> -> vector<512x128xf32>
    %11 = arith.addf %6, %10 : vector<512x128xf32>
    %12 = vector.extract_strided_slice %0 {offsets = [0, 0, 2, 0], sizes = [2, 16, 16, 64], strides = [1, 1, 1, 1]} : vector<2x18x18x64xbf16> to vector<2x16x16x64xbf16>
    %13 = vector.shape_cast %12 : vector<2x16x16x64xbf16> to vector<512x64xbf16>
    %c128 = arith.constant 128 : index
    %c0_8 = arith.constant 0 : index
    %14 = vector.load %arg2[%c128, %c0_8] : memref<576x128xbf16, #tpu.memory_space<vmem>>, vector<64x128xbf16>
    %cst_9 = arith.constant dense<0.000000e+00> : vector<512x128xf32>
    %15 = tpu.matmul %13, %14, %cst_9 {dimension_numbers = #tpu.dot_dimension_numbers<[1], [0], [0], [1], [0, 0, 1, 1], [], []>} : vector<512x64xbf16>, vector<64x128xbf16>, vector<512x128xf32> -> vector<512x128xf32>
    %16 = arith.addf %11, %15 : vector<512x128xf32>
    %17 = vector.extract_strided_slice %0 {offsets = [0, 1, 0, 0], sizes = [2, 16, 16, 64], strides = [1, 1, 1, 1]} : vector<2x18x18x64xbf16> to vector<2x16x16x64xbf16>
    %18 = vector.shape_cast %17 : vector<2x16x16x64xbf16> to vector<512x64xbf16>
    %c192 = arith.constant 192 : index
    %c0_10 = arith.constant 0 : index
    %19 = vector.load %arg2[%c192, %c0_10] : memref<576x128xbf16, #tpu.memory_space<vmem>>, vector<64x128xbf16>
    %cst_11 = arith.constant dense<0.000000e+00> : vector<512x128xf32>
    %20 = tpu.matmul %18, %19, %cst_11 {dimension_numbers = #tpu.dot_dimension_numbers<[1], [0], [0], [1], [0, 0, 1, 1], [], []>} : vector<512x64xbf16>, vector<64x128xbf16>, vector<512x128xf32> -> vector<512x128xf32>
    %21 = arith.addf %16, %20 : vector<512x128xf32>
    %22 = vector.extract_strided_slice %0 {offsets = [0, 1, 1, 0], sizes = [2, 16, 16, 64], strides = [1, 1, 1, 1]} : vector<2x18x18x64xbf16> to vector<2x16x16x64xbf16>
    %23 = vector.shape_cast %22 : vector<2x16x16x64xbf16> to vector<512x64xbf16>
    %c256 = arith.constant 256 : index
    %c0_12 = arith.constant 0 : index
    %24 = vector.load %arg2[%c256, %c0_12] : memref<576x128xbf16, #tpu.memory_space<vmem>>, vector<64x128xbf16>
    %cst_13 = arith.constant dense<0.000000e+00> : vector<512x128xf32>
    %25 = tpu.matmul %23, %24, %cst_13 {dimension_numbers = #tpu.dot_dimension_numbers<[1], [0], [0], [1], [0, 0, 1, 1], [], []>} : vector<512x64xbf16>, vector<64x128xbf16>, vector<512x128xf32> -> vector<512x128xf32>
    %26 = arith.addf %21, %25 : vector<512x128xf32>
    %27 = vector.extract_strided_slice %0 {offsets = [0, 1, 2, 0], sizes = [2, 16, 16, 64], strides = [1, 1, 1, 1]} : vector<2x18x18x64xbf16> to vector<2x16x16x64xbf16>
    %28 = vector.shape_cast %27 : vector<2x16x16x64xbf16> to vector<512x64xbf16>
    %c320 = arith.constant 320 : index
    %c0_14 = arith.constant 0 : index
    %29 = vector.load %arg2[%c320, %c0_14] : memref<576x128xbf16, #tpu.memory_space<vmem>>, vector<64x128xbf16>
    %cst_15 = arith.constant dense<0.000000e+00> : vector<512x128xf32>
    %30 = tpu.matmul %28, %29, %cst_15 {dimension_numbers = #tpu.dot_dimension_numbers<[1], [0], [0], [1], [0, 0, 1, 1], [], []>} : vector<512x64xbf16>, vector<64x128xbf16>, vector<512x128xf32> -> vector<512x128xf32>
    %31 = arith.addf %26, %30 : vector<512x128xf32>
    %32 = vector.extract_strided_slice %0 {offsets = [0, 2, 0, 0], sizes = [2, 16, 16, 64], strides = [1, 1, 1, 1]} : vector<2x18x18x64xbf16> to vector<2x16x16x64xbf16>
    %33 = vector.shape_cast %32 : vector<2x16x16x64xbf16> to vector<512x64xbf16>
    %c384 = arith.constant 384 : index
    %c0_16 = arith.constant 0 : index
    %34 = vector.load %arg2[%c384, %c0_16] : memref<576x128xbf16, #tpu.memory_space<vmem>>, vector<64x128xbf16>
    %cst_17 = arith.constant dense<0.000000e+00> : vector<512x128xf32>
    %35 = tpu.matmul %33, %34, %cst_17 {dimension_numbers = #tpu.dot_dimension_numbers<[1], [0], [0], [1], [0, 0, 1, 1], [], []>} : vector<512x64xbf16>, vector<64x128xbf16>, vector<512x128xf32> -> vector<512x128xf32>
    %36 = arith.addf %31, %35 : vector<512x128xf32>
    %37 = vector.extract_strided_slice %0 {offsets = [0, 2, 1, 0], sizes = [2, 16, 16, 64], strides = [1, 1, 1, 1]} : vector<2x18x18x64xbf16> to vector<2x16x16x64xbf16>
    %38 = vector.shape_cast %37 : vector<2x16x16x64xbf16> to vector<512x64xbf16>
    %c448 = arith.constant 448 : index
    %c0_18 = arith.constant 0 : index
    %39 = vector.load %arg2[%c448, %c0_18] : memref<576x128xbf16, #tpu.memory_space<vmem>>, vector<64x128xbf16>
    %cst_19 = arith.constant dense<0.000000e+00> : vector<512x128xf32>
    %40 = tpu.matmul %38, %39, %cst_19 {dimension_numbers = #tpu.dot_dimension_numbers<[1], [0], [0], [1], [0, 0, 1, 1], [], []>} : vector<512x64xbf16>, vector<64x128xbf16>, vector<512x128xf32> -> vector<512x128xf32>
    %41 = arith.addf %36, %40 : vector<512x128xf32>
    %42 = vector.extract_strided_slice %0 {offsets = [0, 2, 2, 0], sizes = [2, 16, 16, 64], strides = [1, 1, 1, 1]} : vector<2x18x18x64xbf16> to vector<2x16x16x64xbf16>
    %43 = vector.shape_cast %42 : vector<2x16x16x64xbf16> to vector<512x64xbf16>
    %c512 = arith.constant 512 : index
    %c0_20 = arith.constant 0 : index
    %44 = vector.load %arg2[%c512, %c0_20] : memref<576x128xbf16, #tpu.memory_space<vmem>>, vector<64x128xbf16>
    %cst_21 = arith.constant dense<0.000000e+00> : vector<512x128xf32>
    %45 = tpu.matmul %43, %44, %cst_21 {dimension_numbers = #tpu.dot_dimension_numbers<[1], [0], [0], [1], [0, 0, 1, 1], [], []>} : vector<512x64xbf16>, vector<64x128xbf16>, vector<512x128xf32> -> vector<512x128xf32>
    %46 = arith.addf %41, %45 : vector<512x128xf32>
    %c0_22 = arith.constant 0 : index
    %c0_23 = arith.constant 0 : index
    %47 = vector.load %arg3[%c0_22, %c0_23] : memref<1x128xf32, #tpu.memory_space<vmem>>, vector<1x128xf32>
    %48 = vector.broadcast %47 : vector<1x128xf32> to vector<512x128xf32>
    %49 = arith.addf %46, %48 : vector<512x128xf32>
    %cst_24 = arith.constant 0.000000e+00 : f32
    %50 = vector.broadcast %cst_24 : f32 to vector<512x128xf32>
    %51 = arith.maximumf %49, %50 : vector<512x128xf32>
    %52 = arith.truncf %51 : vector<512x128xf32> to vector<512x128xbf16>
    %c0_25 = arith.constant 0 : index
    %c0_26 = arith.constant 0 : index
    %53 = vector.load %arg4[%c0_25, %c0_26] : memref<512x128xbf16, #tpu.memory_space<vmem>>, vector<512x128xbf16>
    tpu.vector_store %arg4[%c0_25, %c0_26], %52 {strides = array<i32>} : memref<512x128xbf16, #tpu.memory_space<vmem>>, vector<512x128xbf16>,
    return
  }
  func.func @transform_0(%arg0: i32) -> (i32, i32, i32, i32) {
    %c0_i32 = arith.constant 0 : i32
    %c0_i32_0 = arith.constant 0 : i32
    %c0_i32_1 = arith.constant 0 : i32
    %c0_i32_2 = arith.constant 0 : i32
    return %arg0, %c0_i32, %c0_i32_0, %c0_i32_1 : i32, i32, i32, i32
  }
  func.func @transform_1(%arg0: i32) -> (i32, i32) {
    %c0_i32 = arith.constant 0 : i32
    %c0_i32_0 = arith.constant 0 : i32
    %c0_i32_1 = arith.constant 0 : i32
    return %c0_i32, %c0_i32_0 : i32, i32
  }
  func.func @transform_2(%arg0: i32) -> (i32, i32) {
    %c0_i32 = arith.constant 0 : i32
    %c0_i32_0 = arith.constant 0 : i32
    %c0_i32_1 = arith.constant 0 : i32
    return %c0_i32, %c0_i32_0 : i32, i32
  }
  func.func @transform_3(%arg0: i32) -> (i32, i32) {
    %c0_i32 = arith.constant 0 : i32
    %c0_i32_0 = arith.constant 0 : i32
    return %arg0, %c0_i32 : i32, i32
  }
}

module attributes {stable_mosaic.version = 11 : i64} {
  func.func @_matmul_bias_relu_kernel(%arg0: i32, %arg1: memref<112x864xbf16, #tpu.memory_space<vmem>>, %arg2: memref<864x128xbf16, #tpu.memory_space<vmem>>, %arg3: memref<1x128xf32, #tpu.memory_space<vmem>>, %arg4: memref<112x128xf32, #tpu.memory_space<vmem>>) attributes {dimension_semantics = [#tpu.dimension_semantics<parallel>], iteration_bounds = array<i64: 1>, scalar_prefetch = 0 : i64, scratch_operands = 0 : i64, tpu.core_type = #tpu.core_type<tc>, window_params = [{transform_indices = @transform_0, window_bounds = array<i64: 112, 864>}, {pipeline_mode = #tpu.pipeline_mode<synchronous>, transform_indices = @transform_1, window_bounds = array<i64: 864, 128>}, {pipeline_mode = #tpu.pipeline_mode<synchronous>, transform_indices = @transform_2, window_bounds = array<i64: 1, 128>}, {transform_indices = @transform_3, window_bounds = array<i64: 112, 128>}]} {
    %c0 = arith.constant 0 : index
    %c0_0 = arith.constant 0 : index
    %0 = vector.load %arg1[%c0, %c0_0] : memref<112x864xbf16, #tpu.memory_space<vmem>>, vector<112x864xbf16>
    %c0_1 = arith.constant 0 : index
    %c0_2 = arith.constant 0 : index
    %1 = vector.load %arg2[%c0_1, %c0_2] : memref<864x128xbf16, #tpu.memory_space<vmem>>, vector<864x128xbf16>
    %cst = arith.constant dense<0.000000e+00> : vector<112x128xf32>
    %2 = tpu.matmul %0, %1, %cst {dimension_numbers = #tpu.dot_dimension_numbers<[1], [0], [0], [1], [0, 0, 1, 1], [], []>} : vector<112x864xbf16>, vector<864x128xbf16>, vector<112x128xf32> -> vector<112x128xf32>
    %c0_3 = arith.constant 0 : index
    %c0_4 = arith.constant 0 : index
    %3 = vector.load %arg3[%c0_3, %c0_4] : memref<1x128xf32, #tpu.memory_space<vmem>>, vector<1x128xf32>
    %4 = vector.broadcast %3 : vector<1x128xf32> to vector<112x128xf32>
    %5 = arith.addf %2, %4 : vector<112x128xf32>
    %cst_5 = arith.constant 0.000000e+00 : f32
    %6 = vector.broadcast %cst_5 : f32 to vector<112x128xf32>
    %7 = arith.maximumf %5, %6 : vector<112x128xf32>
    %c0_6 = arith.constant 0 : index
    %c0_7 = arith.constant 0 : index
    %8 = vector.load %arg4[%c0_6, %c0_7] : memref<112x128xf32, #tpu.memory_space<vmem>>, vector<112x128xf32>
    tpu.vector_store %arg4[%c0_6, %c0_7], %7 {strides = array<i32>} : memref<112x128xf32, #tpu.memory_space<vmem>>, vector<112x128xf32>,
    return
  }
  func.func @transform_0(%arg0: i32) -> (i32, i32) {
    %c0_i32 = arith.constant 0 : i32
    %c0_i32_0 = arith.constant 0 : i32
    return %arg0, %c0_i32 : i32, i32
  }
  func.func @transform_1(%arg0: i32) -> (i32, i32) {
    %c0_i32 = arith.constant 0 : i32
    %c0_i32_0 = arith.constant 0 : i32
    %c0_i32_1 = arith.constant 0 : i32
    return %c0_i32, %c0_i32_0 : i32, i32
  }
  func.func @transform_2(%arg0: i32) -> (i32, i32) {
    %c0_i32 = arith.constant 0 : i32
    %c0_i32_0 = arith.constant 0 : i32
    %c0_i32_1 = arith.constant 0 : i32
    return %c0_i32, %c0_i32_0 : i32, i32
  }
  func.func @transform_3(%arg0: i32) -> (i32, i32) {
    %c0_i32 = arith.constant 0 : i32
    %c0_i32_0 = arith.constant 0 : i32
    return %arg0, %c0_i32 : i32, i32
  }
}

</mosaic_0001>

<llo_original>
// kernel: reduction_block_a.5
$region0: #{reduction_block_a.5}
  #allocation0 [shape = 'u32[]', space=smem, size = 0x4, offset = 0x4, fixed_abs, tag = 'smem constant byte address 0x4 - core index']
  #allocation1 [shape = 'u32[144,128]{1,0:T(1,128)}', space=vmem, size = 0x12000, scoped, tag = 'internal scratch']
  %s0 = inlined_call_operand.vmem [shape: f32[8,8,8,4], index: 0, kind: input, shape index: {}]
  %s1 = inlined_call_operand.vmem [shape: f32[2,7,7,4], index: 1, kind: output, shape index: {}]
  %s2 = sld [smem:[#allocation0]]
  $region14: #{reduction_block_a.5} parent=0
    _
  %s4 = ssub.s32 1, %s2
  %s5 = scalar_select 0, %s4, %s2
  // Predicated region
  $region2: #{reduction_block_a.5} parent=0 // pred_check
    _
  $region3: #{reduction_block_a.5} parent=0 // pred_check_branch
    %7 = sbr.rel (0) target = $region5
  $region4: #{reduction_block_a.5} parent=0 // pred_region
    _
  $region5: #{reduction_block_a.5} parent=0 // pred_fallthru
    _
  %v8 = vld [vmem:[%s0] sm:$0x7f]
  %v9 = vld [vmem:[%s0 + $0x8] sm:$0x7f]
  %v10 = vld [vmem:[%s0 + $0x10] sm:$0x7f]
  %v11 = vld [vmem:[%s0 + $0x18] sm:$0x7f]
  %v12 = vld [vmem:[%s0 + $0x20] sm:$0x7f]
  %v13 = vld [vmem:[%s0 + $0x28] sm:$0x7f]
  %v14 = vld [vmem:[%s0 + $0x30] sm:$0x7f]
  %v15 = vld [vmem:[%s0 + $0x40] sm:$0x7f]
  %v16 = vld [vmem:[%s0 + $0x48] sm:$0x7f]
  %v17 = vld [vmem:[%s0 + $0x50] sm:$0x7f]
  %v18 = vld [vmem:[%s0 + $0x58] sm:$0x7f]
  %v19 = vld [vmem:[%s0 + $0x60] sm:$0x7f]
  %v20 = vld [vmem:[%s0 + $0x68] sm:$0x7f]
  %v21 = vld [vmem:[%s0 + $0x70] sm:$0x7f]
  %s22 = scalar_lea.vmem %s0, 128
  %v23 = vld [vmem:[%s22] sm:$0x7f]
  %v24 = vld [vmem:[%s22 + $0x8] sm:$0x7f]
  %v25 = vld [vmem:[%s22 + $0x10] sm:$0x7f]
  %v26 = vld [vmem:[%s22 + $0x18] sm:$0x7f]
  %v27 = vld [vmem:[%s22 + $0x20] sm:$0x7f]
  %v28 = vld [vmem:[%s22 + $0x28] sm:$0x7f]
  %v29 = vld [vmem:[%s22 + $0x30] sm:$0x7f]
  %v30 = vld [vmem:[%s22 + $0x40] sm:$0x7f]
  %v31 = vld [vmem:[%s22 + $0x48] sm:$0x7f]
  %v32 = vld [vmem:[%s22 + $0x50] sm:$0x7f]
  %v33 = vld [vmem:[%s22 + $0x58] sm:$0x7f]
  %v34 = vld [vmem:[%s22 + $0x60] sm:$0x7f]
  %v35 = vld [vmem:[%s22 + $0x68] sm:$0x7f]
  %v36 = vld [vmem:[%s22 + $0x70] sm:$0x7f]
  %v37 = vmax.f32 %v8, %v23
  %v38 = vmax.f32 %v9, %v24
  %v39 = vmax.f32 %v10, %v25
  %v40 = vmax.f32 %v11, %v26
  %v41 = vmax.f32 %v12, %v27
  %v42 = vmax.f32 %v13, %v28
  %v43 = vmax.f32 %v14, %v29
  %v44 = vmax.f32 %v15, %v30
  %v45 = vmax.f32 %v16, %v31
  %v46 = vmax.f32 %v17, %v32
  %v47 = vmax.f32 %v18, %v33
  %v48 = vmax.f32 %v19, %v34
  %v49 = vmax.f32 %v20, %v35
  %v50 = vmax.f32 %v21, %v36
  %v51 = vld [vmem:[%s0 + $0x1] sm:$0x7f]
  %v52 = vld [vmem:[%s0 + $0x9] sm:$0x7f]
  %v53 = vld [vmem:[%s0 + $0x11] sm:$0x7f]
  %v54 = vld [vmem:[%s0 + $0x19] sm:$0x7f]
  %v55 = vld [vmem:[%s0 + $0x21] sm:$0x7f]
  %v56 = vld [vmem:[%s0 + $0x29] sm:$0x7f]
  %v57 = vld [vmem:[%s0 + $0x31] sm:$0x7f]
  %v58 = vld [vmem:[%s0 + $0x41] sm:$0x7f]
  %v59 = vld [vmem:[%s0 + $0x49] sm:$0x7f]
  %v60 = vld [vmem:[%s0 + $0x51] sm:$0x7f]
  %v61 = vld [vmem:[%s0 + $0x59] sm:$0x7f]
  %v62 = vld [vmem:[%s0 + $0x61] sm:$0x7f]
  %v63 = vld [vmem:[%s0 + $0x69] sm:$0x7f]
  %v64 = vld [vmem:[%s0 + $0x71] sm:$0x7f]
  %v65 = vmax.f32 %v37, %v51
  %v66 = vmax.f32 %v38, %v52
  %v67 = vmax.f32 %v39, %v53
  %v68 = vmax.f32 %v40, %v54
  %v69 = vmax.f32 %v41, %v55
  %v70 = vmax.f32 %v42, %v56
  %v71 = vmax.f32 %v43, %v57
  %v72 = vmax.f32 %v44, %v58
  %v73 = vmax.f32 %v45, %v59
  %v74 = vmax.f32 %v46, %v60
  %v75 = vmax.f32 %v47, %v61
  %v76 = vmax.f32 %v48, %v62
  %v77 = vmax.f32 %v49, %v63
  %v78 = vmax.f32 %v50, %v64
  %s79 = scalar_lea.vmem %s0, 256
  %v80 = vld [vmem:[%s79] sm:$0x7f]
  %v81 = vld [vmem:[%s79 + $0x8] sm:$0x7f]
  %v82 = vld [vmem:[%s79 + $0x10] sm:$0x7f]
  %v83 = vld [vmem:[%s79 + $0x18] sm:$0x7f]
  %v84 = vld [vmem:[%s79 + $0x20] sm:$0x7f]
  %v85 = vld [vmem:[%s79 + $0x28] sm:$0x7f]
  %v86 = vld [vmem:[%s79 + $0x30] sm:$0x7f]
  %v87 = vld [vmem:[%s79 + $0x40] sm:$0x7f]
  %v88 = vld [vmem:[%s79 + $0x48] sm:$0x7f]
  %v89 = vld [vmem:[%s79 + $0x50] sm:$0x7f]
  %v90 = vld [vmem:[%s79 + $0x58] sm:$0x7f]
  %v91 = vld [vmem:[%s79 + $0x60] sm:$0x7f]
  %v92 = vld [vmem:[%s79 + $0x68] sm:$0x7f]
  %v93 = vld [vmem:[%s79 + $0x70] sm:$0x7f]
  %v94 = vmax.f32 %v65, %v80
  %v95 = vmax.f32 %v66, %v81
  %v96 = vmax.f32 %v67, %v82
  %v97 = vmax.f32 %v68, %v83
  %v98 = vmax.f32 %v69, %v84
  %v99 = vmax.f32 %v70, %v85
  %v100 = vmax.f32 %v71, %v86
  %v101 = vmax.f32 %v72, %v87
  %v102 = vmax.f32 %v73, %v88
  %v103 = vmax.f32 %v74, %v89
  %v104 = vmax.f32 %v75, %v90
  %v105 = vmax.f32 %v76, %v91
  %v106 = vmax.f32 %v77, %v92
  %v107 = vmax.f32 %v78, %v93
  %s108 = scalar_lea.vmem %s0, 384
  %v109 = vld [vmem:[%s108] sm:$0x7f]
  %v110 = vld [vmem:[%s108 + $0x8] sm:$0x7f]
  %v111 = vld [vmem:[%s108 + $0x10] sm:$0x7f]
  %v112 = vld [vmem:[%s108 + $0x18] sm:$0x7f]
  %v113 = vld [vmem:[%s108 + $0x20] sm:$0x7f]
  %v114 = vld [vmem:[%s108 + $0x28] sm:$0x7f]
  %v115 = vld [vmem:[%s108 + $0x30] sm:$0x7f]
  %v116 = vld [vmem:[%s108 + $0x40] sm:$0x7f]
  %v117 = vld [vmem:[%s108 + $0x48] sm:$0x7f]
  %v118 = vld [vmem:[%s108 + $0x50] sm:$0x7f]
  %v119 = vld [vmem:[%s108 + $0x58] sm:$0x7f]
  %v120 = vld [vmem:[%s108 + $0x60] sm:$0x7f]
  %v121 = vld [vmem:[%s108 + $0x68] sm:$0x7f]
  %v122 = vld [vmem:[%s108 + $0x70] sm:$0x7f]
  %v123 = vmax.f32 %v94, %v109
  %v124 = vmax.f32 %v95, %v110
  %v125 = vmax.f32 %v96, %v111
  %v126 = vmax.f32 %v97, %v112
  %v127 = vmax.f32 %v98, %v113
  %v128 = vmax.f32 %v99, %v114
  %v129 = vmax.f32 %v100, %v115
  %v130 = vmax.f32 %v101, %v116
  %v131 = vmax.f32 %v102, %v117
  %v132 = vmax.f32 %v103, %v118
  %v133 = vmax.f32 %v104, %v119
  %v134 = vmax.f32 %v105, %v120
  %v135 = vmax.f32 %v106, %v121
  %v136 = vmax.f32 %v107, %v122
  %v137 = vld [vmem:[%s79 + $0x1] sm:$0x7f]
  %v138 = vld [vmem:[%s79 + $0x9] sm:$0x7f]
  %v139 = vld [vmem:[%s79 + $0x11] sm:$0x7f]
  %v140 = vld [vmem:[%s79 + $0x19] sm:$0x7f]
  %v141 = vld [vmem:[%s79 + $0x21] sm:$0x7f]
  %v142 = vld [vmem:[%s79 + $0x29] sm:$0x7f]
  %v143 = vld [vmem:[%s79 + $0x31] sm:$0x7f]
  %v144 = vld [vmem:[%s79 + $0x41] sm:$0x7f]
  %v145 = vld [vmem:[%s79 + $0x49] sm:$0x7f]
  %v146 = vld [vmem:[%s79 + $0x51] sm:$0x7f]
  %v147 = vld [vmem:[%s79 + $0x59] sm:$0x7f]
  %v148 = vld [vmem:[%s79 + $0x61] sm:$0x7f]
  %v149 = vld [vmem:[%s79 + $0x69] sm:$0x7f]
  %v150 = vld [vmem:[%s79 + $0x71] sm:$0x7f]
  %v151 = vmax.f32 %v123, %v137
  %v152 = vmax.f32 %v124, %v138
  %v153 = vmax.f32 %v125, %v139
  %v154 = vmax.f32 %v126, %v140
  %v155 = vmax.f32 %v127, %v141
  %v156 = vmax.f32 %v128, %v142
  %v157 = vmax.f32 %v129, %v143
  %v158 = vmax.f32 %v130, %v144
  %v159 = vmax.f32 %v131, %v145
  %v160 = vmax.f32 %v132, %v146
  %v161 = vmax.f32 %v133, %v147
  %v162 = vmax.f32 %v134, %v148
  %v163 = vmax.f32 %v135, %v149
  %v164 = vmax.f32 %v136, %v150
  %s165 = scalar_lea.vmem %s0, 8
  %v166 = vld [vmem:[%s165] sm:$0x7f]
  %v167 = vld [vmem:[%s165 + $0x8] sm:$0x7f]
  %v168 = vld [vmem:[%s165 + $0x10] sm:$0x7f]
  %v169 = vld [vmem:[%s165 + $0x18] sm:$0x7f]
  %v170 = vld [vmem:[%s165 + $0x20] sm:$0x7f]
  %v171 = vld [vmem:[%s165 + $0x28] sm:$0x7f]
  %v172 = vld [vmem:[%s165 + $0x30] sm:$0x7f]
  %v173 = vld [vmem:[%s165 + $0x40] sm:$0x7f]
  %v174 = vld [vmem:[%s165 + $0x48] sm:$0x7f]
  %v175 = vld [vmem:[%s165 + $0x50] sm:$0x7f]
  %v176 = vld [vmem:[%s165 + $0x58] sm:$0x7f]
  %v177 = vld [vmem:[%s165 + $0x60] sm:$0x7f]
  %v178 = vld [vmem:[%s165 + $0x68] sm:$0x7f]
  %v179 = vld [vmem:[%s165 + $0x70] sm:$0x7f]
  %v180 = vmax.f32 %v151, %v166
  %v181 = vmax.f32 %v152, %v167
  %v182 = vmax.f32 %v153, %v168
  %v183 = vmax.f32 %v154, %v169
  %v184 = vmax.f32 %v155, %v170
  %v185 = vmax.f32 %v156, %v171
  %v186 = vmax.f32 %v157, %v172
  %v187 = vmax.f32 %v158, %v173
  %v188 = vmax.f32 %v159, %v174
  %v189 = vmax.f32 %v160, %v175
  %v190 = vmax.f32 %v161, %v176
  %v191 = vmax.f32 %v162, %v177
  %v192 = vmax.f32 %v163, %v178
  %v193 = vmax.f32 %v164, %v179
  %s194 = scalar_lea.vmem %s0, 136
  %v195 = vld [vmem:[%s194] sm:$0x7f]
  %v196 = vld [vmem:[%s194 + $0x8] sm:$0x7f]
  %v197 = vld [vmem:[%s194 + $0x10] sm:$0x7f]
  %v198 = vld [vmem:[%s194 + $0x18] sm:$0x7f]
  %v199 = vld [vmem:[%s194 + $0x20] sm:$0x7f]
  %v200 = vld [vmem:[%s194 + $0x28] sm:$0x7f]
  %v201 = vld [vmem:[%s194 + $0x30] sm:$0x7f]
  %v202 = vld [vmem:[%s194 + $0x40] sm:$0x7f]
  %v203 = vld [vmem:[%s194 + $0x48] sm:$0x7f]
  %v204 = vld [vmem:[%s194 + $0x50] sm:$0x7f]
  %v205 = vld [vmem:[%s194 + $0x58] sm:$0x7f]
  %v206 = vld [vmem:[%s194 + $0x60] sm:$0x7f]
  %v207 = vld [vmem:[%s194 + $0x68] sm:$0x7f]
  %v208 = vld [vmem:[%s194 + $0x70] sm:$0x7f]
  %v209 = vmax.f32 %v180, %v195
  %v210 = vmax.f32 %v181, %v196
  %v211 = vmax.f32 %v182, %v197
  %v212 = vmax.f32 %v183, %v198
  %v213 = vmax.f32 %v184, %v199
  %v214 = vmax.f32 %v185, %v200
  %v215 = vmax.f32 %v186, %v201
  %v216 = vmax.f32 %v187, %v202
  %v217 = vmax.f32 %v188, %v203
  %v218 = vmax.f32 %v189, %v204
  %v219 = vmax.f32 %v190, %v205
  %v220 = vmax.f32 %v191, %v206
  %v221 = vmax.f32 %v192, %v207
  %v222 = vmax.f32 %v193, %v208
  %v223 = vld [vmem:[%s165 + $0x1] sm:$0x7f]
  %v224 = vld [vmem:[%s165 + $0x9] sm:$0x7f]
  %v225 = vld [vmem:[%s165 + $0x11] sm:$0x7f]
  %v226 = vld [vmem:[%s165 + $0x19] sm:$0x7f]
  %v227 = vld [vmem:[%s165 + $0x21] sm:$0x7f]
  %v228 = vld [vmem:[%s165 + $0x29] sm:$0x7f]
  %v229 = vld [vmem:[%s165 + $0x31] sm:$0x7f]
  %v230 = vld [vmem:[%s165 + $0x41] sm:$0x7f]
  %v231 = vld [vmem:[%s165 + $0x49] sm:$0x7f]
  %v232 = vld [vmem:[%s165 + $0x51] sm:$0x7f]
  %v233 = vld [vmem:[%s165 + $0x59] sm:$0x7f]
  %v234 = vld [vmem:[%s165 + $0x61] sm:$0x7f]
  %v235 = vld [vmem:[%s165 + $0x69] sm:$0x7f]
  %v236 = vld [vmem:[%s165 + $0x71] sm:$0x7f]
  %v237 = vmax.f32 %v209, %v223
  %v238 = vmax.f32 %v210, %v224
  %v239 = vmax.f32 %v211, %v225
  %v240 = vmax.f32 %v212, %v226
  %v241 = vmax.f32 %v213, %v227
  %v242 = vmax.f32 %v214, %v228
  %v243 = vmax.f32 %v215, %v229
  %v244 = vmax.f32 %v216, %v230
  %v245 = vmax.f32 %v217, %v231
  %v246 = vmax.f32 %v218, %v232
  %v247 = vmax.f32 %v219, %v233
  %v248 = vmax.f32 %v220, %v234
  %v249 = vmax.f32 %v221, %v235
  %v250 = vmax.f32 %v222, %v236
  %vm251 = vcmask 30720
  %252 = vst.msk [vmem:[%s1] sm:$0x7f] %vm251, %v237
  %253 = vst.msk [vmem:[%s1 + $0x8] sm:$0x7f] %vm251, %v238
  %254 = vst.msk [vmem:[%s1 + $0x10] sm:$0x7f] %vm251, %v239
  %255 = vst.msk [vmem:[%s1 + $0x18] sm:$0x7f] %vm251, %v240
  %256 = vst.msk [vmem:[%s1 + $0x20] sm:$0x7f] %vm251, %v241
  %257 = vst.msk [vmem:[%s1 + $0x28] sm:$0x7f] %vm251, %v242
  %258 = vst.msk [vmem:[%s1 + $0x30] sm:$0x7f] %vm251, %v243
  %259 = vst.msk [vmem:[%s1 + $0x38] sm:$0x7f] %vm251, %v244
  %260 = vst.msk [vmem:[%s1 + $0x40] sm:$0x7f] %vm251, %v245
  %261 = vst.msk [vmem:[%s1 + $0x48] sm:$0x7f] %vm251, %v246
  %262 = vst.msk [vmem:[%s1 + $0x50] sm:$0x7f] %vm251, %v247
  %263 = vst.msk [vmem:[%s1 + $0x58] sm:$0x7f] %vm251, %v248
  %264 = vst.msk [vmem:[%s1 + $0x60] sm:$0x7f] %vm251, %v249
  %265 = vst.msk [vmem:[%s1 + $0x68] sm:$0x7f] %vm251, %v250
  // Predicated region
  $region6: #{reduction_block_a.5} parent=0 // pred_check
    _
  $region7: #{reduction_block_a.5} parent=0 // pred_check_branch
    %267 = sbr.rel (0) target = $region9
  $region8: #{reduction_block_a.5} parent=0 // pred_region
    _
  $region9: #{reduction_block_a.5} parent=0 // pred_fallthru
    _
  // Predicated region
  $region10: #{reduction_block_a.5} parent=0 // pred_check
    _
  $region11: #{reduction_block_a.5} parent=0 // pred_check_branch
    %269 = sbr.rel (0) target = $region13
  $region12: #{reduction_block_a.5} parent=0 // pred_region
    _
  $region13: #{reduction_block_a.5} parent=0 // pred_fallthru
    _

// kernel: reduction_block_a.4
$region0: #{reduction_block_a.4}
  #allocation0 [shape = 'u32[]', space=smem, size = 0x4, offset = 0x4, fixed_abs, tag = 'smem constant byte address 0x4 - core index']
  #allocation1 [shape = 'u32[144,128]{1,0:T(1,128)}', space=vmem, size = 0x12000, scoped, tag = 'internal scratch']
  %s0 = inlined_call_operand.vmem [shape: bf16[112,864], index: 0, kind: input, shape index: {}]
  %s1 = inlined_call_operand.vmem [shape: bf16[864,128], index: 1, kind: input, shape index: {}]
  %s2 = inlined_call_operand.vmem [shape: f32[1,128], index: 2, kind: input, shape index: {}]
  %s3 = inlined_call_operand.vmem [shape: f32[112,128], index: 3, kind: output, shape index: {}]
  %s4 = sld [smem:[#allocation0]]
  $region22: #{reduction_block_a.4} parent=0
    _
  %s6 = ssub.s32 1, %s4
  %s7 = scalar_select 0, %s6, %s4
  // Predicated region
  $region2: #{reduction_block_a.4} parent=0 // pred_check
    _
  $region3: #{reduction_block_a.4} parent=0 // pred_check_branch
    %9 = sbr.rel (0) target = $region5
  $region4: #{reduction_block_a.4} parent=0 // pred_region
    _
  $region5: #{reduction_block_a.4} parent=0 // pred_fallthru
    _
  // Predicated region
  $region6: #{reduction_block_a.4} parent=0 // pred_check
    _
  $region7: #{reduction_block_a.4} parent=0 // pred_check_branch
    %11 = sbr.rel (0) target = $region9
  $region8: #{reduction_block_a.4} parent=0 // pred_region
    _
  $region9: #{reduction_block_a.4} parent=0 // pred_fallthru
    _
  // Predicated region
  $region10: #{reduction_block_a.4} parent=0 // pred_check
    _
  $region11: #{reduction_block_a.4} parent=0 // pred_check_branch
    %13 = sbr.rel (0) target = $region13
  $region12: #{reduction_block_a.4} parent=0 // pred_region
    _
  $region13: #{reduction_block_a.4} parent=0 // pred_fallthru
    _
  %v15 = vld [vmem:[%s0] sm:$0xff]
  %v16 = vld [vmem:[%s0 + $0x8] sm:$0xff]
  %v17 = vld [vmem:[%s0 + $0x10] sm:$0xff]
  %v18 = vld [vmem:[%s0 + $0x18] sm:$0xf]
  %v19 = vld [vmem:[%s0 + $0x1c] sm:$0xff]
  %v20 = vld [vmem:[%s0 + $0x24] sm:$0xff]
  %v21 = vld [vmem:[%s0 + $0x2c] sm:$0xff]
  %v22 = vld [vmem:[%s0 + $0x34] sm:$0xf]
  %v23 = vld [vmem:[%s0 + $0x38] sm:$0xff]
  %v24 = vld [vmem:[%s0 + $0x40] sm:$0xff]
  %v25 = vld [vmem:[%s0 + $0x48] sm:$0xff]
  %v26 = vld [vmem:[%s0 + $0x50] sm:$0xf]
  %v27 = vld [vmem:[%s0 + $0x54] sm:$0xff]
  %v28 = vld [vmem:[%s0 + $0x5c] sm:$0xff]
  %v29 = vld [vmem:[%s0 + $0x64] sm:$0xff]
  %v30 = vld [vmem:[%s0 + $0x6c] sm:$0xf]
  %v31 = vld [vmem:[%s0 + $0x70] sm:$0xff]
  %v32 = vld [vmem:[%s0 + $0x78] sm:$0xff]
  %v33 = vld [vmem:[%s0 + $0x80] sm:$0xff]
  %v34 = vld [vmem:[%s0 + $0x88] sm:$0xf]
  %v35 = vld [vmem:[%s0 + $0x8c] sm:$0xff]
  %v36 = vld [vmem:[%s0 + $0x94] sm:$0xff]
  %v37 = vld [vmem:[%s0 + $0x9c] sm:$0xff]
  %v38 = vld [vmem:[%s0 + $0xa4] sm:$0xf]
  %v39 = vld [vmem:[%s0 + $0xa8] sm:$0xff]
  %v40 = vld [vmem:[%s0 + $0xb0] sm:$0xff]
  %v41 = vld [vmem:[%s0 + $0xb8] sm:$0xff]
  %v42 = vld [vmem:[%s0 + $0xc0] sm:$0xf]
  %v43 = vld [vmem:[%s0 + $0xc4] sm:$0xff]
  %v44 = vld [vmem:[%s0 + $0xcc] sm:$0xff]
  %v45 = vld [vmem:[%s0 + $0xd4] sm:$0xff]
  %v46 = vld [vmem:[%s0 + $0xdc] sm:$0xf]
  %v47 = vld [vmem:[%s0 + $0xe0] sm:$0xff]
  %v48 = vld [vmem:[%s0 + $0xe8] sm:$0xff]
  %v49 = vld [vmem:[%s0 + $0xf0] sm:$0xff]
  %v50 = vld [vmem:[%s0 + $0xf8] sm:$0xf]
  %v51 = vld [vmem:[%s0 + $0xfc] sm:$0xff]
  %v52 = vld [vmem:[%s0 + $0x104] sm:$0xff]
  %v53 = vld [vmem:[%s0 + $0x10c] sm:$0xff]
  %v54 = vld [vmem:[%s0 + $0x114] sm:$0xf]
  %v55 = vld [vmem:[%s0 + $0x118] sm:$0xff]
  %v56 = vld [vmem:[%s0 + $0x120] sm:$0xff]
  %v57 = vld [vmem:[%s0 + $0x128] sm:$0xff]
  %v58 = vld [vmem:[%s0 + $0x130] sm:$0xf]
  %v59 = vld [vmem:[%s0 + $0x134] sm:$0xff]
  %v60 = vld [vmem:[%s0 + $0x13c] sm:$0xff]
  %v61 = vld [vmem:[%s0 + $0x144] sm:$0xff]
  %v62 = vld [vmem:[%s0 + $0x14c] sm:$0xf]
  %v63 = vld [vmem:[%s0 + $0x150] sm:$0xff]
  %v64 = vld [vmem:[%s0 + $0x158] sm:$0xff]
  %v65 = vld [vmem:[%s0 + $0x160] sm:$0xff]
  %v66 = vld [vmem:[%s0 + $0x168] sm:$0xf]
  %v67 = vld [vmem:[%s0 + $0x16c] sm:$0xff]
  %v68 = vld [vmem:[%s0 + $0x174] sm:$0xff]
  %v69 = vld [vmem:[%s0 + $0x17c] sm:$0xff]
  %v70 = vld [vmem:[%s0 + $0x184] sm:$0xf]
  %v71 = vld [vmem:[%s1] sm:$0xf]
  %v72 = vld [vmem:[%s1 + $0x4] sm:$0xf]
  %v73 = vld [vmem:[%s1 + $0x8] sm:$0xf]
  %v74 = vld [vmem:[%s1 + $0xc] sm:$0xf]
  %v75 = vld [vmem:[%s1 + $0x10] sm:$0xf]
  %v76 = vld [vmem:[%s1 + $0x14] sm:$0xf]
  %v77 = vld [vmem:[%s1 + $0x18] sm:$0xf]
  %v78 = vld [vmem:[%s1 + $0x1c] sm:$0xf]
  %v79 = vld [vmem:[%s1 + $0x20] sm:$0xf]
  %v80 = vld [vmem:[%s1 + $0x24] sm:$0xf]
  %v81 = vld [vmem:[%s1 + $0x28] sm:$0xf]
  %v82 = vld [vmem:[%s1 + $0x2c] sm:$0xf]
  %v83 = vld [vmem:[%s1 + $0x30] sm:$0xf]
  %v84 = vld [vmem:[%s1 + $0x34] sm:$0xf]
  %v85 = vld [vmem:[%s1 + $0x38] sm:$0xf]
  %v86 = vld [vmem:[%s1 + $0x3c] sm:$0xf]
  %v87 = vld [vmem:[%s1 + $0x40] sm:$0xf]
  %v88 = vld [vmem:[%s1 + $0x44] sm:$0xf]
  %v89 = vld [vmem:[%s1 + $0x48] sm:$0xf]
  %v90 = vld [vmem:[%s1 + $0x4c] sm:$0xf]
  %v91 = vld [vmem:[%s1 + $0x50] sm:$0xf]
  %v92 = vld [vmem:[%s1 + $0x54] sm:$0xf]
  %v93 = vld [vmem:[%s1 + $0x58] sm:$0xf]
  %v94 = vld [vmem:[%s1 + $0x5c] sm:$0xf]
  %v95 = vld [vmem:[%s1 + $0x60] sm:$0xf]
  %v96 = vld [vmem:[%s1 + $0x64] sm:$0xf]
  %v97 = vld [vmem:[%s1 + $0x68] sm:$0xf]
  %v98 = vld [vmem:[%s1 + $0x6c] sm:$0xf]
  %v99 = vld [vmem:[%s1 + $0x70] sm:$0xf]
  %v100 = vld [vmem:[%s1 + $0x74] sm:$0xf]
  %v101 = vld [vmem:[%s1 + $0x78] sm:$0xf]
  %v102 = vld [vmem:[%s1 + $0x7c] sm:$0xf]
  %v103 = vld [vmem:[%s1 + $0x80] sm:$0xf]
  %v104 = vld [vmem:[%s1 + $0x84] sm:$0xf]
  %v105 = vld [vmem:[%s1 + $0x88] sm:$0xf]
  %v106 = vld [vmem:[%s1 + $0x8c] sm:$0xf]
  %v107 = vld [vmem:[%s1 + $0x90] sm:$0xf]
  %v108 = vld [vmem:[%s1 + $0x94] sm:$0xf]
  %v109 = vld [vmem:[%s1 + $0x98] sm:$0xf]
  %v110 = vld [vmem:[%s1 + $0x9c] sm:$0xf]
  %v111 = vld [vmem:[%s1 + $0xa0] sm:$0xf]
  %v112 = vld [vmem:[%s1 + $0xa4] sm:$0xf]
  %v113 = vld [vmem:[%s1 + $0xa8] sm:$0xf]
  %v114 = vld [vmem:[%s1 + $0xac] sm:$0xf]
  %v115 = vld [vmem:[%s1 + $0xb0] sm:$0xf]
  %v116 = vld [vmem:[%s1 + $0xb4] sm:$0xf]
  %v117 = vld [vmem:[%s1 + $0xb8] sm:$0xf]
  %v118 = vld [vmem:[%s1 + $0xbc] sm:$0xf]
  %v119 = vld [vmem:[%s1 + $0xc0] sm:$0xf]
  %v120 = vld [vmem:[%s1 + $0xc4] sm:$0xf]
  %v121 = vld [vmem:[%s1 + $0xc8] sm:$0xf]
  %v122 = vld [vmem:[%s1 + $0xcc] sm:$0xf]
  %v123 = vld [vmem:[%s1 + $0xd0] sm:$0xf]
  %v124 = vld [vmem:[%s1 + $0xd4] sm:$0xf]
  %v125 = vld [vmem:[%s1 + $0xd8] sm:$0xf]
  %v126 = vld [vmem:[%s1 + $0xdc] sm:$0xf]
  %v127 = vld [vmem:[%s1 + $0xe0] sm:$0xf]
  %v128 = vld [vmem:[%s1 + $0xe4] sm:$0xf]
  %v129 = vld [vmem:[%s1 + $0xe8] sm:$0xf]
  %v130 = vld [vmem:[%s1 + $0xec] sm:$0xf]
  %v131 = vld [vmem:[%s1 + $0xf0] sm:$0xf]
  %v132 = vld [vmem:[%s1 + $0xf4] sm:$0xf]
  %v133 = vld [vmem:[%s1 + $0xf8] sm:$0xf]
  %v134 = vld [vmem:[%s1 + $0xfc] sm:$0xf]
  %v135 = vld [vmem:[%s1 + $0x100] sm:$0xf]
  %v136 = vld [vmem:[%s1 + $0x104] sm:$0xf]
  %v137 = vld [vmem:[%s1 + $0x108] sm:$0xf]
  %v138 = vld [vmem:[%s1 + $0x10c] sm:$0xf]
  %v139 = vld [vmem:[%s1 + $0x110] sm:$0xf]
  %v140 = vld [vmem:[%s1 + $0x114] sm:$0xf]
  %v141 = vld [vmem:[%s1 + $0x118] sm:$0xf]
  %v142 = vld [vmem:[%s1 + $0x11c] sm:$0xf]
  %v143 = vld [vmem:[%s1 + $0x120] sm:$0xf]
  %v144 = vld [vmem:[%s1 + $0x124] sm:$0xf]
  %v145 = vld [vmem:[%s1 + $0x128] sm:$0xf]
  %v146 = vld [vmem:[%s1 + $0x12c] sm:$0xf]
  %v147 = vld [vmem:[%s1 + $0x130] sm:$0xf]
  %v148 = vld [vmem:[%s1 + $0x134] sm:$0xf]
  %v149 = vld [vmem:[%s1 + $0x138] sm:$0xf]
  %v150 = vld [vmem:[%s1 + $0x13c] sm:$0xf]
  %v151 = vld [vmem:[%s1 + $0x140] sm:$0xf]
  %v152 = vld [vmem:[%s1 + $0x144] sm:$0xf]
  %v153 = vld [vmem:[%s1 + $0x148] sm:$0xf]
  %v154 = vld [vmem:[%s1 + $0x14c] sm:$0xf]
  %v155 = vld [vmem:[%s1 + $0x150] sm:$0xf]
  %v156 = vld [vmem:[%s1 + $0x154] sm:$0xf]
  %v157 = vld [vmem:[%s1 + $0x158] sm:$0xf]
  %v158 = vld [vmem:[%s1 + $0x15c] sm:$0xf]
  %v159 = vld [vmem:[%s1 + $0x160] sm:$0xf]
  %v160 = vld [vmem:[%s1 + $0x164] sm:$0xf]
  %v161 = vld [vmem:[%s1 + $0x168] sm:$0xf]
  %v162 = vld [vmem:[%s1 + $0x16c] sm:$0xf]
  %v163 = vld [vmem:[%s1 + $0x170] sm:$0xf]
  %v164 = vld [vmem:[%s1 + $0x174] sm:$0xf]
  %v165 = vld [vmem:[%s1 + $0x178] sm:$0xf]
  %v166 = vld [vmem:[%s1 + $0x17c] sm:$0xf]
  %v167 = vld [vmem:[%s1 + $0x180] sm:$0xf]
  %v168 = vld [vmem:[%s1 + $0x184] sm:$0xf]
  %v169 = vld [vmem:[%s1 + $0x188] sm:$0xf]
  %v170 = vld [vmem:[%s1 + $0x18c] sm:$0xf]
  %v171 = vld [vmem:[%s1 + $0x190] sm:$0xf]
  %v172 = vld [vmem:[%s1 + $0x194] sm:$0xf]
  %v173 = vld [vmem:[%s1 + $0x198] sm:$0xf]
  %v174 = vld [vmem:[%s1 + $0x19c] sm:$0xf]
  %v175 = vld [vmem:[%s1 + $0x1a0] sm:$0xf]
  %v176 = vld [vmem:[%s1 + $0x1a4] sm:$0xf]
  %v177 = vld [vmem:[%s1 + $0x1a8] sm:$0xf]
  %v178 = vld [vmem:[%s1 + $0x1ac] sm:$0xf]
  %v179 = vld [vmem:[%s2] sm:$0x1]
  %v181 = vlaneseq
  %v182 = vshrl.u32 %v181, 7
  %v183 = vsub.s32 0, %v182
  %v184 = vrot.slane %v179, %v183
  %v242 = vunpack.c.l.b16 %v15
  %v243 = vunpack.c.h.b16 %v15
  %v244 = vunpack.c.l.b16 %v16
  %v245 = vunpack.c.h.b16 %v16
  %v246 = vunpack.c.l.b16 %v17
  %v247 = vunpack.c.h.b16 %v17
  %v248 = vunpack.c.l.b16 %v18
  %v249 = vunpack.c.l.b16 %v19
  %v250 = vunpack.c.h.b16 %v19
  %v251 = vunpack.c.l.b16 %v20
  %v252 = vunpack.c.h.b16 %v20
  %v253 = vunpack.c.l.b16 %v21
  %v254 = vunpack.c.h.b16 %v21
  %v255 = vunpack.c.l.b16 %v22
  %v256 = vunpack.c.l.b16 %v23
  %v257 = vunpack.c.h.b16 %v23
  %v258 = vunpack.c.l.b16 %v24
  %v259 = vunpack.c.h.b16 %v24
  %v260 = vunpack.c.l.b16 %v25
  %v261 = vunpack.c.h.b16 %v25
  %v262 = vunpack.c.l.b16 %v26
  %v263 = vunpack.c.l.b16 %v27
  %v264 = vunpack.c.h.b16 %v27
  %v265 = vunpack.c.l.b16 %v28
  %v266 = vunpack.c.h.b16 %v28
  %v267 = vunpack.c.l.b16 %v29
  %v268 = vunpack.c.h.b16 %v29
  %v269 = vunpack.c.l.b16 %v30
  %v270 = vunpack.c.l.b16 %v31
  %v271 = vunpack.c.h.b16 %v31
  %v272 = vunpack.c.l.b16 %v32
  %v273 = vunpack.c.h.b16 %v32
  %v274 = vunpack.c.l.b16 %v33
  %v275 = vunpack.c.h.b16 %v33
  %v276 = vunpack.c.l.b16 %v34
  %v277 = vunpack.c.l.b16 %v35
  %v278 = vunpack.c.h.b16 %v35
  %v279 = vunpack.c.l.b16 %v36
  %v280 = vunpack.c.h.b16 %v36
  %v281 = vunpack.c.l.b16 %v37
  %v282 = vunpack.c.h.b16 %v37
  %v283 = vunpack.c.l.b16 %v38
  %v284 = vunpack.c.l.b16 %v39
  %v285 = vunpack.c.h.b16 %v39
  %v286 = vunpack.c.l.b16 %v40
  %v287 = vunpack.c.h.b16 %v40
  %v288 = vunpack.c.l.b16 %v41
  %v289 = vunpack.c.h.b16 %v41
  %v290 = vunpack.c.l.b16 %v42
  %v291 = vunpack.c.l.b16 %v43
  %v292 = vunpack.c.h.b16 %v43
  %v293 = vunpack.c.l.b16 %v44
  %v294 = vunpack.c.h.b16 %v44
  %v295 = vunpack.c.l.b16 %v45
  %v296 = vunpack.c.h.b16 %v45
  %v297 = vunpack.c.l.b16 %v46
  %v298 = vunpack.c.l.b16 %v47
  %v299 = vunpack.c.h.b16 %v47
  %v300 = vunpack.c.l.b16 %v48
  %v301 = vunpack.c.h.b16 %v48
  %v302 = vunpack.c.l.b16 %v49
  %v303 = vunpack.c.h.b16 %v49
  %v304 = vunpack.c.l.b16 %v50
  %v305 = vunpack.c.l.b16 %v51
  %v306 = vunpack.c.h.b16 %v51
  %v307 = vunpack.c.l.b16 %v52
  %v308 = vunpack.c.h.b16 %v52
  %v309 = vunpack.c.l.b16 %v53
  %v310 = vunpack.c.h.b16 %v53
  %v311 = vunpack.c.l.b16 %v54
  %v312 = vunpack.c.l.b16 %v55
  %v313 = vunpack.c.h.b16 %v55
  %v314 = vunpack.c.l.b16 %v56
  %v315 = vunpack.c.h.b16 %v56
  %v316 = vunpack.c.l.b16 %v57
  %v317 = vunpack.c.h.b16 %v57
  %v318 = vunpack.c.l.b16 %v58
  %v319 = vunpack.c.l.b16 %v59
  %v320 = vunpack.c.h.b16 %v59
  %v321 = vunpack.c.l.b16 %v60
  %v322 = vunpack.c.h.b16 %v60
  %v323 = vunpack.c.l.b16 %v61
  %v324 = vunpack.c.h.b16 %v61
  %v325 = vunpack.c.l.b16 %v62
  %v326 = vunpack.c.l.b16 %v63
  %v327 = vunpack.c.h.b16 %v63
  %v328 = vunpack.c.l.b16 %v64
  %v329 = vunpack.c.h.b16 %v64
  %v330 = vunpack.c.l.b16 %v65
  %v331 = vunpack.c.h.b16 %v65
  %v332 = vunpack.c.l.b16 %v66
  %v333 = vunpack.c.l.b16 %v67
  %v334 = vunpack.c.h.b16 %v67
  %v335 = vunpack.c.l.b16 %v68
  %v336 = vunpack.c.h.b16 %v68
  %v337 = vunpack.c.l.b16 %v69
  %v338 = vunpack.c.h.b16 %v69
  %v339 = vunpack.c.l.b16 %v70
  %v340 = vpack.c.b16 %v249, %v242
  %v341 = vpack.c.b16 %v250, %v243
  %v342 = vpack.c.b16 %v251, %v244
  %v343 = vpack.c.b16 %v252, %v245
  %v344 = vpack.c.b16 %v253, %v246
  %v345 = vpack.c.b16 %v254, %v247
  %v346 = vpack.c.b16 %v255, %v248
  %v347 = vpack.c.b16 %v263, %v256
  %v348 = vpack.c.b16 %v264, %v257
  %v349 = vpack.c.b16 %v265, %v258
  %v350 = vpack.c.b16 %v266, %v259
  %v351 = vpack.c.b16 %v267, %v260
  %v352 = vpack.c.b16 %v268, %v261
  %v353 = vpack.c.b16 %v269, %v262
  %v354 = vpack.c.b16 %v277, %v270
  %v355 = vpack.c.b16 %v278, %v271
  %v356 = vpack.c.b16 %v279, %v272
  %v357 = vpack.c.b16 %v280, %v273
  %v358 = vpack.c.b16 %v281, %v274
  %v359 = vpack.c.b16 %v282, %v275
  %v360 = vpack.c.b16 %v283, %v276
  %v361 = vpack.c.b16 %v291, %v284
  %v362 = vpack.c.b16 %v292, %v285
  %v363 = vpack.c.b16 %v293, %v286
  %v364 = vpack.c.b16 %v294, %v287
  %v365 = vpack.c.b16 %v295, %v288
  %v366 = vpack.c.b16 %v296, %v289
  %v367 = vpack.c.b16 %v297, %v290
  %v368 = vpack.c.b16 %v305, %v298
  %v369 = vpack.c.b16 %v306, %v299
  %v370 = vpack.c.b16 %v307, %v300
  %v371 = vpack.c.b16 %v308, %v301
  %v372 = vpack.c.b16 %v309, %v302
  %v373 = vpack.c.b16 %v310, %v303
  %v374 = vpack.c.b16 %v311, %v304
  %v375 = vpack.c.b16 %v319, %v312
  %v376 = vpack.c.b16 %v320, %v313
  %v377 = vpack.c.b16 %v321, %v314
  %v378 = vpack.c.b16 %v322, %v315
  %v379 = vpack.c.b16 %v323, %v316
  %v380 = vpack.c.b16 %v324, %v317
  %v381 = vpack.c.b16 %v325, %v318
  %v382 = vpack.c.b16 %v333, %v326
  %v383 = vpack.c.b16 %v334, %v327
  %v384 = vpack.c.b16 %v335, %v328
  %v385 = vpack.c.b16 %v336, %v329
  %v386 = vpack.c.b16 %v337, %v330
  %v387 = vpack.c.b16 %v338, %v331
  %v388 = vpack.c.b16 %v339, %v332
  %v539 = vunpack.c.l.b16 %v71
  %v540 = vunpack.c.l.b16 %v72
  %v541 = vunpack.c.l.b16 %v73
  %v542 = vunpack.c.l.b16 %v74
  %v543 = vunpack.c.l.b16 %v75
  %v544 = vunpack.c.l.b16 %v76
  %v545 = vunpack.c.l.b16 %v77
  %v546 = vunpack.c.l.b16 %v78
  %v547 = vunpack.c.l.b16 %v79
  %v548 = vunpack.c.l.b16 %v80
  %v549 = vunpack.c.l.b16 %v81
  %v550 = vunpack.c.l.b16 %v82
  %v551 = vunpack.c.l.b16 %v83
  %v552 = vunpack.c.l.b16 %v84
  %v553 = vunpack.c.l.b16 %v85
  %v554 = vunpack.c.l.b16 %v86
  %v555 = vunpack.c.l.b16 %v87
  %v556 = vunpack.c.l.b16 %v88
  %v557 = vunpack.c.l.b16 %v89
  %v558 = vunpack.c.l.b16 %v90
  %v559 = vunpack.c.l.b16 %v91
  %v560 = vunpack.c.l.b16 %v92
  %v561 = vunpack.c.l.b16 %v93
  %v562 = vunpack.c.l.b16 %v94
  %v563 = vunpack.c.l.b16 %v95
  %v564 = vunpack.c.l.b16 %v96
  %v565 = vunpack.c.l.b16 %v97
  %v566 = vunpack.c.l.b16 %v98
  %v567 = vunpack.c.l.b16 %v99
  %v568 = vunpack.c.l.b16 %v100
  %v569 = vunpack.c.l.b16 %v101
  %v570 = vunpack.c.l.b16 %v102
  %v571 = vunpack.c.l.b16 %v103
  %v572 = vunpack.c.l.b16 %v104
  %v573 = vunpack.c.l.b16 %v105
  %v574 = vunpack.c.l.b16 %v106
  %v575 = vunpack.c.l.b16 %v107
  %v576 = vunpack.c.l.b16 %v108
  %v577 = vunpack.c.l.b16 %v109
  %v578 = vunpack.c.l.b16 %v110
  %v579 = vunpack.c.l.b16 %v111
  %v580 = vunpack.c.l.b16 %v112
  %v581 = vunpack.c.l.b16 %v113
  %v582 = vunpack.c.l.b16 %v114
  %v583 = vunpack.c.l.b16 %v115
  %v584 = vunpack.c.l.b16 %v116
  %v585 = vunpack.c.l.b16 %v117
  %v586 = vunpack.c.l.b16 %v118
  %v587 = vunpack.c.l.b16 %v119
  %v588 = vunpack.c.l.b16 %v120
  %v589 = vunpack.c.l.b16 %v121
  %v590 = vunpack.c.l.b16 %v122
  %v591 = vunpack.c.l.b16 %v123
  %v592 = vunpack.c.l.b16 %v124
  %v593 = vunpack.c.l.b16 %v125
  %v594 = vunpack.c.l.b16 %v126
  %v595 = vunpack.c.l.b16 %v127
  %v596 = vunpack.c.l.b16 %v128
  %v597 = vunpack.c.l.b16 %v129
  %v598 = vunpack.c.l.b16 %v130
  %v599 = vunpack.c.l.b16 %v131
  %v600 = vunpack.c.l.b16 %v132
  %v601 = vunpack.c.l.b16 %v133
  %v602 = vunpack.c.l.b16 %v134
  %v603 = vunpack.c.l.b16 %v135
  %v604 = vunpack.c.l.b16 %v136
  %v605 = vunpack.c.l.b16 %v137
  %v606 = vunpack.c.l.b16 %v138
  %v607 = vunpack.c.l.b16 %v139
  %v608 = vunpack.c.l.b16 %v140
  %v609 = vunpack.c.l.b16 %v141
  %v610 = vunpack.c.l.b16 %v142
  %v611 = vunpack.c.l.b16 %v143
  %v612 = vunpack.c.l.b16 %v144
  %v613 = vunpack.c.l.b16 %v145
  %v614 = vunpack.c.l.b16 %v146
  %v615 = vunpack.c.l.b16 %v147
  %v616 = vunpack.c.l.b16 %v148
  %v617 = vunpack.c.l.b16 %v149
  %v618 = vunpack.c.l.b16 %v150
  %v619 = vunpack.c.l.b16 %v151
  %v620 = vunpack.c.l.b16 %v152
  %v621 = vunpack.c.l.b16 %v153
  %v622 = vunpack.c.l.b16 %v154
  %v623 = vunpack.c.l.b16 %v155
  %v624 = vunpack.c.l.b16 %v156
  %v625 = vunpack.c.l.b16 %v157
  %v626 = vunpack.c.l.b16 %v158
  %v627 = vunpack.c.l.b16 %v159
  %v628 = vunpack.c.l.b16 %v160
  %v629 = vunpack.c.l.b16 %v161
  %v630 = vunpack.c.l.b16 %v162
  %v631 = vunpack.c.l.b16 %v163
  %v632 = vunpack.c.l.b16 %v164
  %v633 = vunpack.c.l.b16 %v165
  %v634 = vunpack.c.l.b16 %v166
  %v635 = vunpack.c.l.b16 %v167
  %v636 = vunpack.c.l.b16 %v168
  %v637 = vunpack.c.l.b16 %v169
  %v638 = vunpack.c.l.b16 %v170
  %v639 = vunpack.c.l.b16 %v171
  %v640 = vunpack.c.l.b16 %v172
  %v641 = vunpack.c.l.b16 %v173
  %v642 = vunpack.c.l.b16 %v174
  %v643 = vunpack.c.l.b16 %v175
  %v644 = vunpack.c.l.b16 %v176
  %v645 = vunpack.c.l.b16 %v177
  %v646 = vunpack.c.l.b16 %v178
  %v647 = vpack.c.b16 %v540, %v539
  %v648 = vpack.c.b16 %v542, %v541
  %v649 = vpack.c.b16 %v544, %v543
  %v650 = vpack.c.b16 %v546, %v545
  %v651 = vpack.c.b16 %v548, %v547
  %v652 = vpack.c.b16 %v550, %v549
  %v653 = vpack.c.b16 %v552, %v551
  %v654 = vpack.c.b16 %v554, %v553
  %v655 = vpack.c.b16 %v556, %v555
  %v656 = vpack.c.b16 %v558, %v557
  %v657 = vpack.c.b16 %v560, %v559
  %v658 = vpack.c.b16 %v562, %v561
  %v659 = vpack.c.b16 %v564, %v563
  %v660 = vpack.c.b16 %v566, %v565
  %v661 = vpack.c.b16 %v568, %v567
  %v662 = vpack.c.b16 %v570, %v569
  %v663 = vpack.c.b16 %v572, %v571
  %v664 = vpack.c.b16 %v574, %v573
  %v665 = vpack.c.b16 %v576, %v575
  %v666 = vpack.c.b16 %v578, %v577
  %v667 = vpack.c.b16 %v580, %v579
  %v668 = vpack.c.b16 %v582, %v581
  %v669 = vpack.c.b16 %v584, %v583
  %v670 = vpack.c.b16 %v586, %v585
  %v671 = vpack.c.b16 %v588, %v587
  %v672 = vpack.c.b16 %v590, %v589
  %v673 = vpack.c.b16 %v592, %v591
  %v674 = vpack.c.b16 %v594, %v593
  %v675 = vpack.c.b16 %v596, %v595
  %v676 = vpack.c.b16 %v598, %v597
  %v677 = vpack.c.b16 %v600, %v599
  %v678 = vpack.c.b16 %v602, %v601
  %v679 = vpack.c.b16 %v604, %v603
  %v680 = vpack.c.b16 %v606, %v605
  %v681 = vpack.c.b16 %v608, %v607
  %v682 = vpack.c.b16 %v610, %v609
  %v683 = vpack.c.b16 %v612, %v611
  %v684 = vpack.c.b16 %v614, %v613
  %v685 = vpack.c.b16 %v616, %v615
  %v686 = vpack.c.b16 %v618, %v617
  %v687 = vpack.c.b16 %v620, %v619
  %v688 = vpack.c.b16 %v622, %v621
  %v689 = vpack.c.b16 %v624, %v623
  %v690 = vpack.c.b16 %v626, %v625
  %v691 = vpack.c.b16 %v628, %v627
  %v692 = vpack.c.b16 %v630, %v629
  %v693 = vpack.c.b16 %v632, %v631
  %v694 = vpack.c.b16 %v634, %v633
  %v695 = vpack.c.b16 %v636, %v635
  %v696 = vpack.c.b16 %v638, %v637
  %v697 = vpack.c.b16 %v640, %v639
  %v698 = vpack.c.b16 %v642, %v641
  %v699 = vpack.c.b16 %v644, %v643
  %v700 = vpack.c.b16 %v646, %v645
  %vm755 = vcmask 785408
  %v757 = vsel %vm755, %v346, 0
  %v760 = vsel %vm755, %v353, 0
  %v763 = vsel %vm755, %v360, 0
  %v766 = vsel %vm755, %v367, 0
  %v769 = vsel %vm755, %v374, 0
  %v772 = vsel %vm755, %v381, 0
  %v775 = vsel %vm755, %v388, 0
  %777 = vmatprep.subr.bf16.mxu0 0
  %778 = vmatpush1.bf16.msra.mxu0 %v654
  %779 = vmatprep.subr.bf16.mxu0 0
  %780 = vmatpush1.bf16.msra.mxu0 %v653
  %781 = vmatprep.subr.bf16.mxu0 0
  %782 = vmatpush1.bf16.msra.mxu0 %v652
  %783 = vmatprep.subr.bf16.mxu0 0
  %784 = vmatpush1.bf16.msra.mxu0 %v651
  %785 = vmatprep.subr.bf16.mxu0 0
  %786 = vmatpush1.bf16.msra.mxu0 %v650
  %787 = vmatprep.subr.bf16.mxu0 0
  %788 = vmatpush1.bf16.msra.mxu0 %v649
  %789 = vmatprep.subr.bf16.mxu0 0
  %790 = vmatpush1.bf16.msra.mxu0 %v648
  %791 = vmatprep.subr.bf16.mxu0 0
  %792 = vmatpush1.bf16.msra.mxu0 %v647
  %793 = vmatprep.subr.bf16.mxu0 0
  %794 = vmatpush2.bf16.msra.mxu0 %v662
  %795 = vmatprep.subr.bf16.mxu0 0
  %796 = vmatpush2.bf16.msra.mxu0 %v661
  %797 = vmatprep.subr.bf16.mxu0 0
  %798 = vmatpush2.bf16.msra.mxu0 %v660
  %799 = vmatprep.subr.bf16.mxu0 0
  %800 = vmatpush2.bf16.msra.mxu0 %v659
  %801 = vmatprep.subr.bf16.mxu0 0
  %802 = vmatpush2.bf16.msra.mxu0 %v658
  %803 = vmatprep.subr.bf16.mxu0 0
  %804 = vmatpush2.bf16.msra.mxu0 %v657
  %805 = vmatprep.subr.bf16.mxu0 0
  %806 = vmatpush2.bf16.msra.mxu0 %v656
  %807 = vmatprep.subr.bf16.mxu0 0
  %808 = vmatpush2.bf16.msra.mxu0 %v655
  %809 = vmatprep.mubr.bf16.mxu0 %v341
  %810 = vmatmul.mubr.bf16.gmra.mxu0 %v340
  %v811 = vpop.f32.mrf.mxu0
  %v812 = vadd.f32 %v184, %v811
  %v813 = vpop.f32.mrf.mxu0
  %v814 = vpop.f32.mrf.mxu0
  %v815 = vadd.f32 %v184, %v814
  %v816 = vpop.f32.mrf.mxu0
  %817 = vmatprep.mubr.bf16.mxu0 %v348
  %818 = vmatmul.mubr.bf16.gmra.mxu0 %v347
  %v819 = vpop.f32.mrf.mxu0
  %v820 = vadd.f32 %v184, %v819
  %v821 = vpop.f32.mrf.mxu0
  %v822 = vpop.f32.mrf.mxu0
  %v823 = vadd.f32 %v184, %v822
  %v824 = vpop.f32.mrf.mxu0
  %825 = vmatprep.mubr.bf16.mxu0 %v355
  %826 = vmatmul.mubr.bf16.gmra.mxu0 %v354
  %v827 = vpop.f32.mrf.mxu0
  %v828 = vadd.f32 %v184, %v827
  %v829 = vpop.f32.mrf.mxu0
  %v830 = vpop.f32.mrf.mxu0
  %v831 = vadd.f32 %v184, %v830
  %v832 = vpop.f32.mrf.mxu0
  %833 = vmatprep.mubr.bf16.mxu0 %v362
  %834 = vmatmul.mubr.bf16.gmra.mxu0 %v361
  %v835 = vpop.f32.mrf.mxu0
  %v836 = vadd.f32 %v184, %v835
  %v837 = vpop.f32.mrf.mxu0
  %v838 = vpop.f32.mrf.mxu0
  %v839 = vadd.f32 %v184, %v838
  %v840 = vpop.f32.mrf.mxu0
  %841 = vmatprep.mubr.bf16.mxu0 %v369
  %842 = vmatmul.mubr.bf16.gmra.mxu0 %v368
  %v843 = vpop.f32.mrf.mxu0
  %v844 = vadd.f32 %v184, %v843
  %v845 = vpop.f32.mrf.mxu0
  %v846 = vpop.f32.mrf.mxu0
  %v847 = vadd.f32 %v184, %v846
  %v848 = vpop.f32.mrf.mxu0
  %849 = vmatprep.mubr.bf16.mxu0 %v376
  %850 = vmatmul.mubr.bf16.gmra.mxu0 %v375
  %v851 = vpop.f32.mrf.mxu0
  %v852 = vadd.f32 %v184, %v851
  %v853 = vpop.f32.mrf.mxu0
  %v854 = vpop.f32.mrf.mxu0
  %v855 = vadd.f32 %v184, %v854
  %v856 = vpop.f32.mrf.mxu0
  %857 = vmatprep.mubr.bf16.mxu0 %v383
  %858 = vmatmul.mubr.bf16.gmra.mxu0 %v382
  %v859 = vpop.f32.mrf.mxu0
  %v860 = vadd.f32 %v184, %v859
  %v861 = vpop.f32.mrf.mxu0
  %v862 = vpop.f32.mrf.mxu0
  %v863 = vadd.f32 %v184, %v862
  %v864 = vpop.f32.mrf.mxu0
  %865 = vdwg.mxu0
  %866 = vmatprep.subr.bf16.mxu0 0
  %867 = vmatpush1.bf16.msra.mxu0 %v670
  %868 = vmatprep.subr.bf16.mxu0 0
  %869 = vmatpush1.bf16.msra.mxu0 %v669
  %870 = vmatprep.subr.bf16.mxu0 0
  %871 = vmatpush1.bf16.msra.mxu0 %v668
  %872 = vmatprep.subr.bf16.mxu0 0
  %873 = vmatpush1.bf16.msra.mxu0 %v667
  %874 = vmatprep.subr.bf16.mxu0 0
  %875 = vmatpush1.bf16.msra.mxu0 %v666
  %876 = vmatprep.subr.bf16.mxu0 0
  %877 = vmatpush1.bf16.msra.mxu0 %v665
  %878 = vmatprep.subr.bf16.mxu0 0
  %879 = vmatpush1.bf16.msra.mxu0 %v664
  %880 = vmatprep.subr.bf16.mxu0 0
  %881 = vmatpush1.bf16.msra.mxu0 %v663
  %882 = vmatprep.subr.bf16.mxu0 0
  %883 = vmatpush2.bf16.msra.mxu0 %v678
  %884 = vmatprep.subr.bf16.mxu0 0
  %885 = vmatpush2.bf16.msra.mxu0 %v677
  %886 = vmatprep.subr.bf16.mxu0 0
  %887 = vmatpush2.bf16.msra.mxu0 %v676
  %888 = vmatprep.subr.bf16.mxu0 0
  %889 = vmatpush2.bf16.msra.mxu0 %v675
  %890 = vmatprep.subr.bf16.mxu0 0
  %891 = vmatpush2.bf16.msra.mxu0 %v674
  %892 = vmatprep.subr.bf16.mxu0 0
  %893 = vmatpush2.bf16.msra.mxu0 %v673
  %894 = vmatprep.subr.bf16.mxu0 0
  %895 = vmatpush2.bf16.msra.mxu0 %v672
  %896 = vmatprep.subr.bf16.mxu0 0
  %897 = vmatpush2.bf16.msra.mxu0 %v671
  %898 = vmatprep.mubr.bf16.mxu0 %v343
  %899 = vmatmul.mubr.bf16.gmra.mxu0 %v342
  %v900 = vpop.f32.mrf.mxu0
  %v901 = vadd.f32 %v812, %v900
  %v902 = vpop.f32.mrf.mxu0
  %v903 = vpop.f32.mrf.mxu0
  %v904 = vadd.f32 %v815, %v903
  %v905 = vpop.f32.mrf.mxu0
  %906 = vmatprep.mubr.bf16.mxu0 %v350
  %907 = vmatmul.mubr.bf16.gmra.mxu0 %v349
  %v908 = vpop.f32.mrf.mxu0
  %v909 = vadd.f32 %v820, %v908
  %v910 = vpop.f32.mrf.mxu0
  %v911 = vpop.f32.mrf.mxu0
  %v912 = vadd.f32 %v823, %v911
  %v913 = vpop.f32.mrf.mxu0
  %914 = vmatprep.mubr.bf16.mxu0 %v357
  %915 = vmatmul.mubr.bf16.gmra.mxu0 %v356
  %v916 = vpop.f32.mrf.mxu0
  %v917 = vadd.f32 %v828, %v916
  %v918 = vpop.f32.mrf.mxu0
  %v919 = vpop.f32.mrf.mxu0
  %v920 = vadd.f32 %v831, %v919
  %v921 = vpop.f32.mrf.mxu0
  %922 = vmatprep.mubr.bf16.mxu0 %v364
  %923 = vmatmul.mubr.bf16.gmra.mxu0 %v363
  %v924 = vpop.f32.mrf.mxu0
  %v925 = vadd.f32 %v836, %v924
  %v926 = vpop.f32.mrf.mxu0
  %v927 = vpop.f32.mrf.mxu0
  %v928 = vadd.f32 %v839, %v927
  %v929 = vpop.f32.mrf.mxu0
  %930 = vmatprep.mubr.bf16.mxu0 %v371
  %931 = vmatmul.mubr.bf16.gmra.mxu0 %v370
  %v932 = vpop.f32.mrf.mxu0
  %v933 = vadd.f32 %v844, %v932
  %v934 = vpop.f32.mrf.mxu0
  %v935 = vpop.f32.mrf.mxu0
  %v936 = vadd.f32 %v847, %v935
  %v937 = vpop.f32.mrf.mxu0
  %938 = vmatprep.mubr.bf16.mxu0 %v378
  %939 = vmatmul.mubr.bf16.gmra.mxu0 %v377
  %v940 = vpop.f32.mrf.mxu0
  %v941 = vadd.f32 %v852, %v940
  %v942 = vpop.f32.mrf.mxu0
  %v943 = vpop.f32.mrf.mxu0
  %v944 = vadd.f32 %v855, %v943
  %v945 = vpop.f32.mrf.mxu0
  %946 = vmatprep.mubr.bf16.mxu0 %v385
  %947 = vmatmul.mubr.bf16.gmra.mxu0 %v384
  %v948 = vpop.f32.mrf.mxu0
  %v949 = vadd.f32 %v860, %v948
  %v950 = vpop.f32.mrf.mxu0
  %v951 = vpop.f32.mrf.mxu0
  %v952 = vadd.f32 %v863, %v951
  %v953 = vpop.f32.mrf.mxu0
  %954 = vdwg.mxu0
  %955 = vmatprep.subr.bf16.mxu0 0
  %956 = vmatpush1.bf16.msra.mxu0 %v686
  %957 = vmatprep.subr.bf16.mxu0 0
  %958 = vmatpush1.bf16.msra.mxu0 %v685
  %959 = vmatprep.subr.bf16.mxu0 0
  %960 = vmatpush1.bf16.msra.mxu0 %v684
  %961 = vmatprep.subr.bf16.mxu0 0
  %962 = vmatpush1.bf16.msra.mxu0 %v683
  %963 = vmatprep.subr.bf16.mxu0 0
  %964 = vmatpush1.bf16.msra.mxu0 %v682
  %965 = vmatprep.subr.bf16.mxu0 0
  %966 = vmatpush1.bf16.msra.mxu0 %v681
  %967 = vmatprep.subr.bf16.mxu0 0
  %968 = vmatpush1.bf16.msra.mxu0 %v680
  %969 = vmatprep.subr.bf16.mxu0 0
  %970 = vmatpush1.bf16.msra.mxu0 %v679
  %971 = vmatprep.subr.bf16.mxu0 0
  %972 = vmatpush2.bf16.msra.mxu0 %v694
  %973 = vmatprep.subr.bf16.mxu0 0
  %974 = vmatpush2.bf16.msra.mxu0 %v693
  %975 = vmatprep.subr.bf16.mxu0 0
  %976 = vmatpush2.bf16.msra.mxu0 %v692
  %977 = vmatprep.subr.bf16.mxu0 0
  %978 = vmatpush2.bf16.msra.mxu0 %v691
  %979 = vmatprep.subr.bf16.mxu0 0
  %980 = vmatpush2.bf16.msra.mxu0 %v690
  %981 = vmatprep.subr.bf16.mxu0 0
  %982 = vmatpush2.bf16.msra.mxu0 %v689
  %983 = vmatprep.subr.bf16.mxu0 0
  %984 = vmatpush2.bf16.msra.mxu0 %v688
  %985 = vmatprep.subr.bf16.mxu0 0
  %986 = vmatpush2.bf16.msra.mxu0 %v687
  %987 = vmatprep.mubr.bf16.mxu0 %v345
  %988 = vmatmul.mubr.bf16.gmra.mxu0 %v344
  %v989 = vpop.f32.mrf.mxu0
  %v990 = vadd.f32 %v901, %v989
  %v991 = vpop.f32.mrf.mxu0
  %v992 = vpop.f32.mrf.mxu0
  %v993 = vadd.f32 %v904, %v992
  %v994 = vpop.f32.mrf.mxu0
  %995 = vmatprep.mubr.bf16.mxu0 %v352
  %996 = vmatmul.mubr.bf16.gmra.mxu0 %v351
  %v997 = vpop.f32.mrf.mxu0
  %v998 = vadd.f32 %v909, %v997
  %v999 = vpop.f32.mrf.mxu0
  %v1000 = vpop.f32.mrf.mxu0
  %v1001 = vadd.f32 %v912, %v1000
  %v1002 = vpop.f32.mrf.mxu0
  %1003 = vmatprep.mubr.bf16.mxu0 %v359
  %1004 = vmatmul.mubr.bf16.gmra.mxu0 %v358
  %v1005 = vpop.f32.mrf.mxu0
  %v1006 = vadd.f32 %v917, %v1005
  %v1007 = vpop.f32.mrf.mxu0
  %v1008 = vpop.f32.mrf.mxu0
  %v1009 = vadd.f32 %v920, %v1008
  %v1010 = vpop.f32.mrf.mxu0
  %1011 = vmatprep.mubr.bf16.mxu0 %v366
  %1012 = vmatmul.mubr.bf16.gmra.mxu0 %v365
  %v1013 = vpop.f32.mrf.mxu0
  %v1014 = vadd.f32 %v925, %v1013
  %v1015 = vpop.f32.mrf.mxu0
  %v1016 = vpop.f32.mrf.mxu0
  %v1017 = vadd.f32 %v928, %v1016
  %v1018 = vpop.f32.mrf.mxu0
  %1019 = vmatprep.mubr.bf16.mxu0 %v373
  %1020 = vmatmul.mubr.bf16.gmra.mxu0 %v372
  %v1021 = vpop.f32.mrf.mxu0
  %v1022 = vadd.f32 %v933, %v1021
  %v1023 = vpop.f32.mrf.mxu0
  %v1024 = vpop.f32.mrf.mxu0
  %v1025 = vadd.f32 %v936, %v1024
  %v1026 = vpop.f32.mrf.mxu0
  %1027 = vmatprep.mubr.bf16.mxu0 %v380
  %1028 = vmatmul.mubr.bf16.gmra.mxu0 %v379
  %v1029 = vpop.f32.mrf.mxu0
  %v1030 = vadd.f32 %v941, %v1029
  %v1031 = vpop.f32.mrf.mxu0
  %v1032 = vpop.f32.mrf.mxu0
  %v1033 = vadd.f32 %v944, %v1032
  %v1034 = vpop.f32.mrf.mxu0
  %1035 = vmatprep.mubr.bf16.mxu0 %v387
  %1036 = vmatmul.mubr.bf16.gmra.mxu0 %v386
  %v1037 = vpop.f32.mrf.mxu0
  %v1038 = vadd.f32 %v949, %v1037
  %v1039 = vpop.f32.mrf.mxu0
  %v1040 = vpop.f32.mrf.mxu0
  %v1041 = vadd.f32 %v952, %v1040
  %v1042 = vpop.f32.mrf.mxu0
  %1043 = vdwg.mxu0
  %1044 = vmatprep.subr.bf16.mxu0 0
  %1045 = vmatpush1.bf16.msra.mxu0 0
  %1046 = vmatprep.subr.bf16.mxu0 0
  %1047 = vmatpush1.bf16.msra.mxu0 0
  %1048 = vmatprep.subr.bf16.mxu0 0
  %1049 = vmatpush1.bf16.msra.mxu0 %v700
  %1050 = vmatprep.subr.bf16.mxu0 0
  %1051 = vmatpush1.bf16.msra.mxu0 %v699
  %1052 = vmatprep.subr.bf16.mxu0 0
  %1053 = vmatpush1.bf16.msra.mxu0 %v698
  %1054 = vmatprep.subr.bf16.mxu0 0
  %1055 = vmatpush1.bf16.msra.mxu0 %v697
  %1056 = vmatprep.subr.bf16.mxu0 0
  %1057 = vmatpush1.bf16.msra.mxu0 %v696
  %1058 = vmatprep.subr.bf16.mxu0 0
  %1059 = vmatpush1.bf16.msra.mxu0 %v695
  %1060 = vmatprep.subr.bf16.mxu0 0
  %1061 = vmatpush2.bf16.msra.mxu0 0
  %1062 = vmatprep.subr.bf16.mxu0 0
  %1063 = vmatpush2.bf16.msra.mxu0 0
  %1064 = vmatprep.subr.bf16.mxu0 0
  %1065 = vmatpush2.bf16.msra.mxu0 0
  %1066 = vmatprep.subr.bf16.mxu0 0
  %1067 = vmatpush2.bf16.msra.mxu0 0
  %1068 = vmatprep.subr.bf16.mxu0 0
  %1069 = vmatpush2.bf16.msra.mxu0 0
  %1070 = vmatprep.subr.bf16.mxu0 0
  %1071 = vmatpush2.bf16.msra.mxu0 0
  %1072 = vmatprep.subr.bf16.mxu0 0
  %1073 = vmatpush2.bf16.msra.mxu0 0
  %1074 = vmatprep.subr.bf16.mxu0 0
  %1075 = vmatpush2.bf16.msra.mxu0 0
  %1076 = vmatprep.mubr.bf16.mxu0 0
  %1077 = vmatmul.mubr.bf16.gmra.mxu0 %v757
  %v1078 = vpop.f32.mrf.mxu0
  %v1079 = vadd.f32 %v990, %v1078
  %v1080 = vpop.f32.mrf.mxu0
  %v1081 = vpop.f32.mrf.mxu0
  %v1082 = vadd.f32 %v993, %v1081
  %v1083 = vpop.f32.mrf.mxu0
  %1084 = vmatprep.mubr.bf16.mxu0 0
  %1085 = vmatmul.mubr.bf16.gmra.mxu0 %v760
  %v1086 = vpop.f32.mrf.mxu0
  %v1087 = vadd.f32 %v998, %v1086
  %v1088 = vpop.f32.mrf.mxu0
  %v1089 = vpop.f32.mrf.mxu0
  %v1090 = vadd.f32 %v1001, %v1089
  %v1091 = vpop.f32.mrf.mxu0
  %1092 = vmatprep.mubr.bf16.mxu0 0
  %1093 = vmatmul.mubr.bf16.gmra.mxu0 %v763
  %v1094 = vpop.f32.mrf.mxu0
  %v1095 = vadd.f32 %v1006, %v1094
  %v1096 = vpop.f32.mrf.mxu0
  %v1097 = vpop.f32.mrf.mxu0
  %v1098 = vadd.f32 %v1009, %v1097
  %v1099 = vpop.f32.mrf.mxu0
  %1100 = vmatprep.mubr.bf16.mxu0 0
  %1101 = vmatmul.mubr.bf16.gmra.mxu0 %v766
  %v1102 = vpop.f32.mrf.mxu0
  %v1103 = vadd.f32 %v1014, %v1102
  %v1104 = vpop.f32.mrf.mxu0
  %v1105 = vpop.f32.mrf.mxu0
  %v1106 = vadd.f32 %v1017, %v1105
  %v1107 = vpop.f32.mrf.mxu0
  %1108 = vmatprep.mubr.bf16.mxu0 0
  %1109 = vmatmul.mubr.bf16.gmra.mxu0 %v769
  %v1110 = vpop.f32.mrf.mxu0
  %v1111 = vadd.f32 %v1022, %v1110
  %v1112 = vpop.f32.mrf.mxu0
  %v1113 = vpop.f32.mrf.mxu0
  %v1114 = vadd.f32 %v1025, %v1113
  %v1115 = vpop.f32.mrf.mxu0
  %1116 = vmatprep.mubr.bf16.mxu0 0
  %1117 = vmatmul.mubr.bf16.gmra.mxu0 %v772
  %v1118 = vpop.f32.mrf.mxu0
  %v1119 = vadd.f32 %v1030, %v1118
  %v1120 = vpop.f32.mrf.mxu0
  %v1121 = vpop.f32.mrf.mxu0
  %v1122 = vadd.f32 %v1033, %v1121
  %v1123 = vpop.f32.mrf.mxu0
  %1124 = vmatprep.mubr.bf16.mxu0 0
  %1125 = vmatmul.mubr.bf16.gmra.mxu0 %v775
  %v1126 = vpop.f32.mrf.mxu0
  %v1127 = vadd.f32 %v1038, %v1126
  %v1128 = vpop.f32.mrf.mxu0
  %v1129 = vpop.f32.mrf.mxu0
  %v1130 = vadd.f32 %v1041, %v1129
  %v1131 = vpop.f32.mrf.mxu0
  %1132 = vdwg.mxu0
  %v1133 = vmax.f32 %v1079, 0.0
  %v1134 = vmax.f32 %v1082, 0.0
  %v1135 = vmax.f32 %v1087, 0.0
  %v1136 = vmax.f32 %v1090, 0.0
  %v1137 = vmax.f32 %v1095, 0.0
  %v1138 = vmax.f32 %v1098, 0.0
  %v1139 = vmax.f32 %v1103, 0.0
  %v1140 = vmax.f32 %v1106, 0.0
  %v1141 = vmax.f32 %v1111, 0.0
  %v1142 = vmax.f32 %v1114, 0.0
  %v1143 = vmax.f32 %v1119, 0.0
  %v1144 = vmax.f32 %v1122, 0.0
  %v1145 = vmax.f32 %v1127, 0.0
  %v1146 = vmax.f32 %v1130, 0.0
  %1147 = vst [vmem:[%s3] sm:$0xff] %v1133
  %1148 = vst [vmem:[%s3 + $0x8] sm:$0xff] %v1134
  %1149 = vst [vmem:[%s3 + $0x10] sm:$0xff] %v1135
  %1150 = vst [vmem:[%s3 + $0x18] sm:$0xff] %v1136
  %1151 = vst [vmem:[%s3 + $0x20] sm:$0xff] %v1137
  %1152 = vst [vmem:[%s3 + $0x28] sm:$0xff] %v1138
  %1153 = vst [vmem:[%s3 + $0x30] sm:$0xff] %v1139
  %1154 = vst [vmem:[%s3 + $0x38] sm:$0xff] %v1140
  %1155 = vst [vmem:[%s3 + $0x40] sm:$0xff] %v1141
  %1156 = vst [vmem:[%s3 + $0x48] sm:$0xff] %v1142
  %1157 = vst [vmem:[%s3 + $0x50] sm:$0xff] %v1143
  %1158 = vst [vmem:[%s3 + $0x58] sm:$0xff] %v1144
  %1159 = vst [vmem:[%s3 + $0x60] sm:$0xff] %v1145
  %1160 = vst [vmem:[%s3 + $0x68] sm:$0xff] %v1146
  // Predicated region
  $region14: #{reduction_block_a.4} parent=0 // pred_check
    _
  $region15: #{reduction_block_a.4} parent=0 // pred_check_branch
    %1162 = sbr.rel (0) target = $region17
  $region16: #{reduction_block_a.4} parent=0 // pred_region
    _
  $region17: #{reduction_block_a.4} parent=0 // pred_fallthru
    _
  // Predicated region
  $region18: #{reduction_block_a.4} parent=0 // pred_check
    _
  $region19: #{reduction_block_a.4} parent=0 // pred_check_branch
    %1164 = sbr.rel (0) target = $region21
  $region20: #{reduction_block_a.4} parent=0 // pred_region
    _
  $region21: #{reduction_block_a.4} parent=0 // pred_fallthru
    _

// kernel: reduction_block_a.3
$region0: #{reduction_block_a.3}
  #allocation0 [shape = 'u32[]', space=smem, size = 0x4, offset = 0x4, fixed_abs, tag = 'smem constant byte address 0x4 - core index']
  #allocation1 [shape = 'u32[144,128]{1,0:T(1,128)}', space=vmem, size = 0x12000, scoped, tag = 'internal scratch']
  %s0 = inlined_call_operand.vmem [shape: bf16[2,18,18,64], index: 0, kind: input, shape index: {}]
  %s1 = inlined_call_operand.vmem [shape: bf16[576,128], index: 1, kind: input, shape index: {}]
  %s2 = inlined_call_operand.vmem [shape: f32[1,128], index: 2, kind: input, shape index: {}]
  %s3 = inlined_call_operand.vmem [shape: bf16[512,128], index: 3, kind: output, shape index: {}]
  %s4 = sld [smem:[#allocation0]]
  $region22: #{reduction_block_a.3} parent=0
    _
  %s6 = ssub.s32 1, %s4
  %s7 = scalar_select 0, %s6, %s4
  // Predicated region
  $region2: #{reduction_block_a.3} parent=0 // pred_check
    _
  $region3: #{reduction_block_a.3} parent=0 // pred_check_branch
    %9 = sbr.rel (0) target = $region5
  $region4: #{reduction_block_a.3} parent=0 // pred_region
    _
  $region5: #{reduction_block_a.3} parent=0 // pred_fallthru
    _
  // Predicated region
  $region6: #{reduction_block_a.3} parent=0 // pred_check
    _
  $region7: #{reduction_block_a.3} parent=0 // pred_check_branch
    %11 = sbr.rel (0) target = $region9
  $region8: #{reduction_block_a.3} parent=0 // pred_region
    _
  $region9: #{reduction_block_a.3} parent=0 // pred_fallthru
    _
  // Predicated region
  $region10: #{reduction_block_a.3} parent=0 // pred_check
    _
  $region11: #{reduction_block_a.3} parent=0 // pred_check_branch
    %13 = sbr.rel (0) target = $region13
  $region12: #{reduction_block_a.3} parent=0 // pred_region
    _
  $region13: #{reduction_block_a.3} parent=0 // pred_fallthru
    _
  %v15 = vld [vmem:[%s0] sm:$0xf]
  %v16 = vld [vmem:[%s0 + $0x4] sm:$0xf]
  %v17 = vld [vmem:[%s0 + $0x8] sm:$0x1]
  %v18 = vld [vmem:[%s0 + $0xc] sm:$0xf]
  %v19 = vld [vmem:[%s0 + $0x10] sm:$0xf]
  %v20 = vld [vmem:[%s0 + $0x14] sm:$0x1]
  %v21 = vld [vmem:[%s0 + $0x18] sm:$0xf]
  %v22 = vld [vmem:[%s0 + $0x1c] sm:$0xf]
  %v23 = vld [vmem:[%s0 + $0x20] sm:$0x1]
  %v24 = vld [vmem:[%s0 + $0x24] sm:$0xf]
  %v25 = vld [vmem:[%s0 + $0x28] sm:$0xf]
  %v26 = vld [vmem:[%s0 + $0x2c] sm:$0x1]
  %v27 = vld [vmem:[%s0 + $0x30] sm:$0xf]
  %v28 = vld [vmem:[%s0 + $0x34] sm:$0xf]
  %v29 = vld [vmem:[%s0 + $0x38] sm:$0x1]
  %v30 = vld [vmem:[%s0 + $0x3c] sm:$0xf]
  %v31 = vld [vmem:[%s0 + $0x40] sm:$0xf]
  %v32 = vld [vmem:[%s0 + $0x44] sm:$0x1]
  %v33 = vld [vmem:[%s0 + $0x48] sm:$0xf]
  %v34 = vld [vmem:[%s0 + $0x4c] sm:$0xf]
  %v35 = vld [vmem:[%s0 + $0x50] sm:$0x1]
  %v36 = vld [vmem:[%s0 + $0x54] sm:$0xf]
  %v37 = vld [vmem:[%s0 + $0x58] sm:$0xf]
  %v38 = vld [vmem:[%s0 + $0x5c] sm:$0x1]
  %v39 = vld [vmem:[%s0 + $0x60] sm:$0xf]
  %v40 = vld [vmem:[%s0 + $0x64] sm:$0xf]
  %v41 = vld [vmem:[%s0 + $0x68] sm:$0x1]
  %v42 = vld [vmem:[%s0 + $0x6c] sm:$0xf]
  %v43 = vld [vmem:[%s0 + $0x70] sm:$0xf]
  %v44 = vld [vmem:[%s0 + $0x74] sm:$0x1]
  %v45 = vld [vmem:[%s0 + $0x78] sm:$0xf]
  %v46 = vld [vmem:[%s0 + $0x7c] sm:$0xf]
  %v47 = vld [vmem:[%s0 + $0x80] sm:$0x1]
  %v48 = vld [vmem:[%s0 + $0x84] sm:$0xf]
  %v49 = vld [vmem:[%s0 + $0x88] sm:$0xf]
  %v50 = vld [vmem:[%s0 + $0x8c] sm:$0x1]
  %v51 = vld [vmem:[%s0 + $0x90] sm:$0xf]
  %v52 = vld [vmem:[%s0 + $0x94] sm:$0xf]
  %v53 = vld [vmem:[%s0 + $0x98] sm:$0x1]
  %v54 = vld [vmem:[%s0 + $0x9c] sm:$0xf]
  %v55 = vld [vmem:[%s0 + $0xa0] sm:$0xf]
  %v56 = vld [vmem:[%s0 + $0xa4] sm:$0x1]
  %v57 = vld [vmem:[%s0 + $0xa8] sm:$0xf]
  %v58 = vld [vmem:[%s0 + $0xac] sm:$0xf]
  %v59 = vld [vmem:[%s0 + $0xb0] sm:$0x1]
  %v60 = vld [vmem:[%s0 + $0xb4] sm:$0xf]
  %v61 = vld [vmem:[%s0 + $0xb8] sm:$0xf]
  %v62 = vld [vmem:[%s0 + $0xbc] sm:$0x1]
  %v63 = vld [vmem:[%s0 + $0xc0] sm:$0xf]
  %v64 = vld [vmem:[%s0 + $0xc4] sm:$0xf]
  %v65 = vld [vmem:[%s0 + $0xc8] sm:$0x1]
  %v66 = vld [vmem:[%s0 + $0xcc] sm:$0xf]
  %v67 = vld [vmem:[%s0 + $0xd0] sm:$0xf]
  %v68 = vld [vmem:[%s0 + $0xd4] sm:$0x1]
  %v69 = vld [vmem:[%s0 + $0xd8] sm:$0xf]
  %v70 = vld [vmem:[%s0 + $0xdc] sm:$0xf]
  %v71 = vld [vmem:[%s0 + $0xe0] sm:$0x1]
  %v72 = vld [vmem:[%s0 + $0xe4] sm:$0xf]
  %v73 = vld [vmem:[%s0 + $0xe8] sm:$0xf]
  %v74 = vld [vmem:[%s0 + $0xec] sm:$0x1]
  %v75 = vld [vmem:[%s0 + $0xf0] sm:$0xf]
  %v76 = vld [vmem:[%s0 + $0xf4] sm:$0xf]
  %v77 = vld [vmem:[%s0 + $0xf8] sm:$0x1]
  %v78 = vld [vmem:[%s0 + $0xfc] sm:$0xf]
  %v79 = vld [vmem:[%s0 + $0x100] sm:$0xf]
  %v80 = vld [vmem:[%s0 + $0x104] sm:$0x1]
  %v81 = vld [vmem:[%s0 + $0x108] sm:$0xf]
  %v82 = vld [vmem:[%s0 + $0x10c] sm:$0xf]
  %v83 = vld [vmem:[%s0 + $0x110] sm:$0x1]
  %v84 = vld [vmem:[%s0 + $0x114] sm:$0xf]
  %v85 = vld [vmem:[%s0 + $0x118] sm:$0xf]
  %v86 = vld [vmem:[%s0 + $0x11c] sm:$0x1]
  %v87 = vld [vmem:[%s0 + $0x120] sm:$0xf]
  %v88 = vld [vmem:[%s0 + $0x124] sm:$0xf]
  %v89 = vld [vmem:[%s0 + $0x128] sm:$0x1]
  %v90 = vld [vmem:[%s0 + $0x12c] sm:$0xf]
  %v91 = vld [vmem:[%s0 + $0x130] sm:$0xf]
  %v92 = vld [vmem:[%s0 + $0x134] sm:$0x1]
  %v93 = vld [vmem:[%s0 + $0x138] sm:$0xf]
  %v94 = vld [vmem:[%s0 + $0x13c] sm:$0xf]
  %v95 = vld [vmem:[%s0 + $0x140] sm:$0x1]
  %v96 = vld [vmem:[%s0 + $0x144] sm:$0xf]
  %v97 = vld [vmem:[%s0 + $0x148] sm:$0xf]
  %v98 = vld [vmem:[%s0 + $0x14c] sm:$0x1]
  %v99 = vld [vmem:[%s0 + $0x150] sm:$0xf]
  %v100 = vld [vmem:[%s0 + $0x154] sm:$0xf]
  %v101 = vld [vmem:[%s0 + $0x158] sm:$0x1]
  %v102 = vld [vmem:[%s0 + $0x15c] sm:$0xf]
  %v103 = vld [vmem:[%s0 + $0x160] sm:$0xf]
  %v104 = vld [vmem:[%s0 + $0x164] sm:$0x1]
  %v105 = vld [vmem:[%s0 + $0x168] sm:$0xf]
  %v106 = vld [vmem:[%s0 + $0x16c] sm:$0xf]
  %v107 = vld [vmem:[%s0 + $0x170] sm:$0x1]
  %v108 = vld [vmem:[%s0 + $0x174] sm:$0xf]
  %v109 = vld [vmem:[%s0 + $0x178] sm:$0xf]
  %v110 = vld [vmem:[%s0 + $0x17c] sm:$0x1]
  %v111 = vld [vmem:[%s0 + $0x180] sm:$0xf]
  %v112 = vld [vmem:[%s0 + $0x184] sm:$0xf]
  %v113 = vld [vmem:[%s0 + $0x188] sm:$0x1]
  %v114 = vld [vmem:[%s0 + $0x18c] sm:$0xf]
  %v115 = vld [vmem:[%s0 + $0x190] sm:$0xf]
  %v116 = vld [vmem:[%s0 + $0x194] sm:$0x1]
  %v117 = vld [vmem:[%s0 + $0x198] sm:$0xf]
  %v118 = vld [vmem:[%s0 + $0x19c] sm:$0xf]
  %v119 = vld [vmem:[%s0 + $0x1a0] sm:$0x1]
  %v120 = vld [vmem:[%s0 + $0x1a4] sm:$0xf]
  %v121 = vld [vmem:[%s0 + $0x1a8] sm:$0xf]
  %v122 = vld [vmem:[%s0 + $0x1ac] sm:$0x1]
  %v123 = vld [vmem:[%s1] sm:$0xf]
  %v124 = vld [vmem:[%s1 + $0x4] sm:$0xf]
  %v125 = vld [vmem:[%s1 + $0x8] sm:$0xf]
  %v126 = vld [vmem:[%s1 + $0xc] sm:$0xf]
  %v127 = vld [vmem:[%s1 + $0x10] sm:$0xf]
  %v128 = vld [vmem:[%s1 + $0x14] sm:$0xf]
  %v129 = vld [vmem:[%s1 + $0x18] sm:$0xf]
  %v130 = vld [vmem:[%s1 + $0x1c] sm:$0xf]
  %vm131 = vsmask.f32 3328
  %vm132 = vsmask.f32 7440
  %vm133 = vmor %vm131, %vm132
  %v135 = vshrl.u32 %v15, 16
  %v137 = vrot.slane %v135, 4
  %v138 = vshll.u32 %v15, 16
  %v140 = vrot.slane %v138, 5
  %v141 = vor.u32 %v137, %v140
  %v142 = vrot.slane %v141, 4
  %v144 = vshll.u32 %v16, 16
  %v146 = vrot.slane %v144, 5
  %v147 = vsel %vm133, %v142, %v146
  %v148 = vshrl.u32 %v16, 16
  %v150 = vrot.slane %v148, 4
  %v151 = vor.u32 %v150, %v146
  %v152 = vrot.slane %v151, 4
  %v154 = vshll.u32 %v17, 16
  %v156 = vrot.slane %v154, 5
  %v157 = vsel %vm133, %v152, %v156
  %v159 = vshrl.u32 %v18, 16
  %v161 = vrot.slane %v159, 4
  %v162 = vshll.u32 %v18, 16
  %v164 = vrot.slane %v162, 5
  %v165 = vor.u32 %v161, %v164
  %v166 = vrot.slane %v165, 4
  %v168 = vshll.u32 %v19, 16
  %v170 = vrot.slane %v168, 5
  %v171 = vsel %vm133, %v166, %v170
  %v172 = vshrl.u32 %v19, 16
  %v174 = vrot.slane %v172, 4
  %v175 = vor.u32 %v174, %v170
  %v176 = vrot.slane %v175, 4
  %v178 = vshll.u32 %v20, 16
  %v180 = vrot.slane %v178, 5
  %v181 = vsel %vm133, %v176, %v180
  %v183 = vshrl.u32 %v21, 16
  %v185 = vrot.slane %v183, 4
  %v186 = vshll.u32 %v21, 16
  %v188 = vrot.slane %v186, 5
  %v189 = vor.u32 %v185, %v188
  %v190 = vrot.slane %v189, 4
  %v192 = vshll.u32 %v22, 16
  %v194 = vrot.slane %v192, 5
  %v195 = vsel %vm133, %v190, %v194
  %v196 = vshrl.u32 %v22, 16
  %v198 = vrot.slane %v196, 4
  %v199 = vor.u32 %v198, %v194
  %v200 = vrot.slane %v199, 4
  %v202 = vshll.u32 %v23, 16
  %v204 = vrot.slane %v202, 5
  %v205 = vsel %vm133, %v200, %v204
  %v207 = vshrl.u32 %v24, 16
  %v209 = vrot.slane %v207, 4
  %v210 = vshll.u32 %v24, 16
  %v212 = vrot.slane %v210, 5
  %v213 = vor.u32 %v209, %v212
  %v214 = vrot.slane %v213, 4
  %v216 = vshll.u32 %v25, 16
  %v218 = vrot.slane %v216, 5
  %v219 = vsel %vm133, %v214, %v218
  %v220 = vshrl.u32 %v25, 16
  %v222 = vrot.slane %v220, 4
  %v223 = vor.u32 %v222, %v218
  %v224 = vrot.slane %v223, 4
  %v226 = vshll.u32 %v26, 16
  %v228 = vrot.slane %v226, 5
  %v229 = vsel %vm133, %v224, %v228
  %v231 = vshrl.u32 %v27, 16
  %v233 = vrot.slane %v231, 4
  %v234 = vshll.u32 %v27, 16
  %v236 = vrot.slane %v234, 5
  %v237 = vor.u32 %v233, %v236
  %v238 = vrot.slane %v237, 4
  %v240 = vshll.u32 %v28, 16
  %v242 = vrot.slane %v240, 5
  %v243 = vsel %vm133, %v238, %v242
  %v244 = vshrl.u32 %v28, 16
  %v246 = vrot.slane %v244, 4
  %v247 = vor.u32 %v246, %v242
  %v248 = vrot.slane %v247, 4
  %v250 = vshll.u32 %v29, 16
  %v252 = vrot.slane %v250, 5
  %v253 = vsel %vm133, %v248, %v252
  %v255 = vshrl.u32 %v30, 16
  %v257 = vrot.slane %v255, 4
  %v258 = vshll.u32 %v30, 16
  %v260 = vrot.slane %v258, 5
  %v261 = vor.u32 %v257, %v260
  %v262 = vrot.slane %v261, 4
  %v264 = vshll.u32 %v31, 16
  %v266 = vrot.slane %v264, 5
  %v267 = vsel %vm133, %v262, %v266
  %v268 = vshrl.u32 %v31, 16
  %v270 = vrot.slane %v268, 4
  %v271 = vor.u32 %v270, %v266
  %v272 = vrot.slane %v271, 4
  %v274 = vshll.u32 %v32, 16
  %v276 = vrot.slane %v274, 5
  %v277 = vsel %vm133, %v272, %v276
  %v279 = vshrl.u32 %v33, 16
  %v281 = vrot.slane %v279, 4
  %v282 = vshll.u32 %v33, 16
  %v284 = vrot.slane %v282, 5
  %v285 = vor.u32 %v281, %v284
  %v286 = vrot.slane %v285, 4
  %v288 = vshll.u32 %v34, 16
  %v290 = vrot.slane %v288, 5
  %v291 = vsel %vm133, %v286, %v290
  %v292 = vshrl.u32 %v34, 16
  %v294 = vrot.slane %v292, 4
  %v295 = vor.u32 %v294, %v290
  %v296 = vrot.slane %v295, 4
  %v298 = vshll.u32 %v35, 16
  %v300 = vrot.slane %v298, 5
  %v301 = vsel %vm133, %v296, %v300
  %v303 = vshrl.u32 %v36, 16
  %v305 = vrot.slane %v303, 4
  %v306 = vshll.u32 %v36, 16
  %v308 = vrot.slane %v306, 5
  %v309 = vor.u32 %v305, %v308
  %v310 = vrot.slane %v309, 4
  %v312 = vshll.u32 %v37, 16
  %v314 = vrot.slane %v312, 5
  %v315 = vsel %vm133, %v310, %v314
  %v316 = vshrl.u32 %v37, 16
  %v318 = vrot.slane %v316, 4
  %v319 = vor.u32 %v318, %v314
  %v320 = vrot.slane %v319, 4
  %v322 = vshll.u32 %v38, 16
  %v324 = vrot.slane %v322, 5
  %v325 = vsel %vm133, %v320, %v324
  %v327 = vshrl.u32 %v39, 16
  %v329 = vrot.slane %v327, 4
  %v330 = vshll.u32 %v39, 16
  %v332 = vrot.slane %v330, 5
  %v333 = vor.u32 %v329, %v332
  %v334 = vrot.slane %v333, 4
  %v336 = vshll.u32 %v40, 16
  %v338 = vrot.slane %v336, 5
  %v339 = vsel %vm133, %v334, %v338
  %v340 = vshrl.u32 %v40, 16
  %v342 = vrot.slane %v340, 4
  %v343 = vor.u32 %v342, %v338
  %v344 = vrot.slane %v343, 4
  %v346 = vshll.u32 %v41, 16
  %v348 = vrot.slane %v346, 5
  %v349 = vsel %vm133, %v344, %v348
  %v351 = vshrl.u32 %v42, 16
  %v353 = vrot.slane %v351, 4
  %v354 = vshll.u32 %v42, 16
  %v356 = vrot.slane %v354, 5
  %v357 = vor.u32 %v353, %v356
  %v358 = vrot.slane %v357, 4
  %v360 = vshll.u32 %v43, 16
  %v362 = vrot.slane %v360, 5
  %v363 = vsel %vm133, %v358, %v362
  %v364 = vshrl.u32 %v43, 16
  %v366 = vrot.slane %v364, 4
  %v367 = vor.u32 %v366, %v362
  %v368 = vrot.slane %v367, 4
  %v370 = vshll.u32 %v44, 16
  %v372 = vrot.slane %v370, 5
  %v373 = vsel %vm133, %v368, %v372
  %v375 = vshrl.u32 %v45, 16
  %v377 = vrot.slane %v375, 4
  %v378 = vshll.u32 %v45, 16
  %v380 = vrot.slane %v378, 5
  %v381 = vor.u32 %v377, %v380
  %v382 = vrot.slane %v381, 4
  %v384 = vshll.u32 %v46, 16
  %v386 = vrot.slane %v384, 5
  %v387 = vsel %vm133, %v382, %v386
  %v388 = vshrl.u32 %v46, 16
  %v390 = vrot.slane %v388, 4
  %v391 = vor.u32 %v390, %v386
  %v392 = vrot.slane %v391, 4
  %v394 = vshll.u32 %v47, 16
  %v396 = vrot.slane %v394, 5
  %v397 = vsel %vm133, %v392, %v396
  %v399 = vshrl.u32 %v48, 16
  %v401 = vrot.slane %v399, 4
  %v402 = vshll.u32 %v48, 16
  %v404 = vrot.slane %v402, 5
  %v405 = vor.u32 %v401, %v404
  %v406 = vrot.slane %v405, 4
  %v408 = vshll.u32 %v49, 16
  %v410 = vrot.slane %v408, 5
  %v411 = vsel %vm133, %v406, %v410
  %v412 = vshrl.u32 %v49, 16
  %v414 = vrot.slane %v412, 4
  %v415 = vor.u32 %v414, %v410
  %v416 = vrot.slane %v415, 4
  %v418 = vshll.u32 %v50, 16
  %v420 = vrot.slane %v418, 5
  %v421 = vsel %vm133, %v416, %v420
  %v423 = vshrl.u32 %v51, 16
  %v425 = vrot.slane %v423, 4
  %v426 = vshll.u32 %v51, 16
  %v428 = vrot.slane %v426, 5
  %v429 = vor.u32 %v425, %v428
  %v430 = vrot.slane %v429, 4
  %v432 = vshll.u32 %v52, 16
  %v434 = vrot.slane %v432, 5
  %v435 = vsel %vm133, %v430, %v434
  %v436 = vshrl.u32 %v52, 16
  %v438 = vrot.slane %v436, 4
  %v439 = vor.u32 %v438, %v434
  %v440 = vrot.slane %v439, 4
  %v442 = vshll.u32 %v53, 16
  %v444 = vrot.slane %v442, 5
  %v445 = vsel %vm133, %v440, %v444
  %v447 = vshrl.u32 %v54, 16
  %v449 = vrot.slane %v447, 4
  %v450 = vshll.u32 %v54, 16
  %v452 = vrot.slane %v450, 5
  %v453 = vor.u32 %v449, %v452
  %v454 = vrot.slane %v453, 4
  %v456 = vshll.u32 %v55, 16
  %v458 = vrot.slane %v456, 5
  %v459 = vsel %vm133, %v454, %v458
  %v460 = vshrl.u32 %v55, 16
  %v462 = vrot.slane %v460, 4
  %v463 = vor.u32 %v462, %v458
  %v464 = vrot.slane %v463, 4
  %v466 = vshll.u32 %v56, 16
  %v468 = vrot.slane %v466, 5
  %v469 = vsel %vm133, %v464, %v468
  %v471 = vshrl.u32 %v57, 16
  %v473 = vrot.slane %v471, 4
  %v474 = vshll.u32 %v57, 16
  %v476 = vrot.slane %v474, 5
  %v477 = vor.u32 %v473, %v476
  %v478 = vrot.slane %v477, 4
  %v480 = vshll.u32 %v58, 16
  %v482 = vrot.slane %v480, 5
  %v483 = vsel %vm133, %v478, %v482
  %v484 = vshrl.u32 %v58, 16
  %v486 = vrot.slane %v484, 4
  %v487 = vor.u32 %v486, %v482
  %v488 = vrot.slane %v487, 4
  %v490 = vshll.u32 %v59, 16
  %v492 = vrot.slane %v490, 5
  %v493 = vsel %vm133, %v488, %v492
  %v495 = vshrl.u32 %v60, 16
  %v497 = vrot.slane %v495, 4
  %v498 = vshll.u32 %v60, 16
  %v500 = vrot.slane %v498, 5
  %v501 = vor.u32 %v497, %v500
  %v502 = vrot.slane %v501, 4
  %v504 = vshll.u32 %v61, 16
  %v506 = vrot.slane %v504, 5
  %v507 = vsel %vm133, %v502, %v506
  %v508 = vshrl.u32 %v61, 16
  %v510 = vrot.slane %v508, 4
  %v511 = vor.u32 %v510, %v506
  %v512 = vrot.slane %v511, 4
  %v514 = vshll.u32 %v62, 16
  %v516 = vrot.slane %v514, 5
  %v517 = vsel %vm133, %v512, %v516
  %v519 = vshrl.u32 %v69, 16
  %v521 = vrot.slane %v519, 4
  %v522 = vshll.u32 %v69, 16
  %v524 = vrot.slane %v522, 5
  %v525 = vor.u32 %v521, %v524
  %v526 = vrot.slane %v525, 4
  %v528 = vshll.u32 %v70, 16
  %v530 = vrot.slane %v528, 5
  %v531 = vsel %vm133, %v526, %v530
  %v532 = vshrl.u32 %v70, 16
  %v534 = vrot.slane %v532, 4
  %v535 = vor.u32 %v534, %v530
  %v536 = vrot.slane %v535, 4
  %v538 = vshll.u32 %v71, 16
  %v540 = vrot.slane %v538, 5
  %v541 = vsel %vm133, %v536, %v540
  %v543 = vshrl.u32 %v72, 16
  %v545 = vrot.slane %v543, 4
  %v546 = vshll.u32 %v72, 16
  %v548 = vrot.slane %v546, 5
  %v549 = vor.u32 %v545, %v548
  %v550 = vrot.slane %v549, 4
  %v552 = vshll.u32 %v73, 16
  %v554 = vrot.slane %v552, 5
  %v555 = vsel %vm133, %v550, %v554
  %v556 = vshrl.u32 %v73, 16
  %v558 = vrot.slane %v556, 4
  %v559 = vor.u32 %v558, %v554
  %v560 = vrot.slane %v559, 4
  %v562 = vshll.u32 %v74, 16
  %v564 = vrot.slane %v562, 5
  %v565 = vsel %vm133, %v560, %v564
  %v567 = vshrl.u32 %v75, 16
  %v569 = vrot.slane %v567, 4
  %v570 = vshll.u32 %v75, 16
  %v572 = vrot.slane %v570, 5
  %v573 = vor.u32 %v569, %v572
  %v574 = vrot.slane %v573, 4
  %v576 = vshll.u32 %v76, 16
  %v578 = vrot.slane %v576, 5
  %v579 = vsel %vm133, %v574, %v578
  %v580 = vshrl.u32 %v76, 16
  %v582 = vrot.slane %v580, 4
  %v583 = vor.u32 %v582, %v578
  %v584 = vrot.slane %v583, 4
  %v586 = vshll.u32 %v77, 16
  %v588 = vrot.slane %v586, 5
  %v589 = vsel %vm133, %v584, %v588
  %v591 = vshrl.u32 %v78, 16
  %v593 = vrot.slane %v591, 4
  %v594 = vshll.u32 %v78, 16
  %v596 = vrot.slane %v594, 5
  %v597 = vor.u32 %v593, %v596
  %v598 = vrot.slane %v597, 4
  %v600 = vshll.u32 %v79, 16
  %v602 = vrot.slane %v600, 5
  %v603 = vsel %vm133, %v598, %v602
  %v604 = vshrl.u32 %v79, 16
  %v606 = vrot.slane %v604, 4
  %v607 = vor.u32 %v606, %v602
  %v608 = vrot.slane %v607, 4
  %v610 = vshll.u32 %v80, 16
  %v612 = vrot.slane %v610, 5
  %v613 = vsel %vm133, %v608, %v612
  %v615 = vshrl.u32 %v81, 16
  %v617 = vrot.slane %v615, 4
  %v618 = vshll.u32 %v81, 16
  %v620 = vrot.slane %v618, 5
  %v621 = vor.u32 %v617, %v620
  %v622 = vrot.slane %v621, 4
  %v624 = vshll.u32 %v82, 16
  %v626 = vrot.slane %v624, 5
  %v627 = vsel %vm133, %v622, %v626
  %v628 = vshrl.u32 %v82, 16
  %v630 = vrot.slane %v628, 4
  %v631 = vor.u32 %v630, %v626
  %v632 = vrot.slane %v631, 4
  %v634 = vshll.u32 %v83, 16
  %v636 = vrot.slane %v634, 5
  %v637 = vsel %vm133, %v632, %v636
  %v639 = vshrl.u32 %v84, 16
  %v641 = vrot.slane %v639, 4
  %v642 = vshll.u32 %v84, 16
  %v644 = vrot.slane %v642, 5
  %v645 = vor.u32 %v641, %v644
  %v646 = vrot.slane %v645, 4
  %v648 = vshll.u32 %v85, 16
  %v650 = vrot.slane %v648, 5
  %v651 = vsel %vm133, %v646, %v650
  %v652 = vshrl.u32 %v85, 16
  %v654 = vrot.slane %v652, 4
  %v655 = vor.u32 %v654, %v650
  %v656 = vrot.slane %v655, 4
  %v658 = vshll.u32 %v86, 16
  %v660 = vrot.slane %v658, 5
  %v661 = vsel %vm133, %v656, %v660
  %v663 = vshrl.u32 %v87, 16
  %v665 = vrot.slane %v663, 4
  %v666 = vshll.u32 %v87, 16
  %v668 = vrot.slane %v666, 5
  %v669 = vor.u32 %v665, %v668
  %v670 = vrot.slane %v669, 4
  %v672 = vshll.u32 %v88, 16
  %v674 = vrot.slane %v672, 5
  %v675 = vsel %vm133, %v670, %v674
  %v676 = vshrl.u32 %v88, 16
  %v678 = vrot.slane %v676, 4
  %v679 = vor.u32 %v678, %v674
  %v680 = vrot.slane %v679, 4
  %v682 = vshll.u32 %v89, 16
  %v684 = vrot.slane %v682, 5
  %v685 = vsel %vm133, %v680, %v684
  %v687 = vshrl.u32 %v90, 16
  %v689 = vrot.slane %v687, 4
  %v690 = vshll.u32 %v90, 16
  %v692 = vrot.slane %v690, 5
  %v693 = vor.u32 %v689, %v692
  %v694 = vrot.slane %v693, 4
  %v696 = vshll.u32 %v91, 16
  %v698 = vrot.slane %v696, 5
  %v699 = vsel %vm133, %v694, %v698
  %v700 = vshrl.u32 %v91, 16
  %v702 = vrot.slane %v700, 4
  %v703 = vor.u32 %v702, %v698
  %v704 = vrot.slane %v703, 4
  %v706 = vshll.u32 %v92, 16
  %v708 = vrot.slane %v706, 5
  %v709 = vsel %vm133, %v704, %v708
  %v711 = vshrl.u32 %v93, 16
  %v713 = vrot.slane %v711, 4
  %v714 = vshll.u32 %v93, 16
  %v716 = vrot.slane %v714, 5
  %v717 = vor.u32 %v713, %v716
  %v718 = vrot.slane %v717, 4
  %v720 = vshll.u32 %v94, 16
  %v722 = vrot.slane %v720, 5
  %v723 = vsel %vm133, %v718, %v722
  %v724 = vshrl.u32 %v94, 16
  %v726 = vrot.slane %v724, 4
  %v727 = vor.u32 %v726, %v722
  %v728 = vrot.slane %v727, 4
  %v730 = vshll.u32 %v95, 16
  %v732 = vrot.slane %v730, 5
  %v733 = vsel %vm133, %v728, %v732
  %v735 = vshrl.u32 %v96, 16
  %v737 = vrot.slane %v735, 4
  %v738 = vshll.u32 %v96, 16
  %v740 = vrot.slane %v738, 5
  %v741 = vor.u32 %v737, %v740
  %v742 = vrot.slane %v741, 4
  %v744 = vshll.u32 %v97, 16
  %v746 = vrot.slane %v744, 5
  %v747 = vsel %vm133, %v742, %v746
  %v748 = vshrl.u32 %v97, 16
  %v750 = vrot.slane %v748, 4
  %v751 = vor.u32 %v750, %v746
  %v752 = vrot.slane %v751, 4
  %v754 = vshll.u32 %v98, 16
  %v756 = vrot.slane %v754, 5
  %v757 = vsel %vm133, %v752, %v756
  %v759 = vshrl.u32 %v99, 16
  %v761 = vrot.slane %v759, 4
  %v762 = vshll.u32 %v99, 16
  %v764 = vrot.slane %v762, 5
  %v765 = vor.u32 %v761, %v764
  %v766 = vrot.slane %v765, 4
  %v768 = vshll.u32 %v100, 16
  %v770 = vrot.slane %v768, 5
  %v771 = vsel %vm133, %v766, %v770
  %v772 = vshrl.u32 %v100, 16
  %v774 = vrot.slane %v772, 4
  %v775 = vor.u32 %v774, %v770
  %v776 = vrot.slane %v775, 4
  %v778 = vshll.u32 %v101, 16
  %v780 = vrot.slane %v778, 5
  %v781 = vsel %vm133, %v776, %v780
  %v783 = vshrl.u32 %v102, 16
  %v785 = vrot.slane %v783, 4
  %v786 = vshll.u32 %v102, 16
  %v788 = vrot.slane %v786, 5
  %v789 = vor.u32 %v785, %v788
  %v790 = vrot.slane %v789, 4
  %v792 = vshll.u32 %v103, 16
  %v794 = vrot.slane %v792, 5
  %v795 = vsel %vm133, %v790, %v794
  %v796 = vshrl.u32 %v103, 16
  %v798 = vrot.slane %v796, 4
  %v799 = vor.u32 %v798, %v794
  %v800 = vrot.slane %v799, 4
  %v802 = vshll.u32 %v104, 16
  %v804 = vrot.slane %v802, 5
  %v805 = vsel %vm133, %v800, %v804
  %v807 = vshrl.u32 %v105, 16
  %v809 = vrot.slane %v807, 4
  %v810 = vshll.u32 %v105, 16
  %v812 = vrot.slane %v810, 5
  %v813 = vor.u32 %v809, %v812
  %v814 = vrot.slane %v813, 4
  %v816 = vshll.u32 %v106, 16
  %v818 = vrot.slane %v816, 5
  %v819 = vsel %vm133, %v814, %v818
  %v820 = vshrl.u32 %v106, 16
  %v822 = vrot.slane %v820, 4
  %v823 = vor.u32 %v822, %v818
  %v824 = vrot.slane %v823, 4
  %v826 = vshll.u32 %v107, 16
  %v828 = vrot.slane %v826, 5
  %v829 = vsel %vm133, %v824, %v828
  %v831 = vshrl.u32 %v108, 16
  %v833 = vrot.slane %v831, 4
  %v834 = vshll.u32 %v108, 16
  %v836 = vrot.slane %v834, 5
  %v837 = vor.u32 %v833, %v836
  %v838 = vrot.slane %v837, 4
  %v840 = vshll.u32 %v109, 16
  %v842 = vrot.slane %v840, 5
  %v843 = vsel %vm133, %v838, %v842
  %v844 = vshrl.u32 %v109, 16
  %v846 = vrot.slane %v844, 4
  %v847 = vor.u32 %v846, %v842
  %v848 = vrot.slane %v847, 4
  %v850 = vshll.u32 %v110, 16
  %v852 = vrot.slane %v850, 5
  %v853 = vsel %vm133, %v848, %v852
  %v855 = vshrl.u32 %v111, 16
  %v857 = vrot.slane %v855, 4
  %v858 = vshll.u32 %v111, 16
  %v860 = vrot.slane %v858, 5
  %v861 = vor.u32 %v857, %v860
  %v862 = vrot.slane %v861, 4
  %v864 = vshll.u32 %v112, 16
  %v866 = vrot.slane %v864, 5
  %v867 = vsel %vm133, %v862, %v866
  %v868 = vshrl.u32 %v112, 16
  %v870 = vrot.slane %v868, 4
  %v871 = vor.u32 %v870, %v866
  %v872 = vrot.slane %v871, 4
  %v874 = vshll.u32 %v113, 16
  %v876 = vrot.slane %v874, 5
  %v877 = vsel %vm133, %v872, %v876
  %v879 = vshrl.u32 %v114, 16
  %v881 = vrot.slane %v879, 4
  %v882 = vshll.u32 %v114, 16
  %v884 = vrot.slane %v882, 5
  %v885 = vor.u32 %v881, %v884
  %v886 = vrot.slane %v885, 4
  %v888 = vshll.u32 %v115, 16
  %v890 = vrot.slane %v888, 5
  %v891 = vsel %vm133, %v886, %v890
  %v892 = vshrl.u32 %v115, 16
  %v894 = vrot.slane %v892, 4
  %v895 = vor.u32 %v894, %v890
  %v896 = vrot.slane %v895, 4
  %v898 = vshll.u32 %v116, 16
  %v900 = vrot.slane %v898, 5
  %v901 = vsel %vm133, %v896, %v900
  %v902 = vld [vmem:[%s1 + $0x20] sm:$0xf]
  %v903 = vld [vmem:[%s1 + $0x24] sm:$0xf]
  %v904 = vld [vmem:[%s1 + $0x28] sm:$0xf]
  %v905 = vld [vmem:[%s1 + $0x2c] sm:$0xf]
  %v906 = vld [vmem:[%s1 + $0x30] sm:$0xf]
  %v907 = vld [vmem:[%s1 + $0x34] sm:$0xf]
  %v908 = vld [vmem:[%s1 + $0x38] sm:$0xf]
  %v909 = vld [vmem:[%s1 + $0x3c] sm:$0xf]
  %v910 = vunpack.c.l.b16 %v147
  %v911 = vunpack.c.l.b16 %v157
  %v912 = vunpack.c.l.b16 %v171
  %v913 = vunpack.c.l.b16 %v181
  %v914 = vunpack.c.l.b16 %v195
  %v915 = vunpack.c.l.b16 %v205
  %v916 = vunpack.c.l.b16 %v219
  %v917 = vunpack.c.l.b16 %v229
  %v918 = vunpack.c.l.b16 %v243
  %v919 = vunpack.c.l.b16 %v253
  %v920 = vunpack.c.l.b16 %v267
  %v921 = vunpack.c.l.b16 %v277
  %v922 = vunpack.c.l.b16 %v291
  %v923 = vunpack.c.l.b16 %v301
  %v924 = vunpack.c.l.b16 %v315
  %v925 = vunpack.c.l.b16 %v325
  %v926 = vunpack.c.l.b16 %v339
  %v927 = vunpack.c.l.b16 %v349
  %v928 = vunpack.c.l.b16 %v363
  %v929 = vunpack.c.l.b16 %v373
  %v930 = vunpack.c.l.b16 %v387
  %v931 = vunpack.c.l.b16 %v397
  %v932 = vunpack.c.l.b16 %v411
  %v933 = vunpack.c.l.b16 %v421
  %v934 = vunpack.c.l.b16 %v435
  %v935 = vunpack.c.l.b16 %v445
  %v936 = vunpack.c.l.b16 %v459
  %v937 = vunpack.c.l.b16 %v469
  %v938 = vunpack.c.l.b16 %v483
  %v939 = vunpack.c.l.b16 %v493
  %v940 = vunpack.c.l.b16 %v507
  %v941 = vunpack.c.l.b16 %v517
  %v942 = vunpack.c.l.b16 %v531
  %v943 = vunpack.c.l.b16 %v541
  %v944 = vunpack.c.l.b16 %v555
  %v945 = vunpack.c.l.b16 %v565
  %v946 = vunpack.c.l.b16 %v579
  %v947 = vunpack.c.l.b16 %v589
  %v948 = vunpack.c.l.b16 %v603
  %v949 = vunpack.c.l.b16 %v613
  %v950 = vunpack.c.l.b16 %v627
  %v951 = vunpack.c.l.b16 %v637
  %v952 = vunpack.c.l.b16 %v651
  %v953 = vunpack.c.l.b16 %v661
  %v954 = vunpack.c.l.b16 %v675
  %v955 = vunpack.c.l.b16 %v685
  %v956 = vunpack.c.l.b16 %v699
  %v957 = vunpack.c.l.b16 %v709
  %v958 = vunpack.c.l.b16 %v723
  %v959 = vunpack.c.l.b16 %v733
  %v960 = vunpack.c.l.b16 %v747
  %v961 = vunpack.c.l.b16 %v757
  %v962 = vunpack.c.l.b16 %v771
  %v963 = vunpack.c.l.b16 %v781
  %v964 = vunpack.c.l.b16 %v795
  %v965 = vunpack.c.l.b16 %v805
  %v966 = vunpack.c.l.b16 %v819
  %v967 = vunpack.c.l.b16 %v829
  %v968 = vunpack.c.l.b16 %v843
  %v969 = vunpack.c.l.b16 %v853
  %v970 = vunpack.c.l.b16 %v867
  %v971 = vunpack.c.l.b16 %v877
  %v972 = vunpack.c.l.b16 %v891
  %v973 = vunpack.c.l.b16 %v901
  %v974 = vpack.c.b16 %v911, %v910
  %v975 = vpack.c.b16 %v913, %v912
  %v976 = vpack.c.b16 %v915, %v914
  %v977 = vpack.c.b16 %v917, %v916
  %v978 = vpack.c.b16 %v919, %v918
  %v979 = vpack.c.b16 %v921, %v920
  %v980 = vpack.c.b16 %v923, %v922
  %v981 = vpack.c.b16 %v925, %v924
  %v982 = vpack.c.b16 %v927, %v926
  %v983 = vpack.c.b16 %v929, %v928
  %v984 = vpack.c.b16 %v931, %v930
  %v985 = vpack.c.b16 %v933, %v932
  %v986 = vpack.c.b16 %v935, %v934
  %v987 = vpack.c.b16 %v937, %v936
  %v988 = vpack.c.b16 %v939, %v938
  %v989 = vpack.c.b16 %v941, %v940
  %v990 = vpack.c.b16 %v943, %v942
  %v991 = vpack.c.b16 %v945, %v944
  %v992 = vpack.c.b16 %v947, %v946
  %v993 = vpack.c.b16 %v949, %v948
  %v994 = vpack.c.b16 %v951, %v950
  %v995 = vpack.c.b16 %v953, %v952
  %v996 = vpack.c.b16 %v955, %v954
  %v997 = vpack.c.b16 %v957, %v956
  %v998 = vpack.c.b16 %v959, %v958
  %v999 = vpack.c.b16 %v961, %v960
  %v1000 = vpack.c.b16 %v963, %v962
  %v1001 = vpack.c.b16 %v965, %v964
  %v1002 = vpack.c.b16 %v967, %v966
  %v1003 = vpack.c.b16 %v969, %v968
  %v1004 = vpack.c.b16 %v971, %v970
  %v1005 = vpack.c.b16 %v973, %v972
  %v1014 = vunpack.c.l.b16 %v902
  %v1015 = vunpack.c.l.b16 %v903
  %v1016 = vunpack.c.l.b16 %v904
  %v1017 = vunpack.c.l.b16 %v905
  %v1018 = vunpack.c.l.b16 %v906
  %v1019 = vunpack.c.l.b16 %v907
  %v1020 = vunpack.c.l.b16 %v908
  %v1021 = vunpack.c.l.b16 %v909
  %v1022 = vpack.c.b16 %v1015, %v1014
  %v1023 = vpack.c.b16 %v1017, %v1016
  %v1024 = vpack.c.b16 %v1019, %v1018
  %v1025 = vpack.c.b16 %v1021, %v1020
  %vm1030 = vcmask 523264
  %v1032 = vsel %vm1030, %v974, 0
  %v1035 = vsel %vm1030, %v975, 0
  %v1038 = vsel %vm1030, %v976, 0
  %v1041 = vsel %vm1030, %v977, 0
  %v1044 = vsel %vm1030, %v978, 0
  %v1047 = vsel %vm1030, %v979, 0
  %v1050 = vsel %vm1030, %v980, 0
  %v1053 = vsel %vm1030, %v981, 0
  %v1056 = vsel %vm1030, %v982, 0
  %v1059 = vsel %vm1030, %v983, 0
  %v1062 = vsel %vm1030, %v984, 0
  %v1065 = vsel %vm1030, %v985, 0
  %v1068 = vsel %vm1030, %v986, 0
  %v1071 = vsel %vm1030, %v987, 0
  %v1074 = vsel %vm1030, %v988, 0
  %v1077 = vsel %vm1030, %v989, 0
  %v1080 = vsel %vm1030, %v990, 0
  %v1083 = vsel %vm1030, %v991, 0
  %v1086 = vsel %vm1030, %v992, 0
  %v1089 = vsel %vm1030, %v993, 0
  %v1092 = vsel %vm1030, %v994, 0
  %v1095 = vsel %vm1030, %v995, 0
  %v1098 = vsel %vm1030, %v996, 0
  %v1101 = vsel %vm1030, %v997, 0
  %v1104 = vsel %vm1030, %v998, 0
  %v1107 = vsel %vm1030, %v999, 0
  %v1110 = vsel %vm1030, %v1000, 0
  %v1113 = vsel %vm1030, %v1001, 0
  %v1116 = vsel %vm1030, %v1002, 0
  %v1119 = vsel %vm1030, %v1003, 0
  %v1122 = vsel %vm1030, %v1004, 0
  %v1125 = vsel %vm1030, %v1005, 0
  %1127 = vmatprep.subr.bf16.mxu0 0
  %1128 = vmatpush1.bf16.msra.mxu0 0
  %1129 = vmatprep.subr.bf16.mxu0 0
  %1130 = vmatpush1.bf16.msra.mxu0 0
  %1131 = vmatprep.subr.bf16.mxu0 0
  %1132 = vmatpush1.bf16.msra.mxu0 0
  %1133 = vmatprep.subr.bf16.mxu0 0
  %1134 = vmatpush1.bf16.msra.mxu0 0
  %1135 = vmatprep.subr.bf16.mxu0 0
  %1136 = vmatpush1.bf16.msra.mxu0 %v1025
  %1137 = vmatprep.subr.bf16.mxu0 0
  %1138 = vmatpush1.bf16.msra.mxu0 %v1024
  %1139 = vmatprep.subr.bf16.mxu0 0
  %1140 = vmatpush1.bf16.msra.mxu0 %v1023
  %1141 = vmatprep.subr.bf16.mxu0 0
  %1142 = vmatpush1.bf16.msra.mxu0 %v1022
  %1143 = vmatprep.subr.bf16.mxu0 0
  %1144 = vmatpush2.bf16.msra.mxu0 0
  %1145 = vmatprep.subr.bf16.mxu0 0
  %1146 = vmatpush2.bf16.msra.mxu0 0
  %1147 = vmatprep.subr.bf16.mxu0 0
  %1148 = vmatpush2.bf16.msra.mxu0 0
  %1149 = vmatprep.subr.bf16.mxu0 0
  %1150 = vmatpush2.bf16.msra.mxu0 0
  %1151 = vmatprep.subr.bf16.mxu0 0
  %1152 = vmatpush2.bf16.msra.mxu0 0
  %1153 = vmatprep.subr.bf16.mxu0 0
  %1154 = vmatpush2.bf16.msra.mxu0 0
  %1155 = vmatprep.subr.bf16.mxu0 0
  %1156 = vmatpush2.bf16.msra.mxu0 0
  %1157 = vmatprep.subr.bf16.mxu0 0
  %1158 = vmatpush2.bf16.msra.mxu0 0
  %1159 = vmatprep.mubr.bf16.mxu0 0
  %1160 = vmatmul.mubr.bf16.gmra.mxu0 %v1032
  %v1161 = vpop.f32.mrf.mxu0
  %v1162 = vadd.f32 0.0, %v1161
  %v1163 = vpop.f32.mrf.mxu0
  %v1164 = vpop.f32.mrf.mxu0
  %v1165 = vadd.f32 0.0, %v1164
  %v1166 = vpop.f32.mrf.mxu0
  %1167 = vmatprep.mubr.bf16.mxu0 0
  %1168 = vmatmul.mubr.bf16.gmra.mxu0 %v1035
  %v1169 = vpop.f32.mrf.mxu0
  %v1170 = vadd.f32 0.0, %v1169
  %v1171 = vpop.f32.mrf.mxu0
  %v1172 = vpop.f32.mrf.mxu0
  %v1173 = vadd.f32 0.0, %v1172
  %v1174 = vpop.f32.mrf.mxu0
  %1175 = vmatprep.mubr.bf16.mxu0 0
  %1176 = vmatmul.mubr.bf16.gmra.mxu0 %v1038
  %v1177 = vpop.f32.mrf.mxu0
  %v1178 = vadd.f32 0.0, %v1177
  %v1179 = vpop.f32.mrf.mxu0
  %v1180 = vpop.f32.mrf.mxu0
  %v1181 = vadd.f32 0.0, %v1180
  %v1182 = vpop.f32.mrf.mxu0
  %1183 = vmatprep.mubr.bf16.mxu0 0
  %1184 = vmatmul.mubr.bf16.gmra.mxu0 %v1041
  %v1185 = vpop.f32.mrf.mxu0
  %v1186 = vadd.f32 0.0, %v1185
  %v1187 = vpop.f32.mrf.mxu0
  %v1188 = vpop.f32.mrf.mxu0
  %v1189 = vadd.f32 0.0, %v1188
  %v1190 = vpop.f32.mrf.mxu0
  %1191 = vmatprep.mubr.bf16.mxu0 0
  %1192 = vmatmul.mubr.bf16.gmra.mxu0 %v1044
  %v1193 = vpop.f32.mrf.mxu0
  %v1194 = vadd.f32 0.0, %v1193
  %v1195 = vpop.f32.mrf.mxu0
  %v1196 = vpop.f32.mrf.mxu0
  %v1197 = vadd.f32 0.0, %v1196
  %v1198 = vpop.f32.mrf.mxu0
  %1199 = vmatprep.mubr.bf16.mxu0 0
  %1200 = vmatmul.mubr.bf16.gmra.mxu0 %v1047
  %v1201 = vpop.f32.mrf.mxu0
  %v1202 = vadd.f32 0.0, %v1201
  %v1203 = vpop.f32.mrf.mxu0
  %v1204 = vpop.f32.mrf.mxu0
  %v1205 = vadd.f32 0.0, %v1204
  %v1206 = vpop.f32.mrf.mxu0
  %1207 = vmatprep.mubr.bf16.mxu0 0
  %1208 = vmatmul.mubr.bf16.gmra.mxu0 %v1050
  %v1209 = vpop.f32.mrf.mxu0
  %v1210 = vadd.f32 0.0, %v1209
  %v1211 = vpop.f32.mrf.mxu0
  %v1212 = vpop.f32.mrf.mxu0
  %v1213 = vadd.f32 0.0, %v1212
  %v1214 = vpop.f32.mrf.mxu0
  %1215 = vmatprep.mubr.bf16.mxu0 0
  %1216 = vmatmul.mubr.bf16.gmra.mxu0 %v1053
  %v1217 = vpop.f32.mrf.mxu0
  %v1218 = vadd.f32 0.0, %v1217
  %v1219 = vpop.f32.mrf.mxu0
  %v1220 = vpop.f32.mrf.mxu0
  %v1221 = vadd.f32 0.0, %v1220
  %v1222 = vpop.f32.mrf.mxu0
  %1223 = vmatprep.mubr.bf16.mxu0 0
  %1224 = vmatmul.mubr.bf16.gmra.mxu0 %v1056
  %v1225 = vpop.f32.mrf.mxu0
  %v1226 = vadd.f32 0.0, %v1225
  %v1227 = vpop.f32.mrf.mxu0
  %v1228 = vpop.f32.mrf.mxu0
  %v1229 = vadd.f32 0.0, %v1228
  %v1230 = vpop.f32.mrf.mxu0
  %1231 = vmatprep.mubr.bf16.mxu0 0
  %1232 = vmatmul.mubr.bf16.gmra.mxu0 %v1059
  %v1233 = vpop.f32.mrf.mxu0
  %v1234 = vadd.f32 0.0, %v1233
  %v1235 = vpop.f32.mrf.mxu0
  %v1236 = vpop.f32.mrf.mxu0
  %v1237 = vadd.f32 0.0, %v1236
  %v1238 = vpop.f32.mrf.mxu0
  %1239 = vmatprep.mubr.bf16.mxu0 0
  %1240 = vmatmul.mubr.bf16.gmra.mxu0 %v1062
  %v1241 = vpop.f32.mrf.mxu0
  %v1242 = vadd.f32 0.0, %v1241
  %v1243 = vpop.f32.mrf.mxu0
  %v1244 = vpop.f32.mrf.mxu0
  %v1245 = vadd.f32 0.0, %v1244
  %v1246 = vpop.f32.mrf.mxu0
  %1247 = vmatprep.mubr.bf16.mxu0 0
  %1248 = vmatmul.mubr.bf16.gmra.mxu0 %v1065
  %v1249 = vpop.f32.mrf.mxu0
  %v1250 = vadd.f32 0.0, %v1249
  %v1251 = vpop.f32.mrf.mxu0
  %v1252 = vpop.f32.mrf.mxu0
  %v1253 = vadd.f32 0.0, %v1252
  %v1254 = vpop.f32.mrf.mxu0
  %1255 = vmatprep.mubr.bf16.mxu0 0
  %1256 = vmatmul.mubr.bf16.gmra.mxu0 %v1068
  %v1257 = vpop.f32.mrf.mxu0
  %v1258 = vadd.f32 0.0, %v1257
  %v1259 = vpop.f32.mrf.mxu0
  %v1260 = vpop.f32.mrf.mxu0
  %v1261 = vadd.f32 0.0, %v1260
  %v1262 = vpop.f32.mrf.mxu0
  %1263 = vmatprep.mubr.bf16.mxu0 0
  %1264 = vmatmul.mubr.bf16.gmra.mxu0 %v1071
  %v1265 = vpop.f32.mrf.mxu0
  %v1266 = vadd.f32 0.0, %v1265
  %v1267 = vpop.f32.mrf.mxu0
  %v1268 = vpop.f32.mrf.mxu0
  %v1269 = vadd.f32 0.0, %v1268
  %v1270 = vpop.f32.mrf.mxu0
  %1271 = vmatprep.mubr.bf16.mxu0 0
  %1272 = vmatmul.mubr.bf16.gmra.mxu0 %v1074
  %v1273 = vpop.f32.mrf.mxu0
  %v1274 = vadd.f32 0.0, %v1273
  %v1275 = vpop.f32.mrf.mxu0
  %v1276 = vpop.f32.mrf.mxu0
  %v1277 = vadd.f32 0.0, %v1276
  %v1278 = vpop.f32.mrf.mxu0
  %1279 = vmatprep.mubr.bf16.mxu0 0
  %1280 = vmatmul.mubr.bf16.gmra.mxu0 %v1077
  %v1281 = vpop.f32.mrf.mxu0
  %v1282 = vadd.f32 0.0, %v1281
  %v1283 = vpop.f32.mrf.mxu0
  %v1284 = vpop.f32.mrf.mxu0
  %v1285 = vadd.f32 0.0, %v1284
  %v1286 = vpop.f32.mrf.mxu0
  %1287 = vmatprep.mubr.bf16.mxu0 0
  %1288 = vmatmul.mubr.bf16.gmra.mxu0 %v1080
  %v1289 = vpop.f32.mrf.mxu0
  %v1290 = vadd.f32 0.0, %v1289
  %v1291 = vpop.f32.mrf.mxu0
  %v1292 = vpop.f32.mrf.mxu0
  %v1293 = vadd.f32 0.0, %v1292
  %v1294 = vpop.f32.mrf.mxu0
  %1295 = vmatprep.mubr.bf16.mxu0 0
  %1296 = vmatmul.mubr.bf16.gmra.mxu0 %v1083
  %v1297 = vpop.f32.mrf.mxu0
  %v1298 = vadd.f32 0.0, %v1297
  %v1299 = vpop.f32.mrf.mxu0
  %v1300 = vpop.f32.mrf.mxu0
  %v1301 = vadd.f32 0.0, %v1300
  %v1302 = vpop.f32.mrf.mxu0
  %1303 = vmatprep.mubr.bf16.mxu0 0
  %1304 = vmatmul.mubr.bf16.gmra.mxu0 %v1086
  %v1305 = vpop.f32.mrf.mxu0
  %v1306 = vadd.f32 0.0, %v1305
  %v1307 = vpop.f32.mrf.mxu0
  %v1308 = vpop.f32.mrf.mxu0
  %v1309 = vadd.f32 0.0, %v1308
  %v1310 = vpop.f32.mrf.mxu0
  %1311 = vmatprep.mubr.bf16.mxu0 0
  %1312 = vmatmul.mubr.bf16.gmra.mxu0 %v1089
  %v1313 = vpop.f32.mrf.mxu0
  %v1314 = vadd.f32 0.0, %v1313
  %v1315 = vpop.f32.mrf.mxu0
  %v1316 = vpop.f32.mrf.mxu0
  %v1317 = vadd.f32 0.0, %v1316
  %v1318 = vpop.f32.mrf.mxu0
  %1319 = vmatprep.mubr.bf16.mxu0 0
  %1320 = vmatmul.mubr.bf16.gmra.mxu0 %v1092
  %v1321 = vpop.f32.mrf.mxu0
  %v1322 = vadd.f32 0.0, %v1321
  %v1323 = vpop.f32.mrf.mxu0
  %v1324 = vpop.f32.mrf.mxu0
  %v1325 = vadd.f32 0.0, %v1324
  %v1326 = vpop.f32.mrf.mxu0
  %1327 = vmatprep.mubr.bf16.mxu0 0
  %1328 = vmatmul.mubr.bf16.gmra.mxu0 %v1095
  %v1329 = vpop.f32.mrf.mxu0
  %v1330 = vadd.f32 0.0, %v1329
  %v1331 = vpop.f32.mrf.mxu0
  %v1332 = vpop.f32.mrf.mxu0
  %v1333 = vadd.f32 0.0, %v1332
  %v1334 = vpop.f32.mrf.mxu0
  %1335 = vmatprep.mubr.bf16.mxu0 0
  %1336 = vmatmul.mubr.bf16.gmra.mxu0 %v1098
  %v1337 = vpop.f32.mrf.mxu0
  %v1338 = vadd.f32 0.0, %v1337
  %v1339 = vpop.f32.mrf.mxu0
  %v1340 = vpop.f32.mrf.mxu0
  %v1341 = vadd.f32 0.0, %v1340
  %v1342 = vpop.f32.mrf.mxu0
  %1343 = vmatprep.mubr.bf16.mxu0 0
  %1344 = vmatmul.mubr.bf16.gmra.mxu0 %v1101
  %v1345 = vpop.f32.mrf.mxu0
  %v1346 = vadd.f32 0.0, %v1345
  %v1347 = vpop.f32.mrf.mxu0
  %v1348 = vpop.f32.mrf.mxu0
  %v1349 = vadd.f32 0.0, %v1348
  %v1350 = vpop.f32.mrf.mxu0
  %1351 = vmatprep.mubr.bf16.mxu0 0
  %1352 = vmatmul.mubr.bf16.gmra.mxu0 %v1104
  %v1353 = vpop.f32.mrf.mxu0
  %v1354 = vadd.f32 0.0, %v1353
  %v1355 = vpop.f32.mrf.mxu0
  %v1356 = vpop.f32.mrf.mxu0
  %v1357 = vadd.f32 0.0, %v1356
  %v1358 = vpop.f32.mrf.mxu0
  %1359 = vmatprep.mubr.bf16.mxu0 0
  %1360 = vmatmul.mubr.bf16.gmra.mxu0 %v1107
  %v1361 = vpop.f32.mrf.mxu0
  %v1362 = vadd.f32 0.0, %v1361
  %v1363 = vpop.f32.mrf.mxu0
  %v1364 = vpop.f32.mrf.mxu0
  %v1365 = vadd.f32 0.0, %v1364
  %v1366 = vpop.f32.mrf.mxu0
  %1367 = vmatprep.mubr.bf16.mxu0 0
  %1368 = vmatmul.mubr.bf16.gmra.mxu0 %v1110
  %v1369 = vpop.f32.mrf.mxu0
  %v1370 = vadd.f32 0.0, %v1369
  %v1371 = vpop.f32.mrf.mxu0
  %v1372 = vpop.f32.mrf.mxu0
  %v1373 = vadd.f32 0.0, %v1372
  %v1374 = vpop.f32.mrf.mxu0
  %1375 = vmatprep.mubr.bf16.mxu0 0
  %1376 = vmatmul.mubr.bf16.gmra.mxu0 %v1113
  %v1377 = vpop.f32.mrf.mxu0
  %v1378 = vadd.f32 0.0, %v1377
  %v1379 = vpop.f32.mrf.mxu0
  %v1380 = vpop.f32.mrf.mxu0
  %v1381 = vadd.f32 0.0, %v1380
  %v1382 = vpop.f32.mrf.mxu0
  %1383 = vmatprep.mubr.bf16.mxu0 0
  %1384 = vmatmul.mubr.bf16.gmra.mxu0 %v1116
  %v1385 = vpop.f32.mrf.mxu0
  %v1386 = vadd.f32 0.0, %v1385
  %v1387 = vpop.f32.mrf.mxu0
  %v1388 = vpop.f32.mrf.mxu0
  %v1389 = vadd.f32 0.0, %v1388
  %v1390 = vpop.f32.mrf.mxu0
  %1391 = vmatprep.mubr.bf16.mxu0 0
  %1392 = vmatmul.mubr.bf16.gmra.mxu0 %v1119
  %v1393 = vpop.f32.mrf.mxu0
  %v1394 = vadd.f32 0.0, %v1393
  %v1395 = vpop.f32.mrf.mxu0
  %v1396 = vpop.f32.mrf.mxu0
  %v1397 = vadd.f32 0.0, %v1396
  %v1398 = vpop.f32.mrf.mxu0
  %1399 = vmatprep.mubr.bf16.mxu0 0
  %1400 = vmatmul.mubr.bf16.gmra.mxu0 %v1122
  %v1401 = vpop.f32.mrf.mxu0
  %v1402 = vadd.f32 0.0, %v1401
  %v1403 = vpop.f32.mrf.mxu0
  %v1404 = vpop.f32.mrf.mxu0
  %v1405 = vadd.f32 0.0, %v1404
  %v1406 = vpop.f32.mrf.mxu0
  %1407 = vmatprep.mubr.bf16.mxu0 0
  %1408 = vmatmul.mubr.bf16.gmra.mxu0 %v1125
  %v1409 = vpop.f32.mrf.mxu0
  %v1410 = vadd.f32 0.0, %v1409
  %v1411 = vpop.f32.mrf.mxu0
  %v1412 = vpop.f32.mrf.mxu0
  %v1413 = vadd.f32 0.0, %v1412
  %v1414 = vpop.f32.mrf.mxu0
  %1415 = vdwg.mxu0
  %v1480 = vunpack.c.l.b16 %v15
  %v1481 = vunpack.c.l.b16 %v16
  %v1482 = vunpack.c.l.b16 %v18
  %v1483 = vunpack.c.l.b16 %v19
  %v1484 = vunpack.c.l.b16 %v21
  %v1485 = vunpack.c.l.b16 %v22
  %v1486 = vunpack.c.l.b16 %v24
  %v1487 = vunpack.c.l.b16 %v25
  %v1488 = vunpack.c.l.b16 %v27
  %v1489 = vunpack.c.l.b16 %v28
  %v1490 = vunpack.c.l.b16 %v30
  %v1491 = vunpack.c.l.b16 %v31
  %v1492 = vunpack.c.l.b16 %v33
  %v1493 = vunpack.c.l.b16 %v34
  %v1494 = vunpack.c.l.b16 %v36
  %v1495 = vunpack.c.l.b16 %v37
  %v1496 = vunpack.c.l.b16 %v39
  %v1497 = vunpack.c.l.b16 %v40
  %v1498 = vunpack.c.l.b16 %v42
  %v1499 = vunpack.c.l.b16 %v43
  %v1500 = vunpack.c.l.b16 %v45
  %v1501 = vunpack.c.l.b16 %v46
  %v1502 = vunpack.c.l.b16 %v48
  %v1503 = vunpack.c.l.b16 %v49
  %v1504 = vunpack.c.l.b16 %v51
  %v1505 = vunpack.c.l.b16 %v52
  %v1506 = vunpack.c.l.b16 %v54
  %v1507 = vunpack.c.l.b16 %v55
  %v1508 = vunpack.c.l.b16 %v57
  %v1509 = vunpack.c.l.b16 %v58
  %v1510 = vunpack.c.l.b16 %v60
  %v1511 = vunpack.c.l.b16 %v61
  %v1512 = vunpack.c.l.b16 %v69
  %v1513 = vunpack.c.l.b16 %v70
  %v1514 = vunpack.c.l.b16 %v72
  %v1515 = vunpack.c.l.b16 %v73
  %v1516 = vunpack.c.l.b16 %v75
  %v1517 = vunpack.c.l.b16 %v76
  %v1518 = vunpack.c.l.b16 %v78
  %v1519 = vunpack.c.l.b16 %v79
  %v1520 = vunpack.c.l.b16 %v81
  %v1521 = vunpack.c.l.b16 %v82
  %v1522 = vunpack.c.l.b16 %v84
  %v1523 = vunpack.c.l.b16 %v85
  %v1524 = vunpack.c.l.b16 %v87
  %v1525 = vunpack.c.l.b16 %v88
  %v1526 = vunpack.c.l.b16 %v90
  %v1527 = vunpack.c.l.b16 %v91
  %v1528 = vunpack.c.l.b16 %v93
  %v1529 = vunpack.c.l.b16 %v94
  %v1530 = vunpack.c.l.b16 %v96
  %v1531 = vunpack.c.l.b16 %v97
  %v1532 = vunpack.c.l.b16 %v99
  %v1533 = vunpack.c.l.b16 %v100
  %v1534 = vunpack.c.l.b16 %v102
  %v1535 = vunpack.c.l.b16 %v103
  %v1536 = vunpack.c.l.b16 %v105
  %v1537 = vunpack.c.l.b16 %v106
  %v1538 = vunpack.c.l.b16 %v108
  %v1539 = vunpack.c.l.b16 %v109
  %v1540 = vunpack.c.l.b16 %v111
  %v1541 = vunpack.c.l.b16 %v112
  %v1542 = vunpack.c.l.b16 %v114
  %v1543 = vunpack.c.l.b16 %v115
  %v1544 = vpack.c.b16 %v1481, %v1480
  %v1545 = vpack.c.b16 %v1483, %v1482
  %v1546 = vpack.c.b16 %v1485, %v1484
  %v1547 = vpack.c.b16 %v1487, %v1486
  %v1548 = vpack.c.b16 %v1489, %v1488
  %v1549 = vpack.c.b16 %v1491, %v1490
  %v1550 = vpack.c.b16 %v1493, %v1492
  %v1551 = vpack.c.b16 %v1495, %v1494
  %v1552 = vpack.c.b16 %v1497, %v1496
  %v1553 = vpack.c.b16 %v1499, %v1498
  %v1554 = vpack.c.b16 %v1501, %v1500
  %v1555 = vpack.c.b16 %v1503, %v1502
  %v1556 = vpack.c.b16 %v1505, %v1504
  %v1557 = vpack.c.b16 %v1507, %v1506
  %v1558 = vpack.c.b16 %v1509, %v1508
  %v1559 = vpack.c.b16 %v1511, %v1510
  %v1560 = vpack.c.b16 %v1513, %v1512
  %v1561 = vpack.c.b16 %v1515, %v1514
  %v1562 = vpack.c.b16 %v1517, %v1516
  %v1563 = vpack.c.b16 %v1519, %v1518
  %v1564 = vpack.c.b16 %v1521, %v1520
  %v1565 = vpack.c.b16 %v1523, %v1522
  %v1566 = vpack.c.b16 %v1525, %v1524
  %v1567 = vpack.c.b16 %v1527, %v1526
  %v1568 = vpack.c.b16 %v1529, %v1528
  %v1569 = vpack.c.b16 %v1531, %v1530
  %v1570 = vpack.c.b16 %v1533, %v1532
  %v1571 = vpack.c.b16 %v1535, %v1534
  %v1572 = vpack.c.b16 %v1537, %v1536
  %v1573 = vpack.c.b16 %v1539, %v1538
  %v1574 = vpack.c.b16 %v1541, %v1540
  %v1575 = vpack.c.b16 %v1543, %v1542
  %v1584 = vunpack.c.l.b16 %v123
  %v1585 = vunpack.c.l.b16 %v124
  %v1586 = vunpack.c.l.b16 %v125
  %v1587 = vunpack.c.l.b16 %v126
  %v1588 = vunpack.c.l.b16 %v127
  %v1589 = vunpack.c.l.b16 %v128
  %v1590 = vunpack.c.l.b16 %v129
  %v1591 = vunpack.c.l.b16 %v130
  %v1592 = vpack.c.b16 %v1585, %v1584
  %v1593 = vpack.c.b16 %v1587, %v1586
  %v1594 = vpack.c.b16 %v1589, %v1588
  %v1595 = vpack.c.b16 %v1591, %v1590
  %v1601 = vsel %vm1030, %v1544, 0
  %v1604 = vsel %vm1030, %v1545, 0
  %v1607 = vsel %vm1030, %v1546, 0
  %v1610 = vsel %vm1030, %v1547, 0
  %v1613 = vsel %vm1030, %v1548, 0
  %v1616 = vsel %vm1030, %v1549, 0
  %v1619 = vsel %vm1030, %v1550, 0
  %v1622 = vsel %vm1030, %v1551, 0
  %v1625 = vsel %vm1030, %v1552, 0
  %v1628 = vsel %vm1030, %v1553, 0
  %v1631 = vsel %vm1030, %v1554, 0
  %v1634 = vsel %vm1030, %v1555, 0
  %v1637 = vsel %vm1030, %v1556, 0
  %v1640 = vsel %vm1030, %v1557, 0
  %v1643 = vsel %vm1030, %v1558, 0
  %v1646 = vsel %vm1030, %v1559, 0
  %v1649 = vsel %vm1030, %v1560, 0
  %v1652 = vsel %vm1030, %v1561, 0
  %v1655 = vsel %vm1030, %v1562, 0
  %v1658 = vsel %vm1030, %v1563, 0
  %v1661 = vsel %vm1030, %v1564, 0
  %v1664 = vsel %vm1030, %v1565, 0
  %v1667 = vsel %vm1030, %v1566, 0
  %v1670 = vsel %vm1030, %v1567, 0
  %v1673 = vsel %vm1030, %v1568, 0
  %v1676 = vsel %vm1030, %v1569, 0
  %v1679 = vsel %vm1030, %v1570, 0
  %v1682 = vsel %vm1030, %v1571, 0
  %v1685 = vsel %vm1030, %v1572, 0
  %v1688 = vsel %vm1030, %v1573, 0
  %v1691 = vsel %vm1030, %v1574, 0
  %v1694 = vsel %vm1030, %v1575, 0
  %1696 = vmatprep.subr.bf16.mxu0 0
  %1697 = vmatpush1.bf16.msra.mxu0 0
  %1698 = vmatprep.subr.bf16.mxu0 0
  %1699 = vmatpush1.bf16.msra.mxu0 0
  %1700 = vmatprep.subr.bf16.mxu0 0
  %1701 = vmatpush1.bf16.msra.mxu0 0
  %1702 = vmatprep.subr.bf16.mxu0 0
  %1703 = vmatpush1.bf16.msra.mxu0 0
  %1704 = vmatprep.subr.bf16.mxu0 0
  %1705 = vmatpush1.bf16.msra.mxu0 %v1595
  %1706 = vmatprep.subr.bf16.mxu0 0
  %1707 = vmatpush1.bf16.msra.mxu0 %v1594
  %1708 = vmatprep.subr.bf16.mxu0 0
  %1709 = vmatpush1.bf16.msra.mxu0 %v1593
  %1710 = vmatprep.subr.bf16.mxu0 0
  %1711 = vmatpush1.bf16.msra.mxu0 %v1592
  %1712 = vmatprep.subr.bf16.mxu0 0
  %1713 = vmatpush2.bf16.msra.mxu0 0
  %1714 = vmatprep.subr.bf16.mxu0 0
  %1715 = vmatpush2.bf16.msra.mxu0 0
  %1716 = vmatprep.subr.bf16.mxu0 0
  %1717 = vmatpush2.bf16.msra.mxu0 0
  %1718 = vmatprep.subr.bf16.mxu0 0
  %1719 = vmatpush2.bf16.msra.mxu0 0
  %1720 = vmatprep.subr.bf16.mxu0 0
  %1721 = vmatpush2.bf16.msra.mxu0 0
  %1722 = vmatprep.subr.bf16.mxu0 0
  %1723 = vmatpush2.bf16.msra.mxu0 0
  %1724 = vmatprep.subr.bf16.mxu0 0
  %1725 = vmatpush2.bf16.msra.mxu0 0
  %1726 = vmatprep.subr.bf16.mxu0 0
  %1727 = vmatpush2.bf16.msra.mxu0 0
  %1728 = vmatprep.mubr.bf16.mxu0 0
  %1729 = vmatmul.mubr.bf16.gmra.mxu0 %v1601
  %v1730 = vpop.f32.mrf.mxu0
  %v1731 = vadd.f32 %v1162, %v1730
  %v1732 = vpop.f32.mrf.mxu0
  %v1733 = vpop.f32.mrf.mxu0
  %v1734 = vadd.f32 %v1165, %v1733
  %v1735 = vpop.f32.mrf.mxu0
  %1736 = vmatprep.mubr.bf16.mxu0 0
  %1737 = vmatmul.mubr.bf16.gmra.mxu0 %v1604
  %v1738 = vpop.f32.mrf.mxu0
  %v1739 = vadd.f32 %v1170, %v1738
  %v1740 = vpop.f32.mrf.mxu0
  %v1741 = vpop.f32.mrf.mxu0
  %v1742 = vadd.f32 %v1173, %v1741
  %v1743 = vpop.f32.mrf.mxu0
  %1744 = vmatprep.mubr.bf16.mxu0 0
  %1745 = vmatmul.mubr.bf16.gmra.mxu0 %v1607
  %v1746 = vpop.f32.mrf.mxu0
  %v1747 = vadd.f32 %v1178, %v1746
  %v1748 = vpop.f32.mrf.mxu0
  %v1749 = vpop.f32.mrf.mxu0
  %v1750 = vadd.f32 %v1181, %v1749
  %v1751 = vpop.f32.mrf.mxu0
  %1752 = vmatprep.mubr.bf16.mxu0 0
  %1753 = vmatmul.mubr.bf16.gmra.mxu0 %v1610
  %v1754 = vpop.f32.mrf.mxu0
  %v1755 = vadd.f32 %v1186, %v1754
  %v1756 = vpop.f32.mrf.mxu0
  %v1757 = vpop.f32.mrf.mxu0
  %v1758 = vadd.f32 %v1189, %v1757
  %v1759 = vpop.f32.mrf.mxu0
  %1760 = vmatprep.mubr.bf16.mxu0 0
  %1761 = vmatmul.mubr.bf16.gmra.mxu0 %v1613
  %v1762 = vpop.f32.mrf.mxu0
  %v1763 = vadd.f32 %v1194, %v1762
  %v1764 = vpop.f32.mrf.mxu0
  %v1765 = vpop.f32.mrf.mxu0
  %v1766 = vadd.f32 %v1197, %v1765
  %v1767 = vpop.f32.mrf.mxu0
  %1768 = vmatprep.mubr.bf16.mxu0 0
  %1769 = vmatmul.mubr.bf16.gmra.mxu0 %v1616
  %v1770 = vpop.f32.mrf.mxu0
  %v1771 = vadd.f32 %v1202, %v1770
  %v1772 = vpop.f32.mrf.mxu0
  %v1773 = vpop.f32.mrf.mxu0
  %v1774 = vadd.f32 %v1205, %v1773
  %v1775 = vpop.f32.mrf.mxu0
  %1776 = vmatprep.mubr.bf16.mxu0 0
  %1777 = vmatmul.mubr.bf16.gmra.mxu0 %v1619
  %v1778 = vpop.f32.mrf.mxu0
  %v1779 = vadd.f32 %v1210, %v1778
  %v1780 = vpop.f32.mrf.mxu0
  %v1781 = vpop.f32.mrf.mxu0
  %v1782 = vadd.f32 %v1213, %v1781
  %v1783 = vpop.f32.mrf.mxu0
  %1784 = vmatprep.mubr.bf16.mxu0 0
  %1785 = vmatmul.mubr.bf16.gmra.mxu0 %v1622
  %v1786 = vpop.f32.mrf.mxu0
  %v1787 = vadd.f32 %v1218, %v1786
  %v1788 = vpop.f32.mrf.mxu0
  %v1789 = vpop.f32.mrf.mxu0
  %v1790 = vadd.f32 %v1221, %v1789
  %v1791 = vpop.f32.mrf.mxu0
  %1792 = vmatprep.mubr.bf16.mxu0 0
  %1793 = vmatmul.mubr.bf16.gmra.mxu0 %v1625
  %v1794 = vpop.f32.mrf.mxu0
  %v1795 = vadd.f32 %v1226, %v1794
  %v1796 = vpop.f32.mrf.mxu0
  %v1797 = vpop.f32.mrf.mxu0
  %v1798 = vadd.f32 %v1229, %v1797
  %v1799 = vpop.f32.mrf.mxu0
  %1800 = vmatprep.mubr.bf16.mxu0 0
  %1801 = vmatmul.mubr.bf16.gmra.mxu0 %v1628
  %v1802 = vpop.f32.mrf.mxu0
  %v1803 = vadd.f32 %v1234, %v1802
  %v1804 = vpop.f32.mrf.mxu0
  %v1805 = vpop.f32.mrf.mxu0
  %v1806 = vadd.f32 %v1237, %v1805
  %v1807 = vpop.f32.mrf.mxu0
  %1808 = vmatprep.mubr.bf16.mxu0 0
  %1809 = vmatmul.mubr.bf16.gmra.mxu0 %v1631
  %v1810 = vpop.f32.mrf.mxu0
  %v1811 = vadd.f32 %v1242, %v1810
  %v1812 = vpop.f32.mrf.mxu0
  %v1813 = vpop.f32.mrf.mxu0
  %v1814 = vadd.f32 %v1245, %v1813
  %v1815 = vpop.f32.mrf.mxu0
  %1816 = vmatprep.mubr.bf16.mxu0 0
  %1817 = vmatmul.mubr.bf16.gmra.mxu0 %v1634
  %v1818 = vpop.f32.mrf.mxu0
  %v1819 = vadd.f32 %v1250, %v1818
  %v1820 = vpop.f32.mrf.mxu0
  %v1821 = vpop.f32.mrf.mxu0
  %v1822 = vadd.f32 %v1253, %v1821
  %v1823 = vpop.f32.mrf.mxu0
  %1824 = vmatprep.mubr.bf16.mxu0 0
  %1825 = vmatmul.mubr.bf16.gmra.mxu0 %v1637
  %v1826 = vpop.f32.mrf.mxu0
  %v1827 = vadd.f32 %v1258, %v1826
  %v1828 = vpop.f32.mrf.mxu0
  %v1829 = vpop.f32.mrf.mxu0
  %v1830 = vadd.f32 %v1261, %v1829
  %v1831 = vpop.f32.mrf.mxu0
  %1832 = vmatprep.mubr.bf16.mxu0 0
  %1833 = vmatmul.mubr.bf16.gmra.mxu0 %v1640
  %v1834 = vpop.f32.mrf.mxu0
  %v1835 = vadd.f32 %v1266, %v1834
  %v1836 = vpop.f32.mrf.mxu0
  %v1837 = vpop.f32.mrf.mxu0
  %v1838 = vadd.f32 %v1269, %v1837
  %v1839 = vpop.f32.mrf.mxu0
  %1840 = vmatprep.mubr.bf16.mxu0 0
  %1841 = vmatmul.mubr.bf16.gmra.mxu0 %v1643
  %v1842 = vpop.f32.mrf.mxu0
  %v1843 = vadd.f32 %v1274, %v1842
  %v1844 = vpop.f32.mrf.mxu0
  %v1845 = vpop.f32.mrf.mxu0
  %v1846 = vadd.f32 %v1277, %v1845
  %v1847 = vpop.f32.mrf.mxu0
  %1848 = vmatprep.mubr.bf16.mxu0 0
  %1849 = vmatmul.mubr.bf16.gmra.mxu0 %v1646
  %v1850 = vpop.f32.mrf.mxu0
  %v1851 = vadd.f32 %v1282, %v1850
  %v1852 = vpop.f32.mrf.mxu0
  %v1853 = vpop.f32.mrf.mxu0
  %v1854 = vadd.f32 %v1285, %v1853
  %v1855 = vpop.f32.mrf.mxu0
  %1856 = vmatprep.mubr.bf16.mxu0 0
  %1857 = vmatmul.mubr.bf16.gmra.mxu0 %v1649
  %v1858 = vpop.f32.mrf.mxu0
  %v1859 = vadd.f32 %v1290, %v1858
  %v1860 = vpop.f32.mrf.mxu0
  %v1861 = vpop.f32.mrf.mxu0
  %v1862 = vadd.f32 %v1293, %v1861
  %v1863 = vpop.f32.mrf.mxu0
  %1864 = vmatprep.mubr.bf16.mxu0 0
  %1865 = vmatmul.mubr.bf16.gmra.mxu0 %v1652
  %v1866 = vpop.f32.mrf.mxu0
  %v1867 = vadd.f32 %v1298, %v1866
  %v1868 = vpop.f32.mrf.mxu0
  %v1869 = vpop.f32.mrf.mxu0
  %v1870 = vadd.f32 %v1301, %v1869
  %v1871 = vpop.f32.mrf.mxu0
  %1872 = vmatprep.mubr.bf16.mxu0 0
  %1873 = vmatmul.mubr.bf16.gmra.mxu0 %v1655
  %v1874 = vpop.f32.mrf.mxu0
  %v1875 = vadd.f32 %v1306, %v1874
  %v1876 = vpop.f32.mrf.mxu0
  %v1877 = vpop.f32.mrf.mxu0
  %v1878 = vadd.f32 %v1309, %v1877
  %v1879 = vpop.f32.mrf.mxu0
  %1880 = vmatprep.mubr.bf16.mxu0 0
  %1881 = vmatmul.mubr.bf16.gmra.mxu0 %v1658
  %v1882 = vpop.f32.mrf.mxu0
  %v1883 = vadd.f32 %v1314, %v1882
  %v1884 = vpop.f32.mrf.mxu0
  %v1885 = vpop.f32.mrf.mxu0
  %v1886 = vadd.f32 %v1317, %v1885
  %v1887 = vpop.f32.mrf.mxu0
  %1888 = vmatprep.mubr.bf16.mxu0 0
  %1889 = vmatmul.mubr.bf16.gmra.mxu0 %v1661
  %v1890 = vpop.f32.mrf.mxu0
  %v1891 = vadd.f32 %v1322, %v1890
  %v1892 = vpop.f32.mrf.mxu0
  %v1893 = vpop.f32.mrf.mxu0
  %v1894 = vadd.f32 %v1325, %v1893
  %v1895 = vpop.f32.mrf.mxu0
  %1896 = vmatprep.mubr.bf16.mxu0 0
  %1897 = vmatmul.mubr.bf16.gmra.mxu0 %v1664
  %v1898 = vpop.f32.mrf.mxu0
  %v1899 = vadd.f32 %v1330, %v1898
  %v1900 = vpop.f32.mrf.mxu0
  %v1901 = vpop.f32.mrf.mxu0
  %v1902 = vadd.f32 %v1333, %v1901
  %v1903 = vpop.f32.mrf.mxu0
  %1904 = vmatprep.mubr.bf16.mxu0 0
  %1905 = vmatmul.mubr.bf16.gmra.mxu0 %v1667
  %v1906 = vpop.f32.mrf.mxu0
  %v1907 = vadd.f32 %v1338, %v1906
  %v1908 = vpop.f32.mrf.mxu0
  %v1909 = vpop.f32.mrf.mxu0
  %v1910 = vadd.f32 %v1341, %v1909
  %v1911 = vpop.f32.mrf.mxu0
  %1912 = vmatprep.mubr.bf16.mxu0 0
  %1913 = vmatmul.mubr.bf16.gmra.mxu0 %v1670
  %v1914 = vpop.f32.mrf.mxu0
  %v1915 = vadd.f32 %v1346, %v1914
  %v1916 = vpop.f32.mrf.mxu0
  %v1917 = vpop.f32.mrf.mxu0
  %v1918 = vadd.f32 %v1349, %v1917
  %v1919 = vpop.f32.mrf.mxu0
  %1920 = vmatprep.mubr.bf16.mxu0 0
  %1921 = vmatmul.mubr.bf16.gmra.mxu0 %v1673
  %v1922 = vpop.f32.mrf.mxu0
  %v1923 = vadd.f32 %v1354, %v1922
  %v1924 = vpop.f32.mrf.mxu0
  %v1925 = vpop.f32.mrf.mxu0
  %v1926 = vadd.f32 %v1357, %v1925
  %v1927 = vpop.f32.mrf.mxu0
  %1928 = vmatprep.mubr.bf16.mxu0 0
  %1929 = vmatmul.mubr.bf16.gmra.mxu0 %v1676
  %v1930 = vpop.f32.mrf.mxu0
  %v1931 = vadd.f32 %v1362, %v1930
  %v1932 = vpop.f32.mrf.mxu0
  %v1933 = vpop.f32.mrf.mxu0
  %v1934 = vadd.f32 %v1365, %v1933
  %v1935 = vpop.f32.mrf.mxu0
  %1936 = vmatprep.mubr.bf16.mxu0 0
  %1937 = vmatmul.mubr.bf16.gmra.mxu0 %v1679
  %v1938 = vpop.f32.mrf.mxu0
  %v1939 = vadd.f32 %v1370, %v1938
  %v1940 = vpop.f32.mrf.mxu0
  %v1941 = vpop.f32.mrf.mxu0
  %v1942 = vadd.f32 %v1373, %v1941
  %v1943 = vpop.f32.mrf.mxu0
  %1944 = vmatprep.mubr.bf16.mxu0 0
  %1945 = vmatmul.mubr.bf16.gmra.mxu0 %v1682
  %v1946 = vpop.f32.mrf.mxu0
  %v1947 = vadd.f32 %v1378, %v1946
  %v1948 = vpop.f32.mrf.mxu0
  %v1949 = vpop.f32.mrf.mxu0
  %v1950 = vadd.f32 %v1381, %v1949
  %v1951 = vpop.f32.mrf.mxu0
  %1952 = vmatprep.mubr.bf16.mxu0 0
  %1953 = vmatmul.mubr.bf16.gmra.mxu0 %v1685
  %v1954 = vpop.f32.mrf.mxu0
  %v1955 = vadd.f32 %v1386, %v1954
  %v1956 = vpop.f32.mrf.mxu0
  %v1957 = vpop.f32.mrf.mxu0
  %v1958 = vadd.f32 %v1389, %v1957
  %v1959 = vpop.f32.mrf.mxu0
  %1960 = vmatprep.mubr.bf16.mxu0 0
  %1961 = vmatmul.mubr.bf16.gmra.mxu0 %v1688
  %v1962 = vpop.f32.mrf.mxu0
  %v1963 = vadd.f32 %v1394, %v1962
  %v1964 = vpop.f32.mrf.mxu0
  %v1965 = vpop.f32.mrf.mxu0
  %v1966 = vadd.f32 %v1397, %v1965
  %v1967 = vpop.f32.mrf.mxu0
  %1968 = vmatprep.mubr.bf16.mxu0 0
  %1969 = vmatmul.mubr.bf16.gmra.mxu0 %v1691
  %v1970 = vpop.f32.mrf.mxu0
  %v1971 = vadd.f32 %v1402, %v1970
  %v1972 = vpop.f32.mrf.mxu0
  %v1973 = vpop.f32.mrf.mxu0
  %v1974 = vadd.f32 %v1405, %v1973
  %v1975 = vpop.f32.mrf.mxu0
  %1976 = vmatprep.mubr.bf16.mxu0 0
  %1977 = vmatmul.mubr.bf16.gmra.mxu0 %v1694
  %v1978 = vpop.f32.mrf.mxu0
  %v1979 = vadd.f32 %v1410, %v1978
  %v1980 = vpop.f32.mrf.mxu0
  %v1981 = vpop.f32.mrf.mxu0
  %v1982 = vadd.f32 %v1413, %v1981
  %v1983 = vpop.f32.mrf.mxu0
  %1984 = vdwg.mxu0
  %vm2017 = vcmask 1042432
  %vm2018 = vcmask 1046532
  %vm2019 = vmor %vm2017, %vm2018
  %v2020 = vrot.slane %v15, 5
  %v2021 = vrot.slane %v2020, 4
  %v2022 = vrot.slane %v16, 5
  %v2023 = vsel %vm2019, %v2021, %v2022
  %v2024 = vrot.slane %v2022, 4
  %v2025 = vrot.slane %v17, 5
  %v2026 = vsel %vm2019, %v2024, %v2025
  %v2027 = vrot.slane %v18, 5
  %v2028 = vrot.slane %v2027, 4
  %v2029 = vrot.slane %v19, 5
  %v2030 = vsel %vm2019, %v2028, %v2029
  %v2031 = vrot.slane %v2029, 4
  %v2032 = vrot.slane %v20, 5
  %v2033 = vsel %vm2019, %v2031, %v2032
  %v2034 = vrot.slane %v21, 5
  %v2035 = vrot.slane %v2034, 4
  %v2036 = vrot.slane %v22, 5
  %v2037 = vsel %vm2019, %v2035, %v2036
  %v2038 = vrot.slane %v2036, 4
  %v2039 = vrot.slane %v23, 5
  %v2040 = vsel %vm2019, %v2038, %v2039
  %v2041 = vrot.slane %v24, 5
  %v2042 = vrot.slane %v2041, 4
  %v2043 = vrot.slane %v25, 5
  %v2044 = vsel %vm2019, %v2042, %v2043
  %v2045 = vrot.slane %v2043, 4
  %v2046 = vrot.slane %v26, 5
  %v2047 = vsel %vm2019, %v2045, %v2046
  %v2048 = vrot.slane %v27, 5
  %v2049 = vrot.slane %v2048, 4
  %v2050 = vrot.slane %v28, 5
  %v2051 = vsel %vm2019, %v2049, %v2050
  %v2052 = vrot.slane %v2050, 4
  %v2053 = vrot.slane %v29, 5
  %v2054 = vsel %vm2019, %v2052, %v2053
  %v2055 = vrot.slane %v30, 5
  %v2056 = vrot.slane %v2055, 4
  %v2057 = vrot.slane %v31, 5
  %v2058 = vsel %vm2019, %v2056, %v2057
  %v2059 = vrot.slane %v2057, 4
  %v2060 = vrot.slane %v32, 5
  %v2061 = vsel %vm2019, %v2059, %v2060
  %v2062 = vrot.slane %v33, 5
  %v2063 = vrot.slane %v2062, 4
  %v2064 = vrot.slane %v34, 5
  %v2065 = vsel %vm2019, %v2063, %v2064
  %v2066 = vrot.slane %v2064, 4
  %v2067 = vrot.slane %v35, 5
  %v2068 = vsel %vm2019, %v2066, %v2067
  %v2069 = vrot.slane %v36, 5
  %v2070 = vrot.slane %v2069, 4
  %v2071 = vrot.slane %v37, 5
  %v2072 = vsel %vm2019, %v2070, %v2071
  %v2073 = vrot.slane %v2071, 4
  %v2074 = vrot.slane %v38, 5
  %v2075 = vsel %vm2019, %v2073, %v2074
  %v2076 = vrot.slane %v39, 5
  %v2077 = vrot.slane %v2076, 4
  %v2078 = vrot.slane %v40, 5
  %v2079 = vsel %vm2019, %v2077, %v2078
  %v2080 = vrot.slane %v2078, 4
  %v2081 = vrot.slane %v41, 5
  %v2082 = vsel %vm2019, %v2080, %v2081
  %v2083 = vrot.slane %v42, 5
  %v2084 = vrot.slane %v2083, 4
  %v2085 = vrot.slane %v43, 5
  %v2086 = vsel %vm2019, %v2084, %v2085
  %v2087 = vrot.slane %v2085, 4
  %v2088 = vrot.slane %v44, 5
  %v2089 = vsel %vm2019, %v2087, %v2088
  %v2090 = vrot.slane %v45, 5
  %v2091 = vrot.slane %v2090, 4
  %v2092 = vrot.slane %v46, 5
  %v2093 = vsel %vm2019, %v2091, %v2092
  %v2094 = vrot.slane %v2092, 4
  %v2095 = vrot.slane %v47, 5
  %v2096 = vsel %vm2019, %v2094, %v2095
  %v2097 = vrot.slane %v48, 5
  %v2098 = vrot.slane %v2097, 4
  %v2099 = vrot.slane %v49, 5
  %v2100 = vsel %vm2019, %v2098, %v2099
  %v2101 = vrot.slane %v2099, 4
  %v2102 = vrot.slane %v50, 5
  %v2103 = vsel %vm2019, %v2101, %v2102
  %v2104 = vrot.slane %v51, 5
  %v2105 = vrot.slane %v2104, 4
  %v2106 = vrot.slane %v52, 5
  %v2107 = vsel %vm2019, %v2105, %v2106
  %v2108 = vrot.slane %v2106, 4
  %v2109 = vrot.slane %v53, 5
  %v2110 = vsel %vm2019, %v2108, %v2109
  %v2111 = vrot.slane %v54, 5
  %v2112 = vrot.slane %v2111, 4
  %v2113 = vrot.slane %v55, 5
  %v2114 = vsel %vm2019, %v2112, %v2113
  %v2115 = vrot.slane %v2113, 4
  %v2116 = vrot.slane %v56, 5
  %v2117 = vsel %vm2019, %v2115, %v2116
  %v2118 = vrot.slane %v57, 5
  %v2119 = vrot.slane %v2118, 4
  %v2120 = vrot.slane %v58, 5
  %v2121 = vsel %vm2019, %v2119, %v2120
  %v2122 = vrot.slane %v2120, 4
  %v2123 = vrot.slane %v59, 5
  %v2124 = vsel %vm2019, %v2122, %v2123
  %v2125 = vrot.slane %v60, 5
  %v2126 = vrot.slane %v2125, 4
  %v2127 = vrot.slane %v61, 5
  %v2128 = vsel %vm2019, %v2126, %v2127
  %v2129 = vrot.slane %v2127, 4
  %v2130 = vrot.slane %v62, 5
  %v2131 = vsel %vm2019, %v2129, %v2130
  %v2132 = vrot.slane %v69, 5
  %v2133 = vrot.slane %v2132, 4
  %v2134 = vrot.slane %v70, 5
  %v2135 = vsel %vm2019, %v2133, %v2134
  %v2136 = vrot.slane %v2134, 4
  %v2137 = vrot.slane %v71, 5
  %v2138 = vsel %vm2019, %v2136, %v2137
  %v2139 = vrot.slane %v72, 5
  %v2140 = vrot.slane %v2139, 4
  %v2141 = vrot.slane %v73, 5
  %v2142 = vsel %vm2019, %v2140, %v2141
  %v2143 = vrot.slane %v2141, 4
  %v2144 = vrot.slane %v74, 5
  %v2145 = vsel %vm2019, %v2143, %v2144
  %v2146 = vrot.slane %v75, 5
  %v2147 = vrot.slane %v2146, 4
  %v2148 = vrot.slane %v76, 5
  %v2149 = vsel %vm2019, %v2147, %v2148
  %v2150 = vrot.slane %v2148, 4
  %v2151 = vrot.slane %v77, 5
  %v2152 = vsel %vm2019, %v2150, %v2151
  %v2153 = vrot.slane %v78, 5
  %v2154 = vrot.slane %v2153, 4
  %v2155 = vrot.slane %v79, 5
  %v2156 = vsel %vm2019, %v2154, %v2155
  %v2157 = vrot.slane %v2155, 4
  %v2158 = vrot.slane %v80, 5
  %v2159 = vsel %vm2019, %v2157, %v2158
  %v2160 = vrot.slane %v81, 5
  %v2161 = vrot.slane %v2160, 4
  %v2162 = vrot.slane %v82, 5
  %v2163 = vsel %vm2019, %v2161, %v2162
  %v2164 = vrot.slane %v2162, 4
  %v2165 = vrot.slane %v83, 5
  %v2166 = vsel %vm2019, %v2164, %v2165
  %v2167 = vrot.slane %v84, 5
  %v2168 = vrot.slane %v2167, 4
  %v2169 = vrot.slane %v85, 5
  %v2170 = vsel %vm2019, %v2168, %v2169
  %v2171 = vrot.slane %v2169, 4
  %v2172 = vrot.slane %v86, 5
  %v2173 = vsel %vm2019, %v2171, %v2172
  %v2174 = vrot.slane %v87, 5
  %v2175 = vrot.slane %v2174, 4
  %v2176 = vrot.slane %v88, 5
  %v2177 = vsel %vm2019, %v2175, %v2176
  %v2178 = vrot.slane %v2176, 4
  %v2179 = vrot.slane %v89, 5
  %v2180 = vsel %vm2019, %v2178, %v2179
  %v2181 = vrot.slane %v90, 5
  %v2182 = vrot.slane %v2181, 4
  %v2183 = vrot.slane %v91, 5
  %v2184 = vsel %vm2019, %v2182, %v2183
  %v2185 = vrot.slane %v2183, 4
  %v2186 = vrot.slane %v92, 5
  %v2187 = vsel %vm2019, %v2185, %v2186
  %v2188 = vrot.slane %v93, 5
  %v2189 = vrot.slane %v2188, 4
  %v2190 = vrot.slane %v94, 5
  %v2191 = vsel %vm2019, %v2189, %v2190
  %v2192 = vrot.slane %v2190, 4
  %v2193 = vrot.slane %v95, 5
  %v2194 = vsel %vm2019, %v2192, %v2193
  %v2195 = vrot.slane %v96, 5
  %v2196 = vrot.slane %v2195, 4
  %v2197 = vrot.slane %v97, 5
  %v2198 = vsel %vm2019, %v2196, %v2197
  %v2199 = vrot.slane %v2197, 4
  %v2200 = vrot.slane %v98, 5
  %v2201 = vsel %vm2019, %v2199, %v2200
  %v2202 = vrot.slane %v99, 5
  %v2203 = vrot.slane %v2202, 4
  %v2204 = vrot.slane %v100, 5
  %v2205 = vsel %vm2019, %v2203, %v2204
  %v2206 = vrot.slane %v2204, 4
  %v2207 = vrot.slane %v101, 5
  %v2208 = vsel %vm2019, %v2206, %v2207
  %v2209 = vrot.slane %v102, 5
  %v2210 = vrot.slane %v2209, 4
  %v2211 = vrot.slane %v103, 5
  %v2212 = vsel %vm2019, %v2210, %v2211
  %v2213 = vrot.slane %v2211, 4
  %v2214 = vrot.slane %v104, 5
  %v2215 = vsel %vm2019, %v2213, %v2214
  %v2216 = vrot.slane %v105, 5
  %v2217 = vrot.slane %v2216, 4
  %v2218 = vrot.slane %v106, 5
  %v2219 = vsel %vm2019, %v2217, %v2218
  %v2220 = vrot.slane %v2218, 4
  %v2221 = vrot.slane %v107, 5
  %v2222 = vsel %vm2019, %v2220, %v2221
  %v2223 = vrot.slane %v108, 5
  %v2224 = vrot.slane %v2223, 4
  %v2225 = vrot.slane %v109, 5
  %v2226 = vsel %vm2019, %v2224, %v2225
  %v2227 = vrot.slane %v2225, 4
  %v2228 = vrot.slane %v110, 5
  %v2229 = vsel %vm2019, %v2227, %v2228
  %v2230 = vrot.slane %v111, 5
  %v2231 = vrot.slane %v2230, 4
  %v2232 = vrot.slane %v112, 5
  %v2233 = vsel %vm2019, %v2231, %v2232
  %v2234 = vrot.slane %v2232, 4
  %v2235 = vrot.slane %v113, 5
  %v2236 = vsel %vm2019, %v2234, %v2235
  %v2237 = vrot.slane %v114, 5
  %v2238 = vrot.slane %v2237, 4
  %v2239 = vrot.slane %v115, 5
  %v2240 = vsel %vm2019, %v2238, %v2239
  %v2241 = vrot.slane %v2239, 4
  %v2242 = vrot.slane %v116, 5
  %v2243 = vsel %vm2019, %v2241, %v2242
  %v2244 = vld [vmem:[%s1 + $0x40] sm:$0xf]
  %v2245 = vld [vmem:[%s1 + $0x44] sm:$0xf]
  %v2246 = vld [vmem:[%s1 + $0x48] sm:$0xf]
  %v2247 = vld [vmem:[%s1 + $0x4c] sm:$0xf]
  %v2248 = vld [vmem:[%s1 + $0x50] sm:$0xf]
  %v2249 = vld [vmem:[%s1 + $0x54] sm:$0xf]
  %v2250 = vld [vmem:[%s1 + $0x58] sm:$0xf]
  %v2251 = vld [vmem:[%s1 + $0x5c] sm:$0xf]
  %v2252 = vunpack.c.l.b16 %v2023
  %v2253 = vunpack.c.l.b16 %v2026
  %v2254 = vunpack.c.l.b16 %v2030
  %v2255 = vunpack.c.l.b16 %v2033
  %v2256 = vunpack.c.l.b16 %v2037
  %v2257 = vunpack.c.l.b16 %v2040
  %v2258 = vunpack.c.l.b16 %v2044
  %v2259 = vunpack.c.l.b16 %v2047
  %v2260 = vunpack.c.l.b16 %v2051
  %v2261 = vunpack.c.l.b16 %v2054
  %v2262 = vunpack.c.l.b16 %v2058
  %v2263 = vunpack.c.l.b16 %v2061
  %v2264 = vunpack.c.l.b16 %v2065
  %v2265 = vunpack.c.l.b16 %v2068
  %v2266 = vunpack.c.l.b16 %v2072
  %v2267 = vunpack.c.l.b16 %v2075
  %v2268 = vunpack.c.l.b16 %v2079
  %v2269 = vunpack.c.l.b16 %v2082
  %v2270 = vunpack.c.l.b16 %v2086
  %v2271 = vunpack.c.l.b16 %v2089
  %v2272 = vunpack.c.l.b16 %v2093
  %v2273 = vunpack.c.l.b16 %v2096
  %v2274 = vunpack.c.l.b16 %v2100
  %v2275 = vunpack.c.l.b16 %v2103
  %v2276 = vunpack.c.l.b16 %v2107
  %v2277 = vunpack.c.l.b16 %v2110
  %v2278 = vunpack.c.l.b16 %v2114
  %v2279 = vunpack.c.l.b16 %v2117
  %v2280 = vunpack.c.l.b16 %v2121
  %v2281 = vunpack.c.l.b16 %v2124
  %v2282 = vunpack.c.l.b16 %v2128
  %v2283 = vunpack.c.l.b16 %v2131
  %v2284 = vunpack.c.l.b16 %v2135
  %v2285 = vunpack.c.l.b16 %v2138
  %v2286 = vunpack.c.l.b16 %v2142
  %v2287 = vunpack.c.l.b16 %v2145
  %v2288 = vunpack.c.l.b16 %v2149
  %v2289 = vunpack.c.l.b16 %v2152
  %v2290 = vunpack.c.l.b16 %v2156
  %v2291 = vunpack.c.l.b16 %v2159
  %v2292 = vunpack.c.l.b16 %v2163
  %v2293 = vunpack.c.l.b16 %v2166
  %v2294 = vunpack.c.l.b16 %v2170
  %v2295 = vunpack.c.l.b16 %v2173
  %v2296 = vunpack.c.l.b16 %v2177
  %v2297 = vunpack.c.l.b16 %v2180
  %v2298 = vunpack.c.l.b16 %v2184
  %v2299 = vunpack.c.l.b16 %v2187
  %v2300 = vunpack.c.l.b16 %v2191
  %v2301 = vunpack.c.l.b16 %v2194
  %v2302 = vunpack.c.l.b16 %v2198
  %v2303 = vunpack.c.l.b16 %v2201
  %v2304 = vunpack.c.l.b16 %v2205
  %v2305 = vunpack.c.l.b16 %v2208
  %v2306 = vunpack.c.l.b16 %v2212
  %v2307 = vunpack.c.l.b16 %v2215
  %v2308 = vunpack.c.l.b16 %v2219
  %v2309 = vunpack.c.l.b16 %v2222
  %v2310 = vunpack.c.l.b16 %v2226
  %v2311 = vunpack.c.l.b16 %v2229
  %v2312 = vunpack.c.l.b16 %v2233
  %v2313 = vunpack.c.l.b16 %v2236
  %v2314 = vunpack.c.l.b16 %v2240
  %v2315 = vunpack.c.l.b16 %v2243
  %v2316 = vpack.c.b16 %v2253, %v2252
  %v2317 = vpack.c.b16 %v2255, %v2254
  %v2318 = vpack.c.b16 %v2257, %v2256
  %v2319 = vpack.c.b16 %v2259, %v2258
  %v2320 = vpack.c.b16 %v2261, %v2260
  %v2321 = vpack.c.b16 %v2263, %v2262
  %v2322 = vpack.c.b16 %v2265, %v2264
  %v2323 = vpack.c.b16 %v2267, %v2266
  %v2324 = vpack.c.b16 %v2269, %v2268
  %v2325 = vpack.c.b16 %v2271, %v2270
  %v2326 = vpack.c.b16 %v2273, %v2272
  %v2327 = vpack.c.b16 %v2275, %v2274
  %v2328 = vpack.c.b16 %v2277, %v2276
  %v2329 = vpack.c.b16 %v2279, %v2278
  %v2330 = vpack.c.b16 %v2281, %v2280
  %v2331 = vpack.c.b16 %v2283, %v2282
  %v2332 = vpack.c.b16 %v2285, %v2284
  %v2333 = vpack.c.b16 %v2287, %v2286
  %v2334 = vpack.c.b16 %v2289, %v2288
  %v2335 = vpack.c.b16 %v2291, %v2290
  %v2336 = vpack.c.b16 %v2293, %v2292
  %v2337 = vpack.c.b16 %v2295, %v2294
  %v2338 = vpack.c.b16 %v2297, %v2296
  %v2339 = vpack.c.b16 %v2299, %v2298
  %v2340 = vpack.c.b16 %v2301, %v2300
  %v2341 = vpack.c.b16 %v2303, %v2302
  %v2342 = vpack.c.b16 %v2305, %v2304
  %v2343 = vpack.c.b16 %v2307, %v2306
  %v2344 = vpack.c.b16 %v2309, %v2308
  %v2345 = vpack.c.b16 %v2311, %v2310
  %v2346 = vpack.c.b16 %v2313, %v2312
  %v2347 = vpack.c.b16 %v2315, %v2314
  %v2356 = vunpack.c.l.b16 %v2244
  %v2357 = vunpack.c.l.b16 %v2245
  %v2358 = vunpack.c.l.b16 %v2246
  %v2359 = vunpack.c.l.b16 %v2247
  %v2360 = vunpack.c.l.b16 %v2248
  %v2361 = vunpack.c.l.b16 %v2249
  %v2362 = vunpack.c.l.b16 %v2250
  %v2363 = vunpack.c.l.b16 %v2251
  %v2364 = vpack.c.b16 %v2357, %v2356
  %v2365 = vpack.c.b16 %v2359, %v2358
  %v2366 = vpack.c.b16 %v2361, %v2360
  %v2367 = vpack.c.b16 %v2363, %v2362
  %v2373 = vsel %vm1030, %v2316, 0
  %v2376 = vsel %vm1030, %v2317, 0
  %v2379 = vsel %vm1030, %v2318, 0
  %v2382 = vsel %vm1030, %v2319, 0
  %v2385 = vsel %vm1030, %v2320, 0
  %v2388 = vsel %vm1030, %v2321, 0
  %v2391 = vsel %vm1030, %v2322, 0
  %v2394 = vsel %vm1030, %v2323, 0
  %v2397 = vsel %vm1030, %v2324, 0
  %v2400 = vsel %vm1030, %v2325, 0
  %v2403 = vsel %vm1030, %v2326, 0
  %v2406 = vsel %vm1030, %v2327, 0
  %v2409 = vsel %vm1030, %v2328, 0
  %v2412 = vsel %vm1030, %v2329, 0
  %v2415 = vsel %vm1030, %v2330, 0
  %v2418 = vsel %vm1030, %v2331, 0
  %v2421 = vsel %vm1030, %v2332, 0
  %v2424 = vsel %vm1030, %v2333, 0
  %v2427 = vsel %vm1030, %v2334, 0
  %v2430 = vsel %vm1030, %v2335, 0
  %v2433 = vsel %vm1030, %v2336, 0
  %v2436 = vsel %vm1030, %v2337, 0
  %v2439 = vsel %vm1030, %v2338, 0
  %v2442 = vsel %vm1030, %v2339, 0
  %v2445 = vsel %vm1030, %v2340, 0
  %v2448 = vsel %vm1030, %v2341, 0
  %v2451 = vsel %vm1030, %v2342, 0
  %v2454 = vsel %vm1030, %v2343, 0
  %v2457 = vsel %vm1030, %v2344, 0
  %v2460 = vsel %vm1030, %v2345, 0
  %v2463 = vsel %vm1030, %v2346, 0
  %v2466 = vsel %vm1030, %v2347, 0
  %2468 = vmatprep.subr.bf16.mxu0 0
  %2469 = vmatpush1.bf16.msra.mxu0 0
  %2470 = vmatprep.subr.bf16.mxu0 0
  %2471 = vmatpush1.bf16.msra.mxu0 0
  %2472 = vmatprep.subr.bf16.mxu0 0
  %2473 = vmatpush1.bf16.msra.mxu0 0
  %2474 = vmatprep.subr.bf16.mxu0 0
  %2475 = vmatpush1.bf16.msra.mxu0 0
  %2476 = vmatprep.subr.bf16.mxu0 0
  %2477 = vmatpush1.bf16.msra.mxu0 %v2367
  %2478 = vmatprep.subr.bf16.mxu0 0
  %2479 = vmatpush1.bf16.msra.mxu0 %v2366
  %2480 = vmatprep.subr.bf16.mxu0 0
  %2481 = vmatpush1.bf16.msra.mxu0 %v2365
  %2482 = vmatprep.subr.bf16.mxu0 0
  %2483 = vmatpush1.bf16.msra.mxu0 %v2364
  %2484 = vmatprep.subr.bf16.mxu0 0
  %2485 = vmatpush2.bf16.msra.mxu0 0
  %2486 = vmatprep.subr.bf16.mxu0 0
  %2487 = vmatpush2.bf16.msra.mxu0 0
  %2488 = vmatprep.subr.bf16.mxu0 0
  %2489 = vmatpush2.bf16.msra.mxu0 0
  %2490 = vmatprep.subr.bf16.mxu0 0
  %2491 = vmatpush2.bf16.msra.mxu0 0
  %2492 = vmatprep.subr.bf16.mxu0 0
  %2493 = vmatpush2.bf16.msra.mxu0 0
  %2494 = vmatprep.subr.bf16.mxu0 0
  %2495 = vmatpush2.bf16.msra.mxu0 0
  %2496 = vmatprep.subr.bf16.mxu0 0
  %2497 = vmatpush2.bf16.msra.mxu0 0
  %2498 = vmatprep.subr.bf16.mxu0 0
  %2499 = vmatpush2.bf16.msra.mxu0 0
  %2500 = vmatprep.mubr.bf16.mxu0 0
  %2501 = vmatmul.mubr.bf16.gmra.mxu0 %v2373
  %v2502 = vpop.f32.mrf.mxu0
  %v2503 = vadd.f32 0.0, %v2502
  %v2504 = vpop.f32.mrf.mxu0
  %v2505 = vpop.f32.mrf.mxu0
  %v2506 = vadd.f32 0.0, %v2505
  %v2507 = vpop.f32.mrf.mxu0
  %2508 = vmatprep.mubr.bf16.mxu0 0
  %2509 = vmatmul.mubr.bf16.gmra.mxu0 %v2376
  %v2510 = vpop.f32.mrf.mxu0
  %v2511 = vadd.f32 0.0, %v2510
  %v2512 = vpop.f32.mrf.mxu0
  %v2513 = vpop.f32.mrf.mxu0
  %v2514 = vadd.f32 0.0, %v2513
  %v2515 = vpop.f32.mrf.mxu0
  %2516 = vmatprep.mubr.bf16.mxu0 0
  %2517 = vmatmul.mubr.bf16.gmra.mxu0 %v2379
  %v2518 = vpop.f32.mrf.mxu0
  %v2519 = vadd.f32 0.0, %v2518
  %v2520 = vpop.f32.mrf.mxu0
  %v2521 = vpop.f32.mrf.mxu0
  %v2522 = vadd.f32 0.0, %v2521
  %v2523 = vpop.f32.mrf.mxu0
  %2524 = vmatprep.mubr.bf16.mxu0 0
  %2525 = vmatmul.mubr.bf16.gmra.mxu0 %v2382
  %v2526 = vpop.f32.mrf.mxu0
  %v2527 = vadd.f32 0.0, %v2526
  %v2528 = vpop.f32.mrf.mxu0
  %v2529 = vpop.f32.mrf.mxu0
  %v2530 = vadd.f32 0.0, %v2529
  %v2531 = vpop.f32.mrf.mxu0
  %2532 = vmatprep.mubr.bf16.mxu0 0
  %2533 = vmatmul.mubr.bf16.gmra.mxu0 %v2385
  %v2534 = vpop.f32.mrf.mxu0
  %v2535 = vadd.f32 0.0, %v2534
  %v2536 = vpop.f32.mrf.mxu0
  %v2537 = vpop.f32.mrf.mxu0
  %v2538 = vadd.f32 0.0, %v2537
  %v2539 = vpop.f32.mrf.mxu0
  %2540 = vmatprep.mubr.bf16.mxu0 0
  %2541 = vmatmul.mubr.bf16.gmra.mxu0 %v2388
  %v2542 = vpop.f32.mrf.mxu0
  %v2543 = vadd.f32 0.0, %v2542
  %v2544 = vpop.f32.mrf.mxu0
  %v2545 = vpop.f32.mrf.mxu0
  %v2546 = vadd.f32 0.0, %v2545
  %v2547 = vpop.f32.mrf.mxu0
  %2548 = vmatprep.mubr.bf16.mxu0 0
  %2549 = vmatmul.mubr.bf16.gmra.mxu0 %v2391
  %v2550 = vpop.f32.mrf.mxu0
  %v2551 = vadd.f32 0.0, %v2550
  %v2552 = vpop.f32.mrf.mxu0
  %v2553 = vpop.f32.mrf.mxu0
  %v2554 = vadd.f32 0.0, %v2553
  %v2555 = vpop.f32.mrf.mxu0
  %2556 = vmatprep.mubr.bf16.mxu0 0
  %2557 = vmatmul.mubr.bf16.gmra.mxu0 %v2394
  %v2558 = vpop.f32.mrf.mxu0
  %v2559 = vadd.f32 0.0, %v2558
  %v2560 = vpop.f32.mrf.mxu0
  %v2561 = vpop.f32.mrf.mxu0
  %v2562 = vadd.f32 0.0, %v2561
  %v2563 = vpop.f32.mrf.mxu0
  %2564 = vmatprep.mubr.bf16.mxu0 0
  %2565 = vmatmul.mubr.bf16.gmra.mxu0 %v2397
  %v2566 = vpop.f32.mrf.mxu0
  %v2567 = vadd.f32 0.0, %v2566
  %v2568 = vpop.f32.mrf.mxu0
  %v2569 = vpop.f32.mrf.mxu0
  %v2570 = vadd.f32 0.0, %v2569
  %v2571 = vpop.f32.mrf.mxu0
  %2572 = vmatprep.mubr.bf16.mxu0 0
  %2573 = vmatmul.mubr.bf16.gmra.mxu0 %v2400
  %v2574 = vpop.f32.mrf.mxu0
  %v2575 = vadd.f32 0.0, %v2574
  %v2576 = vpop.f32.mrf.mxu0
  %v2577 = vpop.f32.mrf.mxu0
  %v2578 = vadd.f32 0.0, %v2577
  %v2579 = vpop.f32.mrf.mxu0
  %2580 = vmatprep.mubr.bf16.mxu0 0
  %2581 = vmatmul.mubr.bf16.gmra.mxu0 %v2403
  %v2582 = vpop.f32.mrf.mxu0
  %v2583 = vadd.f32 0.0, %v2582
  %v2584 = vpop.f32.mrf.mxu0
  %v2585 = vpop.f32.mrf.mxu0
  %v2586 = vadd.f32 0.0, %v2585
  %v2587 = vpop.f32.mrf.mxu0
  %2588 = vmatprep.mubr.bf16.mxu0 0
  %2589 = vmatmul.mubr.bf16.gmra.mxu0 %v2406
  %v2590 = vpop.f32.mrf.mxu0
  %v2591 = vadd.f32 0.0, %v2590
  %v2592 = vpop.f32.mrf.mxu0
  %v2593 = vpop.f32.mrf.mxu0
  %v2594 = vadd.f32 0.0, %v2593
  %v2595 = vpop.f32.mrf.mxu0
  %2596 = vmatprep.mubr.bf16.mxu0 0
  %2597 = vmatmul.mubr.bf16.gmra.mxu0 %v2409
  %v2598 = vpop.f32.mrf.mxu0
  %v2599 = vadd.f32 0.0, %v2598
  %v2600 = vpop.f32.mrf.mxu0
  %v2601 = vpop.f32.mrf.mxu0
  %v2602 = vadd.f32 0.0, %v2601
  %v2603 = vpop.f32.mrf.mxu0
  %2604 = vmatprep.mubr.bf16.mxu0 0
  %2605 = vmatmul.mubr.bf16.gmra.mxu0 %v2412
  %v2606 = vpop.f32.mrf.mxu0
  %v2607 = vadd.f32 0.0, %v2606
  %v2608 = vpop.f32.mrf.mxu0
  %v2609 = vpop.f32.mrf.mxu0
  %v2610 = vadd.f32 0.0, %v2609
  %v2611 = vpop.f32.mrf.mxu0
  %2612 = vmatprep.mubr.bf16.mxu0 0
  %2613 = vmatmul.mubr.bf16.gmra.mxu0 %v2415
  %v2614 = vpop.f32.mrf.mxu0
  %v2615 = vadd.f32 0.0, %v2614
  %v2616 = vpop.f32.mrf.mxu0
  %v2617 = vpop.f32.mrf.mxu0
  %v2618 = vadd.f32 0.0, %v2617
  %v2619 = vpop.f32.mrf.mxu0
  %2620 = vmatprep.mubr.bf16.mxu0 0
  %2621 = vmatmul.mubr.bf16.gmra.mxu0 %v2418
  %v2622 = vpop.f32.mrf.mxu0
  %v2623 = vadd.f32 0.0, %v2622
  %v2624 = vpop.f32.mrf.mxu0
  %v2625 = vpop.f32.mrf.mxu0
  %v2626 = vadd.f32 0.0, %v2625
  %v2627 = vpop.f32.mrf.mxu0
  %2628 = vmatprep.mubr.bf16.mxu0 0
  %2629 = vmatmul.mubr.bf16.gmra.mxu0 %v2421
  %v2630 = vpop.f32.mrf.mxu0
  %v2631 = vadd.f32 0.0, %v2630
  %v2632 = vpop.f32.mrf.mxu0
  %v2633 = vpop.f32.mrf.mxu0
  %v2634 = vadd.f32 0.0, %v2633
  %v2635 = vpop.f32.mrf.mxu0
  %2636 = vmatprep.mubr.bf16.mxu0 0
  %2637 = vmatmul.mubr.bf16.gmra.mxu0 %v2424
  %v2638 = vpop.f32.mrf.mxu0
  %v2639 = vadd.f32 0.0, %v2638
  %v2640 = vpop.f32.mrf.mxu0
  %v2641 = vpop.f32.mrf.mxu0
  %v2642 = vadd.f32 0.0, %v2641
  %v2643 = vpop.f32.mrf.mxu0
  %2644 = vmatprep.mubr.bf16.mxu0 0
  %2645 = vmatmul.mubr.bf16.gmra.mxu0 %v2427
  %v2646 = vpop.f32.mrf.mxu0
  %v2647 = vadd.f32 0.0, %v2646
  %v2648 = vpop.f32.mrf.mxu0
  %v2649 = vpop.f32.mrf.mxu0
  %v2650 = vadd.f32 0.0, %v2649
  %v2651 = vpop.f32.mrf.mxu0
  %2652 = vmatprep.mubr.bf16.mxu0 0
  %2653 = vmatmul.mubr.bf16.gmra.mxu0 %v2430
  %v2654 = vpop.f32.mrf.mxu0
  %v2655 = vadd.f32 0.0, %v2654
  %v2656 = vpop.f32.mrf.mxu0
  %v2657 = vpop.f32.mrf.mxu0
  %v2658 = vadd.f32 0.0, %v2657
  %v2659 = vpop.f32.mrf.mxu0
  %2660 = vmatprep.mubr.bf16.mxu0 0
  %2661 = vmatmul.mubr.bf16.gmra.mxu0 %v2433
  %v2662 = vpop.f32.mrf.mxu0
  %v2663 = vadd.f32 0.0, %v2662
  %v2664 = vpop.f32.mrf.mxu0
  %v2665 = vpop.f32.mrf.mxu0
  %v2666 = vadd.f32 0.0, %v2665
  %v2667 = vpop.f32.mrf.mxu0
  %2668 = vmatprep.mubr.bf16.mxu0 0
  %2669 = vmatmul.mubr.bf16.gmra.mxu0 %v2436
  %v2670 = vpop.f32.mrf.mxu0
  %v2671 = vadd.f32 0.0, %v2670
  %v2672 = vpop.f32.mrf.mxu0
  %v2673 = vpop.f32.mrf.mxu0
  %v2674 = vadd.f32 0.0, %v2673
  %v2675 = vpop.f32.mrf.mxu0
  %2676 = vmatprep.mubr.bf16.mxu0 0
  %2677 = vmatmul.mubr.bf16.gmra.mxu0 %v2439
  %v2678 = vpop.f32.mrf.mxu0
  %v2679 = vadd.f32 0.0, %v2678
  %v2680 = vpop.f32.mrf.mxu0
  %v2681 = vpop.f32.mrf.mxu0
  %v2682 = vadd.f32 0.0, %v2681
  %v2683 = vpop.f32.mrf.mxu0
  %2684 = vmatprep.mubr.bf16.mxu0 0
  %2685 = vmatmul.mubr.bf16.gmra.mxu0 %v2442
  %v2686 = vpop.f32.mrf.mxu0
  %v2687 = vadd.f32 0.0, %v2686
  %v2688 = vpop.f32.mrf.mxu0
  %v2689 = vpop.f32.mrf.mxu0
  %v2690 = vadd.f32 0.0, %v2689
  %v2691 = vpop.f32.mrf.mxu0
  %2692 = vmatprep.mubr.bf16.mxu0 0
  %2693 = vmatmul.mubr.bf16.gmra.mxu0 %v2445
  %v2694 = vpop.f32.mrf.mxu0
  %v2695 = vadd.f32 0.0, %v2694
  %v2696 = vpop.f32.mrf.mxu0
  %v2697 = vpop.f32.mrf.mxu0
  %v2698 = vadd.f32 0.0, %v2697
  %v2699 = vpop.f32.mrf.mxu0
  %2700 = vmatprep.mubr.bf16.mxu0 0
  %2701 = vmatmul.mubr.bf16.gmra.mxu0 %v2448
  %v2702 = vpop.f32.mrf.mxu0
  %v2703 = vadd.f32 0.0, %v2702
  %v2704 = vpop.f32.mrf.mxu0
  %v2705 = vpop.f32.mrf.mxu0
  %v2706 = vadd.f32 0.0, %v2705
  %v2707 = vpop.f32.mrf.mxu0
  %2708 = vmatprep.mubr.bf16.mxu0 0
  %2709 = vmatmul.mubr.bf16.gmra.mxu0 %v2451
  %v2710 = vpop.f32.mrf.mxu0
  %v2711 = vadd.f32 0.0, %v2710
  %v2712 = vpop.f32.mrf.mxu0
  %v2713 = vpop.f32.mrf.mxu0
  %v2714 = vadd.f32 0.0, %v2713
  %v2715 = vpop.f32.mrf.mxu0
  %2716 = vmatprep.mubr.bf16.mxu0 0
  %2717 = vmatmul.mubr.bf16.gmra.mxu0 %v2454
  %v2718 = vpop.f32.mrf.mxu0
  %v2719 = vadd.f32 0.0, %v2718
  %v2720 = vpop.f32.mrf.mxu0
  %v2721 = vpop.f32.mrf.mxu0
  %v2722 = vadd.f32 0.0, %v2721
  %v2723 = vpop.f32.mrf.mxu0
  %2724 = vmatprep.mubr.bf16.mxu0 0
  %2725 = vmatmul.mubr.bf16.gmra.mxu0 %v2457
  %v2726 = vpop.f32.mrf.mxu0
  %v2727 = vadd.f32 0.0, %v2726
  %v2728 = vpop.f32.mrf.mxu0
  %v2729 = vpop.f32.mrf.mxu0
  %v2730 = vadd.f32 0.0, %v2729
  %v2731 = vpop.f32.mrf.mxu0
  %2732 = vmatprep.mubr.bf16.mxu0 0
  %2733 = vmatmul.mubr.bf16.gmra.mxu0 %v2460
  %v2734 = vpop.f32.mrf.mxu0
  %v2735 = vadd.f32 0.0, %v2734
  %v2736 = vpop.f32.mrf.mxu0
  %v2737 = vpop.f32.mrf.mxu0
  %v2738 = vadd.f32 0.0, %v2737
  %v2739 = vpop.f32.mrf.mxu0
  %2740 = vmatprep.mubr.bf16.mxu0 0
  %2741 = vmatmul.mubr.bf16.gmra.mxu0 %v2463
  %v2742 = vpop.f32.mrf.mxu0
  %v2743 = vadd.f32 0.0, %v2742
  %v2744 = vpop.f32.mrf.mxu0
  %v2745 = vpop.f32.mrf.mxu0
  %v2746 = vadd.f32 0.0, %v2745
  %v2747 = vpop.f32.mrf.mxu0
  %2748 = vmatprep.mubr.bf16.mxu0 0
  %2749 = vmatmul.mubr.bf16.gmra.mxu0 %v2466
  %v2750 = vpop.f32.mrf.mxu0
  %v2751 = vadd.f32 0.0, %v2750
  %v2752 = vpop.f32.mrf.mxu0
  %v2753 = vpop.f32.mrf.mxu0
  %v2754 = vadd.f32 0.0, %v2753
  %v2755 = vpop.f32.mrf.mxu0
  %2756 = vdwg.mxu0
  %v2757 = vadd.f32 %v1731, %v2503
  %v2758 = vadd.f32 %v1734, %v2506
  %v2759 = vadd.f32 %v1739, %v2511
  %v2760 = vadd.f32 %v1742, %v2514
  %v2761 = vadd.f32 %v1747, %v2519
  %v2762 = vadd.f32 %v1750, %v2522
  %v2763 = vadd.f32 %v1755, %v2527
  %v2764 = vadd.f32 %v1758, %v2530
  %v2765 = vadd.f32 %v1763, %v2535
  %v2766 = vadd.f32 %v1766, %v2538
  %v2767 = vadd.f32 %v1771, %v2543
  %v2768 = vadd.f32 %v1774, %v2546
  %v2769 = vadd.f32 %v1779, %v2551
  %v2770 = vadd.f32 %v1782, %v2554
  %v2771 = vadd.f32 %v1787, %v2559
  %v2772 = vadd.f32 %v1790, %v2562
  %v2773 = vadd.f32 %v1795, %v2567
  %v2774 = vadd.f32 %v1798, %v2570
  %v2775 = vadd.f32 %v1803, %v2575
  %v2776 = vadd.f32 %v1806, %v2578
  %v2777 = vadd.f32 %v1811, %v2583
  %v2778 = vadd.f32 %v1814, %v2586
  %v2779 = vadd.f32 %v1819, %v2591
  %v2780 = vadd.f32 %v1822, %v2594
  %v2781 = vadd.f32 %v1827, %v2599
  %v2782 = vadd.f32 %v1830, %v2602
  %v2783 = vadd.f32 %v1835, %v2607
  %v2784 = vadd.f32 %v1838, %v2610
  %v2785 = vadd.f32 %v1843, %v2615
  %v2786 = vadd.f32 %v1846, %v2618
  %v2787 = vadd.f32 %v1851, %v2623
  %v2788 = vadd.f32 %v1854, %v2626
  %v2789 = vadd.f32 %v1859, %v2631
  %v2790 = vadd.f32 %v1862, %v2634
  %v2791 = vadd.f32 %v1867, %v2639
  %v2792 = vadd.f32 %v1870, %v2642
  %v2793 = vadd.f32 %v1875, %v2647
  %v2794 = vadd.f32 %v1878, %v2650
  %v2795 = vadd.f32 %v1883, %v2655
  %v2796 = vadd.f32 %v1886, %v2658
  %v2797 = vadd.f32 %v1891, %v2663
  %v2798 = vadd.f32 %v1894, %v2666
  %v2799 = vadd.f32 %v1899, %v2671
  %v2800 = vadd.f32 %v1902, %v2674
  %v2801 = vadd.f32 %v1907, %v2679
  %v2802 = vadd.f32 %v1910, %v2682
  %v2803 = vadd.f32 %v1915, %v2687
  %v2804 = vadd.f32 %v1918, %v2690
  %v2805 = vadd.f32 %v1923, %v2695
  %v2806 = vadd.f32 %v1926, %v2698
  %v2807 = vadd.f32 %v1931, %v2703
  %v2808 = vadd.f32 %v1934, %v2706
  %v2809 = vadd.f32 %v1939, %v2711
  %v2810 = vadd.f32 %v1942, %v2714
  %v2811 = vadd.f32 %v1947, %v2719
  %v2812 = vadd.f32 %v1950, %v2722
  %v2813 = vadd.f32 %v1955, %v2727
  %v2814 = vadd.f32 %v1958, %v2730
  %v2815 = vadd.f32 %v1963, %v2735
  %v2816 = vadd.f32 %v1966, %v2738
  %v2817 = vadd.f32 %v1971, %v2743
  %v2818 = vadd.f32 %v1974, %v2746
  %v2819 = vadd.f32 %v1979, %v2751
  %v2820 = vadd.f32 %v1982, %v2754
  %v2821 = vld [vmem:[%s1 + $0x60] sm:$0xf]
  %v2822 = vld [vmem:[%s1 + $0x64] sm:$0xf]
  %v2823 = vld [vmem:[%s1 + $0x68] sm:$0xf]
  %v2824 = vld [vmem:[%s1 + $0x6c] sm:$0xf]
  %v2825 = vld [vmem:[%s1 + $0x70] sm:$0xf]
  %v2826 = vld [vmem:[%s1 + $0x74] sm:$0xf]
  %v2827 = vld [vmem:[%s1 + $0x78] sm:$0xf]
  %v2828 = vld [vmem:[%s1 + $0x7c] sm:$0xf]
  %v2833 = vunpack.c.l.b16 %v63
  %v2834 = vunpack.c.l.b16 %v64
  %v2835 = vunpack.c.l.b16 %v117
  %v2836 = vunpack.c.l.b16 %v118
  %v2837 = vpack.c.b16 %v2834, %v2833
  %v2838 = vpack.c.b16 %v2836, %v2835
  %v2847 = vunpack.c.l.b16 %v2821
  %v2848 = vunpack.c.l.b16 %v2822
  %v2849 = vunpack.c.l.b16 %v2823
  %v2850 = vunpack.c.l.b16 %v2824
  %v2851 = vunpack.c.l.b16 %v2825
  %v2852 = vunpack.c.l.b16 %v2826
  %v2853 = vunpack.c.l.b16 %v2827
  %v2854 = vunpack.c.l.b16 %v2828
  %v2855 = vpack.c.b16 %v2848, %v2847
  %v2856 = vpack.c.b16 %v2850, %v2849
  %v2857 = vpack.c.b16 %v2852, %v2851
  %v2858 = vpack.c.b16 %v2854, %v2853
  %v2864 = vsel %vm1030, %v2837, 0
  %v2867 = vsel %vm1030, %v2838, 0
  %2869 = vmatprep.subr.bf16.mxu0 0
  %2870 = vmatpush1.bf16.msra.mxu0 0
  %2871 = vmatprep.subr.bf16.mxu0 0
  %2872 = vmatpush1.bf16.msra.mxu0 0
  %2873 = vmatprep.subr.bf16.mxu0 0
  %2874 = vmatpush1.bf16.msra.mxu0 0
  %2875 = vmatprep.subr.bf16.mxu0 0
  %2876 = vmatpush1.bf16.msra.mxu0 0
  %2877 = vmatprep.subr.bf16.mxu0 0
  %2878 = vmatpush1.bf16.msra.mxu0 %v2858
  %2879 = vmatprep.subr.bf16.mxu0 0
  %2880 = vmatpush1.bf16.msra.mxu0 %v2857
  %2881 = vmatprep.subr.bf16.mxu0 0
  %2882 = vmatpush1.bf16.msra.mxu0 %v2856
  %2883 = vmatprep.subr.bf16.mxu0 0
  %2884 = vmatpush1.bf16.msra.mxu0 %v2855
  %2885 = vmatprep.subr.bf16.mxu0 0
  %2886 = vmatpush2.bf16.msra.mxu0 0
  %2887 = vmatprep.subr.bf16.mxu0 0
  %2888 = vmatpush2.bf16.msra.mxu0 0
  %2889 = vmatprep.subr.bf16.mxu0 0
  %2890 = vmatpush2.bf16.msra.mxu0 0
  %2891 = vmatprep.subr.bf16.mxu0 0
  %2892 = vmatpush2.bf16.msra.mxu0 0
  %2893 = vmatprep.subr.bf16.mxu0 0
  %2894 = vmatpush2.bf16.msra.mxu0 0
  %2895 = vmatprep.subr.bf16.mxu0 0
  %2896 = vmatpush2.bf16.msra.mxu0 0
  %2897 = vmatprep.subr.bf16.mxu0 0
  %2898 = vmatpush2.bf16.msra.mxu0 0
  %2899 = vmatprep.subr.bf16.mxu0 0
  %2900 = vmatpush2.bf16.msra.mxu0 0
  %2901 = vmatprep.mubr.bf16.mxu0 0
  %2902 = vmatmul.mubr.bf16.gmra.mxu0 %v1604
  %v2903 = vpop.f32.mrf.mxu0
  %v2904 = vadd.f32 0.0, %v2903
  %v2905 = vpop.f32.mrf.mxu0
  %v2906 = vpop.f32.mrf.mxu0
  %v2907 = vadd.f32 0.0, %v2906
  %v2908 = vpop.f32.mrf.mxu0
  %2909 = vmatprep.mubr.bf16.mxu0 0
  %2910 = vmatmul.mubr.bf16.gmra.mxu0 %v1607
  %v2911 = vpop.f32.mrf.mxu0
  %v2912 = vadd.f32 0.0, %v2911
  %v2913 = vpop.f32.mrf.mxu0
  %v2914 = vpop.f32.mrf.mxu0
  %v2915 = vadd.f32 0.0, %v2914
  %v2916 = vpop.f32.mrf.mxu0
  %2917 = vmatprep.mubr.bf16.mxu0 0
  %2918 = vmatmul.mubr.bf16.gmra.mxu0 %v1610
  %v2919 = vpop.f32.mrf.mxu0
  %v2920 = vadd.f32 0.0, %v2919
  %v2921 = vpop.f32.mrf.mxu0
  %v2922 = vpop.f32.mrf.mxu0
  %v2923 = vadd.f32 0.0, %v2922
  %v2924 = vpop.f32.mrf.mxu0
  %2925 = vmatprep.mubr.bf16.mxu0 0
  %2926 = vmatmul.mubr.bf16.gmra.mxu0 %v1613
  %v2927 = vpop.f32.mrf.mxu0
  %v2928 = vadd.f32 0.0, %v2927
  %v2929 = vpop.f32.mrf.mxu0
  %v2930 = vpop.f32.mrf.mxu0
  %v2931 = vadd.f32 0.0, %v2930
  %v2932 = vpop.f32.mrf.mxu0
  %2933 = vmatprep.mubr.bf16.mxu0 0
  %2934 = vmatmul.mubr.bf16.gmra.mxu0 %v1616
  %v2935 = vpop.f32.mrf.mxu0
  %v2936 = vadd.f32 0.0, %v2935
  %v2937 = vpop.f32.mrf.mxu0
  %v2938 = vpop.f32.mrf.mxu0
  %v2939 = vadd.f32 0.0, %v2938
  %v2940 = vpop.f32.mrf.mxu0
  %2941 = vmatprep.mubr.bf16.mxu0 0
  %2942 = vmatmul.mubr.bf16.gmra.mxu0 %v1619
  %v2943 = vpop.f32.mrf.mxu0
  %v2944 = vadd.f32 0.0, %v2943
  %v2945 = vpop.f32.mrf.mxu0
  %v2946 = vpop.f32.mrf.mxu0
  %v2947 = vadd.f32 0.0, %v2946
  %v2948 = vpop.f32.mrf.mxu0
  %2949 = vmatprep.mubr.bf16.mxu0 0
  %2950 = vmatmul.mubr.bf16.gmra.mxu0 %v1622
  %v2951 = vpop.f32.mrf.mxu0
  %v2952 = vadd.f32 0.0, %v2951
  %v2953 = vpop.f32.mrf.mxu0
  %v2954 = vpop.f32.mrf.mxu0
  %v2955 = vadd.f32 0.0, %v2954
  %v2956 = vpop.f32.mrf.mxu0
  %2957 = vmatprep.mubr.bf16.mxu0 0
  %2958 = vmatmul.mubr.bf16.gmra.mxu0 %v1625
  %v2959 = vpop.f32.mrf.mxu0
  %v2960 = vadd.f32 0.0, %v2959
  %v2961 = vpop.f32.mrf.mxu0
  %v2962 = vpop.f32.mrf.mxu0
  %v2963 = vadd.f32 0.0, %v2962
  %v2964 = vpop.f32.mrf.mxu0
  %2965 = vmatprep.mubr.bf16.mxu0 0
  %2966 = vmatmul.mubr.bf16.gmra.mxu0 %v1628
  %v2967 = vpop.f32.mrf.mxu0
  %v2968 = vadd.f32 0.0, %v2967
  %v2969 = vpop.f32.mrf.mxu0
  %v2970 = vpop.f32.mrf.mxu0
  %v2971 = vadd.f32 0.0, %v2970
  %v2972 = vpop.f32.mrf.mxu0
  %2973 = vmatprep.mubr.bf16.mxu0 0
  %2974 = vmatmul.mubr.bf16.gmra.mxu0 %v1631
  %v2975 = vpop.f32.mrf.mxu0
  %v2976 = vadd.f32 0.0, %v2975
  %v2977 = vpop.f32.mrf.mxu0
  %v2978 = vpop.f32.mrf.mxu0
  %v2979 = vadd.f32 0.0, %v2978
  %v2980 = vpop.f32.mrf.mxu0
  %2981 = vmatprep.mubr.bf16.mxu0 0
  %2982 = vmatmul.mubr.bf16.gmra.mxu0 %v1634
  %v2983 = vpop.f32.mrf.mxu0
  %v2984 = vadd.f32 0.0, %v2983
  %v2985 = vpop.f32.mrf.mxu0
  %v2986 = vpop.f32.mrf.mxu0
  %v2987 = vadd.f32 0.0, %v2986
  %v2988 = vpop.f32.mrf.mxu0
  %2989 = vmatprep.mubr.bf16.mxu0 0
  %2990 = vmatmul.mubr.bf16.gmra.mxu0 %v1637
  %v2991 = vpop.f32.mrf.mxu0
  %v2992 = vadd.f32 0.0, %v2991
  %v2993 = vpop.f32.mrf.mxu0
  %v2994 = vpop.f32.mrf.mxu0
  %v2995 = vadd.f32 0.0, %v2994
  %v2996 = vpop.f32.mrf.mxu0
  %2997 = vmatprep.mubr.bf16.mxu0 0
  %2998 = vmatmul.mubr.bf16.gmra.mxu0 %v1640
  %v2999 = vpop.f32.mrf.mxu0
  %v3000 = vadd.f32 0.0, %v2999
  %v3001 = vpop.f32.mrf.mxu0
  %v3002 = vpop.f32.mrf.mxu0
  %v3003 = vadd.f32 0.0, %v3002
  %v3004 = vpop.f32.mrf.mxu0
  %3005 = vmatprep.mubr.bf16.mxu0 0
  %3006 = vmatmul.mubr.bf16.gmra.mxu0 %v1643
  %v3007 = vpop.f32.mrf.mxu0
  %v3008 = vadd.f32 0.0, %v3007
  %v3009 = vpop.f32.mrf.mxu0
  %v3010 = vpop.f32.mrf.mxu0
  %v3011 = vadd.f32 0.0, %v3010
  %v3012 = vpop.f32.mrf.mxu0
  %3013 = vmatprep.mubr.bf16.mxu0 0
  %3014 = vmatmul.mubr.bf16.gmra.mxu0 %v1646
  %v3015 = vpop.f32.mrf.mxu0
  %v3016 = vadd.f32 0.0, %v3015
  %v3017 = vpop.f32.mrf.mxu0
  %v3018 = vpop.f32.mrf.mxu0
  %v3019 = vadd.f32 0.0, %v3018
  %v3020 = vpop.f32.mrf.mxu0
  %3021 = vmatprep.mubr.bf16.mxu0 0
  %3022 = vmatmul.mubr.bf16.gmra.mxu0 %v2864
  %v3023 = vpop.f32.mrf.mxu0
  %v3024 = vadd.f32 0.0, %v3023
  %v3025 = vpop.f32.mrf.mxu0
  %v3026 = vpop.f32.mrf.mxu0
  %v3027 = vadd.f32 0.0, %v3026
  %v3028 = vpop.f32.mrf.mxu0
  %3029 = vmatprep.mubr.bf16.mxu0 0
  %3030 = vmatmul.mubr.bf16.gmra.mxu0 %v1652
  %v3031 = vpop.f32.mrf.mxu0
  %v3032 = vadd.f32 0.0, %v3031
  %v3033 = vpop.f32.mrf.mxu0
  %v3034 = vpop.f32.mrf.mxu0
  %v3035 = vadd.f32 0.0, %v3034
  %v3036 = vpop.f32.mrf.mxu0
  %3037 = vmatprep.mubr.bf16.mxu0 0
  %3038 = vmatmul.mubr.bf16.gmra.mxu0 %v1655
  %v3039 = vpop.f32.mrf.mxu0
  %v3040 = vadd.f32 0.0, %v3039
  %v3041 = vpop.f32.mrf.mxu0
  %v3042 = vpop.f32.mrf.mxu0
  %v3043 = vadd.f32 0.0, %v3042
  %v3044 = vpop.f32.mrf.mxu0
  %3045 = vmatprep.mubr.bf16.mxu0 0
  %3046 = vmatmul.mubr.bf16.gmra.mxu0 %v1658
  %v3047 = vpop.f32.mrf.mxu0
  %v3048 = vadd.f32 0.0, %v3047
  %v3049 = vpop.f32.mrf.mxu0
  %v3050 = vpop.f32.mrf.mxu0
  %v3051 = vadd.f32 0.0, %v3050
  %v3052 = vpop.f32.mrf.mxu0
  %3053 = vmatprep.mubr.bf16.mxu0 0
  %3054 = vmatmul.mubr.bf16.gmra.mxu0 %v1661
  %v3055 = vpop.f32.mrf.mxu0
  %v3056 = vadd.f32 0.0, %v3055
  %v3057 = vpop.f32.mrf.mxu0
  %v3058 = vpop.f32.mrf.mxu0
  %v3059 = vadd.f32 0.0, %v3058
  %v3060 = vpop.f32.mrf.mxu0
  %3061 = vmatprep.mubr.bf16.mxu0 0
  %3062 = vmatmul.mubr.bf16.gmra.mxu0 %v1664
  %v3063 = vpop.f32.mrf.mxu0
  %v3064 = vadd.f32 0.0, %v3063
  %v3065 = vpop.f32.mrf.mxu0
  %v3066 = vpop.f32.mrf.mxu0
  %v3067 = vadd.f32 0.0, %v3066
  %v3068 = vpop.f32.mrf.mxu0
  %3069 = vmatprep.mubr.bf16.mxu0 0
  %3070 = vmatmul.mubr.bf16.gmra.mxu0 %v1667
  %v3071 = vpop.f32.mrf.mxu0
  %v3072 = vadd.f32 0.0, %v3071
  %v3073 = vpop.f32.mrf.mxu0
  %v3074 = vpop.f32.mrf.mxu0
  %v3075 = vadd.f32 0.0, %v3074
  %v3076 = vpop.f32.mrf.mxu0
  %3077 = vmatprep.mubr.bf16.mxu0 0
  %3078 = vmatmul.mubr.bf16.gmra.mxu0 %v1670
  %v3079 = vpop.f32.mrf.mxu0
  %v3080 = vadd.f32 0.0, %v3079
  %v3081 = vpop.f32.mrf.mxu0
  %v3082 = vpop.f32.mrf.mxu0
  %v3083 = vadd.f32 0.0, %v3082
  %v3084 = vpop.f32.mrf.mxu0
  %3085 = vmatprep.mubr.bf16.mxu0 0
  %3086 = vmatmul.mubr.bf16.gmra.mxu0 %v1673
  %v3087 = vpop.f32.mrf.mxu0
  %v3088 = vadd.f32 0.0, %v3087
  %v3089 = vpop.f32.mrf.mxu0
  %v3090 = vpop.f32.mrf.mxu0
  %v3091 = vadd.f32 0.0, %v3090
  %v3092 = vpop.f32.mrf.mxu0
  %3093 = vmatprep.mubr.bf16.mxu0 0
  %3094 = vmatmul.mubr.bf16.gmra.mxu0 %v1676
  %v3095 = vpop.f32.mrf.mxu0
  %v3096 = vadd.f32 0.0, %v3095
  %v3097 = vpop.f32.mrf.mxu0
  %v3098 = vpop.f32.mrf.mxu0
  %v3099 = vadd.f32 0.0, %v3098
  %v3100 = vpop.f32.mrf.mxu0
  %3101 = vmatprep.mubr.bf16.mxu0 0
  %3102 = vmatmul.mubr.bf16.gmra.mxu0 %v1679
  %v3103 = vpop.f32.mrf.mxu0
  %v3104 = vadd.f32 0.0, %v3103
  %v3105 = vpop.f32.mrf.mxu0
  %v3106 = vpop.f32.mrf.mxu0
  %v3107 = vadd.f32 0.0, %v3106
  %v3108 = vpop.f32.mrf.mxu0
  %3109 = vmatprep.mubr.bf16.mxu0 0
  %3110 = vmatmul.mubr.bf16.gmra.mxu0 %v1682
  %v3111 = vpop.f32.mrf.mxu0
  %v3112 = vadd.f32 0.0, %v3111
  %v3113 = vpop.f32.mrf.mxu0
  %v3114 = vpop.f32.mrf.mxu0
  %v3115 = vadd.f32 0.0, %v3114
  %v3116 = vpop.f32.mrf.mxu0
  %3117 = vmatprep.mubr.bf16.mxu0 0
  %3118 = vmatmul.mubr.bf16.gmra.mxu0 %v1685
  %v3119 = vpop.f32.mrf.mxu0
  %v3120 = vadd.f32 0.0, %v3119
  %v3121 = vpop.f32.mrf.mxu0
  %v3122 = vpop.f32.mrf.mxu0
  %v3123 = vadd.f32 0.0, %v3122
  %v3124 = vpop.f32.mrf.mxu0
  %3125 = vmatprep.mubr.bf16.mxu0 0
  %3126 = vmatmul.mubr.bf16.gmra.mxu0 %v1688
  %v3127 = vpop.f32.mrf.mxu0
  %v3128 = vadd.f32 0.0, %v3127
  %v3129 = vpop.f32.mrf.mxu0
  %v3130 = vpop.f32.mrf.mxu0
  %v3131 = vadd.f32 0.0, %v3130
  %v3132 = vpop.f32.mrf.mxu0
  %3133 = vmatprep.mubr.bf16.mxu0 0
  %3134 = vmatmul.mubr.bf16.gmra.mxu0 %v1691
  %v3135 = vpop.f32.mrf.mxu0
  %v3136 = vadd.f32 0.0, %v3135
  %v3137 = vpop.f32.mrf.mxu0
  %v3138 = vpop.f32.mrf.mxu0
  %v3139 = vadd.f32 0.0, %v3138
  %v3140 = vpop.f32.mrf.mxu0
  %3141 = vmatprep.mubr.bf16.mxu0 0
  %3142 = vmatmul.mubr.bf16.gmra.mxu0 %v1694
  %v3143 = vpop.f32.mrf.mxu0
  %v3144 = vadd.f32 0.0, %v3143
  %v3145 = vpop.f32.mrf.mxu0
  %v3146 = vpop.f32.mrf.mxu0
  %v3147 = vadd.f32 0.0, %v3146
  %v3148 = vpop.f32.mrf.mxu0
  %3149 = vmatprep.mubr.bf16.mxu0 0
  %3150 = vmatmul.mubr.bf16.gmra.mxu0 %v2867
  %v3151 = vpop.f32.mrf.mxu0
  %v3152 = vadd.f32 0.0, %v3151
  %v3153 = vpop.f32.mrf.mxu0
  %v3154 = vpop.f32.mrf.mxu0
  %v3155 = vadd.f32 0.0, %v3154
  %v3156 = vpop.f32.mrf.mxu0
  %3157 = vdwg.mxu0
  %v3158 = vadd.f32 %v2757, %v2904
  %v3159 = vadd.f32 %v2758, %v2907
  %v3160 = vadd.f32 %v2759, %v2912
  %v3161 = vadd.f32 %v2760, %v2915
  %v3162 = vadd.f32 %v2761, %v2920
  %v3163 = vadd.f32 %v2762, %v2923
  %v3164 = vadd.f32 %v2763, %v2928
  %v3165 = vadd.f32 %v2764, %v2931
  %v3166 = vadd.f32 %v2765, %v2936
  %v3167 = vadd.f32 %v2766, %v2939
  %v3168 = vadd.f32 %v2767, %v2944
  %v3169 = vadd.f32 %v2768, %v2947
  %v3170 = vadd.f32 %v2769, %v2952
  %v3171 = vadd.f32 %v2770, %v2955
  %v3172 = vadd.f32 %v2771, %v2960
  %v3173 = vadd.f32 %v2772, %v2963
  %v3174 = vadd.f32 %v2773, %v2968
  %v3175 = vadd.f32 %v2774, %v2971
  %v3176 = vadd.f32 %v2775, %v2976
  %v3177 = vadd.f32 %v2776, %v2979
  %v3178 = vadd.f32 %v2777, %v2984
  %v3179 = vadd.f32 %v2778, %v2987
  %v3180 = vadd.f32 %v2779, %v2992
  %v3181 = vadd.f32 %v2780, %v2995
  %v3182 = vadd.f32 %v2781, %v3000
  %v3183 = vadd.f32 %v2782, %v3003
  %v3184 = vadd.f32 %v2783, %v3008
  %v3185 = vadd.f32 %v2784, %v3011
  %v3186 = vadd.f32 %v2785, %v3016
  %v3187 = vadd.f32 %v2786, %v3019
  %v3188 = vadd.f32 %v2787, %v3024
  %v3189 = vadd.f32 %v2788, %v3027
  %v3190 = vadd.f32 %v2789, %v3032
  %v3191 = vadd.f32 %v2790, %v3035
  %v3192 = vadd.f32 %v2791, %v3040
  %v3193 = vadd.f32 %v2792, %v3043
  %v3194 = vadd.f32 %v2793, %v3048
  %v3195 = vadd.f32 %v2794, %v3051
  %v3196 = vadd.f32 %v2795, %v3056
  %v3197 = vadd.f32 %v2796, %v3059
  %v3198 = vadd.f32 %v2797, %v3064
  %v3199 = vadd.f32 %v2798, %v3067
  %v3200 = vadd.f32 %v2799, %v3072
  %v3201 = vadd.f32 %v2800, %v3075
  %v3202 = vadd.f32 %v2801, %v3080
  %v3203 = vadd.f32 %v2802, %v3083
  %v3204 = vadd.f32 %v2803, %v3088
  %v3205 = vadd.f32 %v2804, %v3091
  %v3206 = vadd.f32 %v2805, %v3096
  %v3207 = vadd.f32 %v2806, %v3099
  %v3208 = vadd.f32 %v2807, %v3104
  %v3209 = vadd.f32 %v2808, %v3107
  %v3210 = vadd.f32 %v2809, %v3112
  %v3211 = vadd.f32 %v2810, %v3115
  %v3212 = vadd.f32 %v2811, %v3120
  %v3213 = vadd.f32 %v2812, %v3123
  %v3214 = vadd.f32 %v2813, %v3128
  %v3215 = vadd.f32 %v2814, %v3131
  %v3216 = vadd.f32 %v2815, %v3136
  %v3217 = vadd.f32 %v2816, %v3139
  %v3218 = vadd.f32 %v2817, %v3144
  %v3219 = vadd.f32 %v2818, %v3147
  %v3220 = vadd.f32 %v2819, %v3152
  %v3221 = vadd.f32 %v2820, %v3155
  %v3223 = vshrl.u32 %v63, 16
  %v3225 = vrot.slane %v3223, 4
  %v3226 = vshll.u32 %v63, 16
  %v3228 = vrot.slane %v3226, 5
  %v3229 = vor.u32 %v3225, %v3228
  %v3230 = vrot.slane %v3229, 4
  %v3232 = vshll.u32 %v64, 16
  %v3234 = vrot.slane %v3232, 5
  %v3235 = vsel %vm133, %v3230, %v3234
  %v3236 = vshrl.u32 %v64, 16
  %v3238 = vrot.slane %v3236, 4
  %v3239 = vor.u32 %v3238, %v3234
  %v3240 = vrot.slane %v3239, 4
  %v3242 = vshll.u32 %v65, 16
  %v3244 = vrot.slane %v3242, 5
  %v3245 = vsel %vm133, %v3240, %v3244
  %v3247 = vshrl.u32 %v117, 16
  %v3249 = vrot.slane %v3247, 4
  %v3250 = vshll.u32 %v117, 16
  %v3252 = vrot.slane %v3250, 5
  %v3253 = vor.u32 %v3249, %v3252
  %v3254 = vrot.slane %v3253, 4
  %v3256 = vshll.u32 %v118, 16
  %v3258 = vrot.slane %v3256, 5
  %v3259 = vsel %vm133, %v3254, %v3258
  %v3260 = vshrl.u32 %v118, 16
  %v3262 = vrot.slane %v3260, 4
  %v3263 = vor.u32 %v3262, %v3258
  %v3264 = vrot.slane %v3263, 4
  %v3266 = vshll.u32 %v119, 16
  %v3268 = vrot.slane %v3266, 5
  %v3269 = vsel %vm133, %v3264, %v3268
  %v3270 = vld [vmem:[%s1 + $0x80] sm:$0xf]
  %v3271 = vld [vmem:[%s1 + $0x84] sm:$0xf]
  %v3272 = vld [vmem:[%s1 + $0x88] sm:$0xf]
  %v3273 = vld [vmem:[%s1 + $0x8c] sm:$0xf]
  %v3274 = vld [vmem:[%s1 + $0x90] sm:$0xf]
  %v3275 = vld [vmem:[%s1 + $0x94] sm:$0xf]
  %v3276 = vld [vmem:[%s1 + $0x98] sm:$0xf]
  %v3277 = vld [vmem:[%s1 + $0x9c] sm:$0xf]
  %v3278 = vunpack.c.l.b16 %v3235
  %v3279 = vunpack.c.l.b16 %v3245
  %v3280 = vunpack.c.l.b16 %v3259
  %v3281 = vunpack.c.l.b16 %v3269
  %v3282 = vpack.c.b16 %v3279, %v3278
  %v3283 = vpack.c.b16 %v3281, %v3280
  %v3292 = vunpack.c.l.b16 %v3270
  %v3293 = vunpack.c.l.b16 %v3271
  %v3294 = vunpack.c.l.b16 %v3272
  %v3295 = vunpack.c.l.b16 %v3273
  %v3296 = vunpack.c.l.b16 %v3274
  %v3297 = vunpack.c.l.b16 %v3275
  %v3298 = vunpack.c.l.b16 %v3276
  %v3299 = vunpack.c.l.b16 %v3277
  %v3300 = vpack.c.b16 %v3293, %v3292
  %v3301 = vpack.c.b16 %v3295, %v3294
  %v3302 = vpack.c.b16 %v3297, %v3296
  %v3303 = vpack.c.b16 %v3299, %v3298
  %v3309 = vsel %vm1030, %v3282, 0
  %v3312 = vsel %vm1030, %v3283, 0
  %3314 = vmatprep.subr.bf16.mxu0 0
  %3315 = vmatpush1.bf16.msra.mxu0 0
  %3316 = vmatprep.subr.bf16.mxu0 0
  %3317 = vmatpush1.bf16.msra.mxu0 0
  %3318 = vmatprep.subr.bf16.mxu0 0
  %3319 = vmatpush1.bf16.msra.mxu0 0
  %3320 = vmatprep.subr.bf16.mxu0 0
  %3321 = vmatpush1.bf16.msra.mxu0 0
  %3322 = vmatprep.subr.bf16.mxu0 0
  %3323 = vmatpush1.bf16.msra.mxu0 %v3303
  %3324 = vmatprep.subr.bf16.mxu0 0
  %3325 = vmatpush1.bf16.msra.mxu0 %v3302
  %3326 = vmatprep.subr.bf16.mxu0 0
  %3327 = vmatpush1.bf16.msra.mxu0 %v3301
  %3328 = vmatprep.subr.bf16.mxu0 0
  %3329 = vmatpush1.bf16.msra.mxu0 %v3300
  %3330 = vmatprep.subr.bf16.mxu0 0
  %3331 = vmatpush2.bf16.msra.mxu0 0
  %3332 = vmatprep.subr.bf16.mxu0 0
  %3333 = vmatpush2.bf16.msra.mxu0 0
  %3334 = vmatprep.subr.bf16.mxu0 0
  %3335 = vmatpush2.bf16.msra.mxu0 0
  %3336 = vmatprep.subr.bf16.mxu0 0
  %3337 = vmatpush2.bf16.msra.mxu0 0
  %3338 = vmatprep.subr.bf16.mxu0 0
  %3339 = vmatpush2.bf16.msra.mxu0 0
  %3340 = vmatprep.subr.bf16.mxu0 0
  %3341 = vmatpush2.bf16.msra.mxu0 0
  %3342 = vmatprep.subr.bf16.mxu0 0
  %3343 = vmatpush2.bf16.msra.mxu0 0
  %3344 = vmatprep.subr.bf16.mxu0 0
  %3345 = vmatpush2.bf16.msra.mxu0 0
  %3346 = vmatprep.mubr.bf16.mxu0 0
  %3347 = vmatmul.mubr.bf16.gmra.mxu0 %v1035
  %v3348 = vpop.f32.mrf.mxu0
  %v3349 = vadd.f32 0.0, %v3348
  %v3350 = vpop.f32.mrf.mxu0
  %v3351 = vpop.f32.mrf.mxu0
  %v3352 = vadd.f32 0.0, %v3351
  %v3353 = vpop.f32.mrf.mxu0
  %3354 = vmatprep.mubr.bf16.mxu0 0
  %3355 = vmatmul.mubr.bf16.gmra.mxu0 %v1038
  %v3356 = vpop.f32.mrf.mxu0
  %v3357 = vadd.f32 0.0, %v3356
  %v3358 = vpop.f32.mrf.mxu0
  %v3359 = vpop.f32.mrf.mxu0
  %v3360 = vadd.f32 0.0, %v3359
  %v3361 = vpop.f32.mrf.mxu0
  %3362 = vmatprep.mubr.bf16.mxu0 0
  %3363 = vmatmul.mubr.bf16.gmra.mxu0 %v1041
  %v3364 = vpop.f32.mrf.mxu0
  %v3365 = vadd.f32 0.0, %v3364
  %v3366 = vpop.f32.mrf.mxu0
  %v3367 = vpop.f32.mrf.mxu0
  %v3368 = vadd.f32 0.0, %v3367
  %v3369 = vpop.f32.mrf.mxu0
  %3370 = vmatprep.mubr.bf16.mxu0 0
  %3371 = vmatmul.mubr.bf16.gmra.mxu0 %v1044
  %v3372 = vpop.f32.mrf.mxu0
  %v3373 = vadd.f32 0.0, %v3372
  %v3374 = vpop.f32.mrf.mxu0
  %v3375 = vpop.f32.mrf.mxu0
  %v3376 = vadd.f32 0.0, %v3375
  %v3377 = vpop.f32.mrf.mxu0
  %3378 = vmatprep.mubr.bf16.mxu0 0
  %3379 = vmatmul.mubr.bf16.gmra.mxu0 %v1047
  %v3380 = vpop.f32.mrf.mxu0
  %v3381 = vadd.f32 0.0, %v3380
  %v3382 = vpop.f32.mrf.mxu0
  %v3383 = vpop.f32.mrf.mxu0
  %v3384 = vadd.f32 0.0, %v3383
  %v3385 = vpop.f32.mrf.mxu0
  %3386 = vmatprep.mubr.bf16.mxu0 0
  %3387 = vmatmul.mubr.bf16.gmra.mxu0 %v1050
  %v3388 = vpop.f32.mrf.mxu0
  %v3389 = vadd.f32 0.0, %v3388
  %v3390 = vpop.f32.mrf.mxu0
  %v3391 = vpop.f32.mrf.mxu0
  %v3392 = vadd.f32 0.0, %v3391
  %v3393 = vpop.f32.mrf.mxu0
  %3394 = vmatprep.mubr.bf16.mxu0 0
  %3395 = vmatmul.mubr.bf16.gmra.mxu0 %v1053
  %v3396 = vpop.f32.mrf.mxu0
  %v3397 = vadd.f32 0.0, %v3396
  %v3398 = vpop.f32.mrf.mxu0
  %v3399 = vpop.f32.mrf.mxu0
  %v3400 = vadd.f32 0.0, %v3399
  %v3401 = vpop.f32.mrf.mxu0
  %3402 = vmatprep.mubr.bf16.mxu0 0
  %3403 = vmatmul.mubr.bf16.gmra.mxu0 %v1056
  %v3404 = vpop.f32.mrf.mxu0
  %v3405 = vadd.f32 0.0, %v3404
  %v3406 = vpop.f32.mrf.mxu0
  %v3407 = vpop.f32.mrf.mxu0
  %v3408 = vadd.f32 0.0, %v3407
  %v3409 = vpop.f32.mrf.mxu0
  %3410 = vmatprep.mubr.bf16.mxu0 0
  %3411 = vmatmul.mubr.bf16.gmra.mxu0 %v1059
  %v3412 = vpop.f32.mrf.mxu0
  %v3413 = vadd.f32 0.0, %v3412
  %v3414 = vpop.f32.mrf.mxu0
  %v3415 = vpop.f32.mrf.mxu0
  %v3416 = vadd.f32 0.0, %v3415
  %v3417 = vpop.f32.mrf.mxu0
  %3418 = vmatprep.mubr.bf16.mxu0 0
  %3419 = vmatmul.mubr.bf16.gmra.mxu0 %v1062
  %v3420 = vpop.f32.mrf.mxu0
  %v3421 = vadd.f32 0.0, %v3420
  %v3422 = vpop.f32.mrf.mxu0
  %v3423 = vpop.f32.mrf.mxu0
  %v3424 = vadd.f32 0.0, %v3423
  %v3425 = vpop.f32.mrf.mxu0
  %3426 = vmatprep.mubr.bf16.mxu0 0
  %3427 = vmatmul.mubr.bf16.gmra.mxu0 %v1065
  %v3428 = vpop.f32.mrf.mxu0
  %v3429 = vadd.f32 0.0, %v3428
  %v3430 = vpop.f32.mrf.mxu0
  %v3431 = vpop.f32.mrf.mxu0
  %v3432 = vadd.f32 0.0, %v3431
  %v3433 = vpop.f32.mrf.mxu0
  %3434 = vmatprep.mubr.bf16.mxu0 0
  %3435 = vmatmul.mubr.bf16.gmra.mxu0 %v1068
  %v3436 = vpop.f32.mrf.mxu0
  %v3437 = vadd.f32 0.0, %v3436
  %v3438 = vpop.f32.mrf.mxu0
  %v3439 = vpop.f32.mrf.mxu0
  %v3440 = vadd.f32 0.0, %v3439
  %v3441 = vpop.f32.mrf.mxu0
  %3442 = vmatprep.mubr.bf16.mxu0 0
  %3443 = vmatmul.mubr.bf16.gmra.mxu0 %v1071
  %v3444 = vpop.f32.mrf.mxu0
  %v3445 = vadd.f32 0.0, %v3444
  %v3446 = vpop.f32.mrf.mxu0
  %v3447 = vpop.f32.mrf.mxu0
  %v3448 = vadd.f32 0.0, %v3447
  %v3449 = vpop.f32.mrf.mxu0
  %3450 = vmatprep.mubr.bf16.mxu0 0
  %3451 = vmatmul.mubr.bf16.gmra.mxu0 %v1074
  %v3452 = vpop.f32.mrf.mxu0
  %v3453 = vadd.f32 0.0, %v3452
  %v3454 = vpop.f32.mrf.mxu0
  %v3455 = vpop.f32.mrf.mxu0
  %v3456 = vadd.f32 0.0, %v3455
  %v3457 = vpop.f32.mrf.mxu0
  %3458 = vmatprep.mubr.bf16.mxu0 0
  %3459 = vmatmul.mubr.bf16.gmra.mxu0 %v1077
  %v3460 = vpop.f32.mrf.mxu0
  %v3461 = vadd.f32 0.0, %v3460
  %v3462 = vpop.f32.mrf.mxu0
  %v3463 = vpop.f32.mrf.mxu0
  %v3464 = vadd.f32 0.0, %v3463
  %v3465 = vpop.f32.mrf.mxu0
  %3466 = vmatprep.mubr.bf16.mxu0 0
  %3467 = vmatmul.mubr.bf16.gmra.mxu0 %v3309
  %v3468 = vpop.f32.mrf.mxu0
  %v3469 = vadd.f32 0.0, %v3468
  %v3470 = vpop.f32.mrf.mxu0
  %v3471 = vpop.f32.mrf.mxu0
  %v3472 = vadd.f32 0.0, %v3471
  %v3473 = vpop.f32.mrf.mxu0
  %3474 = vmatprep.mubr.bf16.mxu0 0
  %3475 = vmatmul.mubr.bf16.gmra.mxu0 %v1083
  %v3476 = vpop.f32.mrf.mxu0
  %v3477 = vadd.f32 0.0, %v3476
  %v3478 = vpop.f32.mrf.mxu0
  %v3479 = vpop.f32.mrf.mxu0
  %v3480 = vadd.f32 0.0, %v3479
  %v3481 = vpop.f32.mrf.mxu0
  %3482 = vmatprep.mubr.bf16.mxu0 0
  %3483 = vmatmul.mubr.bf16.gmra.mxu0 %v1086
  %v3484 = vpop.f32.mrf.mxu0
  %v3485 = vadd.f32 0.0, %v3484
  %v3486 = vpop.f32.mrf.mxu0
  %v3487 = vpop.f32.mrf.mxu0
  %v3488 = vadd.f32 0.0, %v3487
  %v3489 = vpop.f32.mrf.mxu0
  %3490 = vmatprep.mubr.bf16.mxu0 0
  %3491 = vmatmul.mubr.bf16.gmra.mxu0 %v1089
  %v3492 = vpop.f32.mrf.mxu0
  %v3493 = vadd.f32 0.0, %v3492
  %v3494 = vpop.f32.mrf.mxu0
  %v3495 = vpop.f32.mrf.mxu0
  %v3496 = vadd.f32 0.0, %v3495
  %v3497 = vpop.f32.mrf.mxu0
  %3498 = vmatprep.mubr.bf16.mxu0 0
  %3499 = vmatmul.mubr.bf16.gmra.mxu0 %v1092
  %v3500 = vpop.f32.mrf.mxu0
  %v3501 = vadd.f32 0.0, %v3500
  %v3502 = vpop.f32.mrf.mxu0
  %v3503 = vpop.f32.mrf.mxu0
  %v3504 = vadd.f32 0.0, %v3503
  %v3505 = vpop.f32.mrf.mxu0
  %3506 = vmatprep.mubr.bf16.mxu0 0
  %3507 = vmatmul.mubr.bf16.gmra.mxu0 %v1095
  %v3508 = vpop.f32.mrf.mxu0
  %v3509 = vadd.f32 0.0, %v3508
  %v3510 = vpop.f32.mrf.mxu0
  %v3511 = vpop.f32.mrf.mxu0
  %v3512 = vadd.f32 0.0, %v3511
  %v3513 = vpop.f32.mrf.mxu0
  %3514 = vmatprep.mubr.bf16.mxu0 0
  %3515 = vmatmul.mubr.bf16.gmra.mxu0 %v1098
  %v3516 = vpop.f32.mrf.mxu0
  %v3517 = vadd.f32 0.0, %v3516
  %v3518 = vpop.f32.mrf.mxu0
  %v3519 = vpop.f32.mrf.mxu0
  %v3520 = vadd.f32 0.0, %v3519
  %v3521 = vpop.f32.mrf.mxu0
  %3522 = vmatprep.mubr.bf16.mxu0 0
  %3523 = vmatmul.mubr.bf16.gmra.mxu0 %v1101
  %v3524 = vpop.f32.mrf.mxu0
  %v3525 = vadd.f32 0.0, %v3524
  %v3526 = vpop.f32.mrf.mxu0
  %v3527 = vpop.f32.mrf.mxu0
  %v3528 = vadd.f32 0.0, %v3527
  %v3529 = vpop.f32.mrf.mxu0
  %3530 = vmatprep.mubr.bf16.mxu0 0
  %3531 = vmatmul.mubr.bf16.gmra.mxu0 %v1104
  %v3532 = vpop.f32.mrf.mxu0
  %v3533 = vadd.f32 0.0, %v3532
  %v3534 = vpop.f32.mrf.mxu0
  %v3535 = vpop.f32.mrf.mxu0
  %v3536 = vadd.f32 0.0, %v3535
  %v3537 = vpop.f32.mrf.mxu0
  %3538 = vmatprep.mubr.bf16.mxu0 0
  %3539 = vmatmul.mubr.bf16.gmra.mxu0 %v1107
  %v3540 = vpop.f32.mrf.mxu0
  %v3541 = vadd.f32 0.0, %v3540
  %v3542 = vpop.f32.mrf.mxu0
  %v3543 = vpop.f32.mrf.mxu0
  %v3544 = vadd.f32 0.0, %v3543
  %v3545 = vpop.f32.mrf.mxu0
  %3546 = vmatprep.mubr.bf16.mxu0 0
  %3547 = vmatmul.mubr.bf16.gmra.mxu0 %v1110
  %v3548 = vpop.f32.mrf.mxu0
  %v3549 = vadd.f32 0.0, %v3548
  %v3550 = vpop.f32.mrf.mxu0
  %v3551 = vpop.f32.mrf.mxu0
  %v3552 = vadd.f32 0.0, %v3551
  %v3553 = vpop.f32.mrf.mxu0
  %3554 = vmatprep.mubr.bf16.mxu0 0
  %3555 = vmatmul.mubr.bf16.gmra.mxu0 %v1113
  %v3556 = vpop.f32.mrf.mxu0
  %v3557 = vadd.f32 0.0, %v3556
  %v3558 = vpop.f32.mrf.mxu0
  %v3559 = vpop.f32.mrf.mxu0
  %v3560 = vadd.f32 0.0, %v3559
  %v3561 = vpop.f32.mrf.mxu0
  %3562 = vmatprep.mubr.bf16.mxu0 0
  %3563 = vmatmul.mubr.bf16.gmra.mxu0 %v1116
  %v3564 = vpop.f32.mrf.mxu0
  %v3565 = vadd.f32 0.0, %v3564
  %v3566 = vpop.f32.mrf.mxu0
  %v3567 = vpop.f32.mrf.mxu0
  %v3568 = vadd.f32 0.0, %v3567
  %v3569 = vpop.f32.mrf.mxu0
  %3570 = vmatprep.mubr.bf16.mxu0 0
  %3571 = vmatmul.mubr.bf16.gmra.mxu0 %v1119
  %v3572 = vpop.f32.mrf.mxu0
  %v3573 = vadd.f32 0.0, %v3572
  %v3574 = vpop.f32.mrf.mxu0
  %v3575 = vpop.f32.mrf.mxu0
  %v3576 = vadd.f32 0.0, %v3575
  %v3577 = vpop.f32.mrf.mxu0
  %3578 = vmatprep.mubr.bf16.mxu0 0
  %3579 = vmatmul.mubr.bf16.gmra.mxu0 %v1122
  %v3580 = vpop.f32.mrf.mxu0
  %v3581 = vadd.f32 0.0, %v3580
  %v3582 = vpop.f32.mrf.mxu0
  %v3583 = vpop.f32.mrf.mxu0
  %v3584 = vadd.f32 0.0, %v3583
  %v3585 = vpop.f32.mrf.mxu0
  %3586 = vmatprep.mubr.bf16.mxu0 0
  %3587 = vmatmul.mubr.bf16.gmra.mxu0 %v1125
  %v3588 = vpop.f32.mrf.mxu0
  %v3589 = vadd.f32 0.0, %v3588
  %v3590 = vpop.f32.mrf.mxu0
  %v3591 = vpop.f32.mrf.mxu0
  %v3592 = vadd.f32 0.0, %v3591
  %v3593 = vpop.f32.mrf.mxu0
  %3594 = vmatprep.mubr.bf16.mxu0 0
  %3595 = vmatmul.mubr.bf16.gmra.mxu0 %v3312
  %v3596 = vpop.f32.mrf.mxu0
  %v3597 = vadd.f32 0.0, %v3596
  %v3598 = vpop.f32.mrf.mxu0
  %v3599 = vpop.f32.mrf.mxu0
  %v3600 = vadd.f32 0.0, %v3599
  %v3601 = vpop.f32.mrf.mxu0
  %3602 = vdwg.mxu0
  %v3603 = vadd.f32 %v3158, %v3349
  %v3604 = vadd.f32 %v3159, %v3352
  %v3605 = vadd.f32 %v3160, %v3357
  %v3606 = vadd.f32 %v3161, %v3360
  %v3607 = vadd.f32 %v3162, %v3365
  %v3608 = vadd.f32 %v3163, %v3368
  %v3609 = vadd.f32 %v3164, %v3373
  %v3610 = vadd.f32 %v3165, %v3376
  %v3611 = vadd.f32 %v3166, %v3381
  %v3612 = vadd.f32 %v3167, %v3384
  %v3613 = vadd.f32 %v3168, %v3389
  %v3614 = vadd.f32 %v3169, %v3392
  %v3615 = vadd.f32 %v3170, %v3397
  %v3616 = vadd.f32 %v3171, %v3400
  %v3617 = vadd.f32 %v3172, %v3405
  %v3618 = vadd.f32 %v3173, %v3408
  %v3619 = vadd.f32 %v3174, %v3413
  %v3620 = vadd.f32 %v3175, %v3416
  %v3621 = vadd.f32 %v3176, %v3421
  %v3622 = vadd.f32 %v3177, %v3424
  %v3623 = vadd.f32 %v3178, %v3429
  %v3624 = vadd.f32 %v3179, %v3432
  %v3625 = vadd.f32 %v3180, %v3437
  %v3626 = vadd.f32 %v3181, %v3440
  %v3627 = vadd.f32 %v3182, %v3445
  %v3628 = vadd.f32 %v3183, %v3448
  %v3629 = vadd.f32 %v3184, %v3453
  %v3630 = vadd.f32 %v3185, %v3456
  %v3631 = vadd.f32 %v3186, %v3461
  %v3632 = vadd.f32 %v3187, %v3464
  %v3633 = vadd.f32 %v3188, %v3469
  %v3634 = vadd.f32 %v3189, %v3472
  %v3635 = vadd.f32 %v3190, %v3477
  %v3636 = vadd.f32 %v3191, %v3480
  %v3637 = vadd.f32 %v3192, %v3485
  %v3638 = vadd.f32 %v3193, %v3488
  %v3639 = vadd.f32 %v3194, %v3493
  %v3640 = vadd.f32 %v3195, %v3496
  %v3641 = vadd.f32 %v3196, %v3501
  %v3642 = vadd.f32 %v3197, %v3504
  %v3643 = vadd.f32 %v3198, %v3509
  %v3644 = vadd.f32 %v3199, %v3512
  %v3645 = vadd.f32 %v3200, %v3517
  %v3646 = vadd.f32 %v3201, %v3520
  %v3647 = vadd.f32 %v3202, %v3525
  %v3648 = vadd.f32 %v3203, %v3528
  %v3649 = vadd.f32 %v3204, %v3533
  %v3650 = vadd.f32 %v3205, %v3536
  %v3651 = vadd.f32 %v3206, %v3541
  %v3652 = vadd.f32 %v3207, %v3544
  %v3653 = vadd.f32 %v3208, %v3549
  %v3654 = vadd.f32 %v3209, %v3552
  %v3655 = vadd.f32 %v3210, %v3557
  %v3656 = vadd.f32 %v3211, %v3560
  %v3657 = vadd.f32 %v3212, %v3565
  %v3658 = vadd.f32 %v3213, %v3568
  %v3659 = vadd.f32 %v3214, %v3573
  %v3660 = vadd.f32 %v3215, %v3576
  %v3661 = vadd.f32 %v3216, %v3581
  %v3662 = vadd.f32 %v3217, %v3584
  %v3663 = vadd.f32 %v3218, %v3589
  %v3664 = vadd.f32 %v3219, %v3592
  %v3665 = vadd.f32 %v3220, %v3597
  %v3666 = vadd.f32 %v3221, %v3600
  %v3669 = vrot.slane %v63, 5
  %v3670 = vrot.slane %v3669, 4
  %v3671 = vrot.slane %v64, 5
  %v3672 = vsel %vm2019, %v3670, %v3671
  %v3673 = vrot.slane %v3671, 4
  %v3674 = vrot.slane %v65, 5
  %v3675 = vsel %vm2019, %v3673, %v3674
  %v3676 = vrot.slane %v117, 5
  %v3677 = vrot.slane %v3676, 4
  %v3678 = vrot.slane %v118, 5
  %v3679 = vsel %vm2019, %v3677, %v3678
  %v3680 = vrot.slane %v3678, 4
  %v3681 = vrot.slane %v119, 5
  %v3682 = vsel %vm2019, %v3680, %v3681
  %v3683 = vld [vmem:[%s1 + $0xa0] sm:$0xf]
  %v3684 = vld [vmem:[%s1 + $0xa4] sm:$0xf]
  %v3685 = vld [vmem:[%s1 + $0xa8] sm:$0xf]
  %v3686 = vld [vmem:[%s1 + $0xac] sm:$0xf]
  %v3687 = vld [vmem:[%s1 + $0xb0] sm:$0xf]
  %v3688 = vld [vmem:[%s1 + $0xb4] sm:$0xf]
  %v3689 = vld [vmem:[%s1 + $0xb8] sm:$0xf]
  %v3690 = vld [vmem:[%s1 + $0xbc] sm:$0xf]
  %v3691 = vunpack.c.l.b16 %v3672
  %v3692 = vunpack.c.l.b16 %v3675
  %v3693 = vunpack.c.l.b16 %v3679
  %v3694 = vunpack.c.l.b16 %v3682
  %v3695 = vpack.c.b16 %v3692, %v3691
  %v3696 = vpack.c.b16 %v3694, %v3693
  %v3705 = vunpack.c.l.b16 %v3683
  %v3706 = vunpack.c.l.b16 %v3684
  %v3707 = vunpack.c.l.b16 %v3685
  %v3708 = vunpack.c.l.b16 %v3686
  %v3709 = vunpack.c.l.b16 %v3687
  %v3710 = vunpack.c.l.b16 %v3688
  %v3711 = vunpack.c.l.b16 %v3689
  %v3712 = vunpack.c.l.b16 %v3690
  %v3713 = vpack.c.b16 %v3706, %v3705
  %v3714 = vpack.c.b16 %v3708, %v3707
  %v3715 = vpack.c.b16 %v3710, %v3709
  %v3716 = vpack.c.b16 %v3712, %v3711
  %v3722 = vsel %vm1030, %v3695, 0
  %v3725 = vsel %vm1030, %v3696, 0
  %3727 = vmatprep.subr.bf16.mxu0 0
  %3728 = vmatpush1.bf16.msra.mxu0 0
  %3729 = vmatprep.subr.bf16.mxu0 0
  %3730 = vmatpush1.bf16.msra.mxu0 0
  %3731 = vmatprep.subr.bf16.mxu0 0
  %3732 = vmatpush1.bf16.msra.mxu0 0
  %3733 = vmatprep.subr.bf16.mxu0 0
  %3734 = vmatpush1.bf16.msra.mxu0 0
  %3735 = vmatprep.subr.bf16.mxu0 0
  %3736 = vmatpush1.bf16.msra.mxu0 %v3716
  %3737 = vmatprep.subr.bf16.mxu0 0
  %3738 = vmatpush1.bf16.msra.mxu0 %v3715
  %3739 = vmatprep.subr.bf16.mxu0 0
  %3740 = vmatpush1.bf16.msra.mxu0 %v3714
  %3741 = vmatprep.subr.bf16.mxu0 0
  %3742 = vmatpush1.bf16.msra.mxu0 %v3713
  %3743 = vmatprep.subr.bf16.mxu0 0
  %3744 = vmatpush2.bf16.msra.mxu0 0
  %3745 = vmatprep.subr.bf16.mxu0 0
  %3746 = vmatpush2.bf16.msra.mxu0 0
  %3747 = vmatprep.subr.bf16.mxu0 0
  %3748 = vmatpush2.bf16.msra.mxu0 0
  %3749 = vmatprep.subr.bf16.mxu0 0
  %3750 = vmatpush2.bf16.msra.mxu0 0
  %3751 = vmatprep.subr.bf16.mxu0 0
  %3752 = vmatpush2.bf16.msra.mxu0 0
  %3753 = vmatprep.subr.bf16.mxu0 0
  %3754 = vmatpush2.bf16.msra.mxu0 0
  %3755 = vmatprep.subr.bf16.mxu0 0
  %3756 = vmatpush2.bf16.msra.mxu0 0
  %3757 = vmatprep.subr.bf16.mxu0 0
  %3758 = vmatpush2.bf16.msra.mxu0 0
  %3759 = vmatprep.mubr.bf16.mxu0 0
  %3760 = vmatmul.mubr.bf16.gmra.mxu0 %v2376
  %v3761 = vpop.f32.mrf.mxu0
  %v3762 = vadd.f32 0.0, %v3761
  %v3763 = vpop.f32.mrf.mxu0
  %v3764 = vpop.f32.mrf.mxu0
  %v3765 = vadd.f32 0.0, %v3764
  %v3766 = vpop.f32.mrf.mxu0
  %3767 = vmatprep.mubr.bf16.mxu0 0
  %3768 = vmatmul.mubr.bf16.gmra.mxu0 %v2379
  %v3769 = vpop.f32.mrf.mxu0
  %v3770 = vadd.f32 0.0, %v3769
  %v3771 = vpop.f32.mrf.mxu0
  %v3772 = vpop.f32.mrf.mxu0
  %v3773 = vadd.f32 0.0, %v3772
  %v3774 = vpop.f32.mrf.mxu0
  %3775 = vmatprep.mubr.bf16.mxu0 0
  %3776 = vmatmul.mubr.bf16.gmra.mxu0 %v2382
  %v3777 = vpop.f32.mrf.mxu0
  %v3778 = vadd.f32 0.0, %v3777
  %v3779 = vpop.f32.mrf.mxu0
  %v3780 = vpop.f32.mrf.mxu0
  %v3781 = vadd.f32 0.0, %v3780
  %v3782 = vpop.f32.mrf.mxu0
  %3783 = vmatprep.mubr.bf16.mxu0 0
  %3784 = vmatmul.mubr.bf16.gmra.mxu0 %v2385
  %v3785 = vpop.f32.mrf.mxu0
  %v3786 = vadd.f32 0.0, %v3785
  %v3787 = vpop.f32.mrf.mxu0
  %v3788 = vpop.f32.mrf.mxu0
  %v3789 = vadd.f32 0.0, %v3788
  %v3790 = vpop.f32.mrf.mxu0
  %3791 = vmatprep.mubr.bf16.mxu0 0
  %3792 = vmatmul.mubr.bf16.gmra.mxu0 %v2388
  %v3793 = vpop.f32.mrf.mxu0
  %v3794 = vadd.f32 0.0, %v3793
  %v3795 = vpop.f32.mrf.mxu0
  %v3796 = vpop.f32.mrf.mxu0
  %v3797 = vadd.f32 0.0, %v3796
  %v3798 = vpop.f32.mrf.mxu0
  %3799 = vmatprep.mubr.bf16.mxu0 0
  %3800 = vmatmul.mubr.bf16.gmra.mxu0 %v2391
  %v3801 = vpop.f32.mrf.mxu0
  %v3802 = vadd.f32 0.0, %v3801
  %v3803 = vpop.f32.mrf.mxu0
  %v3804 = vpop.f32.mrf.mxu0
  %v3805 = vadd.f32 0.0, %v3804
  %v3806 = vpop.f32.mrf.mxu0
  %3807 = vmatprep.mubr.bf16.mxu0 0
  %3808 = vmatmul.mubr.bf16.gmra.mxu0 %v2394
  %v3809 = vpop.f32.mrf.mxu0
  %v3810 = vadd.f32 0.0, %v3809
  %v3811 = vpop.f32.mrf.mxu0
  %v3812 = vpop.f32.mrf.mxu0
  %v3813 = vadd.f32 0.0, %v3812
  %v3814 = vpop.f32.mrf.mxu0
  %3815 = vmatprep.mubr.bf16.mxu0 0
  %3816 = vmatmul.mubr.bf16.gmra.mxu0 %v2397
  %v3817 = vpop.f32.mrf.mxu0
  %v3818 = vadd.f32 0.0, %v3817
  %v3819 = vpop.f32.mrf.mxu0
  %v3820 = vpop.f32.mrf.mxu0
  %v3821 = vadd.f32 0.0, %v3820
  %v3822 = vpop.f32.mrf.mxu0
  %3823 = vmatprep.mubr.bf16.mxu0 0
  %3824 = vmatmul.mubr.bf16.gmra.mxu0 %v2400
  %v3825 = vpop.f32.mrf.mxu0
  %v3826 = vadd.f32 0.0, %v3825
  %v3827 = vpop.f32.mrf.mxu0
  %v3828 = vpop.f32.mrf.mxu0
  %v3829 = vadd.f32 0.0, %v3828
  %v3830 = vpop.f32.mrf.mxu0
  %3831 = vmatprep.mubr.bf16.mxu0 0
  %3832 = vmatmul.mubr.bf16.gmra.mxu0 %v2403
  %v3833 = vpop.f32.mrf.mxu0
  %v3834 = vadd.f32 0.0, %v3833
  %v3835 = vpop.f32.mrf.mxu0
  %v3836 = vpop.f32.mrf.mxu0
  %v3837 = vadd.f32 0.0, %v3836
  %v3838 = vpop.f32.mrf.mxu0
  %3839 = vmatprep.mubr.bf16.mxu0 0
  %3840 = vmatmul.mubr.bf16.gmra.mxu0 %v2406
  %v3841 = vpop.f32.mrf.mxu0
  %v3842 = vadd.f32 0.0, %v3841
  %v3843 = vpop.f32.mrf.mxu0
  %v3844 = vpop.f32.mrf.mxu0
  %v3845 = vadd.f32 0.0, %v3844
  %v3846 = vpop.f32.mrf.mxu0
  %3847 = vmatprep.mubr.bf16.mxu0 0
  %3848 = vmatmul.mubr.bf16.gmra.mxu0 %v2409
  %v3849 = vpop.f32.mrf.mxu0
  %v3850 = vadd.f32 0.0, %v3849
  %v3851 = vpop.f32.mrf.mxu0
  %v3852 = vpop.f32.mrf.mxu0
  %v3853 = vadd.f32 0.0, %v3852
  %v3854 = vpop.f32.mrf.mxu0
  %3855 = vmatprep.mubr.bf16.mxu0 0
  %3856 = vmatmul.mubr.bf16.gmra.mxu0 %v2412
  %v3857 = vpop.f32.mrf.mxu0
  %v3858 = vadd.f32 0.0, %v3857
  %v3859 = vpop.f32.mrf.mxu0
  %v3860 = vpop.f32.mrf.mxu0
  %v3861 = vadd.f32 0.0, %v3860
  %v3862 = vpop.f32.mrf.mxu0
  %3863 = vmatprep.mubr.bf16.mxu0 0
  %3864 = vmatmul.mubr.bf16.gmra.mxu0 %v2415
  %v3865 = vpop.f32.mrf.mxu0
  %v3866 = vadd.f32 0.0, %v3865
  %v3867 = vpop.f32.mrf.mxu0
  %v3868 = vpop.f32.mrf.mxu0
  %v3869 = vadd.f32 0.0, %v3868
  %v3870 = vpop.f32.mrf.mxu0
  %3871 = vmatprep.mubr.bf16.mxu0 0
  %3872 = vmatmul.mubr.bf16.gmra.mxu0 %v2418
  %v3873 = vpop.f32.mrf.mxu0
  %v3874 = vadd.f32 0.0, %v3873
  %v3875 = vpop.f32.mrf.mxu0
  %v3876 = vpop.f32.mrf.mxu0
  %v3877 = vadd.f32 0.0, %v3876
  %v3878 = vpop.f32.mrf.mxu0
  %3879 = vmatprep.mubr.bf16.mxu0 0
  %3880 = vmatmul.mubr.bf16.gmra.mxu0 %v3722
  %v3881 = vpop.f32.mrf.mxu0
  %v3882 = vadd.f32 0.0, %v3881
  %v3883 = vpop.f32.mrf.mxu0
  %v3884 = vpop.f32.mrf.mxu0
  %v3885 = vadd.f32 0.0, %v3884
  %v3886 = vpop.f32.mrf.mxu0
  %3887 = vmatprep.mubr.bf16.mxu0 0
  %3888 = vmatmul.mubr.bf16.gmra.mxu0 %v2424
  %v3889 = vpop.f32.mrf.mxu0
  %v3890 = vadd.f32 0.0, %v3889
  %v3891 = vpop.f32.mrf.mxu0
  %v3892 = vpop.f32.mrf.mxu0
  %v3893 = vadd.f32 0.0, %v3892
  %v3894 = vpop.f32.mrf.mxu0
  %3895 = vmatprep.mubr.bf16.mxu0 0
  %3896 = vmatmul.mubr.bf16.gmra.mxu0 %v2427
  %v3897 = vpop.f32.mrf.mxu0
  %v3898 = vadd.f32 0.0, %v3897
  %v3899 = vpop.f32.mrf.mxu0
  %v3900 = vpop.f32.mrf.mxu0
  %v3901 = vadd.f32 0.0, %v3900
  %v3902 = vpop.f32.mrf.mxu0
  %3903 = vmatprep.mubr.bf16.mxu0 0
  %3904 = vmatmul.mubr.bf16.gmra.mxu0 %v2430
  %v3905 = vpop.f32.mrf.mxu0
  %v3906 = vadd.f32 0.0, %v3905
  %v3907 = vpop.f32.mrf.mxu0
  %v3908 = vpop.f32.mrf.mxu0
  %v3909 = vadd.f32 0.0, %v3908
  %v3910 = vpop.f32.mrf.mxu0
  %3911 = vmatprep.mubr.bf16.mxu0 0
  %3912 = vmatmul.mubr.bf16.gmra.mxu0 %v2433
  %v3913 = vpop.f32.mrf.mxu0
  %v3914 = vadd.f32 0.0, %v3913
  %v3915 = vpop.f32.mrf.mxu0
  %v3916 = vpop.f32.mrf.mxu0
  %v3917 = vadd.f32 0.0, %v3916
  %v3918 = vpop.f32.mrf.mxu0
  %3919 = vmatprep.mubr.bf16.mxu0 0
  %3920 = vmatmul.mubr.bf16.gmra.mxu0 %v2436
  %v3921 = vpop.f32.mrf.mxu0
  %v3922 = vadd.f32 0.0, %v3921
  %v3923 = vpop.f32.mrf.mxu0
  %v3924 = vpop.f32.mrf.mxu0
  %v3925 = vadd.f32 0.0, %v3924
  %v3926 = vpop.f32.mrf.mxu0
  %3927 = vmatprep.mubr.bf16.mxu0 0
  %3928 = vmatmul.mubr.bf16.gmra.mxu0 %v2439
  %v3929 = vpop.f32.mrf.mxu0
  %v3930 = vadd.f32 0.0, %v3929
  %v3931 = vpop.f32.mrf.mxu0
  %v3932 = vpop.f32.mrf.mxu0
  %v3933 = vadd.f32 0.0, %v3932
  %v3934 = vpop.f32.mrf.mxu0
  %3935 = vmatprep.mubr.bf16.mxu0 0
  %3936 = vmatmul.mubr.bf16.gmra.mxu0 %v2442
  %v3937 = vpop.f32.mrf.mxu0
  %v3938 = vadd.f32 0.0, %v3937
  %v3939 = vpop.f32.mrf.mxu0
  %v3940 = vpop.f32.mrf.mxu0
  %v3941 = vadd.f32 0.0, %v3940
  %v3942 = vpop.f32.mrf.mxu0
  %3943 = vmatprep.mubr.bf16.mxu0 0
  %3944 = vmatmul.mubr.bf16.gmra.mxu0 %v2445
  %v3945 = vpop.f32.mrf.mxu0
  %v3946 = vadd.f32 0.0, %v3945
  %v3947 = vpop.f32.mrf.mxu0
  %v3948 = vpop.f32.mrf.mxu0
  %v3949 = vadd.f32 0.0, %v3948
  %v3950 = vpop.f32.mrf.mxu0
  %3951 = vmatprep.mubr.bf16.mxu0 0
  %3952 = vmatmul.mubr.bf16.gmra.mxu0 %v2448
  %v3953 = vpop.f32.mrf.mxu0
  %v3954 = vadd.f32 0.0, %v3953
  %v3955 = vpop.f32.mrf.mxu0
  %v3956 = vpop.f32.mrf.mxu0
  %v3957 = vadd.f32 0.0, %v3956
  %v3958 = vpop.f32.mrf.mxu0
  %3959 = vmatprep.mubr.bf16.mxu0 0
  %3960 = vmatmul.mubr.bf16.gmra.mxu0 %v2451
  %v3961 = vpop.f32.mrf.mxu0
  %v3962 = vadd.f32 0.0, %v3961
  %v3963 = vpop.f32.mrf.mxu0
  %v3964 = vpop.f32.mrf.mxu0
  %v3965 = vadd.f32 0.0, %v3964
  %v3966 = vpop.f32.mrf.mxu0
  %3967 = vmatprep.mubr.bf16.mxu0 0
  %3968 = vmatmul.mubr.bf16.gmra.mxu0 %v2454
  %v3969 = vpop.f32.mrf.mxu0
  %v3970 = vadd.f32 0.0, %v3969
  %v3971 = vpop.f32.mrf.mxu0
  %v3972 = vpop.f32.mrf.mxu0
  %v3973 = vadd.f32 0.0, %v3972
  %v3974 = vpop.f32.mrf.mxu0
  %3975 = vmatprep.mubr.bf16.mxu0 0
  %3976 = vmatmul.mubr.bf16.gmra.mxu0 %v2457
  %v3977 = vpop.f32.mrf.mxu0
  %v3978 = vadd.f32 0.0, %v3977
  %v3979 = vpop.f32.mrf.mxu0
  %v3980 = vpop.f32.mrf.mxu0
  %v3981 = vadd.f32 0.0, %v3980
  %v3982 = vpop.f32.mrf.mxu0
  %3983 = vmatprep.mubr.bf16.mxu0 0
  %3984 = vmatmul.mubr.bf16.gmra.mxu0 %v2460
  %v3985 = vpop.f32.mrf.mxu0
  %v3986 = vadd.f32 0.0, %v3985
  %v3987 = vpop.f32.mrf.mxu0
  %v3988 = vpop.f32.mrf.mxu0
  %v3989 = vadd.f32 0.0, %v3988
  %v3990 = vpop.f32.mrf.mxu0
  %3991 = vmatprep.mubr.bf16.mxu0 0
  %3992 = vmatmul.mubr.bf16.gmra.mxu0 %v2463
  %v3993 = vpop.f32.mrf.mxu0
  %v3994 = vadd.f32 0.0, %v3993
  %v3995 = vpop.f32.mrf.mxu0
  %v3996 = vpop.f32.mrf.mxu0
  %v3997 = vadd.f32 0.0, %v3996
  %v3998 = vpop.f32.mrf.mxu0
  %3999 = vmatprep.mubr.bf16.mxu0 0
  %4000 = vmatmul.mubr.bf16.gmra.mxu0 %v2466
  %v4001 = vpop.f32.mrf.mxu0
  %v4002 = vadd.f32 0.0, %v4001
  %v4003 = vpop.f32.mrf.mxu0
  %v4004 = vpop.f32.mrf.mxu0
  %v4005 = vadd.f32 0.0, %v4004
  %v4006 = vpop.f32.mrf.mxu0
  %4007 = vmatprep.mubr.bf16.mxu0 0
  %4008 = vmatmul.mubr.bf16.gmra.mxu0 %v3725
  %v4009 = vpop.f32.mrf.mxu0
  %v4010 = vadd.f32 0.0, %v4009
  %v4011 = vpop.f32.mrf.mxu0
  %v4012 = vpop.f32.mrf.mxu0
  %v4013 = vadd.f32 0.0, %v4012
  %v4014 = vpop.f32.mrf.mxu0
  %4015 = vdwg.mxu0
  %v4016 = vadd.f32 %v3603, %v3762
  %v4017 = vadd.f32 %v3604, %v3765
  %v4018 = vadd.f32 %v3605, %v3770
  %v4019 = vadd.f32 %v3606, %v3773
  %v4020 = vadd.f32 %v3607, %v3778
  %v4021 = vadd.f32 %v3608, %v3781
  %v4022 = vadd.f32 %v3609, %v3786
  %v4023 = vadd.f32 %v3610, %v3789
  %v4024 = vadd.f32 %v3611, %v3794
  %v4025 = vadd.f32 %v3612, %v3797
  %v4026 = vadd.f32 %v3613, %v3802
  %v4027 = vadd.f32 %v3614, %v3805
  %v4028 = vadd.f32 %v3615, %v3810
  %v4029 = vadd.f32 %v3616, %v3813
  %v4030 = vadd.f32 %v3617, %v3818
  %v4031 = vadd.f32 %v3618, %v3821
  %v4032 = vadd.f32 %v3619, %v3826
  %v4033 = vadd.f32 %v3620, %v3829
  %v4034 = vadd.f32 %v3621, %v3834
  %v4035 = vadd.f32 %v3622, %v3837
  %v4036 = vadd.f32 %v3623, %v3842
  %v4037 = vadd.f32 %v3624, %v3845
  %v4038 = vadd.f32 %v3625, %v3850
  %v4039 = vadd.f32 %v3626, %v3853
  %v4040 = vadd.f32 %v3627, %v3858
  %v4041 = vadd.f32 %v3628, %v3861
  %v4042 = vadd.f32 %v3629, %v3866
  %v4043 = vadd.f32 %v3630, %v3869
  %v4044 = vadd.f32 %v3631, %v3874
  %v4045 = vadd.f32 %v3632, %v3877
  %v4046 = vadd.f32 %v3633, %v3882
  %v4047 = vadd.f32 %v3634, %v3885
  %v4048 = vadd.f32 %v3635, %v3890
  %v4049 = vadd.f32 %v3636, %v3893
  %v4050 = vadd.f32 %v3637, %v3898
  %v4051 = vadd.f32 %v3638, %v3901
  %v4052 = vadd.f32 %v3639, %v3906
  %v4053 = vadd.f32 %v3640, %v3909
  %v4054 = vadd.f32 %v3641, %v3914
  %v4055 = vadd.f32 %v3642, %v3917
  %v4056 = vadd.f32 %v3643, %v3922
  %v4057 = vadd.f32 %v3644, %v3925
  %v4058 = vadd.f32 %v3645, %v3930
  %v4059 = vadd.f32 %v3646, %v3933
  %v4060 = vadd.f32 %v3647, %v3938
  %v4061 = vadd.f32 %v3648, %v3941
  %v4062 = vadd.f32 %v3649, %v3946
  %v4063 = vadd.f32 %v3650, %v3949
  %v4064 = vadd.f32 %v3651, %v3954
  %v4065 = vadd.f32 %v3652, %v3957
  %v4066 = vadd.f32 %v3653, %v3962
  %v4067 = vadd.f32 %v3654, %v3965
  %v4068 = vadd.f32 %v3655, %v3970
  %v4069 = vadd.f32 %v3656, %v3973
  %v4070 = vadd.f32 %v3657, %v3978
  %v4071 = vadd.f32 %v3658, %v3981
  %v4072 = vadd.f32 %v3659, %v3986
  %v4073 = vadd.f32 %v3660, %v3989
  %v4074 = vadd.f32 %v3661, %v3994
  %v4075 = vadd.f32 %v3662, %v3997
  %v4076 = vadd.f32 %v3663, %v4002
  %v4077 = vadd.f32 %v3664, %v4005
  %v4078 = vadd.f32 %v3665, %v4010
  %v4079 = vadd.f32 %v3666, %v4013
  %v4080 = vld [vmem:[%s1 + $0xc0] sm:$0xf]
  %v4081 = vld [vmem:[%s1 + $0xc4] sm:$0xf]
  %v4082 = vld [vmem:[%s1 + $0xc8] sm:$0xf]
  %v4083 = vld [vmem:[%s1 + $0xcc] sm:$0xf]
  %v4084 = vld [vmem:[%s1 + $0xd0] sm:$0xf]
  %v4085 = vld [vmem:[%s1 + $0xd4] sm:$0xf]
  %v4086 = vld [vmem:[%s1 + $0xd8] sm:$0xf]
  %v4087 = vld [vmem:[%s1 + $0xdc] sm:$0xf]
  %v4092 = vunpack.c.l.b16 %v66
  %v4093 = vunpack.c.l.b16 %v67
  %v4094 = vunpack.c.l.b16 %v120
  %v4095 = vunpack.c.l.b16 %v121
  %v4096 = vpack.c.b16 %v4093, %v4092
  %v4097 = vpack.c.b16 %v4095, %v4094
  %v4106 = vunpack.c.l.b16 %v4080
  %v4107 = vunpack.c.l.b16 %v4081
  %v4108 = vunpack.c.l.b16 %v4082
  %v4109 = vunpack.c.l.b16 %v4083
  %v4110 = vunpack.c.l.b16 %v4084
  %v4111 = vunpack.c.l.b16 %v4085
  %v4112 = vunpack.c.l.b16 %v4086
  %v4113 = vunpack.c.l.b16 %v4087
  %v4114 = vpack.c.b16 %v4107, %v4106
  %v4115 = vpack.c.b16 %v4109, %v4108
  %v4116 = vpack.c.b16 %v4111, %v4110
  %v4117 = vpack.c.b16 %v4113, %v4112
  %v4123 = vsel %vm1030, %v4096, 0
  %v4126 = vsel %vm1030, %v4097, 0
  %4128 = vmatprep.subr.bf16.mxu0 0
  %4129 = vmatpush1.bf16.msra.mxu0 0
  %4130 = vmatprep.subr.bf16.mxu0 0
  %4131 = vmatpush1.bf16.msra.mxu0 0
  %4132 = vmatprep.subr.bf16.mxu0 0
  %4133 = vmatpush1.bf16.msra.mxu0 0
  %4134 = vmatprep.subr.bf16.mxu0 0
  %4135 = vmatpush1.bf16.msra.mxu0 0
  %4136 = vmatprep.subr.bf16.mxu0 0
  %4137 = vmatpush1.bf16.msra.mxu0 %v4117
  %4138 = vmatprep.subr.bf16.mxu0 0
  %4139 = vmatpush1.bf16.msra.mxu0 %v4116
  %4140 = vmatprep.subr.bf16.mxu0 0
  %4141 = vmatpush1.bf16.msra.mxu0 %v4115
  %4142 = vmatprep.subr.bf16.mxu0 0
  %4143 = vmatpush1.bf16.msra.mxu0 %v4114
  %4144 = vmatprep.subr.bf16.mxu0 0
  %4145 = vmatpush2.bf16.msra.mxu0 0
  %4146 = vmatprep.subr.bf16.mxu0 0
  %4147 = vmatpush2.bf16.msra.mxu0 0
  %4148 = vmatprep.subr.bf16.mxu0 0
  %4149 = vmatpush2.bf16.msra.mxu0 0
  %4150 = vmatprep.subr.bf16.mxu0 0
  %4151 = vmatpush2.bf16.msra.mxu0 0
  %4152 = vmatprep.subr.bf16.mxu0 0
  %4153 = vmatpush2.bf16.msra.mxu0 0
  %4154 = vmatprep.subr.bf16.mxu0 0
  %4155 = vmatpush2.bf16.msra.mxu0 0
  %4156 = vmatprep.subr.bf16.mxu0 0
  %4157 = vmatpush2.bf16.msra.mxu0 0
  %4158 = vmatprep.subr.bf16.mxu0 0
  %4159 = vmatpush2.bf16.msra.mxu0 0
  %4160 = vmatprep.mubr.bf16.mxu0 0
  %4161 = vmatmul.mubr.bf16.gmra.mxu0 %v1607
  %v4162 = vpop.f32.mrf.mxu0
  %v4163 = vadd.f32 0.0, %v4162
  %v4164 = vpop.f32.mrf.mxu0
  %v4165 = vpop.f32.mrf.mxu0
  %v4166 = vadd.f32 0.0, %v4165
  %v4167 = vpop.f32.mrf.mxu0
  %4168 = vmatprep.mubr.bf16.mxu0 0
  %4169 = vmatmul.mubr.bf16.gmra.mxu0 %v1610
  %v4170 = vpop.f32.mrf.mxu0
  %v4171 = vadd.f32 0.0, %v4170
  %v4172 = vpop.f32.mrf.mxu0
  %v4173 = vpop.f32.mrf.mxu0
  %v4174 = vadd.f32 0.0, %v4173
  %v4175 = vpop.f32.mrf.mxu0
  %4176 = vmatprep.mubr.bf16.mxu0 0
  %4177 = vmatmul.mubr.bf16.gmra.mxu0 %v1613
  %v4178 = vpop.f32.mrf.mxu0
  %v4179 = vadd.f32 0.0, %v4178
  %v4180 = vpop.f32.mrf.mxu0
  %v4181 = vpop.f32.mrf.mxu0
  %v4182 = vadd.f32 0.0, %v4181
  %v4183 = vpop.f32.mrf.mxu0
  %4184 = vmatprep.mubr.bf16.mxu0 0
  %4185 = vmatmul.mubr.bf16.gmra.mxu0 %v1616
  %v4186 = vpop.f32.mrf.mxu0
  %v4187 = vadd.f32 0.0, %v4186
  %v4188 = vpop.f32.mrf.mxu0
  %v4189 = vpop.f32.mrf.mxu0
  %v4190 = vadd.f32 0.0, %v4189
  %v4191 = vpop.f32.mrf.mxu0
  %4192 = vmatprep.mubr.bf16.mxu0 0
  %4193 = vmatmul.mubr.bf16.gmra.mxu0 %v1619
  %v4194 = vpop.f32.mrf.mxu0
  %v4195 = vadd.f32 0.0, %v4194
  %v4196 = vpop.f32.mrf.mxu0
  %v4197 = vpop.f32.mrf.mxu0
  %v4198 = vadd.f32 0.0, %v4197
  %v4199 = vpop.f32.mrf.mxu0
  %4200 = vmatprep.mubr.bf16.mxu0 0
  %4201 = vmatmul.mubr.bf16.gmra.mxu0 %v1622
  %v4202 = vpop.f32.mrf.mxu0
  %v4203 = vadd.f32 0.0, %v4202
  %v4204 = vpop.f32.mrf.mxu0
  %v4205 = vpop.f32.mrf.mxu0
  %v4206 = vadd.f32 0.0, %v4205
  %v4207 = vpop.f32.mrf.mxu0
  %4208 = vmatprep.mubr.bf16.mxu0 0
  %4209 = vmatmul.mubr.bf16.gmra.mxu0 %v1625
  %v4210 = vpop.f32.mrf.mxu0
  %v4211 = vadd.f32 0.0, %v4210
  %v4212 = vpop.f32.mrf.mxu0
  %v4213 = vpop.f32.mrf.mxu0
  %v4214 = vadd.f32 0.0, %v4213
  %v4215 = vpop.f32.mrf.mxu0
  %4216 = vmatprep.mubr.bf16.mxu0 0
  %4217 = vmatmul.mubr.bf16.gmra.mxu0 %v1628
  %v4218 = vpop.f32.mrf.mxu0
  %v4219 = vadd.f32 0.0, %v4218
  %v4220 = vpop.f32.mrf.mxu0
  %v4221 = vpop.f32.mrf.mxu0
  %v4222 = vadd.f32 0.0, %v4221
  %v4223 = vpop.f32.mrf.mxu0
  %4224 = vmatprep.mubr.bf16.mxu0 0
  %4225 = vmatmul.mubr.bf16.gmra.mxu0 %v1631
  %v4226 = vpop.f32.mrf.mxu0
  %v4227 = vadd.f32 0.0, %v4226
  %v4228 = vpop.f32.mrf.mxu0
  %v4229 = vpop.f32.mrf.mxu0
  %v4230 = vadd.f32 0.0, %v4229
  %v4231 = vpop.f32.mrf.mxu0
  %4232 = vmatprep.mubr.bf16.mxu0 0
  %4233 = vmatmul.mubr.bf16.gmra.mxu0 %v1634
  %v4234 = vpop.f32.mrf.mxu0
  %v4235 = vadd.f32 0.0, %v4234
  %v4236 = vpop.f32.mrf.mxu0
  %v4237 = vpop.f32.mrf.mxu0
  %v4238 = vadd.f32 0.0, %v4237
  %v4239 = vpop.f32.mrf.mxu0
  %4240 = vmatprep.mubr.bf16.mxu0 0
  %4241 = vmatmul.mubr.bf16.gmra.mxu0 %v1637
  %v4242 = vpop.f32.mrf.mxu0
  %v4243 = vadd.f32 0.0, %v4242
  %v4244 = vpop.f32.mrf.mxu0
  %v4245 = vpop.f32.mrf.mxu0
  %v4246 = vadd.f32 0.0, %v4245
  %v4247 = vpop.f32.mrf.mxu0
  %4248 = vmatprep.mubr.bf16.mxu0 0
  %4249 = vmatmul.mubr.bf16.gmra.mxu0 %v1640
  %v4250 = vpop.f32.mrf.mxu0
  %v4251 = vadd.f32 0.0, %v4250
  %v4252 = vpop.f32.mrf.mxu0
  %v4253 = vpop.f32.mrf.mxu0
  %v4254 = vadd.f32 0.0, %v4253
  %v4255 = vpop.f32.mrf.mxu0
  %4256 = vmatprep.mubr.bf16.mxu0 0
  %4257 = vmatmul.mubr.bf16.gmra.mxu0 %v1643
  %v4258 = vpop.f32.mrf.mxu0
  %v4259 = vadd.f32 0.0, %v4258
  %v4260 = vpop.f32.mrf.mxu0
  %v4261 = vpop.f32.mrf.mxu0
  %v4262 = vadd.f32 0.0, %v4261
  %v4263 = vpop.f32.mrf.mxu0
  %4264 = vmatprep.mubr.bf16.mxu0 0
  %4265 = vmatmul.mubr.bf16.gmra.mxu0 %v1646
  %v4266 = vpop.f32.mrf.mxu0
  %v4267 = vadd.f32 0.0, %v4266
  %v4268 = vpop.f32.mrf.mxu0
  %v4269 = vpop.f32.mrf.mxu0
  %v4270 = vadd.f32 0.0, %v4269
  %v4271 = vpop.f32.mrf.mxu0
  %4272 = vmatprep.mubr.bf16.mxu0 0
  %4273 = vmatmul.mubr.bf16.gmra.mxu0 %v2864
  %v4274 = vpop.f32.mrf.mxu0
  %v4275 = vadd.f32 0.0, %v4274
  %v4276 = vpop.f32.mrf.mxu0
  %v4277 = vpop.f32.mrf.mxu0
  %v4278 = vadd.f32 0.0, %v4277
  %v4279 = vpop.f32.mrf.mxu0
  %4280 = vmatprep.mubr.bf16.mxu0 0
  %4281 = vmatmul.mubr.bf16.gmra.mxu0 %v4123
  %v4282 = vpop.f32.mrf.mxu0
  %v4283 = vadd.f32 0.0, %v4282
  %v4284 = vpop.f32.mrf.mxu0
  %v4285 = vpop.f32.mrf.mxu0
  %v4286 = vadd.f32 0.0, %v4285
  %v4287 = vpop.f32.mrf.mxu0
  %4288 = vmatprep.mubr.bf16.mxu0 0
  %4289 = vmatmul.mubr.bf16.gmra.mxu0 %v1655
  %v4290 = vpop.f32.mrf.mxu0
  %v4291 = vadd.f32 0.0, %v4290
  %v4292 = vpop.f32.mrf.mxu0
  %v4293 = vpop.f32.mrf.mxu0
  %v4294 = vadd.f32 0.0, %v4293
  %v4295 = vpop.f32.mrf.mxu0
  %4296 = vmatprep.mubr.bf16.mxu0 0
  %4297 = vmatmul.mubr.bf16.gmra.mxu0 %v1658
  %v4298 = vpop.f32.mrf.mxu0
  %v4299 = vadd.f32 0.0, %v4298
  %v4300 = vpop.f32.mrf.mxu0
  %v4301 = vpop.f32.mrf.mxu0
  %v4302 = vadd.f32 0.0, %v4301
  %v4303 = vpop.f32.mrf.mxu0
  %4304 = vmatprep.mubr.bf16.mxu0 0
  %4305 = vmatmul.mubr.bf16.gmra.mxu0 %v1661
  %v4306 = vpop.f32.mrf.mxu0
  %v4307 = vadd.f32 0.0, %v4306
  %v4308 = vpop.f32.mrf.mxu0
  %v4309 = vpop.f32.mrf.mxu0
  %v4310 = vadd.f32 0.0, %v4309
  %v4311 = vpop.f32.mrf.mxu0
  %4312 = vmatprep.mubr.bf16.mxu0 0
  %4313 = vmatmul.mubr.bf16.gmra.mxu0 %v1664
  %v4314 = vpop.f32.mrf.mxu0
  %v4315 = vadd.f32 0.0, %v4314
  %v4316 = vpop.f32.mrf.mxu0
  %v4317 = vpop.f32.mrf.mxu0
  %v4318 = vadd.f32 0.0, %v4317
  %v4319 = vpop.f32.mrf.mxu0
  %4320 = vmatprep.mubr.bf16.mxu0 0
  %4321 = vmatmul.mubr.bf16.gmra.mxu0 %v1667
  %v4322 = vpop.f32.mrf.mxu0
  %v4323 = vadd.f32 0.0, %v4322
  %v4324 = vpop.f32.mrf.mxu0
  %v4325 = vpop.f32.mrf.mxu0
  %v4326 = vadd.f32 0.0, %v4325
  %v4327 = vpop.f32.mrf.mxu0
  %4328 = vmatprep.mubr.bf16.mxu0 0
  %4329 = vmatmul.mubr.bf16.gmra.mxu0 %v1670
  %v4330 = vpop.f32.mrf.mxu0
  %v4331 = vadd.f32 0.0, %v4330
  %v4332 = vpop.f32.mrf.mxu0
  %v4333 = vpop.f32.mrf.mxu0
  %v4334 = vadd.f32 0.0, %v4333
  %v4335 = vpop.f32.mrf.mxu0
  %4336 = vmatprep.mubr.bf16.mxu0 0
  %4337 = vmatmul.mubr.bf16.gmra.mxu0 %v1673
  %v4338 = vpop.f32.mrf.mxu0
  %v4339 = vadd.f32 0.0, %v4338
  %v4340 = vpop.f32.mrf.mxu0
  %v4341 = vpop.f32.mrf.mxu0
  %v4342 = vadd.f32 0.0, %v4341
  %v4343 = vpop.f32.mrf.mxu0
  %4344 = vmatprep.mubr.bf16.mxu0 0
  %4345 = vmatmul.mubr.bf16.gmra.mxu0 %v1676
  %v4346 = vpop.f32.mrf.mxu0
  %v4347 = vadd.f32 0.0, %v4346
  %v4348 = vpop.f32.mrf.mxu0
  %v4349 = vpop.f32.mrf.mxu0
  %v4350 = vadd.f32 0.0, %v4349
  %v4351 = vpop.f32.mrf.mxu0
  %4352 = vmatprep.mubr.bf16.mxu0 0
  %4353 = vmatmul.mubr.bf16.gmra.mxu0 %v1679
  %v4354 = vpop.f32.mrf.mxu0
  %v4355 = vadd.f32 0.0, %v4354
  %v4356 = vpop.f32.mrf.mxu0
  %v4357 = vpop.f32.mrf.mxu0
  %v4358 = vadd.f32 0.0, %v4357
  %v4359 = vpop.f32.mrf.mxu0
  %4360 = vmatprep.mubr.bf16.mxu0 0
  %4361 = vmatmul.mubr.bf16.gmra.mxu0 %v1682
  %v4362 = vpop.f32.mrf.mxu0
  %v4363 = vadd.f32 0.0, %v4362
  %v4364 = vpop.f32.mrf.mxu0
  %v4365 = vpop.f32.mrf.mxu0
  %v4366 = vadd.f32 0.0, %v4365
  %v4367 = vpop.f32.mrf.mxu0
  %4368 = vmatprep.mubr.bf16.mxu0 0
  %4369 = vmatmul.mubr.bf16.gmra.mxu0 %v1685
  %v4370 = vpop.f32.mrf.mxu0
  %v4371 = vadd.f32 0.0, %v4370
  %v4372 = vpop.f32.mrf.mxu0
  %v4373 = vpop.f32.mrf.mxu0
  %v4374 = vadd.f32 0.0, %v4373
  %v4375 = vpop.f32.mrf.mxu0
  %4376 = vmatprep.mubr.bf16.mxu0 0
  %4377 = vmatmul.mubr.bf16.gmra.mxu0 %v1688
  %v4378 = vpop.f32.mrf.mxu0
  %v4379 = vadd.f32 0.0, %v4378
  %v4380 = vpop.f32.mrf.mxu0
  %v4381 = vpop.f32.mrf.mxu0
  %v4382 = vadd.f32 0.0, %v4381
  %v4383 = vpop.f32.mrf.mxu0
  %4384 = vmatprep.mubr.bf16.mxu0 0
  %4385 = vmatmul.mubr.bf16.gmra.mxu0 %v1691
  %v4386 = vpop.f32.mrf.mxu0
  %v4387 = vadd.f32 0.0, %v4386
  %v4388 = vpop.f32.mrf.mxu0
  %v4389 = vpop.f32.mrf.mxu0
  %v4390 = vadd.f32 0.0, %v4389
  %v4391 = vpop.f32.mrf.mxu0
  %4392 = vmatprep.mubr.bf16.mxu0 0
  %4393 = vmatmul.mubr.bf16.gmra.mxu0 %v1694
  %v4394 = vpop.f32.mrf.mxu0
  %v4395 = vadd.f32 0.0, %v4394
  %v4396 = vpop.f32.mrf.mxu0
  %v4397 = vpop.f32.mrf.mxu0
  %v4398 = vadd.f32 0.0, %v4397
  %v4399 = vpop.f32.mrf.mxu0
  %4400 = vmatprep.mubr.bf16.mxu0 0
  %4401 = vmatmul.mubr.bf16.gmra.mxu0 %v2867
  %v4402 = vpop.f32.mrf.mxu0
  %v4403 = vadd.f32 0.0, %v4402
  %v4404 = vpop.f32.mrf.mxu0
  %v4405 = vpop.f32.mrf.mxu0
  %v4406 = vadd.f32 0.0, %v4405
  %v4407 = vpop.f32.mrf.mxu0
  %4408 = vmatprep.mubr.bf16.mxu0 0
  %4409 = vmatmul.mubr.bf16.gmra.mxu0 %v4126
  %v4410 = vpop.f32.mrf.mxu0
  %v4411 = vadd.f32 0.0, %v4410
  %v4412 = vpop.f32.mrf.mxu0
  %v4413 = vpop.f32.mrf.mxu0
  %v4414 = vadd.f32 0.0, %v4413
  %v4415 = vpop.f32.mrf.mxu0
  %4416 = vdwg.mxu0
  %v4417 = vadd.f32 %v4016, %v4163
  %v4418 = vadd.f32 %v4017, %v4166
  %v4419 = vadd.f32 %v4018, %v4171
  %v4420 = vadd.f32 %v4019, %v4174
  %v4421 = vadd.f32 %v4020, %v4179
  %v4422 = vadd.f32 %v4021, %v4182
  %v4423 = vadd.f32 %v4022, %v4187
  %v4424 = vadd.f32 %v4023, %v4190
  %v4425 = vadd.f32 %v4024, %v4195
  %v4426 = vadd.f32 %v4025, %v4198
  %v4427 = vadd.f32 %v4026, %v4203
  %v4428 = vadd.f32 %v4027, %v4206
  %v4429 = vadd.f32 %v4028, %v4211
  %v4430 = vadd.f32 %v4029, %v4214
  %v4431 = vadd.f32 %v4030, %v4219
  %v4432 = vadd.f32 %v4031, %v4222
  %v4433 = vadd.f32 %v4032, %v4227
  %v4434 = vadd.f32 %v4033, %v4230
  %v4435 = vadd.f32 %v4034, %v4235
  %v4436 = vadd.f32 %v4035, %v4238
  %v4437 = vadd.f32 %v4036, %v4243
  %v4438 = vadd.f32 %v4037, %v4246
  %v4439 = vadd.f32 %v4038, %v4251
  %v4440 = vadd.f32 %v4039, %v4254
  %v4441 = vadd.f32 %v4040, %v4259
  %v4442 = vadd.f32 %v4041, %v4262
  %v4443 = vadd.f32 %v4042, %v4267
  %v4444 = vadd.f32 %v4043, %v4270
  %v4445 = vadd.f32 %v4044, %v4275
  %v4446 = vadd.f32 %v4045, %v4278
  %v4447 = vadd.f32 %v4046, %v4283
  %v4448 = vadd.f32 %v4047, %v4286
  %v4449 = vadd.f32 %v4048, %v4291
  %v4450 = vadd.f32 %v4049, %v4294
  %v4451 = vadd.f32 %v4050, %v4299
  %v4452 = vadd.f32 %v4051, %v4302
  %v4453 = vadd.f32 %v4052, %v4307
  %v4454 = vadd.f32 %v4053, %v4310
  %v4455 = vadd.f32 %v4054, %v4315
  %v4456 = vadd.f32 %v4055, %v4318
  %v4457 = vadd.f32 %v4056, %v4323
  %v4458 = vadd.f32 %v4057, %v4326
  %v4459 = vadd.f32 %v4058, %v4331
  %v4460 = vadd.f32 %v4059, %v4334
  %v4461 = vadd.f32 %v4060, %v4339
  %v4462 = vadd.f32 %v4061, %v4342
  %v4463 = vadd.f32 %v4062, %v4347
  %v4464 = vadd.f32 %v4063, %v4350
  %v4465 = vadd.f32 %v4064, %v4355
  %v4466 = vadd.f32 %v4065, %v4358
  %v4467 = vadd.f32 %v4066, %v4363
  %v4468 = vadd.f32 %v4067, %v4366
  %v4469 = vadd.f32 %v4068, %v4371
  %v4470 = vadd.f32 %v4069, %v4374
  %v4471 = vadd.f32 %v4070, %v4379
  %v4472 = vadd.f32 %v4071, %v4382
  %v4473 = vadd.f32 %v4072, %v4387
  %v4474 = vadd.f32 %v4073, %v4390
  %v4475 = vadd.f32 %v4074, %v4395
  %v4476 = vadd.f32 %v4075, %v4398
  %v4477 = vadd.f32 %v4076, %v4403
  %v4478 = vadd.f32 %v4077, %v4406
  %v4479 = vadd.f32 %v4078, %v4411
  %v4480 = vadd.f32 %v4079, %v4414
  %v4482 = vshrl.u32 %v66, 16
  %v4484 = vrot.slane %v4482, 4
  %v4485 = vshll.u32 %v66, 16
  %v4487 = vrot.slane %v4485, 5
  %v4488 = vor.u32 %v4484, %v4487
  %v4489 = vrot.slane %v4488, 4
  %v4491 = vshll.u32 %v67, 16
  %v4493 = vrot.slane %v4491, 5
  %v4494 = vsel %vm133, %v4489, %v4493
  %v4495 = vshrl.u32 %v67, 16
  %v4497 = vrot.slane %v4495, 4
  %v4498 = vor.u32 %v4497, %v4493
  %v4499 = vrot.slane %v4498, 4
  %v4501 = vshll.u32 %v68, 16
  %v4503 = vrot.slane %v4501, 5
  %v4504 = vsel %vm133, %v4499, %v4503
  %v4506 = vshrl.u32 %v120, 16
  %v4508 = vrot.slane %v4506, 4
  %v4509 = vshll.u32 %v120, 16
  %v4511 = vrot.slane %v4509, 5
  %v4512 = vor.u32 %v4508, %v4511
  %v4513 = vrot.slane %v4512, 4
  %v4515 = vshll.u32 %v121, 16
  %v4517 = vrot.slane %v4515, 5
  %v4518 = vsel %vm133, %v4513, %v4517
  %v4519 = vshrl.u32 %v121, 16
  %v4521 = vrot.slane %v4519, 4
  %v4522 = vor.u32 %v4521, %v4517
  %v4523 = vrot.slane %v4522, 4
  %v4525 = vshll.u32 %v122, 16
  %v4527 = vrot.slane %v4525, 5
  %v4528 = vsel %vm133, %v4523, %v4527
  %v4529 = vld [vmem:[%s1 + $0xe0] sm:$0xf]
  %v4530 = vld [vmem:[%s1 + $0xe4] sm:$0xf]
  %v4531 = vld [vmem:[%s1 + $0xe8] sm:$0xf]
  %v4532 = vld [vmem:[%s1 + $0xec] sm:$0xf]
  %v4533 = vld [vmem:[%s1 + $0xf0] sm:$0xf]
  %v4534 = vld [vmem:[%s1 + $0xf4] sm:$0xf]
  %v4535 = vld [vmem:[%s1 + $0xf8] sm:$0xf]
  %v4536 = vld [vmem:[%s1 + $0xfc] sm:$0xf]
  %v4537 = vunpack.c.l.b16 %v4494
  %v4538 = vunpack.c.l.b16 %v4504
  %v4539 = vunpack.c.l.b16 %v4518
  %v4540 = vunpack.c.l.b16 %v4528
  %v4541 = vpack.c.b16 %v4538, %v4537
  %v4542 = vpack.c.b16 %v4540, %v4539
  %v4551 = vunpack.c.l.b16 %v4529
  %v4552 = vunpack.c.l.b16 %v4530
  %v4553 = vunpack.c.l.b16 %v4531
  %v4554 = vunpack.c.l.b16 %v4532
  %v4555 = vunpack.c.l.b16 %v4533
  %v4556 = vunpack.c.l.b16 %v4534
  %v4557 = vunpack.c.l.b16 %v4535
  %v4558 = vunpack.c.l.b16 %v4536
  %v4559 = vpack.c.b16 %v4552, %v4551
  %v4560 = vpack.c.b16 %v4554, %v4553
  %v4561 = vpack.c.b16 %v4556, %v4555
  %v4562 = vpack.c.b16 %v4558, %v4557
  %v4568 = vsel %vm1030, %v4541, 0
  %v4571 = vsel %vm1030, %v4542, 0
  %4573 = vmatprep.subr.bf16.mxu0 0
  %4574 = vmatpush1.bf16.msra.mxu0 0
  %4575 = vmatprep.subr.bf16.mxu0 0
  %4576 = vmatpush1.bf16.msra.mxu0 0
  %4577 = vmatprep.subr.bf16.mxu0 0
  %4578 = vmatpush1.bf16.msra.mxu0 0
  %4579 = vmatprep.subr.bf16.mxu0 0
  %4580 = vmatpush1.bf16.msra.mxu0 0
  %4581 = vmatprep.subr.bf16.mxu0 0
  %4582 = vmatpush1.bf16.msra.mxu0 %v4562
  %4583 = vmatprep.subr.bf16.mxu0 0
  %4584 = vmatpush1.bf16.msra.mxu0 %v4561
  %4585 = vmatprep.subr.bf16.mxu0 0
  %4586 = vmatpush1.bf16.msra.mxu0 %v4560
  %4587 = vmatprep.subr.bf16.mxu0 0
  %4588 = vmatpush1.bf16.msra.mxu0 %v4559
  %4589 = vmatprep.subr.bf16.mxu0 0
  %4590 = vmatpush2.bf16.msra.mxu0 0
  %4591 = vmatprep.subr.bf16.mxu0 0
  %4592 = vmatpush2.bf16.msra.mxu0 0
  %4593 = vmatprep.subr.bf16.mxu0 0
  %4594 = vmatpush2.bf16.msra.mxu0 0
  %4595 = vmatprep.subr.bf16.mxu0 0
  %4596 = vmatpush2.bf16.msra.mxu0 0
  %4597 = vmatprep.subr.bf16.mxu0 0
  %4598 = vmatpush2.bf16.msra.mxu0 0
  %4599 = vmatprep.subr.bf16.mxu0 0
  %4600 = vmatpush2.bf16.msra.mxu0 0
  %4601 = vmatprep.subr.bf16.mxu0 0
  %4602 = vmatpush2.bf16.msra.mxu0 0
  %4603 = vmatprep.subr.bf16.mxu0 0
  %4604 = vmatpush2.bf16.msra.mxu0 0
  %4605 = vmatprep.mubr.bf16.mxu0 0
  %4606 = vmatmul.mubr.bf16.gmra.mxu0 %v1038
  %v4607 = vpop.f32.mrf.mxu0
  %v4608 = vadd.f32 0.0, %v4607
  %v4609 = vpop.f32.mrf.mxu0
  %v4610 = vpop.f32.mrf.mxu0
  %v4611 = vadd.f32 0.0, %v4610
  %v4612 = vpop.f32.mrf.mxu0
  %4613 = vmatprep.mubr.bf16.mxu0 0
  %4614 = vmatmul.mubr.bf16.gmra.mxu0 %v1041
  %v4615 = vpop.f32.mrf.mxu0
  %v4616 = vadd.f32 0.0, %v4615
  %v4617 = vpop.f32.mrf.mxu0
  %v4618 = vpop.f32.mrf.mxu0
  %v4619 = vadd.f32 0.0, %v4618
  %v4620 = vpop.f32.mrf.mxu0
  %4621 = vmatprep.mubr.bf16.mxu0 0
  %4622 = vmatmul.mubr.bf16.gmra.mxu0 %v1044
  %v4623 = vpop.f32.mrf.mxu0
  %v4624 = vadd.f32 0.0, %v4623
  %v4625 = vpop.f32.mrf.mxu0
  %v4626 = vpop.f32.mrf.mxu0
  %v4627 = vadd.f32 0.0, %v4626
  %v4628 = vpop.f32.mrf.mxu0
  %4629 = vmatprep.mubr.bf16.mxu0 0
  %4630 = vmatmul.mubr.bf16.gmra.mxu0 %v1047
  %v4631 = vpop.f32.mrf.mxu0
  %v4632 = vadd.f32 0.0, %v4631
  %v4633 = vpop.f32.mrf.mxu0
  %v4634 = vpop.f32.mrf.mxu0
  %v4635 = vadd.f32 0.0, %v4634
  %v4636 = vpop.f32.mrf.mxu0
  %4637 = vmatprep.mubr.bf16.mxu0 0
  %4638 = vmatmul.mubr.bf16.gmra.mxu0 %v1050
  %v4639 = vpop.f32.mrf.mxu0
  %v4640 = vadd.f32 0.0, %v4639
  %v4641 = vpop.f32.mrf.mxu0
  %v4642 = vpop.f32.mrf.mxu0
  %v4643 = vadd.f32 0.0, %v4642
  %v4644 = vpop.f32.mrf.mxu0
  %4645 = vmatprep.mubr.bf16.mxu0 0
  %4646 = vmatmul.mubr.bf16.gmra.mxu0 %v1053
  %v4647 = vpop.f32.mrf.mxu0
  %v4648 = vadd.f32 0.0, %v4647
  %v4649 = vpop.f32.mrf.mxu0
  %v4650 = vpop.f32.mrf.mxu0
  %v4651 = vadd.f32 0.0, %v4650
  %v4652 = vpop.f32.mrf.mxu0
  %4653 = vmatprep.mubr.bf16.mxu0 0
  %4654 = vmatmul.mubr.bf16.gmra.mxu0 %v1056
  %v4655 = vpop.f32.mrf.mxu0
  %v4656 = vadd.f32 0.0, %v4655
  %v4657 = vpop.f32.mrf.mxu0
  %v4658 = vpop.f32.mrf.mxu0
  %v4659 = vadd.f32 0.0, %v4658
  %v4660 = vpop.f32.mrf.mxu0
  %4661 = vmatprep.mubr.bf16.mxu0 0
  %4662 = vmatmul.mubr.bf16.gmra.mxu0 %v1059
  %v4663 = vpop.f32.mrf.mxu0
  %v4664 = vadd.f32 0.0, %v4663
  %v4665 = vpop.f32.mrf.mxu0
  %v4666 = vpop.f32.mrf.mxu0
  %v4667 = vadd.f32 0.0, %v4666
  %v4668 = vpop.f32.mrf.mxu0
  %4669 = vmatprep.mubr.bf16.mxu0 0
  %4670 = vmatmul.mubr.bf16.gmra.mxu0 %v1062
  %v4671 = vpop.f32.mrf.mxu0
  %v4672 = vadd.f32 0.0, %v4671
  %v4673 = vpop.f32.mrf.mxu0
  %v4674 = vpop.f32.mrf.mxu0
  %v4675 = vadd.f32 0.0, %v4674
  %v4676 = vpop.f32.mrf.mxu0
  %4677 = vmatprep.mubr.bf16.mxu0 0
  %4678 = vmatmul.mubr.bf16.gmra.mxu0 %v1065
  %v4679 = vpop.f32.mrf.mxu0
  %v4680 = vadd.f32 0.0, %v4679
  %v4681 = vpop.f32.mrf.mxu0
  %v4682 = vpop.f32.mrf.mxu0
  %v4683 = vadd.f32 0.0, %v4682
  %v4684 = vpop.f32.mrf.mxu0
  %4685 = vmatprep.mubr.bf16.mxu0 0
  %4686 = vmatmul.mubr.bf16.gmra.mxu0 %v1068
  %v4687 = vpop.f32.mrf.mxu0
  %v4688 = vadd.f32 0.0, %v4687
  %v4689 = vpop.f32.mrf.mxu0
  %v4690 = vpop.f32.mrf.mxu0
  %v4691 = vadd.f32 0.0, %v4690
  %v4692 = vpop.f32.mrf.mxu0
  %4693 = vmatprep.mubr.bf16.mxu0 0
  %4694 = vmatmul.mubr.bf16.gmra.mxu0 %v1071
  %v4695 = vpop.f32.mrf.mxu0
  %v4696 = vadd.f32 0.0, %v4695
  %v4697 = vpop.f32.mrf.mxu0
  %v4698 = vpop.f32.mrf.mxu0
  %v4699 = vadd.f32 0.0, %v4698
  %v4700 = vpop.f32.mrf.mxu0
  %4701 = vmatprep.mubr.bf16.mxu0 0
  %4702 = vmatmul.mubr.bf16.gmra.mxu0 %v1074
  %v4703 = vpop.f32.mrf.mxu0
  %v4704 = vadd.f32 0.0, %v4703
  %v4705 = vpop.f32.mrf.mxu0
  %v4706 = vpop.f32.mrf.mxu0
  %v4707 = vadd.f32 0.0, %v4706
  %v4708 = vpop.f32.mrf.mxu0
  %4709 = vmatprep.mubr.bf16.mxu0 0
  %4710 = vmatmul.mubr.bf16.gmra.mxu0 %v1077
  %v4711 = vpop.f32.mrf.mxu0
  %v4712 = vadd.f32 0.0, %v4711
  %v4713 = vpop.f32.mrf.mxu0
  %v4714 = vpop.f32.mrf.mxu0
  %v4715 = vadd.f32 0.0, %v4714
  %v4716 = vpop.f32.mrf.mxu0
  %4717 = vmatprep.mubr.bf16.mxu0 0
  %4718 = vmatmul.mubr.bf16.gmra.mxu0 %v3309
  %v4719 = vpop.f32.mrf.mxu0
  %v4720 = vadd.f32 0.0, %v4719
  %v4721 = vpop.f32.mrf.mxu0
  %v4722 = vpop.f32.mrf.mxu0
  %v4723 = vadd.f32 0.0, %v4722
  %v4724 = vpop.f32.mrf.mxu0
  %4725 = vmatprep.mubr.bf16.mxu0 0
  %4726 = vmatmul.mubr.bf16.gmra.mxu0 %v4568
  %v4727 = vpop.f32.mrf.mxu0
  %v4728 = vadd.f32 0.0, %v4727
  %v4729 = vpop.f32.mrf.mxu0
  %v4730 = vpop.f32.mrf.mxu0
  %v4731 = vadd.f32 0.0, %v4730
  %v4732 = vpop.f32.mrf.mxu0
  %4733 = vmatprep.mubr.bf16.mxu0 0
  %4734 = vmatmul.mubr.bf16.gmra.mxu0 %v1086
  %v4735 = vpop.f32.mrf.mxu0
  %v4736 = vadd.f32 0.0, %v4735
  %v4737 = vpop.f32.mrf.mxu0
  %v4738 = vpop.f32.mrf.mxu0
  %v4739 = vadd.f32 0.0, %v4738
  %v4740 = vpop.f32.mrf.mxu0
  %4741 = vmatprep.mubr.bf16.mxu0 0
  %4742 = vmatmul.mubr.bf16.gmra.mxu0 %v1089
  %v4743 = vpop.f32.mrf.mxu0
  %v4744 = vadd.f32 0.0, %v4743
  %v4745 = vpop.f32.mrf.mxu0
  %v4746 = vpop.f32.mrf.mxu0
  %v4747 = vadd.f32 0.0, %v4746
  %v4748 = vpop.f32.mrf.mxu0
  %4749 = vmatprep.mubr.bf16.mxu0 0
  %4750 = vmatmul.mubr.bf16.gmra.mxu0 %v1092
  %v4751 = vpop.f32.mrf.mxu0
  %v4752 = vadd.f32 0.0, %v4751
  %v4753 = vpop.f32.mrf.mxu0
  %v4754 = vpop.f32.mrf.mxu0
  %v4755 = vadd.f32 0.0, %v4754
  %v4756 = vpop.f32.mrf.mxu0
  %4757 = vmatprep.mubr.bf16.mxu0 0
  %4758 = vmatmul.mubr.bf16.gmra.mxu0 %v1095
  %v4759 = vpop.f32.mrf.mxu0
  %v4760 = vadd.f32 0.0, %v4759
  %v4761 = vpop.f32.mrf.mxu0
  %v4762 = vpop.f32.mrf.mxu0
  %v4763 = vadd.f32 0.0, %v4762
  %v4764 = vpop.f32.mrf.mxu0
  %4765 = vmatprep.mubr.bf16.mxu0 0
  %4766 = vmatmul.mubr.bf16.gmra.mxu0 %v1098
  %v4767 = vpop.f32.mrf.mxu0
  %v4768 = vadd.f32 0.0, %v4767
  %v4769 = vpop.f32.mrf.mxu0
  %v4770 = vpop.f32.mrf.mxu0
  %v4771 = vadd.f32 0.0, %v4770
  %v4772 = vpop.f32.mrf.mxu0
  %4773 = vmatprep.mubr.bf16.mxu0 0
  %4774 = vmatmul.mubr.bf16.gmra.mxu0 %v1101
  %v4775 = vpop.f32.mrf.mxu0
  %v4776 = vadd.f32 0.0, %v4775
  %v4777 = vpop.f32.mrf.mxu0
  %v4778 = vpop.f32.mrf.mxu0
  %v4779 = vadd.f32 0.0, %v4778
  %v4780 = vpop.f32.mrf.mxu0
  %4781 = vmatprep.mubr.bf16.mxu0 0
  %4782 = vmatmul.mubr.bf16.gmra.mxu0 %v1104
  %v4783 = vpop.f32.mrf.mxu0
  %v4784 = vadd.f32 0.0, %v4783
  %v4785 = vpop.f32.mrf.mxu0
  %v4786 = vpop.f32.mrf.mxu0
  %v4787 = vadd.f32 0.0, %v4786
  %v4788 = vpop.f32.mrf.mxu0
  %4789 = vmatprep.mubr.bf16.mxu0 0
  %4790 = vmatmul.mubr.bf16.gmra.mxu0 %v1107
  %v4791 = vpop.f32.mrf.mxu0
  %v4792 = vadd.f32 0.0, %v4791
  %v4793 = vpop.f32.mrf.mxu0
  %v4794 = vpop.f32.mrf.mxu0
  %v4795 = vadd.f32 0.0, %v4794
  %v4796 = vpop.f32.mrf.mxu0
  %4797 = vmatprep.mubr.bf16.mxu0 0
  %4798 = vmatmul.mubr.bf16.gmra.mxu0 %v1110
  %v4799 = vpop.f32.mrf.mxu0
  %v4800 = vadd.f32 0.0, %v4799
  %v4801 = vpop.f32.mrf.mxu0
  %v4802 = vpop.f32.mrf.mxu0
  %v4803 = vadd.f32 0.0, %v4802
  %v4804 = vpop.f32.mrf.mxu0
  %4805 = vmatprep.mubr.bf16.mxu0 0
  %4806 = vmatmul.mubr.bf16.gmra.mxu0 %v1113
  %v4807 = vpop.f32.mrf.mxu0
  %v4808 = vadd.f32 0.0, %v4807
  %v4809 = vpop.f32.mrf.mxu0
  %v4810 = vpop.f32.mrf.mxu0
  %v4811 = vadd.f32 0.0, %v4810
  %v4812 = vpop.f32.mrf.mxu0
  %4813 = vmatprep.mubr.bf16.mxu0 0
  %4814 = vmatmul.mubr.bf16.gmra.mxu0 %v1116
  %v4815 = vpop.f32.mrf.mxu0
  %v4816 = vadd.f32 0.0, %v4815
  %v4817 = vpop.f32.mrf.mxu0
  %v4818 = vpop.f32.mrf.mxu0
  %v4819 = vadd.f32 0.0, %v4818
  %v4820 = vpop.f32.mrf.mxu0
  %4821 = vmatprep.mubr.bf16.mxu0 0
  %4822 = vmatmul.mubr.bf16.gmra.mxu0 %v1119
  %v4823 = vpop.f32.mrf.mxu0
  %v4824 = vadd.f32 0.0, %v4823
  %v4825 = vpop.f32.mrf.mxu0
  %v4826 = vpop.f32.mrf.mxu0
  %v4827 = vadd.f32 0.0, %v4826
  %v4828 = vpop.f32.mrf.mxu0
  %4829 = vmatprep.mubr.bf16.mxu0 0
  %4830 = vmatmul.mubr.bf16.gmra.mxu0 %v1122
  %v4831 = vpop.f32.mrf.mxu0
  %v4832 = vadd.f32 0.0, %v4831
  %v4833 = vpop.f32.mrf.mxu0
  %v4834 = vpop.f32.mrf.mxu0
  %v4835 = vadd.f32 0.0, %v4834
  %v4836 = vpop.f32.mrf.mxu0
  %4837 = vmatprep.mubr.bf16.mxu0 0
  %4838 = vmatmul.mubr.bf16.gmra.mxu0 %v1125
  %v4839 = vpop.f32.mrf.mxu0
  %v4840 = vadd.f32 0.0, %v4839
  %v4841 = vpop.f32.mrf.mxu0
  %v4842 = vpop.f32.mrf.mxu0
  %v4843 = vadd.f32 0.0, %v4842
  %v4844 = vpop.f32.mrf.mxu0
  %4845 = vmatprep.mubr.bf16.mxu0 0
  %4846 = vmatmul.mubr.bf16.gmra.mxu0 %v3312
  %v4847 = vpop.f32.mrf.mxu0
  %v4848 = vadd.f32 0.0, %v4847
  %v4849 = vpop.f32.mrf.mxu0
  %v4850 = vpop.f32.mrf.mxu0
  %v4851 = vadd.f32 0.0, %v4850
  %v4852 = vpop.f32.mrf.mxu0
  %4853 = vmatprep.mubr.bf16.mxu0 0
  %4854 = vmatmul.mubr.bf16.gmra.mxu0 %v4571
  %v4855 = vpop.f32.mrf.mxu0
  %v4856 = vadd.f32 0.0, %v4855
  %v4857 = vpop.f32.mrf.mxu0
  %v4858 = vpop.f32.mrf.mxu0
  %v4859 = vadd.f32 0.0, %v4858
  %v4860 = vpop.f32.mrf.mxu0
  %4861 = vdwg.mxu0
  %v4862 = vadd.f32 %v4417, %v4608
  %v4863 = vadd.f32 %v4418, %v4611
  %v4864 = vadd.f32 %v4419, %v4616
  %v4865 = vadd.f32 %v4420, %v4619
  %v4866 = vadd.f32 %v4421, %v4624
  %v4867 = vadd.f32 %v4422, %v4627
  %v4868 = vadd.f32 %v4423, %v4632
  %v4869 = vadd.f32 %v4424, %v4635
  %v4870 = vadd.f32 %v4425, %v4640
  %v4871 = vadd.f32 %v4426, %v4643
  %v4872 = vadd.f32 %v4427, %v4648
  %v4873 = vadd.f32 %v4428, %v4651
  %v4874 = vadd.f32 %v4429, %v4656
  %v4875 = vadd.f32 %v4430, %v4659
  %v4876 = vadd.f32 %v4431, %v4664
  %v4877 = vadd.f32 %v4432, %v4667
  %v4878 = vadd.f32 %v4433, %v4672
  %v4879 = vadd.f32 %v4434, %v4675
  %v4880 = vadd.f32 %v4435, %v4680
  %v4881 = vadd.f32 %v4436, %v4683
  %v4882 = vadd.f32 %v4437, %v4688
  %v4883 = vadd.f32 %v4438, %v4691
  %v4884 = vadd.f32 %v4439, %v4696
  %v4885 = vadd.f32 %v4440, %v4699
  %v4886 = vadd.f32 %v4441, %v4704
  %v4887 = vadd.f32 %v4442, %v4707
  %v4888 = vadd.f32 %v4443, %v4712
  %v4889 = vadd.f32 %v4444, %v4715
  %v4890 = vadd.f32 %v4445, %v4720
  %v4891 = vadd.f32 %v4446, %v4723
  %v4892 = vadd.f32 %v4447, %v4728
  %v4893 = vadd.f32 %v4448, %v4731
  %v4894 = vadd.f32 %v4449, %v4736
  %v4895 = vadd.f32 %v4450, %v4739
  %v4896 = vadd.f32 %v4451, %v4744
  %v4897 = vadd.f32 %v4452, %v4747
  %v4898 = vadd.f32 %v4453, %v4752
  %v4899 = vadd.f32 %v4454, %v4755
  %v4900 = vadd.f32 %v4455, %v4760
  %v4901 = vadd.f32 %v4456, %v4763
  %v4902 = vadd.f32 %v4457, %v4768
  %v4903 = vadd.f32 %v4458, %v4771
  %v4904 = vadd.f32 %v4459, %v4776
  %v4905 = vadd.f32 %v4460, %v4779
  %v4906 = vadd.f32 %v4461, %v4784
  %v4907 = vadd.f32 %v4462, %v4787
  %v4908 = vadd.f32 %v4463, %v4792
  %v4909 = vadd.f32 %v4464, %v4795
  %v4910 = vadd.f32 %v4465, %v4800
  %v4911 = vadd.f32 %v4466, %v4803
  %v4912 = vadd.f32 %v4467, %v4808
  %v4913 = vadd.f32 %v4468, %v4811
  %v4914 = vadd.f32 %v4469, %v4816
  %v4915 = vadd.f32 %v4470, %v4819
  %v4916 = vadd.f32 %v4471, %v4824
  %v4917 = vadd.f32 %v4472, %v4827
  %v4918 = vadd.f32 %v4473, %v4832
  %v4919 = vadd.f32 %v4474, %v4835
  %v4920 = vadd.f32 %v4475, %v4840
  %v4921 = vadd.f32 %v4476, %v4843
  %v4922 = vadd.f32 %v4477, %v4848
  %v4923 = vadd.f32 %v4478, %v4851
  %v4924 = vadd.f32 %v4479, %v4856
  %v4925 = vadd.f32 %v4480, %v4859
  %v4928 = vrot.slane %v66, 5
  %v4929 = vrot.slane %v4928, 4
  %v4930 = vrot.slane %v67, 5
  %v4931 = vsel %vm2019, %v4929, %v4930
  %v4932 = vrot.slane %v4930, 4
  %v4933 = vrot.slane %v68, 5
  %v4934 = vsel %vm2019, %v4932, %v4933
  %v4935 = vrot.slane %v120, 5
  %v4936 = vrot.slane %v4935, 4
  %v4937 = vrot.slane %v121, 5
  %v4938 = vsel %vm2019, %v4936, %v4937
  %v4939 = vrot.slane %v4937, 4
  %v4940 = vrot.slane %v122, 5
  %v4941 = vsel %vm2019, %v4939, %v4940
  %v4942 = vld [vmem:[%s1 + $0x100] sm:$0xf]
  %v4943 = vld [vmem:[%s1 + $0x104] sm:$0xf]
  %v4944 = vld [vmem:[%s1 + $0x108] sm:$0xf]
  %v4945 = vld [vmem:[%s1 + $0x10c] sm:$0xf]
  %v4946 = vld [vmem:[%s1 + $0x110] sm:$0xf]
  %v4947 = vld [vmem:[%s1 + $0x114] sm:$0xf]
  %v4948 = vld [vmem:[%s1 + $0x118] sm:$0xf]
  %v4949 = vld [vmem:[%s1 + $0x11c] sm:$0xf]
  %v4950 = vunpack.c.l.b16 %v4931
  %v4951 = vunpack.c.l.b16 %v4934
  %v4952 = vunpack.c.l.b16 %v4938
  %v4953 = vunpack.c.l.b16 %v4941
  %v4954 = vpack.c.b16 %v4951, %v4950
  %v4955 = vpack.c.b16 %v4953, %v4952
  %v4964 = vunpack.c.l.b16 %v4942
  %v4965 = vunpack.c.l.b16 %v4943
  %v4966 = vunpack.c.l.b16 %v4944
  %v4967 = vunpack.c.l.b16 %v4945
  %v4968 = vunpack.c.l.b16 %v4946
  %v4969 = vunpack.c.l.b16 %v4947
  %v4970 = vunpack.c.l.b16 %v4948
  %v4971 = vunpack.c.l.b16 %v4949
  %v4972 = vpack.c.b16 %v4965, %v4964
  %v4973 = vpack.c.b16 %v4967, %v4966
  %v4974 = vpack.c.b16 %v4969, %v4968
  %v4975 = vpack.c.b16 %v4971, %v4970
  %v4981 = vsel %vm1030, %v4954, 0
  %v4984 = vsel %vm1030, %v4955, 0
  %4986 = vmatprep.subr.bf16.mxu0 0
  %4987 = vmatpush1.bf16.msra.mxu0 0
  %4988 = vmatprep.subr.bf16.mxu0 0
  %4989 = vmatpush1.bf16.msra.mxu0 0
  %4990 = vmatprep.subr.bf16.mxu0 0
  %4991 = vmatpush1.bf16.msra.mxu0 0
  %4992 = vmatprep.subr.bf16.mxu0 0
  %4993 = vmatpush1.bf16.msra.mxu0 0
  %4994 = vmatprep.subr.bf16.mxu0 0
  %4995 = vmatpush1.bf16.msra.mxu0 %v4975
  %4996 = vmatprep.subr.bf16.mxu0 0
  %4997 = vmatpush1.bf16.msra.mxu0 %v4974
  %4998 = vmatprep.subr.bf16.mxu0 0
  %4999 = vmatpush1.bf16.msra.mxu0 %v4973
  %5000 = vmatprep.subr.bf16.mxu0 0
  %5001 = vmatpush1.bf16.msra.mxu0 %v4972
  %5002 = vmatprep.subr.bf16.mxu0 0
  %5003 = vmatpush2.bf16.msra.mxu0 0
  %5004 = vmatprep.subr.bf16.mxu0 0
  %5005 = vmatpush2.bf16.msra.mxu0 0
  %5006 = vmatprep.subr.bf16.mxu0 0
  %5007 = vmatpush2.bf16.msra.mxu0 0
  %5008 = vmatprep.subr.bf16.mxu0 0
  %5009 = vmatpush2.bf16.msra.mxu0 0
  %5010 = vmatprep.subr.bf16.mxu0 0
  %5011 = vmatpush2.bf16.msra.mxu0 0
  %5012 = vmatprep.subr.bf16.mxu0 0
  %5013 = vmatpush2.bf16.msra.mxu0 0
  %5014 = vmatprep.subr.bf16.mxu0 0
  %5015 = vmatpush2.bf16.msra.mxu0 0
  %5016 = vmatprep.subr.bf16.mxu0 0
  %5017 = vmatpush2.bf16.msra.mxu0 0
  %5018 = vmatprep.mubr.bf16.mxu0 0
  %5019 = vmatmul.mubr.bf16.gmra.mxu0 %v2379
  %v5020 = vpop.f32.mrf.mxu0
  %v5021 = vadd.f32 0.0, %v5020
  %v5022 = vpop.f32.mrf.mxu0
  %v5023 = vpop.f32.mrf.mxu0
  %v5024 = vadd.f32 0.0, %v5023
  %v5025 = vpop.f32.mrf.mxu0
  %5026 = vmatprep.mubr.bf16.mxu0 0
  %5027 = vmatmul.mubr.bf16.gmra.mxu0 %v2382
  %v5028 = vpop.f32.mrf.mxu0
  %v5029 = vadd.f32 0.0, %v5028
  %v5030 = vpop.f32.mrf.mxu0
  %v5031 = vpop.f32.mrf.mxu0
  %v5032 = vadd.f32 0.0, %v5031
  %v5033 = vpop.f32.mrf.mxu0
  %5034 = vmatprep.mubr.bf16.mxu0 0
  %5035 = vmatmul.mubr.bf16.gmra.mxu0 %v2385
  %v5036 = vpop.f32.mrf.mxu0
  %v5037 = vadd.f32 0.0, %v5036
  %v5038 = vpop.f32.mrf.mxu0
  %v5039 = vpop.f32.mrf.mxu0
  %v5040 = vadd.f32 0.0, %v5039
  %v5041 = vpop.f32.mrf.mxu0
  %5042 = vmatprep.mubr.bf16.mxu0 0
  %5043 = vmatmul.mubr.bf16.gmra.mxu0 %v2388
  %v5044 = vpop.f32.mrf.mxu0
  %v5045 = vadd.f32 0.0, %v5044
  %v5046 = vpop.f32.mrf.mxu0
  %v5047 = vpop.f32.mrf.mxu0
  %v5048 = vadd.f32 0.0, %v5047
  %v5049 = vpop.f32.mrf.mxu0
  %5050 = vmatprep.mubr.bf16.mxu0 0
  %5051 = vmatmul.mubr.bf16.gmra.mxu0 %v2391
  %v5052 = vpop.f32.mrf.mxu0
  %v5053 = vadd.f32 0.0, %v5052
  %v5054 = vpop.f32.mrf.mxu0
  %v5055 = vpop.f32.mrf.mxu0
  %v5056 = vadd.f32 0.0, %v5055
  %v5057 = vpop.f32.mrf.mxu0
  %5058 = vmatprep.mubr.bf16.mxu0 0
  %5059 = vmatmul.mubr.bf16.gmra.mxu0 %v2394
  %v5060 = vpop.f32.mrf.mxu0
  %v5061 = vadd.f32 0.0, %v5060
  %v5062 = vpop.f32.mrf.mxu0
  %v5063 = vpop.f32.mrf.mxu0
  %v5064 = vadd.f32 0.0, %v5063
  %v5065 = vpop.f32.mrf.mxu0
  %5066 = vmatprep.mubr.bf16.mxu0 0
  %5067 = vmatmul.mubr.bf16.gmra.mxu0 %v2397
  %v5068 = vpop.f32.mrf.mxu0
  %v5069 = vadd.f32 0.0, %v5068
  %v5070 = vpop.f32.mrf.mxu0
  %v5071 = vpop.f32.mrf.mxu0
  %v5072 = vadd.f32 0.0, %v5071
  %v5073 = vpop.f32.mrf.mxu0
  %5074 = vmatprep.mubr.bf16.mxu0 0
  %5075 = vmatmul.mubr.bf16.gmra.mxu0 %v2400
  %v5076 = vpop.f32.mrf.mxu0
  %v5077 = vadd.f32 0.0, %v5076
  %v5078 = vpop.f32.mrf.mxu0
  %v5079 = vpop.f32.mrf.mxu0
  %v5080 = vadd.f32 0.0, %v5079
  %v5081 = vpop.f32.mrf.mxu0
  %5082 = vmatprep.mubr.bf16.mxu0 0
  %5083 = vmatmul.mubr.bf16.gmra.mxu0 %v2403
  %v5084 = vpop.f32.mrf.mxu0
  %v5085 = vadd.f32 0.0, %v5084
  %v5086 = vpop.f32.mrf.mxu0
  %v5087 = vpop.f32.mrf.mxu0
  %v5088 = vadd.f32 0.0, %v5087
  %v5089 = vpop.f32.mrf.mxu0
  %5090 = vmatprep.mubr.bf16.mxu0 0
  %5091 = vmatmul.mubr.bf16.gmra.mxu0 %v2406
  %v5092 = vpop.f32.mrf.mxu0
  %v5093 = vadd.f32 0.0, %v5092
  %v5094 = vpop.f32.mrf.mxu0
  %v5095 = vpop.f32.mrf.mxu0
  %v5096 = vadd.f32 0.0, %v5095
  %v5097 = vpop.f32.mrf.mxu0
  %5098 = vmatprep.mubr.bf16.mxu0 0
  %5099 = vmatmul.mubr.bf16.gmra.mxu0 %v2409
  %v5100 = vpop.f32.mrf.mxu0
  %v5101 = vadd.f32 0.0, %v5100
  %v5102 = vpop.f32.mrf.mxu0
  %v5103 = vpop.f32.mrf.mxu0
  %v5104 = vadd.f32 0.0, %v5103
  %v5105 = vpop.f32.mrf.mxu0
  %5106 = vmatprep.mubr.bf16.mxu0 0
  %5107 = vmatmul.mubr.bf16.gmra.mxu0 %v2412
  %v5108 = vpop.f32.mrf.mxu0
  %v5109 = vadd.f32 0.0, %v5108
  %v5110 = vpop.f32.mrf.mxu0
  %v5111 = vpop.f32.mrf.mxu0
  %v5112 = vadd.f32 0.0, %v5111
  %v5113 = vpop.f32.mrf.mxu0
  %5114 = vmatprep.mubr.bf16.mxu0 0
  %5115 = vmatmul.mubr.bf16.gmra.mxu0 %v2415
  %v5116 = vpop.f32.mrf.mxu0
  %v5117 = vadd.f32 0.0, %v5116
  %v5118 = vpop.f32.mrf.mxu0
  %v5119 = vpop.f32.mrf.mxu0
  %v5120 = vadd.f32 0.0, %v5119
  %v5121 = vpop.f32.mrf.mxu0
  %5122 = vmatprep.mubr.bf16.mxu0 0
  %5123 = vmatmul.mubr.bf16.gmra.mxu0 %v2418
  %v5124 = vpop.f32.mrf.mxu0
  %v5125 = vadd.f32 0.0, %v5124
  %v5126 = vpop.f32.mrf.mxu0
  %v5127 = vpop.f32.mrf.mxu0
  %v5128 = vadd.f32 0.0, %v5127
  %v5129 = vpop.f32.mrf.mxu0
  %5130 = vmatprep.mubr.bf16.mxu0 0
  %5131 = vmatmul.mubr.bf16.gmra.mxu0 %v3722
  %v5132 = vpop.f32.mrf.mxu0
  %v5133 = vadd.f32 0.0, %v5132
  %v5134 = vpop.f32.mrf.mxu0
  %v5135 = vpop.f32.mrf.mxu0
  %v5136 = vadd.f32 0.0, %v5135
  %v5137 = vpop.f32.mrf.mxu0
  %5138 = vmatprep.mubr.bf16.mxu0 0
  %5139 = vmatmul.mubr.bf16.gmra.mxu0 %v4981
  %v5140 = vpop.f32.mrf.mxu0
  %v5141 = vadd.f32 0.0, %v5140
  %v5142 = vpop.f32.mrf.mxu0
  %v5143 = vpop.f32.mrf.mxu0
  %v5144 = vadd.f32 0.0, %v5143
  %v5145 = vpop.f32.mrf.mxu0
  %5146 = vmatprep.mubr.bf16.mxu0 0
  %5147 = vmatmul.mubr.bf16.gmra.mxu0 %v2427
  %v5148 = vpop.f32.mrf.mxu0
  %v5149 = vadd.f32 0.0, %v5148
  %v5150 = vpop.f32.mrf.mxu0
  %v5151 = vpop.f32.mrf.mxu0
  %v5152 = vadd.f32 0.0, %v5151
  %v5153 = vpop.f32.mrf.mxu0
  %5154 = vmatprep.mubr.bf16.mxu0 0
  %5155 = vmatmul.mubr.bf16.gmra.mxu0 %v2430
  %v5156 = vpop.f32.mrf.mxu0
  %v5157 = vadd.f32 0.0, %v5156
  %v5158 = vpop.f32.mrf.mxu0
  %v5159 = vpop.f32.mrf.mxu0
  %v5160 = vadd.f32 0.0, %v5159
  %v5161 = vpop.f32.mrf.mxu0
  %5162 = vmatprep.mubr.bf16.mxu0 0
  %5163 = vmatmul.mubr.bf16.gmra.mxu0 %v2433
  %v5164 = vpop.f32.mrf.mxu0
  %v5165 = vadd.f32 0.0, %v5164
  %v5166 = vpop.f32.mrf.mxu0
  %v5167 = vpop.f32.mrf.mxu0
  %v5168 = vadd.f32 0.0, %v5167
  %v5169 = vpop.f32.mrf.mxu0
  %5170 = vmatprep.mubr.bf16.mxu0 0
  %5171 = vmatmul.mubr.bf16.gmra.mxu0 %v2436
  %v5172 = vpop.f32.mrf.mxu0
  %v5173 = vadd.f32 0.0, %v5172
  %v5174 = vpop.f32.mrf.mxu0
  %v5175 = vpop.f32.mrf.mxu0
  %v5176 = vadd.f32 0.0, %v5175
  %v5177 = vpop.f32.mrf.mxu0
  %5178 = vmatprep.mubr.bf16.mxu0 0
  %5179 = vmatmul.mubr.bf16.gmra.mxu0 %v2439
  %v5180 = vpop.f32.mrf.mxu0
  %v5181 = vadd.f32 0.0, %v5180
  %v5182 = vpop.f32.mrf.mxu0
  %v5183 = vpop.f32.mrf.mxu0
  %v5184 = vadd.f32 0.0, %v5183
  %v5185 = vpop.f32.mrf.mxu0
  %5186 = vmatprep.mubr.bf16.mxu0 0
  %5187 = vmatmul.mubr.bf16.gmra.mxu0 %v2442
  %v5188 = vpop.f32.mrf.mxu0
  %v5189 = vadd.f32 0.0, %v5188
  %v5190 = vpop.f32.mrf.mxu0
  %v5191 = vpop.f32.mrf.mxu0
  %v5192 = vadd.f32 0.0, %v5191
  %v5193 = vpop.f32.mrf.mxu0
  %5194 = vmatprep.mubr.bf16.mxu0 0
  %5195 = vmatmul.mubr.bf16.gmra.mxu0 %v2445
  %v5196 = vpop.f32.mrf.mxu0
  %v5197 = vadd.f32 0.0, %v5196
  %v5198 = vpop.f32.mrf.mxu0
  %v5199 = vpop.f32.mrf.mxu0
  %v5200 = vadd.f32 0.0, %v5199
  %v5201 = vpop.f32.mrf.mxu0
  %5202 = vmatprep.mubr.bf16.mxu0 0
  %5203 = vmatmul.mubr.bf16.gmra.mxu0 %v2448
  %v5204 = vpop.f32.mrf.mxu0
  %v5205 = vadd.f32 0.0, %v5204
  %v5206 = vpop.f32.mrf.mxu0
  %v5207 = vpop.f32.mrf.mxu0
  %v5208 = vadd.f32 0.0, %v5207
  %v5209 = vpop.f32.mrf.mxu0
  %5210 = vmatprep.mubr.bf16.mxu0 0
  %5211 = vmatmul.mubr.bf16.gmra.mxu0 %v2451
  %v5212 = vpop.f32.mrf.mxu0
  %v5213 = vadd.f32 0.0, %v5212
  %v5214 = vpop.f32.mrf.mxu0
  %v5215 = vpop.f32.mrf.mxu0
  %v5216 = vadd.f32 0.0, %v5215
  %v5217 = vpop.f32.mrf.mxu0
  %5218 = vmatprep.mubr.bf16.mxu0 0
  %5219 = vmatmul.mubr.bf16.gmra.mxu0 %v2454
  %v5220 = vpop.f32.mrf.mxu0
  %v5221 = vadd.f32 0.0, %v5220
  %v5222 = vpop.f32.mrf.mxu0
  %v5223 = vpop.f32.mrf.mxu0
  %v5224 = vadd.f32 0.0, %v5223
  %v5225 = vpop.f32.mrf.mxu0
  %5226 = vmatprep.mubr.bf16.mxu0 0
  %5227 = vmatmul.mubr.bf16.gmra.mxu0 %v2457
  %v5228 = vpop.f32.mrf.mxu0
  %v5229 = vadd.f32 0.0, %v5228
  %v5230 = vpop.f32.mrf.mxu0
  %v5231 = vpop.f32.mrf.mxu0
  %v5232 = vadd.f32 0.0, %v5231
  %v5233 = vpop.f32.mrf.mxu0
  %5234 = vmatprep.mubr.bf16.mxu0 0
  %5235 = vmatmul.mubr.bf16.gmra.mxu0 %v2460
  %v5236 = vpop.f32.mrf.mxu0
  %v5237 = vadd.f32 0.0, %v5236
  %v5238 = vpop.f32.mrf.mxu0
  %v5239 = vpop.f32.mrf.mxu0
  %v5240 = vadd.f32 0.0, %v5239
  %v5241 = vpop.f32.mrf.mxu0
  %5242 = vmatprep.mubr.bf16.mxu0 0
  %5243 = vmatmul.mubr.bf16.gmra.mxu0 %v2463
  %v5244 = vpop.f32.mrf.mxu0
  %v5245 = vadd.f32 0.0, %v5244
  %v5246 = vpop.f32.mrf.mxu0
  %v5247 = vpop.f32.mrf.mxu0
  %v5248 = vadd.f32 0.0, %v5247
  %v5249 = vpop.f32.mrf.mxu0
  %5250 = vmatprep.mubr.bf16.mxu0 0
  %5251 = vmatmul.mubr.bf16.gmra.mxu0 %v2466
  %v5252 = vpop.f32.mrf.mxu0
  %v5253 = vadd.f32 0.0, %v5252
  %v5254 = vpop.f32.mrf.mxu0
  %v5255 = vpop.f32.mrf.mxu0
  %v5256 = vadd.f32 0.0, %v5255
  %v5257 = vpop.f32.mrf.mxu0
  %5258 = vmatprep.mubr.bf16.mxu0 0
  %5259 = vmatmul.mubr.bf16.gmra.mxu0 %v3725
  %v5260 = vpop.f32.mrf.mxu0
  %v5261 = vadd.f32 0.0, %v5260
  %v5262 = vpop.f32.mrf.mxu0
  %v5263 = vpop.f32.mrf.mxu0
  %v5264 = vadd.f32 0.0, %v5263
  %v5265 = vpop.f32.mrf.mxu0
  %5266 = vmatprep.mubr.bf16.mxu0 0
  %5267 = vmatmul.mubr.bf16.gmra.mxu0 %v4984
  %v5268 = vpop.f32.mrf.mxu0
  %v5269 = vadd.f32 0.0, %v5268
  %v5270 = vpop.f32.mrf.mxu0
  %v5271 = vpop.f32.mrf.mxu0
  %v5272 = vadd.f32 0.0, %v5271
  %v5273 = vpop.f32.mrf.mxu0
  %5274 = vdwg.mxu0
  %v5275 = vadd.f32 %v4862, %v5021
  %v5276 = vadd.f32 %v4863, %v5024
  %v5277 = vadd.f32 %v4864, %v5029
  %v5278 = vadd.f32 %v4865, %v5032
  %v5279 = vadd.f32 %v4866, %v5037
  %v5280 = vadd.f32 %v4867, %v5040
  %v5281 = vadd.f32 %v4868, %v5045
  %v5282 = vadd.f32 %v4869, %v5048
  %v5283 = vadd.f32 %v4870, %v5053
  %v5284 = vadd.f32 %v4871, %v5056
  %v5285 = vadd.f32 %v4872, %v5061
  %v5286 = vadd.f32 %v4873, %v5064
  %v5287 = vadd.f32 %v4874, %v5069
  %v5288 = vadd.f32 %v4875, %v5072
  %v5289 = vadd.f32 %v4876, %v5077
  %v5290 = vadd.f32 %v4877, %v5080
  %v5291 = vadd.f32 %v4878, %v5085
  %v5292 = vadd.f32 %v4879, %v5088
  %v5293 = vadd.f32 %v4880, %v5093
  %v5294 = vadd.f32 %v4881, %v5096
  %v5295 = vadd.f32 %v4882, %v5101
  %v5296 = vadd.f32 %v4883, %v5104
  %v5297 = vadd.f32 %v4884, %v5109
  %v5298 = vadd.f32 %v4885, %v5112
  %v5299 = vadd.f32 %v4886, %v5117
  %v5300 = vadd.f32 %v4887, %v5120
  %v5301 = vadd.f32 %v4888, %v5125
  %v5302 = vadd.f32 %v4889, %v5128
  %v5303 = vadd.f32 %v4890, %v5133
  %v5304 = vadd.f32 %v4891, %v5136
  %v5305 = vadd.f32 %v4892, %v5141
  %v5306 = vadd.f32 %v4893, %v5144
  %v5307 = vadd.f32 %v4894, %v5149
  %v5308 = vadd.f32 %v4895, %v5152
  %v5309 = vadd.f32 %v4896, %v5157
  %v5310 = vadd.f32 %v4897, %v5160
  %v5311 = vadd.f32 %v4898, %v5165
  %v5312 = vadd.f32 %v4899, %v5168
  %v5313 = vadd.f32 %v4900, %v5173
  %v5314 = vadd.f32 %v4901, %v5176
  %v5315 = vadd.f32 %v4902, %v5181
  %v5316 = vadd.f32 %v4903, %v5184
  %v5317 = vadd.f32 %v4904, %v5189
  %v5318 = vadd.f32 %v4905, %v5192
  %v5319 = vadd.f32 %v4906, %v5197
  %v5320 = vadd.f32 %v4907, %v5200
  %v5321 = vadd.f32 %v4908, %v5205
  %v5322 = vadd.f32 %v4909, %v5208
  %v5323 = vadd.f32 %v4910, %v5213
  %v5324 = vadd.f32 %v4911, %v5216
  %v5325 = vadd.f32 %v4912, %v5221
  %v5326 = vadd.f32 %v4913, %v5224
  %v5327 = vadd.f32 %v4914, %v5229
  %v5328 = vadd.f32 %v4915, %v5232
  %v5329 = vadd.f32 %v4916, %v5237
  %v5330 = vadd.f32 %v4917, %v5240
  %v5331 = vadd.f32 %v4918, %v5245
  %v5332 = vadd.f32 %v4919, %v5248
  %v5333 = vadd.f32 %v4920, %v5253
  %v5334 = vadd.f32 %v4921, %v5256
  %v5335 = vadd.f32 %v4922, %v5261
  %v5336 = vadd.f32 %v4923, %v5264
  %v5337 = vadd.f32 %v4924, %v5269
  %v5338 = vadd.f32 %v4925, %v5272
  %v5339 = vld [vmem:[%s2] sm:$0x1]
  %v5341 = vlaneseq
  %v5342 = vshrl.u32 %v5341, 7
  %v5343 = vsub.s32 0, %v5342
  %v5344 = vrot.slane %v5339, %v5343
  %v5346 = vadd.f32 %v5275, %v5344
  %v5347 = vadd.f32 %v5276, %v5344
  %v5348 = vadd.f32 %v5277, %v5344
  %v5349 = vadd.f32 %v5278, %v5344
  %v5350 = vadd.f32 %v5279, %v5344
  %v5351 = vadd.f32 %v5280, %v5344
  %v5352 = vadd.f32 %v5281, %v5344
  %v5353 = vadd.f32 %v5282, %v5344
  %v5354 = vadd.f32 %v5283, %v5344
  %v5355 = vadd.f32 %v5284, %v5344
  %v5356 = vadd.f32 %v5285, %v5344
  %v5357 = vadd.f32 %v5286, %v5344
  %v5358 = vadd.f32 %v5287, %v5344
  %v5359 = vadd.f32 %v5288, %v5344
  %v5360 = vadd.f32 %v5289, %v5344
  %v5361 = vadd.f32 %v5290, %v5344
  %v5362 = vadd.f32 %v5291, %v5344
  %v5363 = vadd.f32 %v5292, %v5344
  %v5364 = vadd.f32 %v5293, %v5344
  %v5365 = vadd.f32 %v5294, %v5344
  %v5366 = vadd.f32 %v5295, %v5344
  %v5367 = vadd.f32 %v5296, %v5344
  %v5368 = vadd.f32 %v5297, %v5344
  %v5369 = vadd.f32 %v5298, %v5344
  %v5370 = vadd.f32 %v5299, %v5344
  %v5371 = vadd.f32 %v5300, %v5344
  %v5372 = vadd.f32 %v5301, %v5344
  %v5373 = vadd.f32 %v5302, %v5344
  %v5374 = vadd.f32 %v5303, %v5344
  %v5375 = vadd.f32 %v5304, %v5344
  %v5376 = vadd.f32 %v5305, %v5344
  %v5377 = vadd.f32 %v5306, %v5344
  %v5378 = vadd.f32 %v5307, %v5344
  %v5379 = vadd.f32 %v5308, %v5344
  %v5380 = vadd.f32 %v5309, %v5344
  %v5381 = vadd.f32 %v5310, %v5344
  %v5382 = vadd.f32 %v5311, %v5344
  %v5383 = vadd.f32 %v5312, %v5344
  %v5384 = vadd.f32 %v5313, %v5344
  %v5385 = vadd.f32 %v5314, %v5344
  %v5386 = vadd.f32 %v5315, %v5344
  %v5387 = vadd.f32 %v5316, %v5344
  %v5388 = vadd.f32 %v5317, %v5344
  %v5389 = vadd.f32 %v5318, %v5344
  %v5390 = vadd.f32 %v5319, %v5344
  %v5391 = vadd.f32 %v5320, %v5344
  %v5392 = vadd.f32 %v5321, %v5344
  %v5393 = vadd.f32 %v5322, %v5344
  %v5394 = vadd.f32 %v5323, %v5344
  %v5395 = vadd.f32 %v5324, %v5344
  %v5396 = vadd.f32 %v5325, %v5344
  %v5397 = vadd.f32 %v5326, %v5344
  %v5398 = vadd.f32 %v5327, %v5344
  %v5399 = vadd.f32 %v5328, %v5344
  %v5400 = vadd.f32 %v5329, %v5344
  %v5401 = vadd.f32 %v5330, %v5344
  %v5402 = vadd.f32 %v5331, %v5344
  %v5403 = vadd.f32 %v5332, %v5344
  %v5404 = vadd.f32 %v5333, %v5344
  %v5405 = vadd.f32 %v5334, %v5344
  %v5406 = vadd.f32 %v5335, %v5344
  %v5407 = vadd.f32 %v5336, %v5344
  %v5408 = vadd.f32 %v5337, %v5344
  %v5409 = vadd.f32 %v5338, %v5344
  %v5410 = vmax.f32 %v5346, 0.0
  %v5411 = vmax.f32 %v5347, 0.0
  %v5412 = vmax.f32 %v5348, 0.0
  %v5413 = vmax.f32 %v5349, 0.0
  %v5414 = vmax.f32 %v5350, 0.0
  %v5415 = vmax.f32 %v5351, 0.0
  %v5416 = vmax.f32 %v5352, 0.0
  %v5417 = vmax.f32 %v5353, 0.0
  %v5418 = vmax.f32 %v5354, 0.0
  %v5419 = vmax.f32 %v5355, 0.0
  %v5420 = vmax.f32 %v5356, 0.0
  %v5421 = vmax.f32 %v5357, 0.0
  %v5422 = vmax.f32 %v5358, 0.0
  %v5423 = vmax.f32 %v5359, 0.0
  %v5424 = vmax.f32 %v5360, 0.0
  %v5425 = vmax.f32 %v5361, 0.0
  %v5426 = vmax.f32 %v5362, 0.0
  %v5427 = vmax.f32 %v5363, 0.0
  %v5428 = vmax.f32 %v5364, 0.0
  %v5429 = vmax.f32 %v5365, 0.0
  %v5430 = vmax.f32 %v5366, 0.0
  %v5431 = vmax.f32 %v5367, 0.0
  %v5432 = vmax.f32 %v5368, 0.0
  %v5433 = vmax.f32 %v5369, 0.0
  %v5434 = vmax.f32 %v5370, 0.0
  %v5435 = vmax.f32 %v5371, 0.0
  %v5436 = vmax.f32 %v5372, 0.0
  %v5437 = vmax.f32 %v5373, 0.0
  %v5438 = vmax.f32 %v5374, 0.0
  %v5439 = vmax.f32 %v5375, 0.0
  %v5440 = vmax.f32 %v5376, 0.0
  %v5441 = vmax.f32 %v5377, 0.0
  %v5442 = vmax.f32 %v5378, 0.0
  %v5443 = vmax.f32 %v5379, 0.0
  %v5444 = vmax.f32 %v5380, 0.0
  %v5445 = vmax.f32 %v5381, 0.0
  %v5446 = vmax.f32 %v5382, 0.0
  %v5447 = vmax.f32 %v5383, 0.0
  %v5448 = vmax.f32 %v5384, 0.0
  %v5449 = vmax.f32 %v5385, 0.0
  %v5450 = vmax.f32 %v5386, 0.0
  %v5451 = vmax.f32 %v5387, 0.0
  %v5452 = vmax.f32 %v5388, 0.0
  %v5453 = vmax.f32 %v5389, 0.0
  %v5454 = vmax.f32 %v5390, 0.0
  %v5455 = vmax.f32 %v5391, 0.0
  %v5456 = vmax.f32 %v5392, 0.0
  %v5457 = vmax.f32 %v5393, 0.0
  %v5458 = vmax.f32 %v5394, 0.0
  %v5459 = vmax.f32 %v5395, 0.0
  %v5460 = vmax.f32 %v5396, 0.0
  %v5461 = vmax.f32 %v5397, 0.0
  %v5462 = vmax.f32 %v5398, 0.0
  %v5463 = vmax.f32 %v5399, 0.0
  %v5464 = vmax.f32 %v5400, 0.0
  %v5465 = vmax.f32 %v5401, 0.0
  %v5466 = vmax.f32 %v5402, 0.0
  %v5467 = vmax.f32 %v5403, 0.0
  %v5468 = vmax.f32 %v5404, 0.0
  %v5469 = vmax.f32 %v5405, 0.0
  %v5470 = vmax.f32 %v5406, 0.0
  %v5471 = vmax.f32 %v5407, 0.0
  %v5472 = vmax.f32 %v5408, 0.0
  %v5473 = vmax.f32 %v5409, 0.0
  %v5474 = vpack.c.bf16 %v5411, %v5410
  %v5475 = vpack.c.bf16 %v5413, %v5412
  %v5476 = vpack.c.bf16 %v5415, %v5414
  %v5477 = vpack.c.bf16 %v5417, %v5416
  %v5478 = vpack.c.bf16 %v5419, %v5418
  %v5479 = vpack.c.bf16 %v5421, %v5420
  %v5480 = vpack.c.bf16 %v5423, %v5422
  %v5481 = vpack.c.bf16 %v5425, %v5424
  %v5482 = vpack.c.bf16 %v5427, %v5426
  %v5483 = vpack.c.bf16 %v5429, %v5428
  %v5484 = vpack.c.bf16 %v5431, %v5430
  %v5485 = vpack.c.bf16 %v5433, %v5432
  %v5486 = vpack.c.bf16 %v5435, %v5434
  %v5487 = vpack.c.bf16 %v5437, %v5436
  %v5488 = vpack.c.bf16 %v5439, %v5438
  %v5489 = vpack.c.bf16 %v5441, %v5440
  %v5490 = vpack.c.bf16 %v5443, %v5442
  %v5491 = vpack.c.bf16 %v5445, %v5444
  %v5492 = vpack.c.bf16 %v5447, %v5446
  %v5493 = vpack.c.bf16 %v5449, %v5448
  %v5494 = vpack.c.bf16 %v5451, %v5450
  %v5495 = vpack.c.bf16 %v5453, %v5452
  %v5496 = vpack.c.bf16 %v5455, %v5454
  %v5497 = vpack.c.bf16 %v5457, %v5456
  %v5498 = vpack.c.bf16 %v5459, %v5458
  %v5499 = vpack.c.bf16 %v5461, %v5460
  %v5500 = vpack.c.bf16 %v5463, %v5462
  %v5501 = vpack.c.bf16 %v5465, %v5464
  %v5502 = vpack.c.bf16 %v5467, %v5466
  %v5503 = vpack.c.bf16 %v5469, %v5468
  %v5504 = vpack.c.bf16 %v5471, %v5470
  %v5505 = vpack.c.bf16 %v5473, %v5472
  %v5538 = vunpack.c.l.b16 %v5474
  %v5539 = vunpack.c.h.b16 %v5474
  %v5540 = vunpack.c.l.b16 %v5475
  %v5541 = vunpack.c.h.b16 %v5475
  %v5542 = vunpack.c.l.b16 %v5476
  %v5543 = vunpack.c.h.b16 %v5476
  %v5544 = vunpack.c.l.b16 %v5477
  %v5545 = vunpack.c.h.b16 %v5477
  %v5546 = vunpack.c.l.b16 %v5478
  %v5547 = vunpack.c.h.b16 %v5478
  %v5548 = vunpack.c.l.b16 %v5479
  %v5549 = vunpack.c.h.b16 %v5479
  %v5550 = vunpack.c.l.b16 %v5480
  %v5551 = vunpack.c.h.b16 %v5480
  %v5552 = vunpack.c.l.b16 %v5481
  %v5553 = vunpack.c.h.b16 %v5481
  %v5554 = vunpack.c.l.b16 %v5482
  %v5555 = vunpack.c.h.b16 %v5482
  %v5556 = vunpack.c.l.b16 %v5483
  %v5557 = vunpack.c.h.b16 %v5483
  %v5558 = vunpack.c.l.b16 %v5484
  %v5559 = vunpack.c.h.b16 %v5484
  %v5560 = vunpack.c.l.b16 %v5485
  %v5561 = vunpack.c.h.b16 %v5485
  %v5562 = vunpack.c.l.b16 %v5486
  %v5563 = vunpack.c.h.b16 %v5486
  %v5564 = vunpack.c.l.b16 %v5487
  %v5565 = vunpack.c.h.b16 %v5487
  %v5566 = vunpack.c.l.b16 %v5488
  %v5567 = vunpack.c.h.b16 %v5488
  %v5568 = vunpack.c.l.b16 %v5489
  %v5569 = vunpack.c.h.b16 %v5489
  %v5570 = vunpack.c.l.b16 %v5490
  %v5571 = vunpack.c.h.b16 %v5490
  %v5572 = vunpack.c.l.b16 %v5491
  %v5573 = vunpack.c.h.b16 %v5491
  %v5574 = vunpack.c.l.b16 %v5492
  %v5575 = vunpack.c.h.b16 %v5492
  %v5576 = vunpack.c.l.b16 %v5493
  %v5577 = vunpack.c.h.b16 %v5493
  %v5578 = vunpack.c.l.b16 %v5494
  %v5579 = vunpack.c.h.b16 %v5494
  %v5580 = vunpack.c.l.b16 %v5495
  %v5581 = vunpack.c.h.b16 %v5495
  %v5582 = vunpack.c.l.b16 %v5496
  %v5583 = vunpack.c.h.b16 %v5496
  %v5584 = vunpack.c.l.b16 %v5497
  %v5585 = vunpack.c.h.b16 %v5497
  %v5586 = vunpack.c.l.b16 %v5498
  %v5587 = vunpack.c.h.b16 %v5498
  %v5588 = vunpack.c.l.b16 %v5499
  %v5589 = vunpack.c.h.b16 %v5499
  %v5590 = vunpack.c.l.b16 %v5500
  %v5591 = vunpack.c.h.b16 %v5500
  %v5592 = vunpack.c.l.b16 %v5501
  %v5593 = vunpack.c.h.b16 %v5501
  %v5594 = vunpack.c.l.b16 %v5502
  %v5595 = vunpack.c.h.b16 %v5502
  %v5596 = vunpack.c.l.b16 %v5503
  %v5597 = vunpack.c.h.b16 %v5503
  %v5598 = vunpack.c.l.b16 %v5504
  %v5599 = vunpack.c.h.b16 %v5504
  %v5600 = vunpack.c.l.b16 %v5505
  %v5601 = vunpack.c.h.b16 %v5505
  %v5602 = vpack.c.b16 %v5538, %v5538
  %v5603 = vpack.c.b16 %v5539, %v5539
  %v5604 = vpack.c.b16 %v5540, %v5540
  %v5605 = vpack.c.b16 %v5541, %v5541
  %v5606 = vpack.c.b16 %v5542, %v5542
  %v5607 = vpack.c.b16 %v5543, %v5543
  %v5608 = vpack.c.b16 %v5544, %v5544
  %v5609 = vpack.c.b16 %v5545, %v5545
  %v5610 = vpack.c.b16 %v5546, %v5546
  %v5611 = vpack.c.b16 %v5547, %v5547
  %v5612 = vpack.c.b16 %v5548, %v5548
  %v5613 = vpack.c.b16 %v5549, %v5549
  %v5614 = vpack.c.b16 %v5550, %v5550
  %v5615 = vpack.c.b16 %v5551, %v5551
  %v5616 = vpack.c.b16 %v5552, %v5552
  %v5617 = vpack.c.b16 %v5553, %v5553
  %v5618 = vpack.c.b16 %v5554, %v5554
  %v5619 = vpack.c.b16 %v5555, %v5555
  %v5620 = vpack.c.b16 %v5556, %v5556
  %v5621 = vpack.c.b16 %v5557, %v5557
  %v5622 = vpack.c.b16 %v5558, %v5558
  %v5623 = vpack.c.b16 %v5559, %v5559
  %v5624 = vpack.c.b16 %v5560, %v5560
  %v5625 = vpack.c.b16 %v5561, %v5561
  %v5626 = vpack.c.b16 %v5562, %v5562
  %v5627 = vpack.c.b16 %v5563, %v5563
  %v5628 = vpack.c.b16 %v5564, %v5564
  %v5629 = vpack.c.b16 %v5565, %v5565
  %v5630 = vpack.c.b16 %v5566, %v5566
  %v5631 = vpack.c.b16 %v5567, %v5567
  %v5632 = vpack.c.b16 %v5568, %v5568
  %v5633 = vpack.c.b16 %v5569, %v5569
  %v5634 = vpack.c.b16 %v5570, %v5570
  %v5635 = vpack.c.b16 %v5571, %v5571
  %v5636 = vpack.c.b16 %v5572, %v5572
  %v5637 = vpack.c.b16 %v5573, %v5573
  %v5638 = vpack.c.b16 %v5574, %v5574
  %v5639 = vpack.c.b16 %v5575, %v5575
  %v5640 = vpack.c.b16 %v5576, %v5576
  %v5641 = vpack.c.b16 %v5577, %v5577
  %v5642 = vpack.c.b16 %v5578, %v5578
  %v5643 = vpack.c.b16 %v5579, %v5579
  %v5644 = vpack.c.b16 %v5580, %v5580
  %v5645 = vpack.c.b16 %v5581, %v5581
  %v5646 = vpack.c.b16 %v5582, %v5582
  %v5647 = vpack.c.b16 %v5583, %v5583
  %v5648 = vpack.c.b16 %v5584, %v5584
  %v5649 = vpack.c.b16 %v5585, %v5585
  %v5650 = vpack.c.b16 %v5586, %v5586
  %v5651 = vpack.c.b16 %v5587, %v5587
  %v5652 = vpack.c.b16 %v5588, %v5588
  %v5653 = vpack.c.b16 %v5589, %v5589
  %v5654 = vpack.c.b16 %v5590, %v5590
  %v5655 = vpack.c.b16 %v5591, %v5591
  %v5656 = vpack.c.b16 %v5592, %v5592
  %v5657 = vpack.c.b16 %v5593, %v5593
  %v5658 = vpack.c.b16 %v5594, %v5594
  %v5659 = vpack.c.b16 %v5595, %v5595
  %v5660 = vpack.c.b16 %v5596, %v5596
  %v5661 = vpack.c.b16 %v5597, %v5597
  %v5662 = vpack.c.b16 %v5598, %v5598
  %v5663 = vpack.c.b16 %v5599, %v5599
  %v5664 = vpack.c.b16 %v5600, %v5600
  %v5665 = vpack.c.b16 %v5601, %v5601
  %5730 = vst [vmem:[%s3] sm:$0xf] %v5602
  %5731 = vst [vmem:[%s3 + $0x4] sm:$0xf] %v5603
  %5732 = vst [vmem:[%s3 + $0x8] sm:$0xf] %v5604
  %5733 = vst [vmem:[%s3 + $0xc] sm:$0xf] %v5605
  %5734 = vst [vmem:[%s3 + $0x10] sm:$0xf] %v5606
  %5735 = vst [vmem:[%s3 + $0x14] sm:$0xf] %v5607
  %5736 = vst [vmem:[%s3 + $0x18] sm:$0xf] %v5608
  %5737 = vst [vmem:[%s3 + $0x1c] sm:$0xf] %v5609
  %5738 = vst [vmem:[%s3 + $0x20] sm:$0xf] %v5610
  %5739 = vst [vmem:[%s3 + $0x24] sm:$0xf] %v5611
  %5740 = vst [vmem:[%s3 + $0x28] sm:$0xf] %v5612
  %5741 = vst [vmem:[%s3 + $0x2c] sm:$0xf] %v5613
  %5742 = vst [vmem:[%s3 + $0x30] sm:$0xf] %v5614
  %5743 = vst [vmem:[%s3 + $0x34] sm:$0xf] %v5615
  %5744 = vst [vmem:[%s3 + $0x38] sm:$0xf] %v5616
  %5745 = vst [vmem:[%s3 + $0x3c] sm:$0xf] %v5617
  %5746 = vst [vmem:[%s3 + $0x40] sm:$0xf] %v5618
  %5747 = vst [vmem:[%s3 + $0x44] sm:$0xf] %v5619
  %5748 = vst [vmem:[%s3 + $0x48] sm:$0xf] %v5620
  %5749 = vst [vmem:[%s3 + $0x4c] sm:$0xf] %v5621
  %5750 = vst [vmem:[%s3 + $0x50] sm:$0xf] %v5622
  %5751 = vst [vmem:[%s3 + $0x54] sm:$0xf] %v5623
  %5752 = vst [vmem:[%s3 + $0x58] sm:$0xf] %v5624
  %5753 = vst [vmem:[%s3 + $0x5c] sm:$0xf] %v5625
  %5754 = vst [vmem:[%s3 + $0x60] sm:$0xf] %v5626
  %5755 = vst [vmem:[%s3 + $0x64] sm:$0xf] %v5627
  %5756 = vst [vmem:[%s3 + $0x68] sm:$0xf] %v5628
  %5757 = vst [vmem:[%s3 + $0x6c] sm:$0xf] %v5629
  %5758 = vst [vmem:[%s3 + $0x70] sm:$0xf] %v5630
  %5759 = vst [vmem:[%s3 + $0x74] sm:$0xf] %v5631
  %5760 = vst [vmem:[%s3 + $0x78] sm:$0xf] %v5632
  %5761 = vst [vmem:[%s3 + $0x7c] sm:$0xf] %v5633
  %5762 = vst [vmem:[%s3 + $0x80] sm:$0xf] %v5634
  %5763 = vst [vmem:[%s3 + $0x84] sm:$0xf] %v5635
  %5764 = vst [vmem:[%s3 + $0x88] sm:$0xf] %v5636
  %5765 = vst [vmem:[%s3 + $0x8c] sm:$0xf] %v5637
  %5766 = vst [vmem:[%s3 + $0x90] sm:$0xf] %v5638
  %5767 = vst [vmem:[%s3 + $0x94] sm:$0xf] %v5639
  %5768 = vst [vmem:[%s3 + $0x98] sm:$0xf] %v5640
  %5769 = vst [vmem:[%s3 + $0x9c] sm:$0xf] %v5641
  %5770 = vst [vmem:[%s3 + $0xa0] sm:$0xf] %v5642
  %5771 = vst [vmem:[%s3 + $0xa4] sm:$0xf] %v5643
  %5772 = vst [vmem:[%s3 + $0xa8] sm:$0xf] %v5644
  %5773 = vst [vmem:[%s3 + $0xac] sm:$0xf] %v5645
  %5774 = vst [vmem:[%s3 + $0xb0] sm:$0xf] %v5646
  %5775 = vst [vmem:[%s3 + $0xb4] sm:$0xf] %v5647
  %5776 = vst [vmem:[%s3 + $0xb8] sm:$0xf] %v5648
  %5777 = vst [vmem:[%s3 + $0xbc] sm:$0xf] %v5649
  %5778 = vst [vmem:[%s3 + $0xc0] sm:$0xf] %v5650
  %5779 = vst [vmem:[%s3 + $0xc4] sm:$0xf] %v5651
  %5780 = vst [vmem:[%s3 + $0xc8] sm:$0xf] %v5652
  %5781 = vst [vmem:[%s3 + $0xcc] sm:$0xf] %v5653
  %5782 = vst [vmem:[%s3 + $0xd0] sm:$0xf] %v5654
  %5783 = vst [vmem:[%s3 + $0xd4] sm:$0xf] %v5655
  %5784 = vst [vmem:[%s3 + $0xd8] sm:$0xf] %v5656
  %5785 = vst [vmem:[%s3 + $0xdc] sm:$0xf] %v5657
  %5786 = vst [vmem:[%s3 + $0xe0] sm:$0xf] %v5658
  %5787 = vst [vmem:[%s3 + $0xe4] sm:$0xf] %v5659
  %5788 = vst [vmem:[%s3 + $0xe8] sm:$0xf] %v5660
  %5789 = vst [vmem:[%s3 + $0xec] sm:$0xf] %v5661
  %5790 = vst [vmem:[%s3 + $0xf0] sm:$0xf] %v5662
  %5791 = vst [vmem:[%s3 + $0xf4] sm:$0xf] %v5663
  %5792 = vst [vmem:[%s3 + $0xf8] sm:$0xf] %v5664
  %5793 = vst [vmem:[%s3 + $0xfc] sm:$0xf] %v5665
  // Predicated region
  $region14: #{reduction_block_a.3} parent=0 // pred_check
    _
  $region15: #{reduction_block_a.3} parent=0 // pred_check_branch
    %5795 = sbr.rel (0) target = $region17
  $region16: #{reduction_block_a.3} parent=0 // pred_region
    _
  $region17: #{reduction_block_a.3} parent=0 // pred_fallthru
    _
  // Predicated region
  $region18: #{reduction_block_a.3} parent=0 // pred_check
    _
  $region19: #{reduction_block_a.3} parent=0 // pred_check_branch
    %5797 = sbr.rel (0) target = $region21
  $region20: #{reduction_block_a.3} parent=0 // pred_region
    _
  $region21: #{reduction_block_a.3} parent=0 // pred_fallthru
    _

</llo_original>
